<compile_context>
chip_gen: v7x
topology: tpu7x:2x2x1
jax: 0.10.0
libtpu: 0.0.40
codegen_flags: <defaults>
</compile_context>

<pallas_src>
import math

import jax
import jax.numpy as jnp
from jax.experimental import pallas as pl
from jax.experimental.pallas import tpu as pltpu


# ------------------------------ Pallas kernel -------------------------------

def _fused_net_kernel(cols1_ref, w1_ref, b1_ref, w2_ref, b2_ref,
                      w3_hbm, b3_ref, wd_hbm, bd_ref, out_ref,
                      w3_vmem, wd_vmem, dma_sem):
    n = out_ref.shape[0]
    f32, bf16 = jnp.float32, jnp.bfloat16

    # Stream the late-use weights so their HBM->VMEM DMA hides behind the
    # conv1/conv2 work instead of extending the serial prologue.
    w3_copy = pltpu.make_async_copy(w3_hbm, w3_vmem, dma_sem.at[0])
    wd_copy = pltpu.make_async_copy(wd_hbm, wd_vmem, dma_sem.at[1])
    w3_copy.start()
    wd_copy.start()

    # ---- conv1: single (2n*64, 384) x (384, 128) matmul.  Rows are ordered
    # (b_phase, img, p, q); the 128 output lanes hold the two row phases
    # a=0 / a=1 side by side (block-diagonal W1), i.e.
    #   xc[b][img, p, q, a*64 + c] == relu(conv1)[img, 2p + a, 2q + b, c]
    y1 = jnp.dot(cols1_ref[...], w1_ref[...], preferred_element_type=f32)
    y1 = jnp.maximum(y1 + b1_ref[...], 0.0).astype(bf16)
    xc = [y1[b * n * 64:(b + 1) * n * 64].reshape(n, 8, 8, 128) for b in range(2)]

    # ---- conv2 (k=6, s=2): in-kernel im2col (18 lane-aligned 128-wide pieces)
    # -> ONE (n*36, 2304) x (2304, 128) matmul.
    pieces2 = []
    for i2 in range(3):                       # tap row i = 2*i2 + a (a in lanes)
        for j in range(6):
            pieces2.append(xc[j % 2][:, i2:i2 + 6, j // 2:j // 2 + 6, :])
    cols2 = jnp.concatenate(pieces2, axis=-1).reshape(n * 36, 18 * 128)
    y2 = jnp.dot(cols2, w2_ref[...], preferred_element_type=f32)
    x2 = jnp.maximum(y2 + b2_ref[...], 0.0).astype(bf16).reshape(n, 6, 6, 128)

    # ---- conv3 (k=5, s=1): im2col -> ONE (n*4, 3200) x (3200, 128) matmul.
    pieces3 = []
    for i in range(5):
        for j in range(5):
            pieces3.append(x2[:, i:i + 2, j:j + 2, :])
    cols3 = jnp.concatenate(pieces3, axis=-1).reshape(n * 4, 25 * 128)
    w3_copy.wait()                             # w3 streamed behind conv1+conv2
    y3 = jnp.dot(cols3, w3_vmem[...], preferred_element_type=f32)
    z3 = jnp.maximum(y3 + b3_ref[...], 0.0).astype(bf16).reshape(n, 4, 128)

    # ---- dense (512 -> 18, padded to 128 lanes) + ReLU + masked softmax.
    # Flatten order after permute(0,2,3,1) is (h, w, c) == pixel k = h*2 + w.
    flat = jnp.concatenate([z3[:, k, :] for k in range(4)], axis=-1)   # (n, 512)
    wd_copy.wait()
    logits = jnp.dot(flat, wd_vmem[...], preferred_element_type=f32) + bd_ref[...]
    logits = jnp.maximum(logits, 0.0)
    lane = jax.lax.broadcasted_iota(jnp.int32, (n, 128), 1)
    logits = jnp.where(lane < 18, logits, -1e30)          # mask pad lanes
    m = jnp.max(logits, axis=-1, keepdims=True)
    e = jnp.exp(logits - m)
    out_ref[...] = e / jnp.sum(e, axis=-1, keepdims=True)


def _full_spec(shape):
    return pl.BlockSpec(shape, lambda *_: (0,) * len(shape))


def fused_forward(cols1, p, n):
    args = (cols1, p["w1"], p["b1"], p["w2"], p["b2"],
            p["w3"], p["b3"], p["wd"], p["bd"])
    in_specs = [
        _full_spec(cols1.shape),
        _full_spec(p["w1"].shape), _full_spec(p["b1"].shape),
        _full_spec(p["w2"].shape), _full_spec(p["b2"].shape),
        pl.BlockSpec(memory_space=pl.ANY),       # w3: manual DMA inside kernel
        _full_spec(p["b3"].shape),
        pl.BlockSpec(memory_space=pl.ANY),       # wd: manual DMA inside kernel
        _full_spec(p["bd"].shape),
    ]
    # NOTE: at larger batch a leading "parallel" grid axis over batch would let
    # v7x's second TensorCore help; at n=2 the single-program form is best.
    return pl.pallas_call(
        _fused_net_kernel,
        out_shape=jax.ShapeDtypeStruct((n, 128), jnp.float32),
        grid=(1,),
        in_specs=in_specs,
        out_specs=_full_spec((n, 128)),
        scratch_shapes=[
            pltpu.VMEM((3200, 128), jnp.bfloat16),   # w3 landing buffer
            pltpu.VMEM((512, 128), jnp.bfloat16),    # wd landing buffer
            pltpu.SemaphoreType.DMA((2,)),
        ],
        compiler_params=pltpu.CompilerParams(
            dimension_semantics=("arbitrary",)),
    )(*args)


# ------------------------------- Glue (JAX) ---------------------------------

def build_cols1(xp, n):
    """conv1 im2col, lane-192 throughout (no tiny trailing dims).
    Rows ordered (b_phase, img, p, q) with b = wo%2, (p, q) = (ho//2, wo//2);
    features ordered (a_phase, ki, kj, cin) with a = ho%2, matching W1d."""
    taps = []
    for ki in range(8):
        for kj in range(8):
            taps.append(xp[:, ki:ki + 31:2, kj:kj + 31:2, :])   # (n,16,16,3)
    pat = jnp.concatenate(taps, axis=-1)                        # (n,16,16,192)
    pat = pat.reshape(n, 8, 2, 8, 2, 192)                       # (n,p,a,q,b,f)
    pat = jnp.transpose(pat, (4, 0, 1, 3, 2, 5))                # (b,n,p,q,a,f)
    return pat.reshape(2 * n * 64, 2 * 192)                     # (2n*64, 384)


def init_params(key):
    """Deterministic init matching PyTorch default (uniform +/-1/sqrt(fan_in)),
    stored in PyTorch layouts."""
    def conv_init(k, cout, cin, ksz):
        k1, k2 = jax.random.split(k)
        bound = 1.0 / math.sqrt(cin * ksz * ksz)
        w = jax.random.uniform(k1, (cout, cin, ksz, ksz), jnp.float32, -bound, bound)
        b = jax.random.uniform(k2, (cout,), jnp.float32, -bound, bound)
        return w, b

    keys = jax.random.split(key, 4)
    params = {
        "conv1": conv_init(keys[0], 64, 3, 8),
        "conv2": conv_init(keys[1], 128, 64, 6),
        "conv3": conv_init(keys[2], 128, 128, 5),
    }
    k1, k2 = jax.random.split(keys[3])
    bound = 1.0 / math.sqrt(512)
    params["dense"] = (
        jax.random.uniform(k1, (18, 512), jnp.float32, -bound, bound),  # (out, in)
        jax.random.uniform(k2, (18,), jnp.float32, -bound, bound),
    )
    return params


def prepare_params(params):
    """One-time weight re-layout + bf16 cast (done at init, not per forward)."""
    w1, b1 = params["conv1"]
    w2, b2 = params["conv2"]
    w3, b3 = params["conv3"]
    wd, bd = params["dense"]

    # conv1: OIHW (64,3,8,8) -> (ki,kj,cin,cout) -> (192,64); block-diagonally
    # duplicated so ONE matmul emits both stride-2 row phases in 128 lanes
    # (a=0 -> lanes 0..63, a=1 -> lanes 64..127).
    W1 = jnp.transpose(w1, (2, 3, 1, 0)).reshape(192, 64)
    Z = jnp.zeros_like(W1)
    W1d = jnp.concatenate(
        [jnp.concatenate([W1, Z], axis=1), jnp.concatenate([Z, W1], axis=1)],
        axis=0).astype(jnp.bfloat16)                                   # (384,128)
    B1d = jnp.concatenate([b1, b1]).reshape(1, 128).astype(jnp.float32)

    # conv2: OIHW (128,64,6,6) -> K ordered (i2, j, a, cin) with kh = 2*i2 + a,
    # matching the kernel's 18 lane-aligned 128-wide im2col pieces.
    W2 = jnp.transpose(w2, (2, 3, 1, 0))           # (kh, kw, cin, cout)
    W2 = W2.reshape(3, 2, 6, 64, 128)              # (i2, a, kw, cin, cout)
    W2 = jnp.transpose(W2, (0, 2, 1, 3, 4))        # (i2, kw, a, cin, cout)
    W2 = W2.reshape(2304, 128).astype(jnp.bfloat16)

    # conv3: OIHW (128,128,5,5) -> (kh,kw,cin,cout) -> (3200,128), tap-major K.
    W3 = jnp.transpose(w3, (2, 3, 1, 0)).reshape(3200, 128).astype(jnp.bfloat16)

    # dense: (18,512) -> (512,18) padded to 128 lane-dense output columns.
    Wd = jnp.pad(jnp.transpose(wd, (1, 0)), ((0, 0), (0, 110))).astype(jnp.bfloat16)
    Bd = jnp.pad(bd, (0, 110)).reshape(1, 128).astype(jnp.float32)

    return {
        "w1": W1d, "b1": B1d,
        "w2": W2, "b2": b2.reshape(1, 128).astype(jnp.float32),
        "w3": W3, "b3": b3.reshape(1, 128).astype(jnp.float32),
        "wd": Wd, "bd": Bd,
    }


@jax.jit
def net_forward(x_nchw, prep):
    n, c, h, w = x_nchw.shape
    assert (c, h, w) == (3, 32, 32)                 # dense expects 2*2*128 = 512
    x = jnp.transpose(x_nchw, (0, 2, 3, 1)).astype(jnp.bfloat16)   # NCHW -> NHWC
    xp = jnp.pad(x, ((0, 0), (3, 3), (3, 3), (0, 0)))
    cols1 = build_cols1(xp, n)                      # (2n*64, 384) bf16
    out = fused_forward(cols1, prep, n)             # (n, 128), padded probs
    return out[:, :18]


def reference_forward(x_nchw, params):
    """Pure-JAX reference matching the PyTorch module exactly."""
    def conv(x, w_pt, b, stride, pad):
        w = jnp.transpose(w_pt, (2, 3, 1, 0))       # OIHW -> HWIO
        y = jax.lax.conv_general_dilated(
            x, w, window_strides=(stride, stride),
            padding=((pad, pad), (pad, pad)),
            dimension_numbers=("NHWC", "HWIO", "NHWC"))
        return jnp.maximum(y + b, 0.0)

    x = jnp.transpose(x_nchw, (0, 2, 3, 1))
    w1, b1 = params["conv1"]; w2, b2 = params["conv2"]
    w3, b3 = params["conv3"]; wd, bd = params["dense"]
    x = conv(x, w1, b1, 2, 3)                       # (N,16,16,64)
    x = conv(x, w2, b2, 2, 0)                       # (N,6,6,128)
    x = conv(x, w3, b3, 1, 0)                       # (N,2,2,128)
    flat = x.reshape(x.shape[0], -1)                # == permute(0,2,3,1)+flatten
    z = jnp.maximum(flat @ wd.T + bd, 0.0)
    return jax.nn.softmax(z, axis=-1)


if __name__ == "__main__":
    key = jax.random.PRNGKey(0)
    pkey, xkey = jax.random.split(key)
    params = init_params(pkey)
    prep = prepare_params(params)
    x = jax.random.normal(xkey, (2, 3, 32, 32), jnp.float32)

    out = net_forward(x, prep)
    out = jax.block_until_ready(out)

    assert out.shape == (2, 18), out.shape
    assert bool(jnp.all(jnp.isfinite(out)))
    row_sums = jnp.sum(out, axis=-1)
    assert bool(jnp.all(jnp.abs(row_sums - 1.0) < 1e-4))

    ref = reference_forward(x, params)
    max_err = float(jnp.max(jnp.abs(out - ref)))
    assert max_err < 3e-2, max_err                  # bf16 matmul inputs, f32 acc

    print("KERNEL_OK")
</pallas_src>

<mosaic_0001>
module attributes {stable_mosaic.version = 11 : i64} {
  func.func @_fused_net_kernel(%arg0: i32, %arg1: memref<256x384xbf16, #tpu.memory_space<vmem>>, %arg2: memref<384x128xbf16, #tpu.memory_space<vmem>>, %arg3: memref<1x128xf32, #tpu.memory_space<vmem>>, %arg4: memref<2304x128xbf16, #tpu.memory_space<vmem>>, %arg5: memref<1x128xf32, #tpu.memory_space<vmem>>, %arg6: memref<3200x128xbf16, #tpu.memory_space<any>>, %arg7: memref<1x128xf32, #tpu.memory_space<vmem>>, %arg8: memref<512x128xbf16, #tpu.memory_space<any>>, %arg9: memref<1x128xf32, #tpu.memory_space<vmem>>, %arg10: memref<2x128xf32, #tpu.memory_space<vmem>>, %arg11: memref<3200x128xbf16, #tpu.memory_space<vmem>>, %arg12: memref<512x128xbf16, #tpu.memory_space<vmem>>, %arg13: memref<2x!tpu.dma_semaphore, #tpu.memory_space<semaphore_mem>>) attributes {dimension_semantics = [#tpu.dimension_semantics<arbitrary>], iteration_bounds = array<i64: 1>, scalar_prefetch = 0 : i64, scratch_operands = 3 : i64, tpu.core_type = #tpu.core_type<tc>, window_params = [{pipeline_mode = #tpu.pipeline_mode<synchronous>, transform_indices = @transform_0, window_bounds = array<i64: 256, 384>}, {pipeline_mode = #tpu.pipeline_mode<synchronous>, transform_indices = @transform_1, window_bounds = array<i64: 384, 128>}, {pipeline_mode = #tpu.pipeline_mode<synchronous>, transform_indices = @transform_2, window_bounds = array<i64: 1, 128>}, {pipeline_mode = #tpu.pipeline_mode<synchronous>, transform_indices = @transform_3, window_bounds = array<i64: 2304, 128>}, {pipeline_mode = #tpu.pipeline_mode<synchronous>, transform_indices = @transform_4, window_bounds = array<i64: 1, 128>}, {}, {pipeline_mode = #tpu.pipeline_mode<synchronous>, transform_indices = @transform_6, window_bounds = array<i64: 1, 128>}, {}, {pipeline_mode = #tpu.pipeline_mode<synchronous>, transform_indices = @transform_8, window_bounds = array<i64: 1, 128>}, {pipeline_mode = #tpu.pipeline_mode<synchronous>, transform_indices = @transform_9, window_bounds = array<i64: 2, 128>}]} {
    %c0_i32 = arith.constant 0 : i32
    %0 = tpu.memref_slice %arg13[%c0_i32] : memref<2x!tpu.dma_semaphore, #tpu.memory_space<semaphore_mem>> -> memref<1x!tpu.dma_semaphore, #tpu.memory_space<semaphore_mem>>
    %1 = tpu.memref_squeeze %0 : memref<1x!tpu.dma_semaphore, #tpu.memory_space<semaphore_mem>> -> memref<!tpu.dma_semaphore, #tpu.memory_space<semaphore_mem>>
    tpu.enqueue_dma source(%arg6 : memref<3200x128xbf16, #tpu.memory_space<any>>) target(%arg11 : memref<3200x128xbf16, #tpu.memory_space<vmem>>) target_semaphore(%1 : memref<!tpu.dma_semaphore, #tpu.memory_space<semaphore_mem>>)
    %c1_i32 = arith.constant 1 : i32
    %2 = tpu.memref_slice %arg13[%c1_i32] : memref<2x!tpu.dma_semaphore, #tpu.memory_space<semaphore_mem>> -> memref<1x!tpu.dma_semaphore, #tpu.memory_space<semaphore_mem>>
    %3 = tpu.memref_squeeze %2 : memref<1x!tpu.dma_semaphore, #tpu.memory_space<semaphore_mem>> -> memref<!tpu.dma_semaphore, #tpu.memory_space<semaphore_mem>>
    tpu.enqueue_dma source(%arg8 : memref<512x128xbf16, #tpu.memory_space<any>>) target(%arg12 : memref<512x128xbf16, #tpu.memory_space<vmem>>) target_semaphore(%3 : memref<!tpu.dma_semaphore, #tpu.memory_space<semaphore_mem>>)
    %c0 = arith.constant 0 : index
    %c0_0 = arith.constant 0 : index
    %4 = vector.load %arg1[%c0, %c0_0] : memref<256x384xbf16, #tpu.memory_space<vmem>>, vector<256x384xbf16>
    %c0_1 = arith.constant 0 : index
    %c0_2 = arith.constant 0 : index
    %5 = vector.load %arg2[%c0_1, %c0_2] : memref<384x128xbf16, #tpu.memory_space<vmem>>, vector<384x128xbf16>
    %cst = arith.constant dense<0.000000e+00> : vector<256x128xf32>
    %6 = tpu.matmul %4, %5, %cst {dimension_numbers = #tpu.dot_dimension_numbers<[1], [0], [0], [1], [0, 0, 1, 1], [], []>} : vector<256x384xbf16>, vector<384x128xbf16>, vector<256x128xf32> -> vector<256x128xf32>
    %c0_3 = arith.constant 0 : index
    %c0_4 = arith.constant 0 : index
    %7 = vector.load %arg3[%c0_3, %c0_4] : memref<1x128xf32, #tpu.memory_space<vmem>>, vector<1x128xf32>
    %8 = vector.broadcast %7 : vector<1x128xf32> to vector<256x128xf32>
    %9 = arith.addf %6, %8 : vector<256x128xf32>
    %cst_5 = arith.constant 0.000000e+00 : f32
    %10 = vector.broadcast %cst_5 : f32 to vector<256x128xf32>
    %11 = arith.maximumf %9, %10 : vector<256x128xf32>
    %12 = arith.truncf %11 : vector<256x128xf32> to vector<256x128xbf16>
    %13 = vector.extract_strided_slice %12 {offsets = [0, 0], sizes = [128, 128], strides = [1, 1]} : vector<256x128xbf16> to vector<128x128xbf16>
    %14 = vector.shape_cast %13 : vector<128x128xbf16> to vector<2x8x8x128xbf16>
    %15 = vector.extract_strided_slice %12 {offsets = [128, 0], sizes = [128, 128], strides = [1, 1]} : vector<256x128xbf16> to vector<128x128xbf16>
    %16 = vector.shape_cast %15 : vector<128x128xbf16> to vector<2x8x8x128xbf16>
    %17 = vector.extract_strided_slice %14 {offsets = [0, 0, 0, 0], sizes = [2, 6, 6, 128], strides = [1, 1, 1, 1]} : vector<2x8x8x128xbf16> to vector<2x6x6x128xbf16>
    %18 = vector.extract_strided_slice %16 {offsets = [0, 0, 0, 0], sizes = [2, 6, 6, 128], strides = [1, 1, 1, 1]} : vector<2x8x8x128xbf16> to vector<2x6x6x128xbf16>
    %19 = vector.extract_strided_slice %14 {offsets = [0, 0, 1, 0], sizes = [2, 6, 6, 128], strides = [1, 1, 1, 1]} : vector<2x8x8x128xbf16> to vector<2x6x6x128xbf16>
    %20 = vector.extract_strided_slice %16 {offsets = [0, 0, 1, 0], sizes = [2, 6, 6, 128], strides = [1, 1, 1, 1]} : vector<2x8x8x128xbf16> to vector<2x6x6x128xbf16>
    %21 = vector.extract_strided_slice %14 {offsets = [0, 0, 2, 0], sizes = [2, 6, 6, 128], strides = [1, 1, 1, 1]} : vector<2x8x8x128xbf16> to vector<2x6x6x128xbf16>
    %22 = vector.extract_strided_slice %16 {offsets = [0, 0, 2, 0], sizes = [2, 6, 6, 128], strides = [1, 1, 1, 1]} : vector<2x8x8x128xbf16> to vector<2x6x6x128xbf16>
    %23 = vector.extract_strided_slice %14 {offsets = [0, 1, 0, 0], sizes = [2, 6, 6, 128], strides = [1, 1, 1, 1]} : vector<2x8x8x128xbf16> to vector<2x6x6x128xbf16>
    %24 = vector.extract_strided_slice %16 {offsets = [0, 1, 0, 0], sizes = [2, 6, 6, 128], strides = [1, 1, 1, 1]} : vector<2x8x8x128xbf16> to vector<2x6x6x128xbf16>
    %25 = vector.extract_strided_slice %14 {offsets = [0, 1, 1, 0], sizes = [2, 6, 6, 128], strides = [1, 1, 1, 1]} : vector<2x8x8x128xbf16> to vector<2x6x6x128xbf16>
    %26 = vector.extract_strided_slice %16 {offsets = [0, 1, 1, 0], sizes = [2, 6, 6, 128], strides = [1, 1, 1, 1]} : vector<2x8x8x128xbf16> to vector<2x6x6x128xbf16>
    %27 = vector.extract_strided_slice %14 {offsets = [0, 1, 2, 0], sizes = [2, 6, 6, 128], strides = [1, 1, 1, 1]} : vector<2x8x8x128xbf16> to vector<2x6x6x128xbf16>
    %28 = vector.extract_strided_slice %16 {offsets = [0, 1, 2, 0], sizes = [2, 6, 6, 128], strides = [1, 1, 1, 1]} : vector<2x8x8x128xbf16> to vector<2x6x6x128xbf16>
    %29 = vector.extract_strided_slice %14 {offsets = [0, 2, 0, 0], sizes = [2, 6, 6, 128], strides = [1, 1, 1, 1]} : vector<2x8x8x128xbf16> to vector<2x6x6x128xbf16>
    %30 = vector.extract_strided_slice %16 {offsets = [0, 2, 0, 0], sizes = [2, 6, 6, 128], strides = [1, 1, 1, 1]} : vector<2x8x8x128xbf16> to vector<2x6x6x128xbf16>
    %31 = vector.extract_strided_slice %14 {offsets = [0, 2, 1, 0], sizes = [2, 6, 6, 128], strides = [1, 1, 1, 1]} : vector<2x8x8x128xbf16> to vector<2x6x6x128xbf16>
    %32 = vector.extract_strided_slice %16 {offsets = [0, 2, 1, 0], sizes = [2, 6, 6, 128], strides = [1, 1, 1, 1]} : vector<2x8x8x128xbf16> to vector<2x6x6x128xbf16>
    %33 = vector.extract_strided_slice %14 {offsets = [0, 2, 2, 0], sizes = [2, 6, 6, 128], strides = [1, 1, 1, 1]} : vector<2x8x8x128xbf16> to vector<2x6x6x128xbf16>
    %34 = vector.extract_strided_slice %16 {offsets = [0, 2, 2, 0], sizes = [2, 6, 6, 128], strides = [1, 1, 1, 1]} : vector<2x8x8x128xbf16> to vector<2x6x6x128xbf16>
    %35 = tpu.concatenate %17, %18, %19, %20, %21, %22, %23, %24, %25, %26, %27, %28, %29, %30, %31, %32 in 3 : vector<2x6x6x128xbf16>, vector<2x6x6x128xbf16>, vector<2x6x6x128xbf16>, vector<2x6x6x128xbf16>, vector<2x6x6x128xbf16>, vector<2x6x6x128xbf16>, vector<2x6x6x128xbf16>, vector<2x6x6x128xbf16>, vector<2x6x6x128xbf16>, vector<2x6x6x128xbf16>, vector<2x6x6x128xbf16>, vector<2x6x6x128xbf16>, vector<2x6x6x128xbf16>, vector<2x6x6x128xbf16>, vector<2x6x6x128xbf16>, vector<2x6x6x128xbf16> -> vector<2x6x6x2048xbf16>
    %36 = tpu.concatenate %33, %34 in 3 : vector<2x6x6x128xbf16>, vector<2x6x6x128xbf16> -> vector<2x6x6x256xbf16>
    %37 = tpu.concatenate %35, %36 in 3 : vector<2x6x6x2048xbf16>, vector<2x6x6x256xbf16> -> vector<2x6x6x2304xbf16>
    %38 = vector.shape_cast %37 : vector<2x6x6x2304xbf16> to vector<72x2304xbf16>
    %c0_6 = arith.constant 0 : index
    %c0_7 = arith.constant 0 : index
    %39 = vector.load %arg4[%c0_6, %c0_7] : memref<2304x128xbf16, #tpu.memory_space<vmem>>, vector<2304x128xbf16>
    %cst_8 = arith.constant dense<0.000000e+00> : vector<72x128xf32>
    %40 = tpu.matmul %38, %39, %cst_8 {dimension_numbers = #tpu.dot_dimension_numbers<[1], [0], [0], [1], [0, 0, 1, 1], [], []>} : vector<72x2304xbf16>, vector<2304x128xbf16>, vector<72x128xf32> -> vector<72x128xf32>
    %c0_9 = arith.constant 0 : index
    %c0_10 = arith.constant 0 : index
    %41 = vector.load %arg5[%c0_9, %c0_10] : memref<1x128xf32, #tpu.memory_space<vmem>>, vector<1x128xf32>
    %42 = vector.broadcast %41 : vector<1x128xf32> to vector<72x128xf32>
    %43 = arith.addf %40, %42 : vector<72x128xf32>
    %cst_11 = arith.constant 0.000000e+00 : f32
    %44 = vector.broadcast %cst_11 : f32 to vector<72x128xf32>
    %45 = arith.maximumf %43, %44 : vector<72x128xf32>
    %46 = arith.truncf %45 : vector<72x128xf32> to vector<72x128xbf16>
    %47 = vector.shape_cast %46 : vector<72x128xbf16> to vector<2x6x6x128xbf16>
    %48 = vector.extract_strided_slice %47 {offsets = [0, 0, 0, 0], sizes = [2, 2, 2, 128], strides = [1, 1, 1, 1]} : vector<2x6x6x128xbf16> to vector<2x2x2x128xbf16>
    %49 = vector.extract_strided_slice %47 {offsets = [0, 0, 1, 0], sizes = [2, 2, 2, 128], strides = [1, 1, 1, 1]} : vector<2x6x6x128xbf16> to vector<2x2x2x128xbf16>
    %50 = vector.extract_strided_slice %47 {offsets = [0, 0, 2, 0], sizes = [2, 2, 2, 128], strides = [1, 1, 1, 1]} : vector<2x6x6x128xbf16> to vector<2x2x2x128xbf16>
    %51 = vector.extract_strided_slice %47 {offsets = [0, 0, 3, 0], sizes = [2, 2, 2, 128], strides = [1, 1, 1, 1]} : vector<2x6x6x128xbf16> to vector<2x2x2x128xbf16>
    %52 = vector.extract_strided_slice %47 {offsets = [0, 0, 4, 0], sizes = [2, 2, 2, 128], strides = [1, 1, 1, 1]} : vector<2x6x6x128xbf16> to vector<2x2x2x128xbf16>
    %53 = vector.extract_strided_slice %47 {offsets = [0, 1, 0, 0], sizes = [2, 2, 2, 128], strides = [1, 1, 1, 1]} : vector<2x6x6x128xbf16> to vector<2x2x2x128xbf16>
    %54 = vector.extract_strided_slice %47 {offsets = [0, 1, 1, 0], sizes = [2, 2, 2, 128], strides = [1, 1, 1, 1]} : vector<2x6x6x128xbf16> to vector<2x2x2x128xbf16>
    %55 = vector.extract_strided_slice %47 {offsets = [0, 1, 2, 0], sizes = [2, 2, 2, 128], strides = [1, 1, 1, 1]} : vector<2x6x6x128xbf16> to vector<2x2x2x128xbf16>
    %56 = vector.extract_strided_slice %47 {offsets = [0, 1, 3, 0], sizes = [2, 2, 2, 128], strides = [1, 1, 1, 1]} : vector<2x6x6x128xbf16> to vector<2x2x2x128xbf16>
    %57 = vector.extract_strided_slice %47 {offsets = [0, 1, 4, 0], sizes = [2, 2, 2, 128], strides = [1, 1, 1, 1]} : vector<2x6x6x128xbf16> to vector<2x2x2x128xbf16>
    %58 = vector.extract_strided_slice %47 {offsets = [0, 2, 0, 0], sizes = [2, 2, 2, 128], strides = [1, 1, 1, 1]} : vector<2x6x6x128xbf16> to vector<2x2x2x128xbf16>
    %59 = vector.extract_strided_slice %47 {offsets = [0, 2, 1, 0], sizes = [2, 2, 2, 128], strides = [1, 1, 1, 1]} : vector<2x6x6x128xbf16> to vector<2x2x2x128xbf16>
    %60 = vector.extract_strided_slice %47 {offsets = [0, 2, 2, 0], sizes = [2, 2, 2, 128], strides = [1, 1, 1, 1]} : vector<2x6x6x128xbf16> to vector<2x2x2x128xbf16>
    %61 = vector.extract_strided_slice %47 {offsets = [0, 2, 3, 0], sizes = [2, 2, 2, 128], strides = [1, 1, 1, 1]} : vector<2x6x6x128xbf16> to vector<2x2x2x128xbf16>
    %62 = vector.extract_strided_slice %47 {offsets = [0, 2, 4, 0], sizes = [2, 2, 2, 128], strides = [1, 1, 1, 1]} : vector<2x6x6x128xbf16> to vector<2x2x2x128xbf16>
    %63 = vector.extract_strided_slice %47 {offsets = [0, 3, 0, 0], sizes = [2, 2, 2, 128], strides = [1, 1, 1, 1]} : vector<2x6x6x128xbf16> to vector<2x2x2x128xbf16>
    %64 = vector.extract_strided_slice %47 {offsets = [0, 3, 1, 0], sizes = [2, 2, 2, 128], strides = [1, 1, 1, 1]} : vector<2x6x6x128xbf16> to vector<2x2x2x128xbf16>
    %65 = vector.extract_strided_slice %47 {offsets = [0, 3, 2, 0], sizes = [2, 2, 2, 128], strides = [1, 1, 1, 1]} : vector<2x6x6x128xbf16> to vector<2x2x2x128xbf16>
    %66 = vector.extract_strided_slice %47 {offsets = [0, 3, 3, 0], sizes = [2, 2, 2, 128], strides = [1, 1, 1, 1]} : vector<2x6x6x128xbf16> to vector<2x2x2x128xbf16>
    %67 = vector.extract_strided_slice %47 {offsets = [0, 3, 4, 0], sizes = [2, 2, 2, 128], strides = [1, 1, 1, 1]} : vector<2x6x6x128xbf16> to vector<2x2x2x128xbf16>
    %68 = vector.extract_strided_slice %47 {offsets = [0, 4, 0, 0], sizes = [2, 2, 2, 128], strides = [1, 1, 1, 1]} : vector<2x6x6x128xbf16> to vector<2x2x2x128xbf16>
    %69 = vector.extract_strided_slice %47 {offsets = [0, 4, 1, 0], sizes = [2, 2, 2, 128], strides = [1, 1, 1, 1]} : vector<2x6x6x128xbf16> to vector<2x2x2x128xbf16>
    %70 = vector.extract_strided_slice %47 {offsets = [0, 4, 2, 0], sizes = [2, 2, 2, 128], strides = [1, 1, 1, 1]} : vector<2x6x6x128xbf16> to vector<2x2x2x128xbf16>
    %71 = vector.extract_strided_slice %47 {offsets = [0, 4, 3, 0], sizes = [2, 2, 2, 128], strides = [1, 1, 1, 1]} : vector<2x6x6x128xbf16> to vector<2x2x2x128xbf16>
    %72 = vector.extract_strided_slice %47 {offsets = [0, 4, 4, 0], sizes = [2, 2, 2, 128], strides = [1, 1, 1, 1]} : vector<2x6x6x128xbf16> to vector<2x2x2x128xbf16>
    %73 = tpu.concatenate %48, %49, %50, %51, %52, %53, %54, %55, %56, %57, %58, %59, %60, %61, %62, %63 in 3 : vector<2x2x2x128xbf16>, vector<2x2x2x128xbf16>, vector<2x2x2x128xbf16>, vector<2x2x2x128xbf16>, vector<2x2x2x128xbf16>, vector<2x2x2x128xbf16>, vector<2x2x2x128xbf16>, vector<2x2x2x128xbf16>, vector<2x2x2x128xbf16>, vector<2x2x2x128xbf16>, vector<2x2x2x128xbf16>, vector<2x2x2x128xbf16>, vector<2x2x2x128xbf16>, vector<2x2x2x128xbf16>, vector<2x2x2x128xbf16>, vector<2x2x2x128xbf16> -> vector<2x2x2x2048xbf16>
    %74 = tpu.concatenate %64, %65, %66, %67, %68, %69, %70, %71, %72 in 3 : vector<2x2x2x128xbf16>, vector<2x2x2x128xbf16>, vector<2x2x2x128xbf16>, vector<2x2x2x128xbf16>, vector<2x2x2x128xbf16>, vector<2x2x2x128xbf16>, vector<2x2x2x128xbf16>, vector<2x2x2x128xbf16>, vector<2x2x2x128xbf16> -> vector<2x2x2x1152xbf16>
    %75 = tpu.concatenate %73, %74 in 3 : vector<2x2x2x2048xbf16>, vector<2x2x2x1152xbf16> -> vector<2x2x2x3200xbf16>
    %76 = vector.shape_cast %75 : vector<2x2x2x3200xbf16> to vector<8x3200xbf16>
    %c0_i32_12 = arith.constant 0 : i32
    %77 = tpu.memref_slice %arg13[%c0_i32_12] : memref<2x!tpu.dma_semaphore, #tpu.memory_space<semaphore_mem>> -> memref<1x!tpu.dma_semaphore, #tpu.memory_space<semaphore_mem>>
    %78 = tpu.memref_squeeze %77 : memref<1x!tpu.dma_semaphore, #tpu.memory_space<semaphore_mem>> -> memref<!tpu.dma_semaphore, #tpu.memory_space<semaphore_mem>>
    tpu.wait_dma2 semaphore(%78 : memref<!tpu.dma_semaphore, #tpu.memory_space<semaphore_mem>>) src(%arg6 : memref<3200x128xbf16, #tpu.memory_space<any>>) dst(%arg11 : memref<3200x128xbf16, #tpu.memory_space<vmem>>)
    %c0_13 = arith.constant 0 : index
    %c0_14 = arith.constant 0 : index
    %79 = vector.load %arg11[%c0_13, %c0_14] : memref<3200x128xbf16, #tpu.memory_space<vmem>>, vector<3200x128xbf16>
    %cst_15 = arith.constant dense<0.000000e+00> : vector<8x128xf32>
    %80 = tpu.matmul %76, %79, %cst_15 {dimension_numbers = #tpu.dot_dimension_numbers<[1], [0], [0], [1], [0, 0, 1, 1], [], []>} : vector<8x3200xbf16>, vector<3200x128xbf16>, vector<8x128xf32> -> vector<8x128xf32>
    %c0_16 = arith.constant 0 : index
    %c0_17 = arith.constant 0 : index
    %81 = vector.load %arg7[%c0_16, %c0_17] : memref<1x128xf32, #tpu.memory_space<vmem>>, vector<1x128xf32>
    %82 = vector.broadcast %81 : vector<1x128xf32> to vector<8x128xf32>
    %83 = arith.addf %80, %82 : vector<8x128xf32>
    %cst_18 = arith.constant 0.000000e+00 : f32
    %84 = vector.broadcast %cst_18 : f32 to vector<8x128xf32>
    %85 = arith.maximumf %83, %84 : vector<8x128xf32>
    %86 = arith.truncf %85 : vector<8x128xf32> to vector<8x128xbf16>
    %87 = vector.shape_cast %86 : vector<8x128xbf16> to vector<2x4x128xbf16>
    %88 = vector.extract_strided_slice %87 {offsets = [0, 0, 0], sizes = [2, 1, 128], strides = [1, 1, 1]} : vector<2x4x128xbf16> to vector<2x1x128xbf16>
    %89 = vector.shape_cast %88 : vector<2x1x128xbf16> to vector<2x128xbf16>
    %90 = vector.extract_strided_slice %87 {offsets = [0, 1, 0], sizes = [2, 1, 128], strides = [1, 1, 1]} : vector<2x4x128xbf16> to vector<2x1x128xbf16>
    %91 = vector.shape_cast %90 : vector<2x1x128xbf16> to vector<2x128xbf16>
    %92 = vector.extract_strided_slice %87 {offsets = [0, 2, 0], sizes = [2, 1, 128], strides = [1, 1, 1]} : vector<2x4x128xbf16> to vector<2x1x128xbf16>
    %93 = vector.shape_cast %92 : vector<2x1x128xbf16> to vector<2x128xbf16>
    %94 = vector.extract_strided_slice %87 {offsets = [0, 3, 0], sizes = [2, 1, 128], strides = [1, 1, 1]} : vector<2x4x128xbf16> to vector<2x1x128xbf16>
    %95 = vector.shape_cast %94 : vector<2x1x128xbf16> to vector<2x128xbf16>
    %96 = tpu.concatenate %89, %91, %93, %95 in 1 : vector<2x128xbf16>, vector<2x128xbf16>, vector<2x128xbf16>, vector<2x128xbf16> -> vector<2x512xbf16>
    %c1_i32_19 = arith.constant 1 : i32
    %97 = tpu.memref_slice %arg13[%c1_i32_19] : memref<2x!tpu.dma_semaphore, #tpu.memory_space<semaphore_mem>> -> memref<1x!tpu.dma_semaphore, #tpu.memory_space<semaphore_mem>>
    %98 = tpu.memref_squeeze %97 : memref<1x!tpu.dma_semaphore, #tpu.memory_space<semaphore_mem>> -> memref<!tpu.dma_semaphore, #tpu.memory_space<semaphore_mem>>
    tpu.wait_dma2 semaphore(%98 : memref<!tpu.dma_semaphore, #tpu.memory_space<semaphore_mem>>) src(%arg8 : memref<512x128xbf16, #tpu.memory_space<any>>) dst(%arg12 : memref<512x128xbf16, #tpu.memory_space<vmem>>)
    %c0_20 = arith.constant 0 : index
    %c0_21 = arith.constant 0 : index
    %99 = vector.load %arg12[%c0_20, %c0_21] : memref<512x128xbf16, #tpu.memory_space<vmem>>, vector<512x128xbf16>
    %cst_22 = arith.constant dense<0.000000e+00> : vector<2x128xf32>
    %100 = tpu.matmul %96, %99, %cst_22 {dimension_numbers = #tpu.dot_dimension_numbers<[1], [0], [0], [1], [0, 0, 1, 1], [], []>} : vector<2x512xbf16>, vector<512x128xbf16>, vector<2x128xf32> -> vector<2x128xf32>
    %c0_23 = arith.constant 0 : index
    %c0_24 = arith.constant 0 : index
    %101 = vector.load %arg9[%c0_23, %c0_24] : memref<1x128xf32, #tpu.memory_space<vmem>>, vector<1x128xf32>
    %102 = vector.broadcast %101 : vector<1x128xf32> to vector<2x128xf32>
    %103 = arith.addf %100, %102 : vector<2x128xf32>
    %cst_25 = arith.constant 0.000000e+00 : f32
    %104 = vector.broadcast %cst_25 : f32 to vector<2x128xf32>
    %105 = arith.maximumf %103, %104 : vector<2x128xf32>
    %106 = tpu.iota {dimensions = array<i32: 1>} : vector<2x128xi32>
    %c18_i32 = arith.constant 18 : i32
    %107 = vector.broadcast %c18_i32 : i32 to vector<2x128xi32>
    %108 = arith.cmpi slt, %106, %107 : vector<2x128xi32>
    %cst_26 = arith.constant -1.000000e+30 : f32
    %109 = vector.broadcast %cst_26 : f32 to vector<2x128xf32>
    %110 = arith.select %108, %105, %109 : vector<2x128xi1>, vector<2x128xf32>
    %cst_27 = arith.constant dense<0xFF800000> : vector<2xf32>
    %111 = vector.multi_reduction <maximumf>, %110, %cst_27 [1] : vector<2x128xf32> to vector<2xf32>
    %112 = vector.shape_cast %111 : vector<2xf32> to vector<2x1xf32>
    %113 = vector.broadcast %112 : vector<2x1xf32> to vector<2x128xf32>
    %114 = arith.subf %110, %113 : vector<2x128xf32>
    %115 = math.exp %114 : vector<2x128xf32>
    %cst_28 = arith.constant dense<0.000000e+00> : vector<2xf32>
    %116 = vector.multi_reduction <add>, %115, %cst_28 [1] : vector<2x128xf32> to vector<2xf32>
    %117 = vector.shape_cast %116 : vector<2xf32> to vector<2x1xf32>
    %118 = vector.broadcast %117 : vector<2x1xf32> to vector<2x128xf32>
    %119 = arith.divf %115, %118 : vector<2x128xf32>
    %c0_29 = arith.constant 0 : index
    %c0_30 = arith.constant 0 : index
    %120 = vector.load %arg10[%c0_29, %c0_30] : memref<2x128xf32, #tpu.memory_space<vmem>>, vector<2x128xf32>
    tpu.vector_store %arg10[%c0_29, %c0_30], %119 {strides = array<i32>} : memref<2x128xf32, #tpu.memory_space<vmem>>, vector<2x128xf32>,
    return
  }
  func.func @transform_0(%arg0: i32) -> (i32, i32) {
    %c0_i32 = arith.constant 0 : i32
    %c0_i32_0 = arith.constant 0 : i32
    %c0_i32_1 = arith.constant 0 : i32
    return %c0_i32, %c0_i32_0 : i32, i32
  }
  func.func @transform_1(%arg0: i32) -> (i32, i32) {
    %c0_i32 = arith.constant 0 : i32
    %c0_i32_0 = arith.constant 0 : i32
    %c0_i32_1 = arith.constant 0 : i32
    return %c0_i32, %c0_i32_0 : i32, i32
  }
  func.func @transform_2(%arg0: i32) -> (i32, i32) {
    %c0_i32 = arith.constant 0 : i32
    %c0_i32_0 = arith.constant 0 : i32
    %c0_i32_1 = arith.constant 0 : i32
    return %c0_i32, %c0_i32_0 : i32, i32
  }
  func.func @transform_3(%arg0: i32) -> (i32, i32) {
    %c0_i32 = arith.constant 0 : i32
    %c0_i32_0 = arith.constant 0 : i32
    %c0_i32_1 = arith.constant 0 : i32
    return %c0_i32, %c0_i32_0 : i32, i32
  }
  func.func @transform_4(%arg0: i32) -> (i32, i32) {
    %c0_i32 = arith.constant 0 : i32
    %c0_i32_0 = arith.constant 0 : i32
    %c0_i32_1 = arith.constant 0 : i32
    return %c0_i32, %c0_i32_0 : i32, i32
  }
  func.func @transform_6(%arg0: i32) -> (i32, i32) {
    %c0_i32 = arith.constant 0 : i32
    %c0_i32_0 = arith.constant 0 : i32
    %c0_i32_1 = arith.constant 0 : i32
    return %c0_i32, %c0_i32_0 : i32, i32
  }
  func.func @transform_8(%arg0: i32) -> (i32, i32) {
    %c0_i32 = arith.constant 0 : i32
    %c0_i32_0 = arith.constant 0 : i32
    %c0_i32_1 = arith.constant 0 : i32
    return %c0_i32, %c0_i32_0 : i32, i32
  }
  func.func @transform_9(%arg0: i32) -> (i32, i32) {
    %c0_i32 = arith.constant 0 : i32
    %c0_i32_0 = arith.constant 0 : i32
    %c0_i32_1 = arith.constant 0 : i32
    return %c0_i32, %c0_i32_0 : i32, i32
  }
}

</mosaic_0001>

<llo_original>
// kernel: net_forward.1
$region0: #{net_forward.1}
  #allocation0 [shape = 'u32[]', space=smem, size = 0x4, offset = 0x4, fixed_abs, tag = 'smem constant byte address 0x4 - core index']
  #allocation1 [shape = 'u32[144,128]{1,0:T(1,128)}', space=vmem, size = 0x12000, scoped, tag = 'internal scratch']
  #allocation2 [shape = 'bf16[3200,128]{1,0:T(16,128)(2,1)}', space=vmem, size = 0xc8000, scoped, tag = 'scratch operand']
  #allocation3 [shape = 'bf16[512,128]{1,0:T(16,128)(2,1)}', space=vmem, size = 0x20000, scoped, tag = 'scratch operand']
  #allocation4 [shape = 's32[2]{0}', space=sflag, size = 0x8, scoped, tag = 'scratch operand']
  #allocation7 [shape = 's32[]', space=sflag, size = 0x4, offset = 0, fixed_abs, tag = 'sflag constant byte address 0x0 - dummy sync flag']
  #allocation8 [shape = 's32[]', space=sflag, size = 0x4, offset = 0, fixed_abs, tag = 'sflag constant byte address 0x0 - dummy sync flag']
  %s0 = inlined_call_operand.vmem [shape: bf16[256,384], index: 0, kind: input, shape index: {}]
  %s1 = inlined_call_operand.vmem [shape: bf16[384,128], index: 1, kind: input, shape index: {}]
  %s2 = inlined_call_operand.vmem [shape: f32[1,128], index: 2, kind: input, shape index: {}]
  %s3 = inlined_call_operand.vmem [shape: bf16[2304,128], index: 3, kind: input, shape index: {}]
  %s4 = inlined_call_operand.vmem [shape: f32[1,128], index: 4, kind: input, shape index: {}]
  %s5 = inlined_call_operand.vmem [shape: bf16[3200,128], index: 5, kind: input, shape index: {}]
  %s6 = inlined_call_operand.vmem [shape: f32[1,128], index: 6, kind: input, shape index: {}]
  %s7 = inlined_call_operand.vmem [shape: bf16[512,128], index: 7, kind: input, shape index: {}]
  %s8 = inlined_call_operand.vmem [shape: f32[1,128], index: 8, kind: input, shape index: {}]
  %s9 = inlined_call_operand.hbm [shape: f32[2,128], index: 9, kind: output, shape index: {}]
  %s10 = sld [smem:[#allocation0]]
  $region106: #{net_forward.1} parent=0
    _
  %s12 = ssub.s32 1, %s10
  %s13 = scalar_select 0, %s12, %s10
  $region1: #{net_forward.1} parent=0
    #allocation5 [shape = 'u8[1024]{0}', space=vmem, size = 0x400, scoped, tag = 'output window, operand 0, single buffered']
    #allocation6 [shape = 's32[1]{0}', space=sflag, size = 0x4, scoped, tag = 'scoped memory for net_forward.1']
    %14 = vsyncpa [#allocation6], 0
    // Predicated region
    $region2: #{net_forward.1} parent=1 // pred_check
      _
    $region3: #{net_forward.1} parent=1 // pred_check_branch
      %16 = sbr.rel (0) target = $region5
    $region4: #{net_forward.1} parent=1 // pred_region
      _
    $region5: #{net_forward.1} parent=1 // pred_fallthru
      _
    // Predicated region
    $region6: #{net_forward.1} parent=1 // pred_check
      _
    $region7: #{net_forward.1} parent=1 // pred_check_branch
      %18 = sbr.rel (0) target = $region9
    $region8: #{net_forward.1} parent=1 // pred_region
      _
    $region9: #{net_forward.1} parent=1 // pred_fallthru
      _
    // Predicated region
    $region10: #{net_forward.1} parent=1 // pred_check
      _
    $region11: #{net_forward.1} parent=1 // pred_check_branch
      %20 = sbr.rel (0) target = $region13
    $region12: #{net_forward.1} parent=1 // pred_region
      _
    $region13: #{net_forward.1} parent=1 // pred_fallthru
      _
    // Predicated region
    $region14: #{net_forward.1} parent=1 // pred_check
      _
    $region15: #{net_forward.1} parent=1 // pred_check_branch
      %22 = sbr.rel (0) target = $region17
    $region16: #{net_forward.1} parent=1 // pred_region
      _
    $region17: #{net_forward.1} parent=1 // pred_fallthru
      _
    // Predicated region
    $region18: #{net_forward.1} parent=1 // pred_check
      _
    $region19: #{net_forward.1} parent=1 // pred_check_branch
      %24 = sbr.rel (0) target = $region21
    $region20: #{net_forward.1} parent=1 // pred_region
      _
    $region21: #{net_forward.1} parent=1 // pred_fallthru
      _
    // Predicated region
    $region22: #{net_forward.1} parent=1 // pred_check
      _
    $region23: #{net_forward.1} parent=1 // pred_check_branch
      %26 = sbr.rel (0) target = $region25
    $region24: #{net_forward.1} parent=1 // pred_region
      _
    $region25: #{net_forward.1} parent=1 // pred_fallthru
      _
    // Predicated region
    $region26: #{net_forward.1} parent=1 // pred_check
      _
    $region27: #{net_forward.1} parent=1 // pred_check_branch
      %28 = sbr.rel (0) target = $region29
    $region28: #{net_forward.1} parent=1 // pred_region
      _
    $region29: #{net_forward.1} parent=1 // pred_fallthru
      _
    %p31 = scmp.lt.u32.totalorder 1600, 8
    %p32 = pneg %p31
    // Predicated region
    $region30: #{net_forward.1} parent=1 // pred_check
      _
    $region31: #{net_forward.1} parent=1 // pred_check_branch
      %34 = sbr.rel (%p31) target = $region33
    $region32: #{net_forward.1} parent=1 // pred_region
      %s49 = sand.u32 1600, 7
      %p50 = scmp.eq.s32.totalorder %s49, 0
      // Predicated region
      $region45: #{net_forward.1} parent=32 // pred_check
        %p51 = pneg %p50
      $region46: #{net_forward.1} parent=32 // pred_check_branch
        %53 = sbr.rel (%p51) target = $region48
      $region47: #{net_forward.1} parent=32 // pred_region
        loop: start=0, step=1, limit=1
        $region49: #{net_forward.1} parent=47 // loop_pre_header
          _
        $region50: #{net_forward.1} parent=47 // loop_header
          %s55 = sphi 0, %s59
          %p56 = scmp.ge.s32.totalorder %s55, 1
          %s60 = sphi %s5, %s5
          %s61 = sphi [#allocation2], [#allocation2]
        $region51: #{net_forward.1} parent=47 // loop_header_branch
          %58 = sbr.rel (%p56) target = $region55
        $region52: #{net_forward.1} parent=47 // loop_body
          %v62 = vld [vmem:[%s60] sm:$0xff]
          %63 = vst [vmem:[%s61] sm:$0xff] %v62
          %v64 = vld [vmem:[%s60 + $0x8] sm:$0xff]
          %65 = vst [vmem:[%s61 + $0x8] sm:$0xff] %v64
          %v66 = vld [vmem:[%s60 + $0x10] sm:$0xff]
          %67 = vst [vmem:[%s61 + $0x10] sm:$0xff] %v66
          %v68 = vld [vmem:[%s60 + $0x18] sm:$0xff]
          %69 = vst [vmem:[%s61 + $0x18] sm:$0xff] %v68
          %v70 = vld [vmem:[%s60 + $0x20] sm:$0xff]
          %71 = vst [vmem:[%s61 + $0x20] sm:$0xff] %v70
          %v72 = vld [vmem:[%s60 + $0x28] sm:$0xff]
          %73 = vst [vmem:[%s61 + $0x28] sm:$0xff] %v72
          %v74 = vld [vmem:[%s60 + $0x30] sm:$0xff]
          %75 = vst [vmem:[%s61 + $0x30] sm:$0xff] %v74
          %v76 = vld [vmem:[%s60 + $0x38] sm:$0xff]
          %77 = vst [vmem:[%s61 + $0x38] sm:$0xff] %v76
          %v78 = vld [vmem:[%s60 + $0x40] sm:$0xff]
          %79 = vst [vmem:[%s61 + $0x40] sm:$0xff] %v78
          %v80 = vld [vmem:[%s60 + $0x48] sm:$0xff]
          %81 = vst [vmem:[%s61 + $0x48] sm:$0xff] %v80
          %v82 = vld [vmem:[%s60 + $0x50] sm:$0xff]
          %83 = vst [vmem:[%s61 + $0x50] sm:$0xff] %v82
          %v84 = vld [vmem:[%s60 + $0x58] sm:$0xff]
          %85 = vst [vmem:[%s61 + $0x58] sm:$0xff] %v84
          %v86 = vld [vmem:[%s60 + $0x60] sm:$0xff]
          %87 = vst [vmem:[%s61 + $0x60] sm:$0xff] %v86
          %v88 = vld [vmem:[%s60 + $0x68] sm:$0xff]
          %89 = vst [vmem:[%s61 + $0x68] sm:$0xff] %v88
          %v90 = vld [vmem:[%s60 + $0x70] sm:$0xff]
          %91 = vst [vmem:[%s61 + $0x70] sm:$0xff] %v90
          %v92 = vld [vmem:[%s60 + $0x78] sm:$0xff]
          %93 = vst [vmem:[%s61 + $0x78] sm:$0xff] %v92
          %v94 = vld [vmem:[%s60 + $0x80] sm:$0xff]
          %95 = vst [vmem:[%s61 + $0x80] sm:$0xff] %v94
          %v96 = vld [vmem:[%s60 + $0x88] sm:$0xff]
          %97 = vst [vmem:[%s61 + $0x88] sm:$0xff] %v96
          %v98 = vld [vmem:[%s60 + $0x90] sm:$0xff]
          %99 = vst [vmem:[%s61 + $0x90] sm:$0xff] %v98
          %v100 = vld [vmem:[%s60 + $0x98] sm:$0xff]
          %101 = vst [vmem:[%s61 + $0x98] sm:$0xff] %v100
          %v102 = vld [vmem:[%s60 + $0xa0] sm:$0xff]
          %103 = vst [vmem:[%s61 + $0xa0] sm:$0xff] %v102
          %v104 = vld [vmem:[%s60 + $0xa8] sm:$0xff]
          %105 = vst [vmem:[%s61 + $0xa8] sm:$0xff] %v104
          %v106 = vld [vmem:[%s60 + $0xb0] sm:$0xff]
          %107 = vst [vmem:[%s61 + $0xb0] sm:$0xff] %v106
          %v108 = vld [vmem:[%s60 + $0xb8] sm:$0xff]
          %109 = vst [vmem:[%s61 + $0xb8] sm:$0xff] %v108
          %v110 = vld [vmem:[%s60 + $0xc0] sm:$0xff]
          %111 = vst [vmem:[%s61 + $0xc0] sm:$0xff] %v110
          %v112 = vld [vmem:[%s60 + $0xc8] sm:$0xff]
          %113 = vst [vmem:[%s61 + $0xc8] sm:$0xff] %v112
          %v114 = vld [vmem:[%s60 + $0xd0] sm:$0xff]
          %115 = vst [vmem:[%s61 + $0xd0] sm:$0xff] %v114
          %v116 = vld [vmem:[%s60 + $0xd8] sm:$0xff]
          %117 = vst [vmem:[%s61 + $0xd8] sm:$0xff] %v116
          %v118 = vld [vmem:[%s60 + $0xe0] sm:$0xff]
          %119 = vst [vmem:[%s61 + $0xe0] sm:$0xff] %v118
          %v120 = vld [vmem:[%s60 + $0xe8] sm:$0xff]
          %121 = vst [vmem:[%s61 + $0xe8] sm:$0xff] %v120
          %v122 = vld [vmem:[%s60 + $0xf0] sm:$0xff]
          %123 = vst [vmem:[%s61 + $0xf0] sm:$0xff] %v122
          %v124 = vld [vmem:[%s60 + $0xf8] sm:$0xff]
          %125 = vst [vmem:[%s61 + $0xf8] sm:$0xff] %v124
          %v126 = vld [vmem:[%s60 + $0x100] sm:$0xff]
          %127 = vst [vmem:[%s61 + $0x100] sm:$0xff] %v126
          %v128 = vld [vmem:[%s60 + $0x108] sm:$0xff]
          %129 = vst [vmem:[%s61 + $0x108] sm:$0xff] %v128
          %v130 = vld [vmem:[%s60 + $0x110] sm:$0xff]
          %131 = vst [vmem:[%s61 + $0x110] sm:$0xff] %v130
          %v132 = vld [vmem:[%s60 + $0x118] sm:$0xff]
          %133 = vst [vmem:[%s61 + $0x118] sm:$0xff] %v132
          %v134 = vld [vmem:[%s60 + $0x120] sm:$0xff]
          %135 = vst [vmem:[%s61 + $0x120] sm:$0xff] %v134
          %v136 = vld [vmem:[%s60 + $0x128] sm:$0xff]
          %137 = vst [vmem:[%s61 + $0x128] sm:$0xff] %v136
          %v138 = vld [vmem:[%s60 + $0x130] sm:$0xff]
          %139 = vst [vmem:[%s61 + $0x130] sm:$0xff] %v138
          %v140 = vld [vmem:[%s60 + $0x138] sm:$0xff]
          %141 = vst [vmem:[%s61 + $0x138] sm:$0xff] %v140
          %v142 = vld [vmem:[%s60 + $0x140] sm:$0xff]
          %143 = vst [vmem:[%s61 + $0x140] sm:$0xff] %v142
          %v144 = vld [vmem:[%s60 + $0x148] sm:$0xff]
          %145 = vst [vmem:[%s61 + $0x148] sm:$0xff] %v144
          %v146 = vld [vmem:[%s60 + $0x150] sm:$0xff]
          %147 = vst [vmem:[%s61 + $0x150] sm:$0xff] %v146
          %v148 = vld [vmem:[%s60 + $0x158] sm:$0xff]
          %149 = vst [vmem:[%s61 + $0x158] sm:$0xff] %v148
          %v150 = vld [vmem:[%s60 + $0x160] sm:$0xff]
          %151 = vst [vmem:[%s61 + $0x160] sm:$0xff] %v150
          %v152 = vld [vmem:[%s60 + $0x168] sm:$0xff]
          %153 = vst [vmem:[%s61 + $0x168] sm:$0xff] %v152
          %v154 = vld [vmem:[%s60 + $0x170] sm:$0xff]
          %155 = vst [vmem:[%s61 + $0x170] sm:$0xff] %v154
          %v156 = vld [vmem:[%s60 + $0x178] sm:$0xff]
          %157 = vst [vmem:[%s61 + $0x178] sm:$0xff] %v156
          %v158 = vld [vmem:[%s60 + $0x180] sm:$0xff]
          %159 = vst [vmem:[%s61 + $0x180] sm:$0xff] %v158
          %v160 = vld [vmem:[%s60 + $0x188] sm:$0xff]
          %161 = vst [vmem:[%s61 + $0x188] sm:$0xff] %v160
          %v162 = vld [vmem:[%s60 + $0x190] sm:$0xff]
          %163 = vst [vmem:[%s61 + $0x190] sm:$0xff] %v162
          %v164 = vld [vmem:[%s60 + $0x198] sm:$0xff]
          %165 = vst [vmem:[%s61 + $0x198] sm:$0xff] %v164
          %v166 = vld [vmem:[%s60 + $0x1a0] sm:$0xff]
          %167 = vst [vmem:[%s61 + $0x1a0] sm:$0xff] %v166
          %v168 = vld [vmem:[%s60 + $0x1a8] sm:$0xff]
          %169 = vst [vmem:[%s61 + $0x1a8] sm:$0xff] %v168
          %v170 = vld [vmem:[%s60 + $0x1b0] sm:$0xff]
          %171 = vst [vmem:[%s61 + $0x1b0] sm:$0xff] %v170
          %v172 = vld [vmem:[%s60 + $0x1b8] sm:$0xff]
          %173 = vst [vmem:[%s61 + $0x1b8] sm:$0xff] %v172
          %v174 = vld [vmem:[%s60 + $0x1c0] sm:$0xff]
          %175 = vst [vmem:[%s61 + $0x1c0] sm:$0xff] %v174
          %v176 = vld [vmem:[%s60 + $0x1c8] sm:$0xff]
          %177 = vst [vmem:[%s61 + $0x1c8] sm:$0xff] %v176
          %v178 = vld [vmem:[%s60 + $0x1d0] sm:$0xff]
          %179 = vst [vmem:[%s61 + $0x1d0] sm:$0xff] %v178
          %v180 = vld [vmem:[%s60 + $0x1d8] sm:$0xff]
          %181 = vst [vmem:[%s61 + $0x1d8] sm:$0xff] %v180
          %v182 = vld [vmem:[%s60 + $0x1e0] sm:$0xff]
          %183 = vst [vmem:[%s61 + $0x1e0] sm:$0xff] %v182
          %v184 = vld [vmem:[%s60 + $0x1e8] sm:$0xff]
          %185 = vst [vmem:[%s61 + $0x1e8] sm:$0xff] %v184
          %v186 = vld [vmem:[%s60 + $0x1f0] sm:$0xff]
          %187 = vst [vmem:[%s61 + $0x1f0] sm:$0xff] %v186
          %v188 = vld [vmem:[%s60 + $0x1f8] sm:$0xff]
          %189 = vst [vmem:[%s61 + $0x1f8] sm:$0xff] %v188
          %v190 = vld [vmem:[%s60 + $0x200] sm:$0xff]
          %191 = vst [vmem:[%s61 + $0x200] sm:$0xff] %v190
          %v192 = vld [vmem:[%s60 + $0x208] sm:$0xff]
          %193 = vst [vmem:[%s61 + $0x208] sm:$0xff] %v192
          %v194 = vld [vmem:[%s60 + $0x210] sm:$0xff]
          %195 = vst [vmem:[%s61 + $0x210] sm:$0xff] %v194
          %v196 = vld [vmem:[%s60 + $0x218] sm:$0xff]
          %197 = vst [vmem:[%s61 + $0x218] sm:$0xff] %v196
          %v198 = vld [vmem:[%s60 + $0x220] sm:$0xff]
          %199 = vst [vmem:[%s61 + $0x220] sm:$0xff] %v198
          %v200 = vld [vmem:[%s60 + $0x228] sm:$0xff]
          %201 = vst [vmem:[%s61 + $0x228] sm:$0xff] %v200
          %v202 = vld [vmem:[%s60 + $0x230] sm:$0xff]
          %203 = vst [vmem:[%s61 + $0x230] sm:$0xff] %v202
          %v204 = vld [vmem:[%s60 + $0x238] sm:$0xff]
          %205 = vst [vmem:[%s61 + $0x238] sm:$0xff] %v204
          %v206 = vld [vmem:[%s60 + $0x240] sm:$0xff]
          %207 = vst [vmem:[%s61 + $0x240] sm:$0xff] %v206
          %v208 = vld [vmem:[%s60 + $0x248] sm:$0xff]
          %209 = vst [vmem:[%s61 + $0x248] sm:$0xff] %v208
          %v210 = vld [vmem:[%s60 + $0x250] sm:$0xff]
          %211 = vst [vmem:[%s61 + $0x250] sm:$0xff] %v210
          %v212 = vld [vmem:[%s60 + $0x258] sm:$0xff]
          %213 = vst [vmem:[%s61 + $0x258] sm:$0xff] %v212
          %v214 = vld [vmem:[%s60 + $0x260] sm:$0xff]
          %215 = vst [vmem:[%s61 + $0x260] sm:$0xff] %v214
          %v216 = vld [vmem:[%s60 + $0x268] sm:$0xff]
          %217 = vst [vmem:[%s61 + $0x268] sm:$0xff] %v216
          %v218 = vld [vmem:[%s60 + $0x270] sm:$0xff]
          %219 = vst [vmem:[%s61 + $0x270] sm:$0xff] %v218
          %v220 = vld [vmem:[%s60 + $0x278] sm:$0xff]
          %221 = vst [vmem:[%s61 + $0x278] sm:$0xff] %v220
          %v222 = vld [vmem:[%s60 + $0x280] sm:$0xff]
          %223 = vst [vmem:[%s61 + $0x280] sm:$0xff] %v222
          %v224 = vld [vmem:[%s60 + $0x288] sm:$0xff]
          %225 = vst [vmem:[%s61 + $0x288] sm:$0xff] %v224
          %v226 = vld [vmem:[%s60 + $0x290] sm:$0xff]
          %227 = vst [vmem:[%s61 + $0x290] sm:$0xff] %v226
          %v228 = vld [vmem:[%s60 + $0x298] sm:$0xff]
          %229 = vst [vmem:[%s61 + $0x298] sm:$0xff] %v228
          %v230 = vld [vmem:[%s60 + $0x2a0] sm:$0xff]
          %231 = vst [vmem:[%s61 + $0x2a0] sm:$0xff] %v230
          %v232 = vld [vmem:[%s60 + $0x2a8] sm:$0xff]
          %233 = vst [vmem:[%s61 + $0x2a8] sm:$0xff] %v232
          %v234 = vld [vmem:[%s60 + $0x2b0] sm:$0xff]
          %235 = vst [vmem:[%s61 + $0x2b0] sm:$0xff] %v234
          %v236 = vld [vmem:[%s60 + $0x2b8] sm:$0xff]
          %237 = vst [vmem:[%s61 + $0x2b8] sm:$0xff] %v236
          %v238 = vld [vmem:[%s60 + $0x2c0] sm:$0xff]
          %239 = vst [vmem:[%s61 + $0x2c0] sm:$0xff] %v238
          %v240 = vld [vmem:[%s60 + $0x2c8] sm:$0xff]
          %241 = vst [vmem:[%s61 + $0x2c8] sm:$0xff] %v240
          %v242 = vld [vmem:[%s60 + $0x2d0] sm:$0xff]
          %243 = vst [vmem:[%s61 + $0x2d0] sm:$0xff] %v242
          %v244 = vld [vmem:[%s60 + $0x2d8] sm:$0xff]
          %245 = vst [vmem:[%s61 + $0x2d8] sm:$0xff] %v244
          %v246 = vld [vmem:[%s60 + $0x2e0] sm:$0xff]
          %247 = vst [vmem:[%s61 + $0x2e0] sm:$0xff] %v246
          %v248 = vld [vmem:[%s60 + $0x2e8] sm:$0xff]
          %249 = vst [vmem:[%s61 + $0x2e8] sm:$0xff] %v248
          %v250 = vld [vmem:[%s60 + $0x2f0] sm:$0xff]
          %251 = vst [vmem:[%s61 + $0x2f0] sm:$0xff] %v250
          %v252 = vld [vmem:[%s60 + $0x2f8] sm:$0xff]
          %253 = vst [vmem:[%s61 + $0x2f8] sm:$0xff] %v252
          %v254 = vld [vmem:[%s60 + $0x300] sm:$0xff]
          %255 = vst [vmem:[%s61 + $0x300] sm:$0xff] %v254
          %v256 = vld [vmem:[%s60 + $0x308] sm:$0xff]
          %257 = vst [vmem:[%s61 + $0x308] sm:$0xff] %v256
          %v258 = vld [vmem:[%s60 + $0x310] sm:$0xff]
          %259 = vst [vmem:[%s61 + $0x310] sm:$0xff] %v258
          %v260 = vld [vmem:[%s60 + $0x318] sm:$0xff]
          %261 = vst [vmem:[%s61 + $0x318] sm:$0xff] %v260
          %v262 = vld [vmem:[%s60 + $0x320] sm:$0xff]
          %263 = vst [vmem:[%s61 + $0x320] sm:$0xff] %v262
          %v264 = vld [vmem:[%s60 + $0x328] sm:$0xff]
          %265 = vst [vmem:[%s61 + $0x328] sm:$0xff] %v264
          %v266 = vld [vmem:[%s60 + $0x330] sm:$0xff]
          %267 = vst [vmem:[%s61 + $0x330] sm:$0xff] %v266
          %v268 = vld [vmem:[%s60 + $0x338] sm:$0xff]
          %269 = vst [vmem:[%s61 + $0x338] sm:$0xff] %v268
          %v270 = vld [vmem:[%s60 + $0x340] sm:$0xff]
          %271 = vst [vmem:[%s61 + $0x340] sm:$0xff] %v270
          %v272 = vld [vmem:[%s60 + $0x348] sm:$0xff]
          %273 = vst [vmem:[%s61 + $0x348] sm:$0xff] %v272
          %v274 = vld [vmem:[%s60 + $0x350] sm:$0xff]
          %275 = vst [vmem:[%s61 + $0x350] sm:$0xff] %v274
          %v276 = vld [vmem:[%s60 + $0x358] sm:$0xff]
          %277 = vst [vmem:[%s61 + $0x358] sm:$0xff] %v276
          %v278 = vld [vmem:[%s60 + $0x360] sm:$0xff]
          %279 = vst [vmem:[%s61 + $0x360] sm:$0xff] %v278
          %v280 = vld [vmem:[%s60 + $0x368] sm:$0xff]
          %281 = vst [vmem:[%s61 + $0x368] sm:$0xff] %v280
          %v282 = vld [vmem:[%s60 + $0x370] sm:$0xff]
          %283 = vst [vmem:[%s61 + $0x370] sm:$0xff] %v282
          %v284 = vld [vmem:[%s60 + $0x378] sm:$0xff]
          %285 = vst [vmem:[%s61 + $0x378] sm:$0xff] %v284
          %v286 = vld [vmem:[%s60 + $0x380] sm:$0xff]
          %287 = vst [vmem:[%s61 + $0x380] sm:$0xff] %v286
          %v288 = vld [vmem:[%s60 + $0x388] sm:$0xff]
          %289 = vst [vmem:[%s61 + $0x388] sm:$0xff] %v288
          %v290 = vld [vmem:[%s60 + $0x390] sm:$0xff]
          %291 = vst [vmem:[%s61 + $0x390] sm:$0xff] %v290
          %v292 = vld [vmem:[%s60 + $0x398] sm:$0xff]
          %293 = vst [vmem:[%s61 + $0x398] sm:$0xff] %v292
          %v294 = vld [vmem:[%s60 + $0x3a0] sm:$0xff]
          %295 = vst [vmem:[%s61 + $0x3a0] sm:$0xff] %v294
          %v296 = vld [vmem:[%s60 + $0x3a8] sm:$0xff]
          %297 = vst [vmem:[%s61 + $0x3a8] sm:$0xff] %v296
          %v298 = vld [vmem:[%s60 + $0x3b0] sm:$0xff]
          %299 = vst [vmem:[%s61 + $0x3b0] sm:$0xff] %v298
          %v300 = vld [vmem:[%s60 + $0x3b8] sm:$0xff]
          %301 = vst [vmem:[%s61 + $0x3b8] sm:$0xff] %v300
          %v302 = vld [vmem:[%s60 + $0x3c0] sm:$0xff]
          %303 = vst [vmem:[%s61 + $0x3c0] sm:$0xff] %v302
          %v304 = vld [vmem:[%s60 + $0x3c8] sm:$0xff]
          %305 = vst [vmem:[%s61 + $0x3c8] sm:$0xff] %v304
          %v306 = vld [vmem:[%s60 + $0x3d0] sm:$0xff]
          %307 = vst [vmem:[%s61 + $0x3d0] sm:$0xff] %v306
          %v308 = vld [vmem:[%s60 + $0x3d8] sm:$0xff]
          %309 = vst [vmem:[%s61 + $0x3d8] sm:$0xff] %v308
          %v310 = vld [vmem:[%s60 + $0x3e0] sm:$0xff]
          %311 = vst [vmem:[%s61 + $0x3e0] sm:$0xff] %v310
          %v312 = vld [vmem:[%s60 + $0x3e8] sm:$0xff]
          %313 = vst [vmem:[%s61 + $0x3e8] sm:$0xff] %v312
          %v314 = vld [vmem:[%s60 + $0x3f0] sm:$0xff]
          %315 = vst [vmem:[%s61 + $0x3f0] sm:$0xff] %v314
          %v316 = vld [vmem:[%s60 + $0x3f8] sm:$0xff]
          %317 = vst [vmem:[%s61 + $0x3f8] sm:$0xff] %v316
          %v318 = vld [vmem:[%s60 + $0x400] sm:$0xff]
          %319 = vst [vmem:[%s61 + $0x400] sm:$0xff] %v318
          %v320 = vld [vmem:[%s60 + $0x408] sm:$0xff]
          %321 = vst [vmem:[%s61 + $0x408] sm:$0xff] %v320
          %v322 = vld [vmem:[%s60 + $0x410] sm:$0xff]
          %323 = vst [vmem:[%s61 + $0x410] sm:$0xff] %v322
          %v324 = vld [vmem:[%s60 + $0x418] sm:$0xff]
          %325 = vst [vmem:[%s61 + $0x418] sm:$0xff] %v324
          %v326 = vld [vmem:[%s60 + $0x420] sm:$0xff]
          %327 = vst [vmem:[%s61 + $0x420] sm:$0xff] %v326
          %v328 = vld [vmem:[%s60 + $0x428] sm:$0xff]
          %329 = vst [vmem:[%s61 + $0x428] sm:$0xff] %v328
          %v330 = vld [vmem:[%s60 + $0x430] sm:$0xff]
          %331 = vst [vmem:[%s61 + $0x430] sm:$0xff] %v330
          %v332 = vld [vmem:[%s60 + $0x438] sm:$0xff]
          %333 = vst [vmem:[%s61 + $0x438] sm:$0xff] %v332
          %v334 = vld [vmem:[%s60 + $0x440] sm:$0xff]
          %335 = vst [vmem:[%s61 + $0x440] sm:$0xff] %v334
          %v336 = vld [vmem:[%s60 + $0x448] sm:$0xff]
          %337 = vst [vmem:[%s61 + $0x448] sm:$0xff] %v336
          %v338 = vld [vmem:[%s60 + $0x450] sm:$0xff]
          %339 = vst [vmem:[%s61 + $0x450] sm:$0xff] %v338
          %v340 = vld [vmem:[%s60 + $0x458] sm:$0xff]
          %341 = vst [vmem:[%s61 + $0x458] sm:$0xff] %v340
          %v342 = vld [vmem:[%s60 + $0x460] sm:$0xff]
          %343 = vst [vmem:[%s61 + $0x460] sm:$0xff] %v342
          %v344 = vld [vmem:[%s60 + $0x468] sm:$0xff]
          %345 = vst [vmem:[%s61 + $0x468] sm:$0xff] %v344
          %v346 = vld [vmem:[%s60 + $0x470] sm:$0xff]
          %347 = vst [vmem:[%s61 + $0x470] sm:$0xff] %v346
          %v348 = vld [vmem:[%s60 + $0x478] sm:$0xff]
          %349 = vst [vmem:[%s61 + $0x478] sm:$0xff] %v348
          %v350 = vld [vmem:[%s60 + $0x480] sm:$0xff]
          %351 = vst [vmem:[%s61 + $0x480] sm:$0xff] %v350
          %v352 = vld [vmem:[%s60 + $0x488] sm:$0xff]
          %353 = vst [vmem:[%s61 + $0x488] sm:$0xff] %v352
          %v354 = vld [vmem:[%s60 + $0x490] sm:$0xff]
          %355 = vst [vmem:[%s61 + $0x490] sm:$0xff] %v354
          %v356 = vld [vmem:[%s60 + $0x498] sm:$0xff]
          %357 = vst [vmem:[%s61 + $0x498] sm:$0xff] %v356
          %v358 = vld [vmem:[%s60 + $0x4a0] sm:$0xff]
          %359 = vst [vmem:[%s61 + $0x4a0] sm:$0xff] %v358
          %v360 = vld [vmem:[%s60 + $0x4a8] sm:$0xff]
          %361 = vst [vmem:[%s61 + $0x4a8] sm:$0xff] %v360
          %v362 = vld [vmem:[%s60 + $0x4b0] sm:$0xff]
          %363 = vst [vmem:[%s61 + $0x4b0] sm:$0xff] %v362
          %v364 = vld [vmem:[%s60 + $0x4b8] sm:$0xff]
          %365 = vst [vmem:[%s61 + $0x4b8] sm:$0xff] %v364
          %v366 = vld [vmem:[%s60 + $0x4c0] sm:$0xff]
          %367 = vst [vmem:[%s61 + $0x4c0] sm:$0xff] %v366
          %v368 = vld [vmem:[%s60 + $0x4c8] sm:$0xff]
          %369 = vst [vmem:[%s61 + $0x4c8] sm:$0xff] %v368
          %v370 = vld [vmem:[%s60 + $0x4d0] sm:$0xff]
          %371 = vst [vmem:[%s61 + $0x4d0] sm:$0xff] %v370
          %v372 = vld [vmem:[%s60 + $0x4d8] sm:$0xff]
          %373 = vst [vmem:[%s61 + $0x4d8] sm:$0xff] %v372
          %v374 = vld [vmem:[%s60 + $0x4e0] sm:$0xff]
          %375 = vst [vmem:[%s61 + $0x4e0] sm:$0xff] %v374
          %v376 = vld [vmem:[%s60 + $0x4e8] sm:$0xff]
          %377 = vst [vmem:[%s61 + $0x4e8] sm:$0xff] %v376
          %v378 = vld [vmem:[%s60 + $0x4f0] sm:$0xff]
          %379 = vst [vmem:[%s61 + $0x4f0] sm:$0xff] %v378
          %v380 = vld [vmem:[%s60 + $0x4f8] sm:$0xff]
          %381 = vst [vmem:[%s61 + $0x4f8] sm:$0xff] %v380
          %v382 = vld [vmem:[%s60 + $0x500] sm:$0xff]
          %383 = vst [vmem:[%s61 + $0x500] sm:$0xff] %v382
          %v384 = vld [vmem:[%s60 + $0x508] sm:$0xff]
          %385 = vst [vmem:[%s61 + $0x508] sm:$0xff] %v384
          %v386 = vld [vmem:[%s60 + $0x510] sm:$0xff]
          %387 = vst [vmem:[%s61 + $0x510] sm:$0xff] %v386
          %v388 = vld [vmem:[%s60 + $0x518] sm:$0xff]
          %389 = vst [vmem:[%s61 + $0x518] sm:$0xff] %v388
          %v390 = vld [vmem:[%s60 + $0x520] sm:$0xff]
          %391 = vst [vmem:[%s61 + $0x520] sm:$0xff] %v390
          %v392 = vld [vmem:[%s60 + $0x528] sm:$0xff]
          %393 = vst [vmem:[%s61 + $0x528] sm:$0xff] %v392
          %v394 = vld [vmem:[%s60 + $0x530] sm:$0xff]
          %395 = vst [vmem:[%s61 + $0x530] sm:$0xff] %v394
          %v396 = vld [vmem:[%s60 + $0x538] sm:$0xff]
          %397 = vst [vmem:[%s61 + $0x538] sm:$0xff] %v396
          %v398 = vld [vmem:[%s60 + $0x540] sm:$0xff]
          %399 = vst [vmem:[%s61 + $0x540] sm:$0xff] %v398
          %v400 = vld [vmem:[%s60 + $0x548] sm:$0xff]
          %401 = vst [vmem:[%s61 + $0x548] sm:$0xff] %v400
          %v402 = vld [vmem:[%s60 + $0x550] sm:$0xff]
          %403 = vst [vmem:[%s61 + $0x550] sm:$0xff] %v402
          %v404 = vld [vmem:[%s60 + $0x558] sm:$0xff]
          %405 = vst [vmem:[%s61 + $0x558] sm:$0xff] %v404
          %v406 = vld [vmem:[%s60 + $0x560] sm:$0xff]
          %407 = vst [vmem:[%s61 + $0x560] sm:$0xff] %v406
          %v408 = vld [vmem:[%s60 + $0x568] sm:$0xff]
          %409 = vst [vmem:[%s61 + $0x568] sm:$0xff] %v408
          %v410 = vld [vmem:[%s60 + $0x570] sm:$0xff]
          %411 = vst [vmem:[%s61 + $0x570] sm:$0xff] %v410
          %v412 = vld [vmem:[%s60 + $0x578] sm:$0xff]
          %413 = vst [vmem:[%s61 + $0x578] sm:$0xff] %v412
          %v414 = vld [vmem:[%s60 + $0x580] sm:$0xff]
          %415 = vst [vmem:[%s61 + $0x580] sm:$0xff] %v414
          %v416 = vld [vmem:[%s60 + $0x588] sm:$0xff]
          %417 = vst [vmem:[%s61 + $0x588] sm:$0xff] %v416
          %v418 = vld [vmem:[%s60 + $0x590] sm:$0xff]
          %419 = vst [vmem:[%s61 + $0x590] sm:$0xff] %v418
          %v420 = vld [vmem:[%s60 + $0x598] sm:$0xff]
          %421 = vst [vmem:[%s61 + $0x598] sm:$0xff] %v420
          %v422 = vld [vmem:[%s60 + $0x5a0] sm:$0xff]
          %423 = vst [vmem:[%s61 + $0x5a0] sm:$0xff] %v422
          %v424 = vld [vmem:[%s60 + $0x5a8] sm:$0xff]
          %425 = vst [vmem:[%s61 + $0x5a8] sm:$0xff] %v424
          %v426 = vld [vmem:[%s60 + $0x5b0] sm:$0xff]
          %427 = vst [vmem:[%s61 + $0x5b0] sm:$0xff] %v426
          %v428 = vld [vmem:[%s60 + $0x5b8] sm:$0xff]
          %429 = vst [vmem:[%s61 + $0x5b8] sm:$0xff] %v428
          %v430 = vld [vmem:[%s60 + $0x5c0] sm:$0xff]
          %431 = vst [vmem:[%s61 + $0x5c0] sm:$0xff] %v430
          %v432 = vld [vmem:[%s60 + $0x5c8] sm:$0xff]
          %433 = vst [vmem:[%s61 + $0x5c8] sm:$0xff] %v432
          %v434 = vld [vmem:[%s60 + $0x5d0] sm:$0xff]
          %435 = vst [vmem:[%s61 + $0x5d0] sm:$0xff] %v434
          %v436 = vld [vmem:[%s60 + $0x5d8] sm:$0xff]
          %437 = vst [vmem:[%s61 + $0x5d8] sm:$0xff] %v436
          %v438 = vld [vmem:[%s60 + $0x5e0] sm:$0xff]
          %439 = vst [vmem:[%s61 + $0x5e0] sm:$0xff] %v438
          %v440 = vld [vmem:[%s60 + $0x5e8] sm:$0xff]
          %441 = vst [vmem:[%s61 + $0x5e8] sm:$0xff] %v440
          %v442 = vld [vmem:[%s60 + $0x5f0] sm:$0xff]
          %443 = vst [vmem:[%s61 + $0x5f0] sm:$0xff] %v442
          %v444 = vld [vmem:[%s60 + $0x5f8] sm:$0xff]
          %445 = vst [vmem:[%s61 + $0x5f8] sm:$0xff] %v444
          %v446 = vld [vmem:[%s60 + $0x600] sm:$0xff]
          %447 = vst [vmem:[%s61 + $0x600] sm:$0xff] %v446
          %v448 = vld [vmem:[%s60 + $0x608] sm:$0xff]
          %449 = vst [vmem:[%s61 + $0x608] sm:$0xff] %v448
          %v450 = vld [vmem:[%s60 + $0x610] sm:$0xff]
          %451 = vst [vmem:[%s61 + $0x610] sm:$0xff] %v450
          %v452 = vld [vmem:[%s60 + $0x618] sm:$0xff]
          %453 = vst [vmem:[%s61 + $0x618] sm:$0xff] %v452
          %v454 = vld [vmem:[%s60 + $0x620] sm:$0xff]
          %455 = vst [vmem:[%s61 + $0x620] sm:$0xff] %v454
          %v456 = vld [vmem:[%s60 + $0x628] sm:$0xff]
          %457 = vst [vmem:[%s61 + $0x628] sm:$0xff] %v456
          %v458 = vld [vmem:[%s60 + $0x630] sm:$0xff]
          %459 = vst [vmem:[%s61 + $0x630] sm:$0xff] %v458
          %v460 = vld [vmem:[%s60 + $0x638] sm:$0xff]
          %461 = vst [vmem:[%s61 + $0x638] sm:$0xff] %v460
        $region53: #{net_forward.1} parent=47 // loop_footer
          %s59 = sadd.s32 1, %s55
        $region54: #{net_forward.1} parent=47 // loop_footer_branch
          %54 = sbr.rel target = $region50
        $region55: #{net_forward.1} parent=47 // loop_exit
          _
      $region48: #{net_forward.1} parent=32 // pred_fallthru
        _
      %p462 = pneg %p50
      // Predicated region
      $region56: #{net_forward.1} parent=32 // pred_check
        _
      $region57: #{net_forward.1} parent=32 // pred_check_branch
        %464 = sbr.rel (%p50) target = $region59
      $region58: #{net_forward.1} parent=32 // pred_region
        %s465 = sand.u32 1600, 7
      $region59: #{net_forward.1} parent=32 // pred_fallthru
        _
    $region33: #{net_forward.1} parent=1 // pred_fallthru
      _
    // Predicated region
    $region34: #{net_forward.1} parent=1 // pred_check
      %p35 = pneg %p31
    $region35: #{net_forward.1} parent=1 // pred_check_branch
      %37 = sbr.rel (%p35) target = $region37
    $region36: #{net_forward.1} parent=1 // pred_region
      %s38 = sshllo.u32 0, 1600
      loop: start=0, step=1, limit=1
      $region38: #{net_forward.1} parent=36 // loop_pre_header
        _
      $region39: #{net_forward.1} parent=36 // loop_header
        %s40 = sphi 0, %s44
        %p41 = scmp.ge.s32.totalorder %s40, 1
        %s45 = sphi %s5, %s5
        %s46 = sphi [#allocation2], [#allocation2]
      $region40: #{net_forward.1} parent=36 // loop_header_branch
        %43 = sbr.rel (%p41) target = $region44
      $region41: #{net_forward.1} parent=36 // loop_body
        %v47 = vld [vmem:[%s45] sm:%s38]
        %48 = vst [vmem:[%s46] sm:%s38] %v47
      $region42: #{net_forward.1} parent=36 // loop_footer
        %s44 = sadd.s32 1, %s40
      $region43: #{net_forward.1} parent=36 // loop_footer_branch
        %39 = sbr.rel target = $region39
      $region44: #{net_forward.1} parent=36 // loop_exit
        _
    $region37: #{net_forward.1} parent=1 // pred_fallthru
      _
    // Predicated region
    $region60: #{net_forward.1} parent=1 // pred_check
      _
    $region61: #{net_forward.1} parent=1 // pred_check_branch
      %468 = sbr.rel (0) target = $region63
    $region62: #{net_forward.1} parent=1 // pred_region
      %469 = vsyncadd [#allocation4], 25600
    $region63: #{net_forward.1} parent=1 // pred_fallthru
      _
    %s470 = scalar_lea.sflag [#allocation4], 1
    %p472 = scmp.lt.u32.totalorder 256, 8
    %p473 = pneg %p472
    // Predicated region
    $region64: #{net_forward.1} parent=1 // pred_check
      _
    $region65: #{net_forward.1} parent=1 // pred_check_branch
      %475 = sbr.rel (%p472) target = $region67
    $region66: #{net_forward.1} parent=1 // pred_region
      %s490 = sand.u32 256, 7
      %p491 = scmp.eq.s32.totalorder %s490, 0
      // Predicated region
      $region79: #{net_forward.1} parent=66 // pred_check
        %p492 = pneg %p491
      $region80: #{net_forward.1} parent=66 // pred_check_branch
        %494 = sbr.rel (%p492) target = $region82
      $region81: #{net_forward.1} parent=66 // pred_region
        loop: start=0, step=1, limit=1
        $region83: #{net_forward.1} parent=81 // loop_pre_header
          _
        $region84: #{net_forward.1} parent=81 // loop_header
          %s496 = sphi 0, %s500
          %p497 = scmp.ge.s32.totalorder %s496, 1
          %s501 = sphi %s7, %s7
          %s502 = sphi [#allocation3], [#allocation3]
        $region85: #{net_forward.1} parent=81 // loop_header_branch
          %499 = sbr.rel (%p497) target = $region89
        $region86: #{net_forward.1} parent=81 // loop_body
          %v503 = vld [vmem:[%s501] sm:$0xff]
          %504 = vst [vmem:[%s502] sm:$0xff] %v503
          %v505 = vld [vmem:[%s501 + $0x8] sm:$0xff]
          %506 = vst [vmem:[%s502 + $0x8] sm:$0xff] %v505
          %v507 = vld [vmem:[%s501 + $0x10] sm:$0xff]
          %508 = vst [vmem:[%s502 + $0x10] sm:$0xff] %v507
          %v509 = vld [vmem:[%s501 + $0x18] sm:$0xff]
          %510 = vst [vmem:[%s502 + $0x18] sm:$0xff] %v509
          %v511 = vld [vmem:[%s501 + $0x20] sm:$0xff]
          %512 = vst [vmem:[%s502 + $0x20] sm:$0xff] %v511
          %v513 = vld [vmem:[%s501 + $0x28] sm:$0xff]
          %514 = vst [vmem:[%s502 + $0x28] sm:$0xff] %v513
          %v515 = vld [vmem:[%s501 + $0x30] sm:$0xff]
          %516 = vst [vmem:[%s502 + $0x30] sm:$0xff] %v515
          %v517 = vld [vmem:[%s501 + $0x38] sm:$0xff]
          %518 = vst [vmem:[%s502 + $0x38] sm:$0xff] %v517
          %v519 = vld [vmem:[%s501 + $0x40] sm:$0xff]
          %520 = vst [vmem:[%s502 + $0x40] sm:$0xff] %v519
          %v521 = vld [vmem:[%s501 + $0x48] sm:$0xff]
          %522 = vst [vmem:[%s502 + $0x48] sm:$0xff] %v521
          %v523 = vld [vmem:[%s501 + $0x50] sm:$0xff]
          %524 = vst [vmem:[%s502 + $0x50] sm:$0xff] %v523
          %v525 = vld [vmem:[%s501 + $0x58] sm:$0xff]
          %526 = vst [vmem:[%s502 + $0x58] sm:$0xff] %v525
          %v527 = vld [vmem:[%s501 + $0x60] sm:$0xff]
          %528 = vst [vmem:[%s502 + $0x60] sm:$0xff] %v527
          %v529 = vld [vmem:[%s501 + $0x68] sm:$0xff]
          %530 = vst [vmem:[%s502 + $0x68] sm:$0xff] %v529
          %v531 = vld [vmem:[%s501 + $0x70] sm:$0xff]
          %532 = vst [vmem:[%s502 + $0x70] sm:$0xff] %v531
          %v533 = vld [vmem:[%s501 + $0x78] sm:$0xff]
          %534 = vst [vmem:[%s502 + $0x78] sm:$0xff] %v533
          %v535 = vld [vmem:[%s501 + $0x80] sm:$0xff]
          %536 = vst [vmem:[%s502 + $0x80] sm:$0xff] %v535
          %v537 = vld [vmem:[%s501 + $0x88] sm:$0xff]
          %538 = vst [vmem:[%s502 + $0x88] sm:$0xff] %v537
          %v539 = vld [vmem:[%s501 + $0x90] sm:$0xff]
          %540 = vst [vmem:[%s502 + $0x90] sm:$0xff] %v539
          %v541 = vld [vmem:[%s501 + $0x98] sm:$0xff]
          %542 = vst [vmem:[%s502 + $0x98] sm:$0xff] %v541
          %v543 = vld [vmem:[%s501 + $0xa0] sm:$0xff]
          %544 = vst [vmem:[%s502 + $0xa0] sm:$0xff] %v543
          %v545 = vld [vmem:[%s501 + $0xa8] sm:$0xff]
          %546 = vst [vmem:[%s502 + $0xa8] sm:$0xff] %v545
          %v547 = vld [vmem:[%s501 + $0xb0] sm:$0xff]
          %548 = vst [vmem:[%s502 + $0xb0] sm:$0xff] %v547
          %v549 = vld [vmem:[%s501 + $0xb8] sm:$0xff]
          %550 = vst [vmem:[%s502 + $0xb8] sm:$0xff] %v549
          %v551 = vld [vmem:[%s501 + $0xc0] sm:$0xff]
          %552 = vst [vmem:[%s502 + $0xc0] sm:$0xff] %v551
          %v553 = vld [vmem:[%s501 + $0xc8] sm:$0xff]
          %554 = vst [vmem:[%s502 + $0xc8] sm:$0xff] %v553
          %v555 = vld [vmem:[%s501 + $0xd0] sm:$0xff]
          %556 = vst [vmem:[%s502 + $0xd0] sm:$0xff] %v555
          %v557 = vld [vmem:[%s501 + $0xd8] sm:$0xff]
          %558 = vst [vmem:[%s502 + $0xd8] sm:$0xff] %v557
          %v559 = vld [vmem:[%s501 + $0xe0] sm:$0xff]
          %560 = vst [vmem:[%s502 + $0xe0] sm:$0xff] %v559
          %v561 = vld [vmem:[%s501 + $0xe8] sm:$0xff]
          %562 = vst [vmem:[%s502 + $0xe8] sm:$0xff] %v561
          %v563 = vld [vmem:[%s501 + $0xf0] sm:$0xff]
          %564 = vst [vmem:[%s502 + $0xf0] sm:$0xff] %v563
          %v565 = vld [vmem:[%s501 + $0xf8] sm:$0xff]
          %566 = vst [vmem:[%s502 + $0xf8] sm:$0xff] %v565
        $region87: #{net_forward.1} parent=81 // loop_footer
          %s500 = sadd.s32 1, %s496
        $region88: #{net_forward.1} parent=81 // loop_footer_branch
          %495 = sbr.rel target = $region84
        $region89: #{net_forward.1} parent=81 // loop_exit
          _
      $region82: #{net_forward.1} parent=66 // pred_fallthru
        _
      %p567 = pneg %p491
      // Predicated region
      $region90: #{net_forward.1} parent=66 // pred_check
        _
      $region91: #{net_forward.1} parent=66 // pred_check_branch
        %569 = sbr.rel (%p491) target = $region93
      $region92: #{net_forward.1} parent=66 // pred_region
        %s570 = sand.u32 256, 7
      $region93: #{net_forward.1} parent=66 // pred_fallthru
        _
    $region67: #{net_forward.1} parent=1 // pred_fallthru
      _
    // Predicated region
    $region68: #{net_forward.1} parent=1 // pred_check
      %p476 = pneg %p472
    $region69: #{net_forward.1} parent=1 // pred_check_branch
      %478 = sbr.rel (%p476) target = $region71
    $region70: #{net_forward.1} parent=1 // pred_region
      %s479 = sshllo.u32 0, 256
      loop: start=0, step=1, limit=1
      $region72: #{net_forward.1} parent=70 // loop_pre_header
        _
      $region73: #{net_forward.1} parent=70 // loop_header
        %s481 = sphi 0, %s485
        %p482 = scmp.ge.s32.totalorder %s481, 1
        %s486 = sphi %s7, %s7
        %s487 = sphi [#allocation3], [#allocation3]
      $region74: #{net_forward.1} parent=70 // loop_header_branch
        %484 = sbr.rel (%p482) target = $region78
      $region75: #{net_forward.1} parent=70 // loop_body
        %v488 = vld [vmem:[%s486] sm:%s479]
        %489 = vst [vmem:[%s487] sm:%s479] %v488
      $region76: #{net_forward.1} parent=70 // loop_footer
        %s485 = sadd.s32 1, %s481
      $region77: #{net_forward.1} parent=70 // loop_footer_branch
        %480 = sbr.rel target = $region73
      $region78: #{net_forward.1} parent=70 // loop_exit
        _
    $region71: #{net_forward.1} parent=1 // pred_fallthru
      _
    // Predicated region
    $region94: #{net_forward.1} parent=1 // pred_check
      _
    $region95: #{net_forward.1} parent=1 // pred_check_branch
      %573 = sbr.rel (0) target = $region97
    $region96: #{net_forward.1} parent=1 // pred_region
      %574 = vsyncadd %s470, 4096
    $region97: #{net_forward.1} parent=1 // pred_fallthru
      _
    %v575 = vld [vmem:[%s0] sm:$0xff]
    %v576 = vld [vmem:[%s0 + $0x8] sm:$0xf]
    %v577 = vld [vmem:[%s0 + $0xc] sm:$0xff]
    %v578 = vld [vmem:[%s0 + $0x14] sm:$0xf]
    %v579 = vld [vmem:[%s0 + $0x18] sm:$0xff]
    %v580 = vld [vmem:[%s0 + $0x20] sm:$0xf]
    %v581 = vld [vmem:[%s0 + $0x24] sm:$0xff]
    %v582 = vld [vmem:[%s0 + $0x2c] sm:$0xf]
    %v583 = vld [vmem:[%s0 + $0x30] sm:$0xff]
    %v584 = vld [vmem:[%s0 + $0x38] sm:$0xf]
    %v585 = vld [vmem:[%s0 + $0x3c] sm:$0xff]
    %v586 = vld [vmem:[%s0 + $0x44] sm:$0xf]
    %v587 = vld [vmem:[%s0 + $0x48] sm:$0xff]
    %v588 = vld [vmem:[%s0 + $0x50] sm:$0xf]
    %v589 = vld [vmem:[%s0 + $0x54] sm:$0xff]
    %v590 = vld [vmem:[%s0 + $0x5c] sm:$0xf]
    %v591 = vld [vmem:[%s0 + $0x60] sm:$0xff]
    %v592 = vld [vmem:[%s0 + $0x68] sm:$0xf]
    %v593 = vld [vmem:[%s0 + $0x6c] sm:$0xff]
    %v594 = vld [vmem:[%s0 + $0x74] sm:$0xf]
    %v595 = vld [vmem:[%s0 + $0x78] sm:$0xff]
    %v596 = vld [vmem:[%s0 + $0x80] sm:$0xf]
    %v597 = vld [vmem:[%s0 + $0x84] sm:$0xff]
    %v598 = vld [vmem:[%s0 + $0x8c] sm:$0xf]
    %v599 = vld [vmem:[%s0 + $0x90] sm:$0xff]
    %v600 = vld [vmem:[%s0 + $0x98] sm:$0xf]
    %v601 = vld [vmem:[%s0 + $0x9c] sm:$0xff]
    %v602 = vld [vmem:[%s0 + $0xa4] sm:$0xf]
    %v603 = vld [vmem:[%s0 + $0xa8] sm:$0xff]
    %v604 = vld [vmem:[%s0 + $0xb0] sm:$0xf]
    %v605 = vld [vmem:[%s0 + $0xb4] sm:$0xff]
    %v606 = vld [vmem:[%s0 + $0xbc] sm:$0xf]
    %v607 = vld [vmem:[%s0 + $0xc0] sm:$0xff]
    %v608 = vld [vmem:[%s0 + $0xc8] sm:$0xf]
    %v609 = vld [vmem:[%s0 + $0xcc] sm:$0xff]
    %v610 = vld [vmem:[%s0 + $0xd4] sm:$0xf]
    %v611 = vld [vmem:[%s0 + $0xd8] sm:$0xff]
    %v612 = vld [vmem:[%s0 + $0xe0] sm:$0xf]
    %v613 = vld [vmem:[%s0 + $0xe4] sm:$0xff]
    %v614 = vld [vmem:[%s0 + $0xec] sm:$0xf]
    %v615 = vld [vmem:[%s0 + $0xf0] sm:$0xff]
    %v616 = vld [vmem:[%s0 + $0xf8] sm:$0xf]
    %v617 = vld [vmem:[%s0 + $0xfc] sm:$0xff]
    %v618 = vld [vmem:[%s0 + $0x104] sm:$0xf]
    %v619 = vld [vmem:[%s0 + $0x108] sm:$0xff]
    %v620 = vld [vmem:[%s0 + $0x110] sm:$0xf]
    %v621 = vld [vmem:[%s0 + $0x114] sm:$0xff]
    %v622 = vld [vmem:[%s0 + $0x11c] sm:$0xf]
    %v623 = vld [vmem:[%s0 + $0x120] sm:$0xff]
    %v624 = vld [vmem:[%s0 + $0x128] sm:$0xf]
    %v625 = vld [vmem:[%s0 + $0x12c] sm:$0xff]
    %v626 = vld [vmem:[%s0 + $0x134] sm:$0xf]
    %v627 = vld [vmem:[%s0 + $0x138] sm:$0xff]
    %v628 = vld [vmem:[%s0 + $0x140] sm:$0xf]
    %v629 = vld [vmem:[%s0 + $0x144] sm:$0xff]
    %v630 = vld [vmem:[%s0 + $0x14c] sm:$0xf]
    %v631 = vld [vmem:[%s0 + $0x150] sm:$0xff]
    %v632 = vld [vmem:[%s0 + $0x158] sm:$0xf]
    %v633 = vld [vmem:[%s0 + $0x15c] sm:$0xff]
    %v634 = vld [vmem:[%s0 + $0x164] sm:$0xf]
    %v635 = vld [vmem:[%s0 + $0x168] sm:$0xff]
    %v636 = vld [vmem:[%s0 + $0x170] sm:$0xf]
    %v637 = vld [vmem:[%s0 + $0x174] sm:$0xff]
    %v638 = vld [vmem:[%s0 + $0x17c] sm:$0xf]
    %v639 = vld [vmem:[%s1] sm:$0xf]
    %v640 = vld [vmem:[%s1 + $0x4] sm:$0xf]
    %v641 = vld [vmem:[%s1 + $0x8] sm:$0xf]
    %v642 = vld [vmem:[%s1 + $0xc] sm:$0xf]
    %v643 = vld [vmem:[%s1 + $0x10] sm:$0xf]
    %v644 = vld [vmem:[%s1 + $0x14] sm:$0xf]
    %v645 = vld [vmem:[%s1 + $0x18] sm:$0xf]
    %v646 = vld [vmem:[%s1 + $0x1c] sm:$0xf]
    %v647 = vld [vmem:[%s1 + $0x20] sm:$0xf]
    %v648 = vld [vmem:[%s1 + $0x24] sm:$0xf]
    %v649 = vld [vmem:[%s1 + $0x28] sm:$0xf]
    %v650 = vld [vmem:[%s1 + $0x2c] sm:$0xf]
    %v651 = vld [vmem:[%s1 + $0x30] sm:$0xf]
    %v652 = vld [vmem:[%s1 + $0x34] sm:$0xf]
    %v653 = vld [vmem:[%s1 + $0x38] sm:$0xf]
    %v654 = vld [vmem:[%s1 + $0x3c] sm:$0xf]
    %v655 = vld [vmem:[%s1 + $0x40] sm:$0xf]
    %v656 = vld [vmem:[%s1 + $0x44] sm:$0xf]
    %v657 = vld [vmem:[%s1 + $0x48] sm:$0xf]
    %v658 = vld [vmem:[%s1 + $0x4c] sm:$0xf]
    %v659 = vld [vmem:[%s1 + $0x50] sm:$0xf]
    %v660 = vld [vmem:[%s1 + $0x54] sm:$0xf]
    %v661 = vld [vmem:[%s1 + $0x58] sm:$0xf]
    %v662 = vld [vmem:[%s1 + $0x5c] sm:$0xf]
    %v663 = vld [vmem:[%s1 + $0x60] sm:$0xf]
    %v664 = vld [vmem:[%s1 + $0x64] sm:$0xf]
    %v665 = vld [vmem:[%s1 + $0x68] sm:$0xf]
    %v666 = vld [vmem:[%s1 + $0x6c] sm:$0xf]
    %v667 = vld [vmem:[%s1 + $0x70] sm:$0xf]
    %v668 = vld [vmem:[%s1 + $0x74] sm:$0xf]
    %v669 = vld [vmem:[%s1 + $0x78] sm:$0xf]
    %v670 = vld [vmem:[%s1 + $0x7c] sm:$0xf]
    %v671 = vld [vmem:[%s1 + $0x80] sm:$0xf]
    %v672 = vld [vmem:[%s1 + $0x84] sm:$0xf]
    %v673 = vld [vmem:[%s1 + $0x88] sm:$0xf]
    %v674 = vld [vmem:[%s1 + $0x8c] sm:$0xf]
    %v675 = vld [vmem:[%s1 + $0x90] sm:$0xf]
    %v676 = vld [vmem:[%s1 + $0x94] sm:$0xf]
    %v677 = vld [vmem:[%s1 + $0x98] sm:$0xf]
    %v678 = vld [vmem:[%s1 + $0x9c] sm:$0xf]
    %v679 = vld [vmem:[%s1 + $0xa0] sm:$0xf]
    %v680 = vld [vmem:[%s1 + $0xa4] sm:$0xf]
    %v681 = vld [vmem:[%s1 + $0xa8] sm:$0xf]
    %v682 = vld [vmem:[%s1 + $0xac] sm:$0xf]
    %v683 = vld [vmem:[%s1 + $0xb0] sm:$0xf]
    %v684 = vld [vmem:[%s1 + $0xb4] sm:$0xf]
    %v685 = vld [vmem:[%s1 + $0xb8] sm:$0xf]
    %v686 = vld [vmem:[%s1 + $0xbc] sm:$0xf]
    %v687 = vld [vmem:[%s2] sm:$0x1]
    %v689 = vlaneseq
    %v690 = vshrl.u32 %v689, 7
    %v691 = vsub.s32 0, %v690
    %v692 = vrot.slane %v687, %v691
    %v758 = vunpack.c.l.b16 %v575
    %v759 = vunpack.c.h.b16 %v575
    %v760 = vunpack.c.l.b16 %v576
    %v761 = vunpack.c.l.b16 %v577
    %v762 = vunpack.c.h.b16 %v577
    %v763 = vunpack.c.l.b16 %v578
    %v764 = vunpack.c.l.b16 %v579
    %v765 = vunpack.c.h.b16 %v579
    %v766 = vunpack.c.l.b16 %v580
    %v767 = vunpack.c.l.b16 %v581
    %v768 = vunpack.c.h.b16 %v581
    %v769 = vunpack.c.l.b16 %v582
    %v770 = vunpack.c.l.b16 %v583
    %v771 = vunpack.c.h.b16 %v583
    %v772 = vunpack.c.l.b16 %v584
    %v773 = vunpack.c.l.b16 %v585
    %v774 = vunpack.c.h.b16 %v585
    %v775 = vunpack.c.l.b16 %v586
    %v776 = vunpack.c.l.b16 %v587
    %v777 = vunpack.c.h.b16 %v587
    %v778 = vunpack.c.l.b16 %v588
    %v779 = vunpack.c.l.b16 %v589
    %v780 = vunpack.c.h.b16 %v589
    %v781 = vunpack.c.l.b16 %v590
    %v782 = vunpack.c.l.b16 %v591
    %v783 = vunpack.c.h.b16 %v591
    %v784 = vunpack.c.l.b16 %v592
    %v785 = vunpack.c.l.b16 %v593
    %v786 = vunpack.c.h.b16 %v593
    %v787 = vunpack.c.l.b16 %v594
    %v788 = vunpack.c.l.b16 %v595
    %v789 = vunpack.c.h.b16 %v595
    %v790 = vunpack.c.l.b16 %v596
    %v791 = vunpack.c.l.b16 %v597
    %v792 = vunpack.c.h.b16 %v597
    %v793 = vunpack.c.l.b16 %v598
    %v794 = vunpack.c.l.b16 %v599
    %v795 = vunpack.c.h.b16 %v599
    %v796 = vunpack.c.l.b16 %v600
    %v797 = vunpack.c.l.b16 %v601
    %v798 = vunpack.c.h.b16 %v601
    %v799 = vunpack.c.l.b16 %v602
    %v800 = vunpack.c.l.b16 %v603
    %v801 = vunpack.c.h.b16 %v603
    %v802 = vunpack.c.l.b16 %v604
    %v803 = vunpack.c.l.b16 %v605
    %v804 = vunpack.c.h.b16 %v605
    %v805 = vunpack.c.l.b16 %v606
    %v806 = vunpack.c.l.b16 %v607
    %v807 = vunpack.c.h.b16 %v607
    %v808 = vunpack.c.l.b16 %v608
    %v809 = vunpack.c.l.b16 %v609
    %v810 = vunpack.c.h.b16 %v609
    %v811 = vunpack.c.l.b16 %v610
    %v812 = vunpack.c.l.b16 %v611
    %v813 = vunpack.c.h.b16 %v611
    %v814 = vunpack.c.l.b16 %v612
    %v815 = vunpack.c.l.b16 %v613
    %v816 = vunpack.c.h.b16 %v613
    %v817 = vunpack.c.l.b16 %v614
    %v818 = vunpack.c.l.b16 %v615
    %v819 = vunpack.c.h.b16 %v615
    %v820 = vunpack.c.l.b16 %v616
    %v821 = vunpack.c.l.b16 %v617
    %v822 = vunpack.c.h.b16 %v617
    %v823 = vunpack.c.l.b16 %v618
    %v824 = vunpack.c.l.b16 %v619
    %v825 = vunpack.c.h.b16 %v619
    %v826 = vunpack.c.l.b16 %v620
    %v827 = vunpack.c.l.b16 %v621
    %v828 = vunpack.c.h.b16 %v621
    %v829 = vunpack.c.l.b16 %v622
    %v830 = vunpack.c.l.b16 %v623
    %v831 = vunpack.c.h.b16 %v623
    %v832 = vunpack.c.l.b16 %v624
    %v833 = vunpack.c.l.b16 %v625
    %v834 = vunpack.c.h.b16 %v625
    %v835 = vunpack.c.l.b16 %v626
    %v836 = vunpack.c.l.b16 %v627
    %v837 = vunpack.c.h.b16 %v627
    %v838 = vunpack.c.l.b16 %v628
    %v839 = vunpack.c.l.b16 %v629
    %v840 = vunpack.c.h.b16 %v629
    %v841 = vunpack.c.l.b16 %v630
    %v842 = vunpack.c.l.b16 %v631
    %v843 = vunpack.c.h.b16 %v631
    %v844 = vunpack.c.l.b16 %v632
    %v845 = vunpack.c.l.b16 %v633
    %v846 = vunpack.c.h.b16 %v633
    %v847 = vunpack.c.l.b16 %v634
    %v848 = vunpack.c.l.b16 %v635
    %v849 = vunpack.c.h.b16 %v635
    %v850 = vunpack.c.l.b16 %v636
    %v851 = vunpack.c.l.b16 %v637
    %v852 = vunpack.c.h.b16 %v637
    %v853 = vunpack.c.l.b16 %v638
    %v854 = vpack.c.b16 %v761, %v758
    %v855 = vpack.c.b16 %v762, %v759
    %v856 = vpack.c.b16 %v763, %v760
    %v857 = vpack.c.b16 %v767, %v764
    %v858 = vpack.c.b16 %v768, %v765
    %v859 = vpack.c.b16 %v769, %v766
    %v860 = vpack.c.b16 %v773, %v770
    %v861 = vpack.c.b16 %v774, %v771
    %v862 = vpack.c.b16 %v775, %v772
    %v863 = vpack.c.b16 %v779, %v776
    %v864 = vpack.c.b16 %v780, %v777
    %v865 = vpack.c.b16 %v781, %v778
    %v866 = vpack.c.b16 %v785, %v782
    %v867 = vpack.c.b16 %v786, %v783
    %v868 = vpack.c.b16 %v787, %v784
    %v869 = vpack.c.b16 %v791, %v788
    %v870 = vpack.c.b16 %v792, %v789
    %v871 = vpack.c.b16 %v793, %v790
    %v872 = vpack.c.b16 %v797, %v794
    %v873 = vpack.c.b16 %v798, %v795
    %v874 = vpack.c.b16 %v799, %v796
    %v875 = vpack.c.b16 %v803, %v800
    %v876 = vpack.c.b16 %v804, %v801
    %v877 = vpack.c.b16 %v805, %v802
    %v878 = vpack.c.b16 %v809, %v806
    %v879 = vpack.c.b16 %v810, %v807
    %v880 = vpack.c.b16 %v811, %v808
    %v881 = vpack.c.b16 %v815, %v812
    %v882 = vpack.c.b16 %v816, %v813
    %v883 = vpack.c.b16 %v817, %v814
    %v884 = vpack.c.b16 %v821, %v818
    %v885 = vpack.c.b16 %v822, %v819
    %v886 = vpack.c.b16 %v823, %v820
    %v887 = vpack.c.b16 %v827, %v824
    %v888 = vpack.c.b16 %v828, %v825
    %v889 = vpack.c.b16 %v829, %v826
    %v890 = vpack.c.b16 %v833, %v830
    %v891 = vpack.c.b16 %v834, %v831
    %v892 = vpack.c.b16 %v835, %v832
    %v893 = vpack.c.b16 %v839, %v836
    %v894 = vpack.c.b16 %v840, %v837
    %v895 = vpack.c.b16 %v841, %v838
    %v896 = vpack.c.b16 %v845, %v842
    %v897 = vpack.c.b16 %v846, %v843
    %v898 = vpack.c.b16 %v847, %v844
    %v899 = vpack.c.b16 %v851, %v848
    %v900 = vpack.c.b16 %v852, %v849
    %v901 = vpack.c.b16 %v853, %v850
    %v998 = vunpack.c.l.b16 %v639
    %v999 = vunpack.c.l.b16 %v640
    %v1000 = vunpack.c.l.b16 %v641
    %v1001 = vunpack.c.l.b16 %v642
    %v1002 = vunpack.c.l.b16 %v643
    %v1003 = vunpack.c.l.b16 %v644
    %v1004 = vunpack.c.l.b16 %v645
    %v1005 = vunpack.c.l.b16 %v646
    %v1006 = vunpack.c.l.b16 %v647
    %v1007 = vunpack.c.l.b16 %v648
    %v1008 = vunpack.c.l.b16 %v649
    %v1009 = vunpack.c.l.b16 %v650
    %v1010 = vunpack.c.l.b16 %v651
    %v1011 = vunpack.c.l.b16 %v652
    %v1012 = vunpack.c.l.b16 %v653
    %v1013 = vunpack.c.l.b16 %v654
    %v1014 = vunpack.c.l.b16 %v655
    %v1015 = vunpack.c.l.b16 %v656
    %v1016 = vunpack.c.l.b16 %v657
    %v1017 = vunpack.c.l.b16 %v658
    %v1018 = vunpack.c.l.b16 %v659
    %v1019 = vunpack.c.l.b16 %v660
    %v1020 = vunpack.c.l.b16 %v661
    %v1021 = vunpack.c.l.b16 %v662
    %v1022 = vunpack.c.l.b16 %v663
    %v1023 = vunpack.c.l.b16 %v664
    %v1024 = vunpack.c.l.b16 %v665
    %v1025 = vunpack.c.l.b16 %v666
    %v1026 = vunpack.c.l.b16 %v667
    %v1027 = vunpack.c.l.b16 %v668
    %v1028 = vunpack.c.l.b16 %v669
    %v1029 = vunpack.c.l.b16 %v670
    %v1030 = vunpack.c.l.b16 %v671
    %v1031 = vunpack.c.l.b16 %v672
    %v1032 = vunpack.c.l.b16 %v673
    %v1033 = vunpack.c.l.b16 %v674
    %v1034 = vunpack.c.l.b16 %v675
    %v1035 = vunpack.c.l.b16 %v676
    %v1036 = vunpack.c.l.b16 %v677
    %v1037 = vunpack.c.l.b16 %v678
    %v1038 = vunpack.c.l.b16 %v679
    %v1039 = vunpack.c.l.b16 %v680
    %v1040 = vunpack.c.l.b16 %v681
    %v1041 = vunpack.c.l.b16 %v682
    %v1042 = vunpack.c.l.b16 %v683
    %v1043 = vunpack.c.l.b16 %v684
    %v1044 = vunpack.c.l.b16 %v685
    %v1045 = vunpack.c.l.b16 %v686
    %v1046 = vpack.c.b16 %v999, %v998
    %v1047 = vpack.c.b16 %v1001, %v1000
    %v1048 = vpack.c.b16 %v1003, %v1002
    %v1049 = vpack.c.b16 %v1005, %v1004
    %v1050 = vpack.c.b16 %v1007, %v1006
    %v1051 = vpack.c.b16 %v1009, %v1008
    %v1052 = vpack.c.b16 %v1011, %v1010
    %v1053 = vpack.c.b16 %v1013, %v1012
    %v1054 = vpack.c.b16 %v1015, %v1014
    %v1055 = vpack.c.b16 %v1017, %v1016
    %v1056 = vpack.c.b16 %v1019, %v1018
    %v1057 = vpack.c.b16 %v1021, %v1020
    %v1058 = vpack.c.b16 %v1023, %v1022
    %v1059 = vpack.c.b16 %v1025, %v1024
    %v1060 = vpack.c.b16 %v1027, %v1026
    %v1061 = vpack.c.b16 %v1029, %v1028
    %v1062 = vpack.c.b16 %v1031, %v1030
    %v1063 = vpack.c.b16 %v1033, %v1032
    %v1064 = vpack.c.b16 %v1035, %v1034
    %v1065 = vpack.c.b16 %v1037, %v1036
    %v1066 = vpack.c.b16 %v1039, %v1038
    %v1067 = vpack.c.b16 %v1041, %v1040
    %v1068 = vpack.c.b16 %v1043, %v1042
    %v1069 = vpack.c.b16 %v1045, %v1044
    %1094 = vmatprep.subr.bf16.mxu0 0
    %1095 = vmatpush1.bf16.msra.mxu0 %v1046
    %1096 = vmatprep.subr.bf16.mxu0 0
    %1097 = vmatpush1.bf16.msra.mxu0 %v1047
    %1098 = vmatprep.subr.bf16.mxu0 0
    %1099 = vmatpush1.bf16.msra.mxu0 %v1048
    %1100 = vmatprep.subr.bf16.mxu0 0
    %1101 = vmatpush1.bf16.msra.mxu0 %v1049
    %1102 = vmatprep.subr.bf16.mxu0 0
    %1103 = vmatpush1.bf16.msra.mxu0 %v1050
    %1104 = vmatprep.subr.bf16.mxu0 0
    %1105 = vmatpush1.bf16.msra.mxu0 %v1051
    %1106 = vmatprep.subr.bf16.mxu0 0
    %1107 = vmatpush1.bf16.msra.mxu0 %v1052
    %1108 = vmatprep.subr.bf16.mxu0 0
    %1109 = vmatpush1.bf16.msra.mxu0 %v1053
    %1110 = vmatprep.subr.bf16.mxu0 0
    %1111 = vmatpush1.bf16.msra.mxu0 %v1054
    %1112 = vmatprep.subr.bf16.mxu0 0
    %1113 = vmatpush1.bf16.msra.mxu0 %v1055
    %1114 = vmatprep.subr.bf16.mxu0 0
    %1115 = vmatpush1.bf16.msra.mxu0 %v1056
    %1116 = vmatprep.subr.bf16.mxu0 0
    %1117 = vmatpush1.bf16.msra.mxu0 %v1057
    %1118 = vmatprep.subr.bf16.mxu0 0
    %1119 = vmatpush1.bf16.msra.mxu0 %v1058
    %1120 = vmatprep.subr.bf16.mxu0 0
    %1121 = vmatpush1.bf16.msra.mxu0 %v1059
    %1122 = vmatprep.subr.bf16.mxu0 0
    %1123 = vmatpush1.bf16.msra.mxu0 %v1060
    %1124 = vmatprep.subr.bf16.mxu0 0
    %1125 = vmatpush1.bf16.msra.mxu0 %v1061
    %1126 = vmatprep.mubr.bf16.mxu0 %v855
    %1127 = vmatmul.mubr.bf16.gmra.mrb[0].mxu0 %v854
    %v1128 = vpop.f32.mrb[0].mxu0
    %v1129 = vadd.f32 %v692, %v1128
    %v1130 = vpop.f32.mrb[0].mxu0
    %v1131 = vpop.f32.mrb[0].mxu0
    %v1132 = vadd.f32 %v692, %v1131
    %v1133 = vpop.f32.mrb[0].mxu0
    %1134 = vmatprep.mubr.bf16.mxu0 %v858
    %1135 = vmatmul.mubr.bf16.gmra.mrb[0].mxu0 %v857
    %v1136 = vpop.f32.mrb[0].mxu0
    %v1137 = vadd.f32 %v692, %v1136
    %v1138 = vpop.f32.mrb[0].mxu0
    %v1139 = vpop.f32.mrb[0].mxu0
    %v1140 = vadd.f32 %v692, %v1139
    %v1141 = vpop.f32.mrb[0].mxu0
    %1142 = vmatprep.mubr.bf16.mxu0 %v861
    %1143 = vmatmul.mubr.bf16.gmra.mrb[0].mxu0 %v860
    %v1144 = vpop.f32.mrb[0].mxu0
    %v1145 = vadd.f32 %v692, %v1144
    %v1146 = vpop.f32.mrb[0].mxu0
    %v1147 = vpop.f32.mrb[0].mxu0
    %v1148 = vadd.f32 %v692, %v1147
    %v1149 = vpop.f32.mrb[0].mxu0
    %1150 = vmatprep.mubr.bf16.mxu0 %v864
    %1151 = vmatmul.mubr.bf16.gmra.mrb[0].mxu0 %v863
    %v1152 = vpop.f32.mrb[0].mxu0
    %v1153 = vadd.f32 %v692, %v1152
    %v1154 = vpop.f32.mrb[0].mxu0
    %v1155 = vpop.f32.mrb[0].mxu0
    %v1156 = vadd.f32 %v692, %v1155
    %v1157 = vpop.f32.mrb[0].mxu0
    %1158 = vmatprep.mubr.bf16.mxu0 %v867
    %1159 = vmatmul.mubr.bf16.gmra.mrb[0].mxu0 %v866
    %v1160 = vpop.f32.mrb[0].mxu0
    %v1161 = vadd.f32 %v692, %v1160
    %v1162 = vpop.f32.mrb[0].mxu0
    %v1163 = vpop.f32.mrb[0].mxu0
    %v1164 = vadd.f32 %v692, %v1163
    %v1165 = vpop.f32.mrb[0].mxu0
    %1166 = vmatprep.mubr.bf16.mxu0 %v870
    %1167 = vmatmul.mubr.bf16.gmra.mrb[0].mxu0 %v869
    %v1168 = vpop.f32.mrb[0].mxu0
    %v1169 = vadd.f32 %v692, %v1168
    %v1170 = vpop.f32.mrb[0].mxu0
    %v1171 = vpop.f32.mrb[0].mxu0
    %v1172 = vadd.f32 %v692, %v1171
    %v1173 = vpop.f32.mrb[0].mxu0
    %1174 = vmatprep.mubr.bf16.mxu0 %v873
    %1175 = vmatmul.mubr.bf16.gmra.mrb[0].mxu0 %v872
    %v1176 = vpop.f32.mrb[0].mxu0
    %v1177 = vadd.f32 %v692, %v1176
    %v1178 = vpop.f32.mrb[0].mxu0
    %v1179 = vpop.f32.mrb[0].mxu0
    %v1180 = vadd.f32 %v692, %v1179
    %v1181 = vpop.f32.mrb[0].mxu0
    %1182 = vmatprep.mubr.bf16.mxu0 %v876
    %1183 = vmatmul.mubr.bf16.gmra.mrb[0].mxu0 %v875
    %v1184 = vpop.f32.mrb[0].mxu0
    %v1185 = vadd.f32 %v692, %v1184
    %v1186 = vpop.f32.mrb[0].mxu0
    %v1187 = vpop.f32.mrb[0].mxu0
    %v1188 = vadd.f32 %v692, %v1187
    %v1189 = vpop.f32.mrb[0].mxu0
    %1190 = vmatprep.mubr.bf16.mxu0 %v879
    %1191 = vmatmul.mubr.bf16.gmra.mrb[0].mxu0 %v878
    %v1192 = vpop.f32.mrb[0].mxu0
    %v1193 = vadd.f32 %v692, %v1192
    %v1194 = vpop.f32.mrb[0].mxu0
    %v1195 = vpop.f32.mrb[0].mxu0
    %v1196 = vadd.f32 %v692, %v1195
    %v1197 = vpop.f32.mrb[0].mxu0
    %1198 = vmatprep.mubr.bf16.mxu0 %v882
    %1199 = vmatmul.mubr.bf16.gmra.mrb[0].mxu0 %v881
    %v1200 = vpop.f32.mrb[0].mxu0
    %v1201 = vadd.f32 %v692, %v1200
    %v1202 = vpop.f32.mrb[0].mxu0
    %v1203 = vpop.f32.mrb[0].mxu0
    %v1204 = vadd.f32 %v692, %v1203
    %v1205 = vpop.f32.mrb[0].mxu0
    %1206 = vmatprep.mubr.bf16.mxu0 %v885
    %1207 = vmatmul.mubr.bf16.gmra.mrb[0].mxu0 %v884
    %v1208 = vpop.f32.mrb[0].mxu0
    %v1209 = vadd.f32 %v692, %v1208
    %v1210 = vpop.f32.mrb[0].mxu0
    %v1211 = vpop.f32.mrb[0].mxu0
    %v1212 = vadd.f32 %v692, %v1211
    %v1213 = vpop.f32.mrb[0].mxu0
    %1214 = vmatprep.mubr.bf16.mxu0 %v888
    %1215 = vmatmul.mubr.bf16.gmra.mrb[0].mxu0 %v887
    %v1216 = vpop.f32.mrb[0].mxu0
    %v1217 = vadd.f32 %v692, %v1216
    %v1218 = vpop.f32.mrb[0].mxu0
    %v1219 = vpop.f32.mrb[0].mxu0
    %v1220 = vadd.f32 %v692, %v1219
    %v1221 = vpop.f32.mrb[0].mxu0
    %1222 = vmatprep.mubr.bf16.mxu0 %v891
    %1223 = vmatmul.mubr.bf16.gmra.mrb[0].mxu0 %v890
    %v1224 = vpop.f32.mrb[0].mxu0
    %v1225 = vadd.f32 %v692, %v1224
    %v1226 = vpop.f32.mrb[0].mxu0
    %v1227 = vpop.f32.mrb[0].mxu0
    %v1228 = vadd.f32 %v692, %v1227
    %v1229 = vpop.f32.mrb[0].mxu0
    %1230 = vmatprep.mubr.bf16.mxu0 %v894
    %1231 = vmatmul.mubr.bf16.gmra.mrb[0].mxu0 %v893
    %v1232 = vpop.f32.mrb[0].mxu0
    %v1233 = vadd.f32 %v692, %v1232
    %v1234 = vpop.f32.mrb[0].mxu0
    %v1235 = vpop.f32.mrb[0].mxu0
    %v1236 = vadd.f32 %v692, %v1235
    %v1237 = vpop.f32.mrb[0].mxu0
    %1238 = vmatprep.mubr.bf16.mxu0 %v897
    %1239 = vmatmul.mubr.bf16.gmra.mrb[0].mxu0 %v896
    %v1240 = vpop.f32.mrb[0].mxu0
    %v1241 = vadd.f32 %v692, %v1240
    %v1242 = vpop.f32.mrb[0].mxu0
    %v1243 = vpop.f32.mrb[0].mxu0
    %v1244 = vadd.f32 %v692, %v1243
    %v1245 = vpop.f32.mrb[0].mxu0
    %1246 = vmatprep.mubr.bf16.mxu0 %v900
    %1247 = vmatmul.mubr.bf16.gmra.mrb[0].mxu0 %v899
    %v1248 = vpop.f32.mrb[0].mxu0
    %v1249 = vadd.f32 %v692, %v1248
    %v1250 = vpop.f32.mrb[0].mxu0
    %v1251 = vpop.f32.mrb[0].mxu0
    %v1252 = vadd.f32 %v692, %v1251
    %v1253 = vpop.f32.mrb[0].mxu0
    %1254 = vdwg.mxu0
    %1255 = vmatprep.subr.bf16.mxu0 0
    %1256 = vmatpush1.bf16.msra.mxu0 %v1062
    %1257 = vmatprep.subr.bf16.mxu0 0
    %1258 = vmatpush1.bf16.msra.mxu0 %v1063
    %1259 = vmatprep.subr.bf16.mxu0 0
    %1260 = vmatpush1.bf16.msra.mxu0 %v1064
    %1261 = vmatprep.subr.bf16.mxu0 0
    %1262 = vmatpush1.bf16.msra.mxu0 %v1065
    %1263 = vmatprep.subr.bf16.mxu0 0
    %1264 = vmatpush1.bf16.msra.mxu0 %v1066
    %1265 = vmatprep.subr.bf16.mxu0 0
    %1266 = vmatpush1.bf16.msra.mxu0 %v1067
    %1267 = vmatprep.subr.bf16.mxu0 0
    %1268 = vmatpush1.bf16.msra.mxu0 %v1068
    %1269 = vmatprep.subr.bf16.mxu0 0
    %1270 = vmatpush1.bf16.msra.mxu0 %v1069
    %1271 = vmatprep.subr.bf16.mxu0 0
    %1272 = vmatpush1.bf16.msra.mxu0 0
    %1273 = vmatprep.subr.bf16.mxu0 0
    %1274 = vmatpush1.bf16.msra.mxu0 0
    %1275 = vmatprep.subr.bf16.mxu0 0
    %1276 = vmatpush1.bf16.msra.mxu0 0
    %1277 = vmatprep.subr.bf16.mxu0 0
    %1278 = vmatpush1.bf16.msra.mxu0 0
    %1279 = vmatprep.subr.bf16.mxu0 0
    %1280 = vmatpush1.bf16.msra.mxu0 0
    %1281 = vmatprep.subr.bf16.mxu0 0
    %1282 = vmatpush1.bf16.msra.mxu0 0
    %1283 = vmatprep.subr.bf16.mxu0 0
    %1284 = vmatpush1.bf16.msra.mxu0 0
    %1285 = vmatprep.subr.bf16.mxu0 0
    %1286 = vmatpush1.bf16.msra.mxu0 0
    %1287 = vmatprep.mubr.bf16.mxu0 0
    %1288 = vmatmul.mubr.bf16.gmra.mrb[0].mxu0 %v856
    %v1289 = vpop.f32.mrb[0].mxu0
    %v1290 = vadd.f32 %v1129, %v1289
    %v1291 = vpop.f32.mrb[0].mxu0
    %v1292 = vpop.f32.mrb[0].mxu0
    %v1293 = vadd.f32 %v1132, %v1292
    %v1294 = vpop.f32.mrb[0].mxu0
    %1295 = vmatprep.mubr.bf16.mxu0 0
    %1296 = vmatmul.mubr.bf16.gmra.mrb[0].mxu0 %v859
    %v1297 = vpop.f32.mrb[0].mxu0
    %v1298 = vadd.f32 %v1137, %v1297
    %v1299 = vpop.f32.mrb[0].mxu0
    %v1300 = vpop.f32.mrb[0].mxu0
    %v1301 = vadd.f32 %v1140, %v1300
    %v1302 = vpop.f32.mrb[0].mxu0
    %1303 = vmatprep.mubr.bf16.mxu0 0
    %1304 = vmatmul.mubr.bf16.gmra.mrb[0].mxu0 %v862
    %v1305 = vpop.f32.mrb[0].mxu0
    %v1306 = vadd.f32 %v1145, %v1305
    %v1307 = vpop.f32.mrb[0].mxu0
    %v1308 = vpop.f32.mrb[0].mxu0
    %v1309 = vadd.f32 %v1148, %v1308
    %v1310 = vpop.f32.mrb[0].mxu0
    %1311 = vmatprep.mubr.bf16.mxu0 0
    %1312 = vmatmul.mubr.bf16.gmra.mrb[0].mxu0 %v865
    %v1313 = vpop.f32.mrb[0].mxu0
    %v1314 = vadd.f32 %v1153, %v1313
    %v1315 = vpop.f32.mrb[0].mxu0
    %v1316 = vpop.f32.mrb[0].mxu0
    %v1317 = vadd.f32 %v1156, %v1316
    %v1318 = vpop.f32.mrb[0].mxu0
    %1319 = vmatprep.mubr.bf16.mxu0 0
    %1320 = vmatmul.mubr.bf16.gmra.mrb[0].mxu0 %v868
    %v1321 = vpop.f32.mrb[0].mxu0
    %v1322 = vadd.f32 %v1161, %v1321
    %v1323 = vpop.f32.mrb[0].mxu0
    %v1324 = vpop.f32.mrb[0].mxu0
    %v1325 = vadd.f32 %v1164, %v1324
    %v1326 = vpop.f32.mrb[0].mxu0
    %1327 = vmatprep.mubr.bf16.mxu0 0
    %1328 = vmatmul.mubr.bf16.gmra.mrb[0].mxu0 %v871
    %v1329 = vpop.f32.mrb[0].mxu0
    %v1330 = vadd.f32 %v1169, %v1329
    %v1331 = vpop.f32.mrb[0].mxu0
    %v1332 = vpop.f32.mrb[0].mxu0
    %v1333 = vadd.f32 %v1172, %v1332
    %v1334 = vpop.f32.mrb[0].mxu0
    %1335 = vmatprep.mubr.bf16.mxu0 0
    %1336 = vmatmul.mubr.bf16.gmra.mrb[0].mxu0 %v874
    %v1337 = vpop.f32.mrb[0].mxu0
    %v1338 = vadd.f32 %v1177, %v1337
    %v1339 = vpop.f32.mrb[0].mxu0
    %v1340 = vpop.f32.mrb[0].mxu0
    %v1341 = vadd.f32 %v1180, %v1340
    %v1342 = vpop.f32.mrb[0].mxu0
    %1343 = vmatprep.mubr.bf16.mxu0 0
    %1344 = vmatmul.mubr.bf16.gmra.mrb[0].mxu0 %v877
    %v1345 = vpop.f32.mrb[0].mxu0
    %v1346 = vadd.f32 %v1185, %v1345
    %v1347 = vpop.f32.mrb[0].mxu0
    %v1348 = vpop.f32.mrb[0].mxu0
    %v1349 = vadd.f32 %v1188, %v1348
    %v1350 = vpop.f32.mrb[0].mxu0
    %1351 = vmatprep.mubr.bf16.mxu0 0
    %1352 = vmatmul.mubr.bf16.gmra.mrb[0].mxu0 %v880
    %v1353 = vpop.f32.mrb[0].mxu0
    %v1354 = vadd.f32 %v1193, %v1353
    %v1355 = vpop.f32.mrb[0].mxu0
    %v1356 = vpop.f32.mrb[0].mxu0
    %v1357 = vadd.f32 %v1196, %v1356
    %v1358 = vpop.f32.mrb[0].mxu0
    %1359 = vmatprep.mubr.bf16.mxu0 0
    %1360 = vmatmul.mubr.bf16.gmra.mrb[0].mxu0 %v883
    %v1361 = vpop.f32.mrb[0].mxu0
    %v1362 = vadd.f32 %v1201, %v1361
    %v1363 = vpop.f32.mrb[0].mxu0
    %v1364 = vpop.f32.mrb[0].mxu0
    %v1365 = vadd.f32 %v1204, %v1364
    %v1366 = vpop.f32.mrb[0].mxu0
    %1367 = vmatprep.mubr.bf16.mxu0 0
    %1368 = vmatmul.mubr.bf16.gmra.mrb[0].mxu0 %v886
    %v1369 = vpop.f32.mrb[0].mxu0
    %v1370 = vadd.f32 %v1209, %v1369
    %v1371 = vpop.f32.mrb[0].mxu0
    %v1372 = vpop.f32.mrb[0].mxu0
    %v1373 = vadd.f32 %v1212, %v1372
    %v1374 = vpop.f32.mrb[0].mxu0
    %1375 = vmatprep.mubr.bf16.mxu0 0
    %1376 = vmatmul.mubr.bf16.gmra.mrb[0].mxu0 %v889
    %v1377 = vpop.f32.mrb[0].mxu0
    %v1378 = vadd.f32 %v1217, %v1377
    %v1379 = vpop.f32.mrb[0].mxu0
    %v1380 = vpop.f32.mrb[0].mxu0
    %v1381 = vadd.f32 %v1220, %v1380
    %v1382 = vpop.f32.mrb[0].mxu0
    %1383 = vmatprep.mubr.bf16.mxu0 0
    %1384 = vmatmul.mubr.bf16.gmra.mrb[0].mxu0 %v892
    %v1385 = vpop.f32.mrb[0].mxu0
    %v1386 = vadd.f32 %v1225, %v1385
    %v1387 = vpop.f32.mrb[0].mxu0
    %v1388 = vpop.f32.mrb[0].mxu0
    %v1389 = vadd.f32 %v1228, %v1388
    %v1390 = vpop.f32.mrb[0].mxu0
    %1391 = vmatprep.mubr.bf16.mxu0 0
    %1392 = vmatmul.mubr.bf16.gmra.mrb[0].mxu0 %v895
    %v1393 = vpop.f32.mrb[0].mxu0
    %v1394 = vadd.f32 %v1233, %v1393
    %v1395 = vpop.f32.mrb[0].mxu0
    %v1396 = vpop.f32.mrb[0].mxu0
    %v1397 = vadd.f32 %v1236, %v1396
    %v1398 = vpop.f32.mrb[0].mxu0
    %1399 = vmatprep.mubr.bf16.mxu0 0
    %1400 = vmatmul.mubr.bf16.gmra.mrb[0].mxu0 %v898
    %v1401 = vpop.f32.mrb[0].mxu0
    %v1402 = vadd.f32 %v1241, %v1401
    %v1403 = vpop.f32.mrb[0].mxu0
    %v1404 = vpop.f32.mrb[0].mxu0
    %v1405 = vadd.f32 %v1244, %v1404
    %v1406 = vpop.f32.mrb[0].mxu0
    %1407 = vmatprep.mubr.bf16.mxu0 0
    %1408 = vmatmul.mubr.bf16.gmra.mrb[0].mxu0 %v901
    %v1409 = vpop.f32.mrb[0].mxu0
    %v1410 = vadd.f32 %v1249, %v1409
    %v1411 = vpop.f32.mrb[0].mxu0
    %v1412 = vpop.f32.mrb[0].mxu0
    %v1413 = vadd.f32 %v1252, %v1412
    %v1414 = vpop.f32.mrb[0].mxu0
    %1415 = vdwg.mxu0
    %v1416 = vmax.f32 %v1290, 0.0
    %v1417 = vmax.f32 %v1293, 0.0
    %v1418 = vmax.f32 %v1298, 0.0
    %v1419 = vmax.f32 %v1301, 0.0
    %v1420 = vmax.f32 %v1306, 0.0
    %v1421 = vmax.f32 %v1309, 0.0
    %v1422 = vmax.f32 %v1314, 0.0
    %v1423 = vmax.f32 %v1317, 0.0
    %v1424 = vmax.f32 %v1322, 0.0
    %v1425 = vmax.f32 %v1325, 0.0
    %v1426 = vmax.f32 %v1330, 0.0
    %v1427 = vmax.f32 %v1333, 0.0
    %v1428 = vmax.f32 %v1338, 0.0
    %v1429 = vmax.f32 %v1341, 0.0
    %v1430 = vmax.f32 %v1346, 0.0
    %v1431 = vmax.f32 %v1349, 0.0
    %v1432 = vmax.f32 %v1354, 0.0
    %v1433 = vmax.f32 %v1357, 0.0
    %v1434 = vmax.f32 %v1362, 0.0
    %v1435 = vmax.f32 %v1365, 0.0
    %v1436 = vmax.f32 %v1370, 0.0
    %v1437 = vmax.f32 %v1373, 0.0
    %v1438 = vmax.f32 %v1378, 0.0
    %v1439 = vmax.f32 %v1381, 0.0
    %v1440 = vmax.f32 %v1386, 0.0
    %v1441 = vmax.f32 %v1389, 0.0
    %v1442 = vmax.f32 %v1394, 0.0
    %v1443 = vmax.f32 %v1397, 0.0
    %v1444 = vmax.f32 %v1402, 0.0
    %v1445 = vmax.f32 %v1405, 0.0
    %v1446 = vmax.f32 %v1410, 0.0
    %v1447 = vmax.f32 %v1413, 0.0
    %v1448 = vpack.c.bf16 %v1417, %v1416
    %v1449 = vpack.c.bf16 %v1419, %v1418
    %v1450 = vpack.c.bf16 %v1421, %v1420
    %v1451 = vpack.c.bf16 %v1423, %v1422
    %v1452 = vpack.c.bf16 %v1425, %v1424
    %v1453 = vpack.c.bf16 %v1427, %v1426
    %v1454 = vpack.c.bf16 %v1429, %v1428
    %v1455 = vpack.c.bf16 %v1431, %v1430
    %v1456 = vpack.c.bf16 %v1433, %v1432
    %v1457 = vpack.c.bf16 %v1435, %v1434
    %v1458 = vpack.c.bf16 %v1437, %v1436
    %v1459 = vpack.c.bf16 %v1439, %v1438
    %v1460 = vpack.c.bf16 %v1441, %v1440
    %v1461 = vpack.c.bf16 %v1443, %v1442
    %v1462 = vpack.c.bf16 %v1445, %v1444
    %v1463 = vpack.c.bf16 %v1447, %v1446
    %v1472 = vunpack.c.l.b16 %v1448
    %v1473 = vunpack.c.h.b16 %v1448
    %v1474 = vunpack.c.l.b16 %v1449
    %v1475 = vunpack.c.h.b16 %v1449
    %v1476 = vunpack.c.l.b16 %v1450
    %v1477 = vunpack.c.h.b16 %v1450
    %v1478 = vunpack.c.l.b16 %v1451
    %v1479 = vunpack.c.h.b16 %v1451
    %v1480 = vunpack.c.l.b16 %v1452
    %v1481 = vunpack.c.h.b16 %v1452
    %v1482 = vunpack.c.l.b16 %v1453
    %v1483 = vunpack.c.h.b16 %v1453
    %v1484 = vunpack.c.l.b16 %v1454
    %v1485 = vunpack.c.h.b16 %v1454
    %v1486 = vunpack.c.l.b16 %v1455
    %v1487 = vunpack.c.h.b16 %v1455
    %v1488 = vpack.c.b16 %v1472, %v1472
    %v1489 = vpack.c.b16 %v1473, %v1473
    %v1490 = vpack.c.b16 %v1474, %v1474
    %v1491 = vpack.c.b16 %v1475, %v1475
    %v1492 = vpack.c.b16 %v1476, %v1476
    %v1493 = vpack.c.b16 %v1477, %v1477
    %v1494 = vpack.c.b16 %v1478, %v1478
    %v1495 = vpack.c.b16 %v1479, %v1479
    %v1496 = vpack.c.b16 %v1480, %v1480
    %v1497 = vpack.c.b16 %v1481, %v1481
    %v1498 = vpack.c.b16 %v1482, %v1482
    %v1499 = vpack.c.b16 %v1483, %v1483
    %v1500 = vpack.c.b16 %v1484, %v1484
    %v1501 = vpack.c.b16 %v1485, %v1485
    %v1502 = vpack.c.b16 %v1486, %v1486
    %v1503 = vpack.c.b16 %v1487, %v1487
    %v1512 = vunpack.c.l.b16 %v1456
    %v1513 = vunpack.c.h.b16 %v1456
    %v1514 = vunpack.c.l.b16 %v1457
    %v1515 = vunpack.c.h.b16 %v1457
    %v1516 = vunpack.c.l.b16 %v1458
    %v1517 = vunpack.c.h.b16 %v1458
    %v1518 = vunpack.c.l.b16 %v1459
    %v1519 = vunpack.c.h.b16 %v1459
    %v1520 = vunpack.c.l.b16 %v1460
    %v1521 = vunpack.c.h.b16 %v1460
    %v1522 = vunpack.c.l.b16 %v1461
    %v1523 = vunpack.c.h.b16 %v1461
    %v1524 = vunpack.c.l.b16 %v1462
    %v1525 = vunpack.c.h.b16 %v1462
    %v1526 = vunpack.c.l.b16 %v1463
    %v1527 = vunpack.c.h.b16 %v1463
    %v1528 = vpack.c.b16 %v1512, %v1512
    %v1529 = vpack.c.b16 %v1513, %v1513
    %v1530 = vpack.c.b16 %v1514, %v1514
    %v1531 = vpack.c.b16 %v1515, %v1515
    %v1532 = vpack.c.b16 %v1516, %v1516
    %v1533 = vpack.c.b16 %v1517, %v1517
    %v1534 = vpack.c.b16 %v1518, %v1518
    %v1535 = vpack.c.b16 %v1519, %v1519
    %v1536 = vpack.c.b16 %v1520, %v1520
    %v1537 = vpack.c.b16 %v1521, %v1521
    %v1538 = vpack.c.b16 %v1522, %v1522
    %v1539 = vpack.c.b16 %v1523, %v1523
    %v1540 = vpack.c.b16 %v1524, %v1524
    %v1541 = vpack.c.b16 %v1525, %v1525
    %v1542 = vpack.c.b16 %v1526, %v1526
    %v1543 = vpack.c.b16 %v1527, %v1527
    %v1545 = vshrl.u32 %v1488, 16
    %v1547 = vshll.u32 %v1488, 16
    %v1549 = vrot.slane %v1547, 1
    %v1550 = vor.u32 %v1545, %v1549
    %v1552 = vshrl.u32 %v1489, 16
    %v1554 = vshll.u32 %v1489, 16
    %v1556 = vrot.slane %v1554, 1
    %v1557 = vor.u32 %v1552, %v1556
    %v1559 = vshrl.u32 %v1490, 16
    %v1561 = vshll.u32 %v1490, 16
    %v1563 = vrot.slane %v1561, 1
    %v1564 = vor.u32 %v1559, %v1563
    %v1566 = vshrl.u32 %v1491, 16
    %v1568 = vshll.u32 %v1491, 16
    %v1570 = vrot.slane %v1568, 1
    %v1571 = vor.u32 %v1566, %v1570
    %v1573 = vshrl.u32 %v1492, 16
    %v1575 = vshll.u32 %v1492, 16
    %v1577 = vrot.slane %v1575, 1
    %v1578 = vor.u32 %v1573, %v1577
    %v1580 = vshrl.u32 %v1493, 16
    %v1582 = vshll.u32 %v1493, 16
    %v1584 = vrot.slane %v1582, 1
    %v1585 = vor.u32 %v1580, %v1584
    %v1587 = vshrl.u32 %v1496, 16
    %v1589 = vshll.u32 %v1496, 16
    %v1591 = vrot.slane %v1589, 1
    %v1592 = vor.u32 %v1587, %v1591
    %v1594 = vshrl.u32 %v1497, 16
    %v1596 = vshll.u32 %v1497, 16
    %v1598 = vrot.slane %v1596, 1
    %v1599 = vor.u32 %v1594, %v1598
    %v1601 = vshrl.u32 %v1498, 16
    %v1603 = vshll.u32 %v1498, 16
    %v1605 = vrot.slane %v1603, 1
    %v1606 = vor.u32 %v1601, %v1605
    %v1608 = vshrl.u32 %v1499, 16
    %v1610 = vshll.u32 %v1499, 16
    %v1612 = vrot.slane %v1610, 1
    %v1613 = vor.u32 %v1608, %v1612
    %v1615 = vshrl.u32 %v1500, 16
    %v1617 = vshll.u32 %v1500, 16
    %v1619 = vrot.slane %v1617, 1
    %v1620 = vor.u32 %v1615, %v1619
    %v1622 = vshrl.u32 %v1501, 16
    %v1624 = vshll.u32 %v1501, 16
    %v1626 = vrot.slane %v1624, 1
    %v1627 = vor.u32 %v1622, %v1626
    %v1629 = vshrl.u32 %v1528, 16
    %v1631 = vshll.u32 %v1528, 16
    %v1633 = vrot.slane %v1631, 1
    %v1634 = vor.u32 %v1629, %v1633
    %v1636 = vshrl.u32 %v1529, 16
    %v1638 = vshll.u32 %v1529, 16
    %v1640 = vrot.slane %v1638, 1
    %v1641 = vor.u32 %v1636, %v1640
    %v1643 = vshrl.u32 %v1530, 16
    %v1645 = vshll.u32 %v1530, 16
    %v1647 = vrot.slane %v1645, 1
    %v1648 = vor.u32 %v1643, %v1647
    %v1650 = vshrl.u32 %v1531, 16
    %v1652 = vshll.u32 %v1531, 16
    %v1654 = vrot.slane %v1652, 1
    %v1655 = vor.u32 %v1650, %v1654
    %v1657 = vshrl.u32 %v1532, 16
    %v1659 = vshll.u32 %v1532, 16
    %v1661 = vrot.slane %v1659, 1
    %v1662 = vor.u32 %v1657, %v1661
    %v1664 = vshrl.u32 %v1533, 16
    %v1666 = vshll.u32 %v1533, 16
    %v1668 = vrot.slane %v1666, 1
    %v1669 = vor.u32 %v1664, %v1668
    %v1671 = vshrl.u32 %v1536, 16
    %v1673 = vshll.u32 %v1536, 16
    %v1675 = vrot.slane %v1673, 1
    %v1676 = vor.u32 %v1671, %v1675
    %v1678 = vshrl.u32 %v1537, 16
    %v1680 = vshll.u32 %v1537, 16
    %v1682 = vrot.slane %v1680, 1
    %v1683 = vor.u32 %v1678, %v1682
    %v1685 = vshrl.u32 %v1538, 16
    %v1687 = vshll.u32 %v1538, 16
    %v1689 = vrot.slane %v1687, 1
    %v1690 = vor.u32 %v1685, %v1689
    %v1692 = vshrl.u32 %v1539, 16
    %v1694 = vshll.u32 %v1539, 16
    %v1696 = vrot.slane %v1694, 1
    %v1697 = vor.u32 %v1692, %v1696
    %v1699 = vshrl.u32 %v1540, 16
    %v1701 = vshll.u32 %v1540, 16
    %v1703 = vrot.slane %v1701, 1
    %v1704 = vor.u32 %v1699, %v1703
    %v1706 = vshrl.u32 %v1541, 16
    %v1708 = vshll.u32 %v1541, 16
    %v1710 = vrot.slane %v1708, 1
    %v1711 = vor.u32 %v1706, %v1710
    %v1712 = vrot.slane %v1488, 1
    %v1713 = vrot.slane %v1489, 1
    %v1714 = vrot.slane %v1490, 1
    %v1715 = vrot.slane %v1491, 1
    %v1716 = vrot.slane %v1492, 1
    %v1717 = vrot.slane %v1493, 1
    %v1718 = vrot.slane %v1496, 1
    %v1719 = vrot.slane %v1497, 1
    %v1720 = vrot.slane %v1498, 1
    %v1721 = vrot.slane %v1499, 1
    %v1722 = vrot.slane %v1500, 1
    %v1723 = vrot.slane %v1501, 1
    %v1724 = vrot.slane %v1528, 1
    %v1725 = vrot.slane %v1529, 1
    %v1726 = vrot.slane %v1530, 1
    %v1727 = vrot.slane %v1531, 1
    %v1728 = vrot.slane %v1532, 1
    %v1729 = vrot.slane %v1533, 1
    %v1730 = vrot.slane %v1536, 1
    %v1731 = vrot.slane %v1537, 1
    %v1732 = vrot.slane %v1538, 1
    %v1733 = vrot.slane %v1539, 1
    %v1734 = vrot.slane %v1540, 1
    %v1735 = vrot.slane %v1541, 1
    %v1737 = vshrl.u32 %v1494, 16
    %v1739 = vshll.u32 %v1494, 16
    %v1741 = vrot.slane %v1739, 1
    %v1742 = vor.u32 %v1737, %v1741
    %v1744 = vshrl.u32 %v1502, 16
    %v1746 = vshll.u32 %v1502, 16
    %v1748 = vrot.slane %v1746, 1
    %v1749 = vor.u32 %v1744, %v1748
    %v1751 = vshrl.u32 %v1534, 16
    %v1753 = vshll.u32 %v1534, 16
    %v1755 = vrot.slane %v1753, 1
    %v1756 = vor.u32 %v1751, %v1755
    %v1758 = vshrl.u32 %v1542, 16
    %v1760 = vshll.u32 %v1542, 16
    %v1762 = vrot.slane %v1760, 1
    %v1763 = vor.u32 %v1758, %v1762
    %v1764 = vrot.slane %v1494, 1
    %v1765 = vrot.slane %v1502, 1
    %v1766 = vrot.slane %v1534, 1
    %v1767 = vrot.slane %v1542, 1
    %v1769 = vshrl.u32 %v1495, 16
    %v1771 = vshll.u32 %v1495, 16
    %v1773 = vrot.slane %v1771, 1
    %v1774 = vor.u32 %v1769, %v1773
    %v1776 = vshrl.u32 %v1503, 16
    %v1778 = vshll.u32 %v1503, 16
    %v1780 = vrot.slane %v1778, 1
    %v1781 = vor.u32 %v1776, %v1780
    %v1783 = vshrl.u32 %v1535, 16
    %v1785 = vshll.u32 %v1535, 16
    %v1787 = vrot.slane %v1785, 1
    %v1788 = vor.u32 %v1783, %v1787
    %v1790 = vshrl.u32 %v1543, 16
    %v1792 = vshll.u32 %v1543, 16
    %v1794 = vrot.slane %v1792, 1
    %v1795 = vor.u32 %v1790, %v1794
    %v1796 = vrot.slane %v1495, 1
    %v1797 = vrot.slane %v1535, 1
    %v1798 = vrot.slane %v1503, 1
    %v1799 = vrot.slane %v1543, 1
    %v1800 = vcombine.low %v1488, %v1528
    %v1801 = vcombine.low %v1550, %v1634
    %v1802 = vcombine.low %v1712, %v1724
    %v1803 = vcombine.low %v1489, %v1529
    %v1805 = vunpack.c.l.s4 1966171168
    %v1806 = vunpack.c.0.s8 %v1805
    %v1807 = vlaneseq
    %v1808 = vshrl.u32 %v1807, 7
    %v1809 = vsub.s32 %v1806, %v1808
    %v1810 = vrot.slane %v1800, %v1809
    %v1812 = vunpack.c.l.s4 1966171168
    %v1813 = vunpack.c.0.s8 %v1812
    %v1814 = vlaneseq
    %v1815 = vshrl.u32 %v1814, 7
    %v1816 = vsub.s32 %v1813, %v1815
    %v1817 = vrot.slane %v1801, %v1816
    %v1819 = vunpack.c.l.s4 1966171168
    %v1820 = vunpack.c.0.s8 %v1819
    %v1821 = vlaneseq
    %v1822 = vshrl.u32 %v1821, 7
    %v1823 = vsub.s32 %v1820, %v1822
    %v1824 = vrot.slane %v1802, %v1823
    %v1826 = vunpack.c.l.s4 1966171168
    %v1827 = vunpack.c.0.s8 %v1826
    %v1828 = vlaneseq
    %v1829 = vshrl.u32 %v1828, 7
    %v1830 = vsub.s32 %v1827, %v1829
    %v1831 = vrot.slane %v1803, %v1830
    %v1832 = vcombine.low %v1810, %v1817
    %v1833 = vcombine.high %v1810, %v1817
    %v1834 = vcombine.low %v1824, %v1831
    %v1835 = vcombine.high %v1824, %v1831
    %v1837 = vunpack.c.l.s4 1966171168
    %v1838 = vunpack.c.0.s8 %v1837
    %v1839 = vlaneseq
    %v1840 = vshrl.u32 %v1839, 7
    %v1841 = vsub.s32 %v1838, %v1840
    %v1842 = vrot.slane %v1832, %v1841
    %v1844 = vunpack.c.l.s4 1966171168
    %v1845 = vunpack.c.0.s8 %v1844
    %v1846 = vlaneseq
    %v1847 = vshrl.u32 %v1846, 7
    %v1848 = vsub.s32 %v1845, %v1847
    %v1849 = vrot.slane %v1833, %v1848
    %v1851 = vunpack.c.l.s4 1966171168
    %v1852 = vunpack.c.0.s8 %v1851
    %v1853 = vlaneseq
    %v1854 = vshrl.u32 %v1853, 7
    %v1855 = vsub.s32 %v1852, %v1854
    %v1856 = vrot.slane %v1834, %v1855
    %v1858 = vunpack.c.l.s4 1966171168
    %v1859 = vunpack.c.0.s8 %v1858
    %v1860 = vlaneseq
    %v1861 = vshrl.u32 %v1860, 7
    %v1862 = vsub.s32 %v1859, %v1861
    %v1863 = vrot.slane %v1835, %v1862
    %v1864 = vcombine.low %v1842, %v1856
    %v1865 = vcombine.high %v1842, %v1856
    %v1866 = vcombine.low %v1849, %v1863
    %v1867 = vcombine.low %v1557, %v1641
    %v1868 = vcombine.low %v1713, %v1725
    %v1869 = vcombine.low %v1490, %v1530
    %v1870 = vcombine.low %v1564, %v1648
    %v1872 = vunpack.c.l.s4 1966171168
    %v1873 = vunpack.c.0.s8 %v1872
    %v1874 = vlaneseq
    %v1875 = vshrl.u32 %v1874, 7
    %v1876 = vsub.s32 %v1873, %v1875
    %v1877 = vrot.slane %v1867, %v1876
    %v1879 = vunpack.c.l.s4 1966171168
    %v1880 = vunpack.c.0.s8 %v1879
    %v1881 = vlaneseq
    %v1882 = vshrl.u32 %v1881, 7
    %v1883 = vsub.s32 %v1880, %v1882
    %v1884 = vrot.slane %v1868, %v1883
    %v1886 = vunpack.c.l.s4 1966171168
    %v1887 = vunpack.c.0.s8 %v1886
    %v1888 = vlaneseq
    %v1889 = vshrl.u32 %v1888, 7
    %v1890 = vsub.s32 %v1887, %v1889
    %v1891 = vrot.slane %v1869, %v1890
    %v1893 = vunpack.c.l.s4 1966171168
    %v1894 = vunpack.c.0.s8 %v1893
    %v1895 = vlaneseq
    %v1896 = vshrl.u32 %v1895, 7
    %v1897 = vsub.s32 %v1894, %v1896
    %v1898 = vrot.slane %v1870, %v1897
    %v1899 = vcombine.low %v1877, %v1884
    %v1900 = vcombine.high %v1877, %v1884
    %v1901 = vcombine.low %v1891, %v1898
    %v1902 = vcombine.high %v1891, %v1898
    %v1904 = vunpack.c.l.s4 1966171168
    %v1905 = vunpack.c.0.s8 %v1904
    %v1906 = vlaneseq
    %v1907 = vshrl.u32 %v1906, 7
    %v1908 = vsub.s32 %v1905, %v1907
    %v1909 = vrot.slane %v1899, %v1908
    %v1911 = vunpack.c.l.s4 1966171168
    %v1912 = vunpack.c.0.s8 %v1911
    %v1913 = vlaneseq
    %v1914 = vshrl.u32 %v1913, 7
    %v1915 = vsub.s32 %v1912, %v1914
    %v1916 = vrot.slane %v1900, %v1915
    %v1918 = vunpack.c.l.s4 1966171168
    %v1919 = vunpack.c.0.s8 %v1918
    %v1920 = vlaneseq
    %v1921 = vshrl.u32 %v1920, 7
    %v1922 = vsub.s32 %v1919, %v1921
    %v1923 = vrot.slane %v1901, %v1922
    %v1925 = vunpack.c.l.s4 1966171168
    %v1926 = vunpack.c.0.s8 %v1925
    %v1927 = vlaneseq
    %v1928 = vshrl.u32 %v1927, 7
    %v1929 = vsub.s32 %v1926, %v1928
    %v1930 = vrot.slane %v1902, %v1929
    %v1931 = vcombine.low %v1909, %v1923
    %v1932 = vcombine.high %v1909, %v1923
    %v1933 = vcombine.low %v1916, %v1930
    %v1934 = vcombine.low %v1714, %v1726
    %v1936 = vunpack.c.l.s4 1966171168
    %v1937 = vunpack.c.0.s8 %v1936
    %v1938 = vlaneseq
    %v1939 = vshrl.u32 %v1938, 7
    %v1940 = vsub.s32 %v1937, %v1939
    %v1941 = vrot.slane %v1934, %v1940
    %v1942 = vcombine.high %v1941, %v1941
    %v1944 = vunpack.c.l.s4 1966171168
    %v1945 = vunpack.c.0.s8 %v1944
    %v1946 = vlaneseq
    %v1947 = vshrl.u32 %v1946, 7
    %v1948 = vsub.s32 %v1945, %v1947
    %v1949 = vrot.slane %v1941, %v1948
    %v1951 = vunpack.c.l.s4 1966171168
    %v1952 = vunpack.c.0.s8 %v1951
    %v1953 = vlaneseq
    %v1954 = vshrl.u32 %v1953, 7
    %v1955 = vsub.s32 %v1952, %v1954
    %v1956 = vrot.slane %v1942, %v1955
    %v1957 = vcombine.high %v1949, %v1949
    %v1958 = vcombine.low %v1831, %v1877
    %v1959 = vcombine.high %v1831, %v1877
    %v1960 = vcombine.low %v1884, %v1891
    %v1961 = vcombine.high %v1884, %v1891
    %v1963 = vunpack.c.l.s4 1966171168
    %v1964 = vunpack.c.0.s8 %v1963
    %v1965 = vlaneseq
    %v1966 = vshrl.u32 %v1965, 7
    %v1967 = vsub.s32 %v1964, %v1966
    %v1968 = vrot.slane %v1958, %v1967
    %v1970 = vunpack.c.l.s4 1966171168
    %v1971 = vunpack.c.0.s8 %v1970
    %v1972 = vlaneseq
    %v1973 = vshrl.u32 %v1972, 7
    %v1974 = vsub.s32 %v1971, %v1973
    %v1975 = vrot.slane %v1959, %v1974
    %v1977 = vunpack.c.l.s4 1966171168
    %v1978 = vunpack.c.0.s8 %v1977
    %v1979 = vlaneseq
    %v1980 = vshrl.u32 %v1979, 7
    %v1981 = vsub.s32 %v1978, %v1980
    %v1982 = vrot.slane %v1960, %v1981
    %v1984 = vunpack.c.l.s4 1966171168
    %v1985 = vunpack.c.0.s8 %v1984
    %v1986 = vlaneseq
    %v1987 = vshrl.u32 %v1986, 7
    %v1988 = vsub.s32 %v1985, %v1987
    %v1989 = vrot.slane %v1961, %v1988
    %v1990 = vcombine.low %v1968, %v1982
    %v1991 = vcombine.high %v1968, %v1982
    %v1992 = vcombine.low %v1975, %v1989
    %v1993 = vcombine.low %v1491, %v1531
    %v1994 = vcombine.low %v1571, %v1655
    %v1996 = vunpack.c.l.s4 1966171168
    %v1997 = vunpack.c.0.s8 %v1996
    %v1998 = vlaneseq
    %v1999 = vshrl.u32 %v1998, 7
    %v2000 = vsub.s32 %v1997, %v1999
    %v2001 = vrot.slane %v1993, %v2000
    %v2003 = vunpack.c.l.s4 1966171168
    %v2004 = vunpack.c.0.s8 %v2003
    %v2005 = vlaneseq
    %v2006 = vshrl.u32 %v2005, 7
    %v2007 = vsub.s32 %v2004, %v2006
    %v2008 = vrot.slane %v1994, %v2007
    %v2009 = vcombine.low %v1898, %v1941
    %v2010 = vcombine.high %v1898, %v1941
    %v2011 = vcombine.low %v2001, %v2008
    %v2012 = vcombine.high %v2001, %v2008
    %v2014 = vunpack.c.l.s4 1966171168
    %v2015 = vunpack.c.0.s8 %v2014
    %v2016 = vlaneseq
    %v2017 = vshrl.u32 %v2016, 7
    %v2018 = vsub.s32 %v2015, %v2017
    %v2019 = vrot.slane %v2009, %v2018
    %v2021 = vunpack.c.l.s4 1966171168
    %v2022 = vunpack.c.0.s8 %v2021
    %v2023 = vlaneseq
    %v2024 = vshrl.u32 %v2023, 7
    %v2025 = vsub.s32 %v2022, %v2024
    %v2026 = vrot.slane %v2010, %v2025
    %v2028 = vunpack.c.l.s4 1966171168
    %v2029 = vunpack.c.0.s8 %v2028
    %v2030 = vlaneseq
    %v2031 = vshrl.u32 %v2030, 7
    %v2032 = vsub.s32 %v2029, %v2031
    %v2033 = vrot.slane %v2011, %v2032
    %v2035 = vunpack.c.l.s4 1966171168
    %v2036 = vunpack.c.0.s8 %v2035
    %v2037 = vlaneseq
    %v2038 = vshrl.u32 %v2037, 7
    %v2039 = vsub.s32 %v2036, %v2038
    %v2040 = vrot.slane %v2012, %v2039
    %v2041 = vcombine.low %v2019, %v2033
    %v2042 = vcombine.high %v2019, %v2033
    %v2043 = vcombine.low %v2026, %v2040
    %v2044 = vcombine.low %v1715, %v1727
    %v2046 = vunpack.c.l.s4 1966171168
    %v2047 = vunpack.c.0.s8 %v2046
    %v2048 = vlaneseq
    %v2049 = vshrl.u32 %v2048, 7
    %v2050 = vsub.s32 %v2047, %v2049
    %v2051 = vrot.slane %v2044, %v2050
    %v2052 = vcombine.high %v2051, %v2051
    %v2054 = vunpack.c.l.s4 1966171168
    %v2055 = vunpack.c.0.s8 %v2054
    %v2056 = vlaneseq
    %v2057 = vshrl.u32 %v2056, 7
    %v2058 = vsub.s32 %v2055, %v2057
    %v2059 = vrot.slane %v2051, %v2058
    %v2061 = vunpack.c.l.s4 1966171168
    %v2062 = vunpack.c.0.s8 %v2061
    %v2063 = vlaneseq
    %v2064 = vshrl.u32 %v2063, 7
    %v2065 = vsub.s32 %v2062, %v2064
    %v2066 = vrot.slane %v2052, %v2065
    %v2067 = vcombine.high %v2059, %v2059
    %v2068 = vcombine.low %v1941, %v2001
    %v2069 = vcombine.high %v1941, %v2001
    %v2071 = vunpack.c.l.s4 1966171168
    %v2072 = vunpack.c.0.s8 %v2071
    %v2073 = vlaneseq
    %v2074 = vshrl.u32 %v2073, 7
    %v2075 = vsub.s32 %v2072, %v2074
    %v2076 = vrot.slane %v2068, %v2075
    %v2078 = vunpack.c.l.s4 1966171168
    %v2079 = vunpack.c.0.s8 %v2078
    %v2080 = vlaneseq
    %v2081 = vshrl.u32 %v2080, 7
    %v2082 = vsub.s32 %v2079, %v2081
    %v2083 = vrot.slane %v2069, %v2082
    %v2084 = vcombine.low %v1923, %v2076
    %v2085 = vcombine.high %v1923, %v2076
    %v2086 = vcombine.low %v1930, %v2083
    %v2087 = vcombine.low %v1492, %v1532
    %v2088 = vcombine.low %v1578, %v1662
    %v2090 = vunpack.c.l.s4 1966171168
    %v2091 = vunpack.c.0.s8 %v2090
    %v2092 = vlaneseq
    %v2093 = vshrl.u32 %v2092, 7
    %v2094 = vsub.s32 %v2091, %v2093
    %v2095 = vrot.slane %v2087, %v2094
    %v2097 = vunpack.c.l.s4 1966171168
    %v2098 = vunpack.c.0.s8 %v2097
    %v2099 = vlaneseq
    %v2100 = vshrl.u32 %v2099, 7
    %v2101 = vsub.s32 %v2098, %v2100
    %v2102 = vrot.slane %v2088, %v2101
    %v2103 = vcombine.low %v2008, %v2051
    %v2104 = vcombine.high %v2008, %v2051
    %v2105 = vcombine.low %v2095, %v2102
    %v2106 = vcombine.high %v2095, %v2102
    %v2108 = vunpack.c.l.s4 1966171168
    %v2109 = vunpack.c.0.s8 %v2108
    %v2110 = vlaneseq
    %v2111 = vshrl.u32 %v2110, 7
    %v2112 = vsub.s32 %v2109, %v2111
    %v2113 = vrot.slane %v2103, %v2112
    %v2115 = vunpack.c.l.s4 1966171168
    %v2116 = vunpack.c.0.s8 %v2115
    %v2117 = vlaneseq
    %v2118 = vshrl.u32 %v2117, 7
    %v2119 = vsub.s32 %v2116, %v2118
    %v2120 = vrot.slane %v2104, %v2119
    %v2122 = vunpack.c.l.s4 1966171168
    %v2123 = vunpack.c.0.s8 %v2122
    %v2124 = vlaneseq
    %v2125 = vshrl.u32 %v2124, 7
    %v2126 = vsub.s32 %v2123, %v2125
    %v2127 = vrot.slane %v2105, %v2126
    %v2129 = vunpack.c.l.s4 1966171168
    %v2130 = vunpack.c.0.s8 %v2129
    %v2131 = vlaneseq
    %v2132 = vshrl.u32 %v2131, 7
    %v2133 = vsub.s32 %v2130, %v2132
    %v2134 = vrot.slane %v2106, %v2133
    %v2135 = vcombine.low %v2113, %v2127
    %v2136 = vcombine.high %v2113, %v2127
    %v2137 = vcombine.low %v2120, %v2134
    %v2138 = vcombine.low %v1716, %v1728
    %v2140 = vunpack.c.l.s4 1966171168
    %v2141 = vunpack.c.0.s8 %v2140
    %v2142 = vlaneseq
    %v2143 = vshrl.u32 %v2142, 7
    %v2144 = vsub.s32 %v2141, %v2143
    %v2145 = vrot.slane %v2138, %v2144
    %v2146 = vcombine.high %v2145, %v2145
    %v2148 = vunpack.c.l.s4 1966171168
    %v2149 = vunpack.c.0.s8 %v2148
    %v2150 = vlaneseq
    %v2151 = vshrl.u32 %v2150, 7
    %v2152 = vsub.s32 %v2149, %v2151
    %v2153 = vrot.slane %v2145, %v2152
    %v2155 = vunpack.c.l.s4 1966171168
    %v2156 = vunpack.c.0.s8 %v2155
    %v2157 = vlaneseq
    %v2158 = vshrl.u32 %v2157, 7
    %v2159 = vsub.s32 %v2156, %v2158
    %v2160 = vrot.slane %v2146, %v2159
    %v2161 = vcombine.high %v2153, %v2153
    %v2162 = vcombine.low %v2051, %v2095
    %v2163 = vcombine.high %v2051, %v2095
    %v2165 = vunpack.c.l.s4 1966171168
    %v2166 = vunpack.c.0.s8 %v2165
    %v2167 = vlaneseq
    %v2168 = vshrl.u32 %v2167, 7
    %v2169 = vsub.s32 %v2166, %v2168
    %v2170 = vrot.slane %v2162, %v2169
    %v2172 = vunpack.c.l.s4 1966171168
    %v2173 = vunpack.c.0.s8 %v2172
    %v2174 = vlaneseq
    %v2175 = vshrl.u32 %v2174, 7
    %v2176 = vsub.s32 %v2173, %v2175
    %v2177 = vrot.slane %v2163, %v2176
    %v2178 = vcombine.low %v2033, %v2170
    %v2179 = vcombine.high %v2033, %v2170
    %v2180 = vcombine.low %v2040, %v2177
    %v2181 = vcombine.low %v1493, %v1533
    %v2182 = vcombine.low %v1585, %v1669
    %v2184 = vunpack.c.l.s4 1966171168
    %v2185 = vunpack.c.0.s8 %v2184
    %v2186 = vlaneseq
    %v2187 = vshrl.u32 %v2186, 7
    %v2188 = vsub.s32 %v2185, %v2187
    %v2189 = vrot.slane %v2181, %v2188
    %v2191 = vunpack.c.l.s4 1966171168
    %v2192 = vunpack.c.0.s8 %v2191
    %v2193 = vlaneseq
    %v2194 = vshrl.u32 %v2193, 7
    %v2195 = vsub.s32 %v2192, %v2194
    %v2196 = vrot.slane %v2182, %v2195
    %v2197 = vcombine.low %v2102, %v2145
    %v2198 = vcombine.high %v2102, %v2145
    %v2199 = vcombine.low %v2189, %v2196
    %v2200 = vcombine.high %v2189, %v2196
    %v2202 = vunpack.c.l.s4 1966171168
    %v2203 = vunpack.c.0.s8 %v2202
    %v2204 = vlaneseq
    %v2205 = vshrl.u32 %v2204, 7
    %v2206 = vsub.s32 %v2203, %v2205
    %v2207 = vrot.slane %v2197, %v2206
    %v2209 = vunpack.c.l.s4 1966171168
    %v2210 = vunpack.c.0.s8 %v2209
    %v2211 = vlaneseq
    %v2212 = vshrl.u32 %v2211, 7
    %v2213 = vsub.s32 %v2210, %v2212
    %v2214 = vrot.slane %v2198, %v2213
    %v2216 = vunpack.c.l.s4 1966171168
    %v2217 = vunpack.c.0.s8 %v2216
    %v2218 = vlaneseq
    %v2219 = vshrl.u32 %v2218, 7
    %v2220 = vsub.s32 %v2217, %v2219
    %v2221 = vrot.slane %v2199, %v2220
    %v2223 = vunpack.c.l.s4 1966171168
    %v2224 = vunpack.c.0.s8 %v2223
    %v2225 = vlaneseq
    %v2226 = vshrl.u32 %v2225, 7
    %v2227 = vsub.s32 %v2224, %v2226
    %v2228 = vrot.slane %v2200, %v2227
    %v2229 = vcombine.low %v2207, %v2221
    %v2230 = vcombine.high %v2207, %v2221
    %v2231 = vcombine.low %v2214, %v2228
    %v2232 = vcombine.low %v1717, %v1729
    %v2234 = vunpack.c.l.s4 1966171168
    %v2235 = vunpack.c.0.s8 %v2234
    %v2236 = vlaneseq
    %v2237 = vshrl.u32 %v2236, 7
    %v2238 = vsub.s32 %v2235, %v2237
    %v2239 = vrot.slane %v2232, %v2238
    %v2240 = vcombine.high %v2239, %v2239
    %v2242 = vunpack.c.l.s4 1966171168
    %v2243 = vunpack.c.0.s8 %v2242
    %v2244 = vlaneseq
    %v2245 = vshrl.u32 %v2244, 7
    %v2246 = vsub.s32 %v2243, %v2245
    %v2247 = vrot.slane %v2239, %v2246
    %v2249 = vunpack.c.l.s4 1966171168
    %v2250 = vunpack.c.0.s8 %v2249
    %v2251 = vlaneseq
    %v2252 = vshrl.u32 %v2251, 7
    %v2253 = vsub.s32 %v2250, %v2252
    %v2254 = vrot.slane %v2240, %v2253
    %v2255 = vcombine.high %v2247, %v2247
    %v2256 = vcombine.low %v2145, %v2189
    %v2257 = vcombine.high %v2145, %v2189
    %v2259 = vunpack.c.l.s4 1966171168
    %v2260 = vunpack.c.0.s8 %v2259
    %v2261 = vlaneseq
    %v2262 = vshrl.u32 %v2261, 7
    %v2263 = vsub.s32 %v2260, %v2262
    %v2264 = vrot.slane %v2256, %v2263
    %v2266 = vunpack.c.l.s4 1966171168
    %v2267 = vunpack.c.0.s8 %v2266
    %v2268 = vlaneseq
    %v2269 = vshrl.u32 %v2268, 7
    %v2270 = vsub.s32 %v2267, %v2269
    %v2271 = vrot.slane %v2257, %v2270
    %v2272 = vcombine.low %v2127, %v2264
    %v2273 = vcombine.high %v2127, %v2264
    %v2274 = vcombine.low %v2134, %v2271
    %v2275 = vcombine.low %v1494, %v1534
    %v2276 = vcombine.low %v1742, %v1756
    %v2278 = vunpack.c.l.s4 1966171168
    %v2279 = vunpack.c.0.s8 %v2278
    %v2280 = vlaneseq
    %v2281 = vshrl.u32 %v2280, 7
    %v2282 = vsub.s32 %v2279, %v2281
    %v2283 = vrot.slane %v2275, %v2282
    %v2285 = vunpack.c.l.s4 1966171168
    %v2286 = vunpack.c.0.s8 %v2285
    %v2287 = vlaneseq
    %v2288 = vshrl.u32 %v2287, 7
    %v2289 = vsub.s32 %v2286, %v2288
    %v2290 = vrot.slane %v2276, %v2289
    %v2291 = vcombine.low %v2196, %v2239
    %v2292 = vcombine.high %v2196, %v2239
    %v2293 = vcombine.low %v2283, %v2290
    %v2294 = vcombine.high %v2283, %v2290
    %v2296 = vunpack.c.l.s4 1966171168
    %v2297 = vunpack.c.0.s8 %v2296
    %v2298 = vlaneseq
    %v2299 = vshrl.u32 %v2298, 7
    %v2300 = vsub.s32 %v2297, %v2299
    %v2301 = vrot.slane %v2291, %v2300
    %v2303 = vunpack.c.l.s4 1966171168
    %v2304 = vunpack.c.0.s8 %v2303
    %v2305 = vlaneseq
    %v2306 = vshrl.u32 %v2305, 7
    %v2307 = vsub.s32 %v2304, %v2306
    %v2308 = vrot.slane %v2292, %v2307
    %v2310 = vunpack.c.l.s4 1966171168
    %v2311 = vunpack.c.0.s8 %v2310
    %v2312 = vlaneseq
    %v2313 = vshrl.u32 %v2312, 7
    %v2314 = vsub.s32 %v2311, %v2313
    %v2315 = vrot.slane %v2293, %v2314
    %v2317 = vunpack.c.l.s4 1966171168
    %v2318 = vunpack.c.0.s8 %v2317
    %v2319 = vlaneseq
    %v2320 = vshrl.u32 %v2319, 7
    %v2321 = vsub.s32 %v2318, %v2320
    %v2322 = vrot.slane %v2294, %v2321
    %v2323 = vcombine.low %v2301, %v2315
    %v2324 = vcombine.high %v2301, %v2315
    %v2325 = vcombine.low %v2308, %v2322
    %v2326 = vcombine.low %v1764, %v1766
    %v2328 = vunpack.c.l.s4 1966171168
    %v2329 = vunpack.c.0.s8 %v2328
    %v2330 = vlaneseq
    %v2331 = vshrl.u32 %v2330, 7
    %v2332 = vsub.s32 %v2329, %v2331
    %v2333 = vrot.slane %v2326, %v2332
    %v2334 = vcombine.high %v2333, %v2333
    %v2336 = vunpack.c.l.s4 1966171168
    %v2337 = vunpack.c.0.s8 %v2336
    %v2338 = vlaneseq
    %v2339 = vshrl.u32 %v2338, 7
    %v2340 = vsub.s32 %v2337, %v2339
    %v2341 = vrot.slane %v2333, %v2340
    %v2343 = vunpack.c.l.s4 1966171168
    %v2344 = vunpack.c.0.s8 %v2343
    %v2345 = vlaneseq
    %v2346 = vshrl.u32 %v2345, 7
    %v2347 = vsub.s32 %v2344, %v2346
    %v2348 = vrot.slane %v2334, %v2347
    %v2349 = vcombine.high %v2341, %v2341
    %v2350 = vcombine.low %v2239, %v2283
    %v2351 = vcombine.high %v2239, %v2283
    %v2353 = vunpack.c.l.s4 1966171168
    %v2354 = vunpack.c.0.s8 %v2353
    %v2355 = vlaneseq
    %v2356 = vshrl.u32 %v2355, 7
    %v2357 = vsub.s32 %v2354, %v2356
    %v2358 = vrot.slane %v2350, %v2357
    %v2360 = vunpack.c.l.s4 1966171168
    %v2361 = vunpack.c.0.s8 %v2360
    %v2362 = vlaneseq
    %v2363 = vshrl.u32 %v2362, 7
    %v2364 = vsub.s32 %v2361, %v2363
    %v2365 = vrot.slane %v2351, %v2364
    %v2366 = vcombine.low %v2221, %v2358
    %v2367 = vcombine.high %v2221, %v2358
    %v2368 = vcombine.low %v2228, %v2365
    %v2369 = vcombine.low %v1495, %v1535
    %v2370 = vcombine.low %v1774, %v1788
    %v2372 = vunpack.c.l.s4 1966171168
    %v2373 = vunpack.c.0.s8 %v2372
    %v2374 = vlaneseq
    %v2375 = vshrl.u32 %v2374, 7
    %v2376 = vsub.s32 %v2373, %v2375
    %v2377 = vrot.slane %v2369, %v2376
    %v2379 = vunpack.c.l.s4 1966171168
    %v2380 = vunpack.c.0.s8 %v2379
    %v2381 = vlaneseq
    %v2382 = vshrl.u32 %v2381, 7
    %v2383 = vsub.s32 %v2380, %v2382
    %v2384 = vrot.slane %v2370, %v2383
    %v2385 = vcombine.low %v2290, %v2333
    %v2386 = vcombine.high %v2290, %v2333
    %v2387 = vcombine.low %v2377, %v2384
    %v2388 = vcombine.high %v2377, %v2384
    %v2390 = vunpack.c.l.s4 1966171168
    %v2391 = vunpack.c.0.s8 %v2390
    %v2392 = vlaneseq
    %v2393 = vshrl.u32 %v2392, 7
    %v2394 = vsub.s32 %v2391, %v2393
    %v2395 = vrot.slane %v2385, %v2394
    %v2397 = vunpack.c.l.s4 1966171168
    %v2398 = vunpack.c.0.s8 %v2397
    %v2399 = vlaneseq
    %v2400 = vshrl.u32 %v2399, 7
    %v2401 = vsub.s32 %v2398, %v2400
    %v2402 = vrot.slane %v2386, %v2401
    %v2404 = vunpack.c.l.s4 1966171168
    %v2405 = vunpack.c.0.s8 %v2404
    %v2406 = vlaneseq
    %v2407 = vshrl.u32 %v2406, 7
    %v2408 = vsub.s32 %v2405, %v2407
    %v2409 = vrot.slane %v2387, %v2408
    %v2411 = vunpack.c.l.s4 1966171168
    %v2412 = vunpack.c.0.s8 %v2411
    %v2413 = vlaneseq
    %v2414 = vshrl.u32 %v2413, 7
    %v2415 = vsub.s32 %v2412, %v2414
    %v2416 = vrot.slane %v2388, %v2415
    %v2417 = vcombine.low %v2395, %v2409
    %v2418 = vcombine.high %v2395, %v2409
    %v2419 = vcombine.low %v2402, %v2416
    %v2420 = vcombine.low %v1796, %v1797
    %v2422 = vunpack.c.l.s4 1966171168
    %v2423 = vunpack.c.0.s8 %v2422
    %v2424 = vlaneseq
    %v2425 = vshrl.u32 %v2424, 7
    %v2426 = vsub.s32 %v2423, %v2425
    %v2427 = vrot.slane %v2420, %v2426
    %v2428 = vcombine.high %v2427, %v2427
    %v2430 = vunpack.c.l.s4 1966171168
    %v2431 = vunpack.c.0.s8 %v2430
    %v2432 = vlaneseq
    %v2433 = vshrl.u32 %v2432, 7
    %v2434 = vsub.s32 %v2431, %v2433
    %v2435 = vrot.slane %v2427, %v2434
    %v2437 = vunpack.c.l.s4 1966171168
    %v2438 = vunpack.c.0.s8 %v2437
    %v2439 = vlaneseq
    %v2440 = vshrl.u32 %v2439, 7
    %v2441 = vsub.s32 %v2438, %v2440
    %v2442 = vrot.slane %v2428, %v2441
    %v2443 = vcombine.high %v2435, %v2435
    %v2444 = vcombine.low %v1496, %v1536
    %v2445 = vcombine.low %v1592, %v1676
    %v2446 = vcombine.low %v1718, %v1730
    %v2447 = vcombine.low %v1497, %v1537
    %v2449 = vunpack.c.l.s4 1966171168
    %v2450 = vunpack.c.0.s8 %v2449
    %v2451 = vlaneseq
    %v2452 = vshrl.u32 %v2451, 7
    %v2453 = vsub.s32 %v2450, %v2452
    %v2454 = vrot.slane %v2444, %v2453
    %v2456 = vunpack.c.l.s4 1966171168
    %v2457 = vunpack.c.0.s8 %v2456
    %v2458 = vlaneseq
    %v2459 = vshrl.u32 %v2458, 7
    %v2460 = vsub.s32 %v2457, %v2459
    %v2461 = vrot.slane %v2445, %v2460
    %v2463 = vunpack.c.l.s4 1966171168
    %v2464 = vunpack.c.0.s8 %v2463
    %v2465 = vlaneseq
    %v2466 = vshrl.u32 %v2465, 7
    %v2467 = vsub.s32 %v2464, %v2466
    %v2468 = vrot.slane %v2446, %v2467
    %v2470 = vunpack.c.l.s4 1966171168
    %v2471 = vunpack.c.0.s8 %v2470
    %v2472 = vlaneseq
    %v2473 = vshrl.u32 %v2472, 7
    %v2474 = vsub.s32 %v2471, %v2473
    %v2475 = vrot.slane %v2447, %v2474
    %v2476 = vcombine.low %v2454, %v2461
    %v2477 = vcombine.high %v2454, %v2461
    %v2478 = vcombine.low %v2468, %v2475
    %v2479 = vcombine.high %v2468, %v2475
    %v2481 = vunpack.c.l.s4 1966171168
    %v2482 = vunpack.c.0.s8 %v2481
    %v2483 = vlaneseq
    %v2484 = vshrl.u32 %v2483, 7
    %v2485 = vsub.s32 %v2482, %v2484
    %v2486 = vrot.slane %v2476, %v2485
    %v2488 = vunpack.c.l.s4 1966171168
    %v2489 = vunpack.c.0.s8 %v2488
    %v2490 = vlaneseq
    %v2491 = vshrl.u32 %v2490, 7
    %v2492 = vsub.s32 %v2489, %v2491
    %v2493 = vrot.slane %v2477, %v2492
    %v2495 = vunpack.c.l.s4 1966171168
    %v2496 = vunpack.c.0.s8 %v2495
    %v2497 = vlaneseq
    %v2498 = vshrl.u32 %v2497, 7
    %v2499 = vsub.s32 %v2496, %v2498
    %v2500 = vrot.slane %v2478, %v2499
    %v2502 = vunpack.c.l.s4 1966171168
    %v2503 = vunpack.c.0.s8 %v2502
    %v2504 = vlaneseq
    %v2505 = vshrl.u32 %v2504, 7
    %v2506 = vsub.s32 %v2503, %v2505
    %v2507 = vrot.slane %v2479, %v2506
    %v2508 = vcombine.low %v2486, %v2500
    %v2509 = vcombine.high %v2486, %v2500
    %v2510 = vcombine.low %v2493, %v2507
    %v2511 = vcombine.low %v1599, %v1683
    %v2512 = vcombine.low %v1719, %v1731
    %v2513 = vcombine.low %v1498, %v1538
    %v2514 = vcombine.low %v1606, %v1690
    %v2516 = vunpack.c.l.s4 1966171168
    %v2517 = vunpack.c.0.s8 %v2516
    %v2518 = vlaneseq
    %v2519 = vshrl.u32 %v2518, 7
    %v2520 = vsub.s32 %v2517, %v2519
    %v2521 = vrot.slane %v2511, %v2520
    %v2523 = vunpack.c.l.s4 1966171168
    %v2524 = vunpack.c.0.s8 %v2523
    %v2525 = vlaneseq
    %v2526 = vshrl.u32 %v2525, 7
    %v2527 = vsub.s32 %v2524, %v2526
    %v2528 = vrot.slane %v2512, %v2527
    %v2530 = vunpack.c.l.s4 1966171168
    %v2531 = vunpack.c.0.s8 %v2530
    %v2532 = vlaneseq
    %v2533 = vshrl.u32 %v2532, 7
    %v2534 = vsub.s32 %v2531, %v2533
    %v2535 = vrot.slane %v2513, %v2534
    %v2537 = vunpack.c.l.s4 1966171168
    %v2538 = vunpack.c.0.s8 %v2537
    %v2539 = vlaneseq
    %v2540 = vshrl.u32 %v2539, 7
    %v2541 = vsub.s32 %v2538, %v2540
    %v2542 = vrot.slane %v2514, %v2541
    %v2543 = vcombine.low %v2521, %v2528
    %v2544 = vcombine.high %v2521, %v2528
    %v2545 = vcombine.low %v2535, %v2542
    %v2546 = vcombine.high %v2535, %v2542
    %v2548 = vunpack.c.l.s4 1966171168
    %v2549 = vunpack.c.0.s8 %v2548
    %v2550 = vlaneseq
    %v2551 = vshrl.u32 %v2550, 7
    %v2552 = vsub.s32 %v2549, %v2551
    %v2553 = vrot.slane %v2543, %v2552
    %v2555 = vunpack.c.l.s4 1966171168
    %v2556 = vunpack.c.0.s8 %v2555
    %v2557 = vlaneseq
    %v2558 = vshrl.u32 %v2557, 7
    %v2559 = vsub.s32 %v2556, %v2558
    %v2560 = vrot.slane %v2544, %v2559
    %v2562 = vunpack.c.l.s4 1966171168
    %v2563 = vunpack.c.0.s8 %v2562
    %v2564 = vlaneseq
    %v2565 = vshrl.u32 %v2564, 7
    %v2566 = vsub.s32 %v2563, %v2565
    %v2567 = vrot.slane %v2545, %v2566
    %v2569 = vunpack.c.l.s4 1966171168
    %v2570 = vunpack.c.0.s8 %v2569
    %v2571 = vlaneseq
    %v2572 = vshrl.u32 %v2571, 7
    %v2573 = vsub.s32 %v2570, %v2572
    %v2574 = vrot.slane %v2546, %v2573
    %v2575 = vcombine.low %v2553, %v2567
    %v2576 = vcombine.high %v2553, %v2567
    %v2577 = vcombine.low %v2560, %v2574
    %v2578 = vcombine.low %v1720, %v1732
    %v2580 = vunpack.c.l.s4 1966171168
    %v2581 = vunpack.c.0.s8 %v2580
    %v2582 = vlaneseq
    %v2583 = vshrl.u32 %v2582, 7
    %v2584 = vsub.s32 %v2581, %v2583
    %v2585 = vrot.slane %v2578, %v2584
    %v2586 = vcombine.high %v2585, %v2585
    %v2588 = vunpack.c.l.s4 1966171168
    %v2589 = vunpack.c.0.s8 %v2588
    %v2590 = vlaneseq
    %v2591 = vshrl.u32 %v2590, 7
    %v2592 = vsub.s32 %v2589, %v2591
    %v2593 = vrot.slane %v2585, %v2592
    %v2595 = vunpack.c.l.s4 1966171168
    %v2596 = vunpack.c.0.s8 %v2595
    %v2597 = vlaneseq
    %v2598 = vshrl.u32 %v2597, 7
    %v2599 = vsub.s32 %v2596, %v2598
    %v2600 = vrot.slane %v2586, %v2599
    %v2601 = vcombine.high %v2593, %v2593
    %v2602 = vcombine.low %v2475, %v2521
    %v2603 = vcombine.high %v2475, %v2521
    %v2604 = vcombine.low %v2528, %v2535
    %v2605 = vcombine.high %v2528, %v2535
    %v2607 = vunpack.c.l.s4 1966171168
    %v2608 = vunpack.c.0.s8 %v2607
    %v2609 = vlaneseq
    %v2610 = vshrl.u32 %v2609, 7
    %v2611 = vsub.s32 %v2608, %v2610
    %v2612 = vrot.slane %v2602, %v2611
    %v2614 = vunpack.c.l.s4 1966171168
    %v2615 = vunpack.c.0.s8 %v2614
    %v2616 = vlaneseq
    %v2617 = vshrl.u32 %v2616, 7
    %v2618 = vsub.s32 %v2615, %v2617
    %v2619 = vrot.slane %v2603, %v2618
    %v2621 = vunpack.c.l.s4 1966171168
    %v2622 = vunpack.c.0.s8 %v2621
    %v2623 = vlaneseq
    %v2624 = vshrl.u32 %v2623, 7
    %v2625 = vsub.s32 %v2622, %v2624
    %v2626 = vrot.slane %v2604, %v2625
    %v2628 = vunpack.c.l.s4 1966171168
    %v2629 = vunpack.c.0.s8 %v2628
    %v2630 = vlaneseq
    %v2631 = vshrl.u32 %v2630, 7
    %v2632 = vsub.s32 %v2629, %v2631
    %v2633 = vrot.slane %v2605, %v2632
    %v2634 = vcombine.low %v2612, %v2626
    %v2635 = vcombine.high %v2612, %v2626
    %v2636 = vcombine.low %v2619, %v2633
    %v2637 = vcombine.low %v1499, %v1539
    %v2638 = vcombine.low %v1613, %v1697
    %v2640 = vunpack.c.l.s4 1966171168
    %v2641 = vunpack.c.0.s8 %v2640
    %v2642 = vlaneseq
    %v2643 = vshrl.u32 %v2642, 7
    %v2644 = vsub.s32 %v2641, %v2643
    %v2645 = vrot.slane %v2637, %v2644
    %v2647 = vunpack.c.l.s4 1966171168
    %v2648 = vunpack.c.0.s8 %v2647
    %v2649 = vlaneseq
    %v2650 = vshrl.u32 %v2649, 7
    %v2651 = vsub.s32 %v2648, %v2650
    %v2652 = vrot.slane %v2638, %v2651
    %v2653 = vcombine.low %v2542, %v2585
    %v2654 = vcombine.high %v2542, %v2585
    %v2655 = vcombine.low %v2645, %v2652
    %v2656 = vcombine.high %v2645, %v2652
    %v2658 = vunpack.c.l.s4 1966171168
    %v2659 = vunpack.c.0.s8 %v2658
    %v2660 = vlaneseq
    %v2661 = vshrl.u32 %v2660, 7
    %v2662 = vsub.s32 %v2659, %v2661
    %v2663 = vrot.slane %v2653, %v2662
    %v2665 = vunpack.c.l.s4 1966171168
    %v2666 = vunpack.c.0.s8 %v2665
    %v2667 = vlaneseq
    %v2668 = vshrl.u32 %v2667, 7
    %v2669 = vsub.s32 %v2666, %v2668
    %v2670 = vrot.slane %v2654, %v2669
    %v2672 = vunpack.c.l.s4 1966171168
    %v2673 = vunpack.c.0.s8 %v2672
    %v2674 = vlaneseq
    %v2675 = vshrl.u32 %v2674, 7
    %v2676 = vsub.s32 %v2673, %v2675
    %v2677 = vrot.slane %v2655, %v2676
    %v2679 = vunpack.c.l.s4 1966171168
    %v2680 = vunpack.c.0.s8 %v2679
    %v2681 = vlaneseq
    %v2682 = vshrl.u32 %v2681, 7
    %v2683 = vsub.s32 %v2680, %v2682
    %v2684 = vrot.slane %v2656, %v2683
    %v2685 = vcombine.low %v2663, %v2677
    %v2686 = vcombine.high %v2663, %v2677
    %v2687 = vcombine.low %v2670, %v2684
    %v2688 = vcombine.low %v1721, %v1733
    %v2690 = vunpack.c.l.s4 1966171168
    %v2691 = vunpack.c.0.s8 %v2690
    %v2692 = vlaneseq
    %v2693 = vshrl.u32 %v2692, 7
    %v2694 = vsub.s32 %v2691, %v2693
    %v2695 = vrot.slane %v2688, %v2694
    %v2696 = vcombine.high %v2695, %v2695
    %v2698 = vunpack.c.l.s4 1966171168
    %v2699 = vunpack.c.0.s8 %v2698
    %v2700 = vlaneseq
    %v2701 = vshrl.u32 %v2700, 7
    %v2702 = vsub.s32 %v2699, %v2701
    %v2703 = vrot.slane %v2695, %v2702
    %v2705 = vunpack.c.l.s4 1966171168
    %v2706 = vunpack.c.0.s8 %v2705
    %v2707 = vlaneseq
    %v2708 = vshrl.u32 %v2707, 7
    %v2709 = vsub.s32 %v2706, %v2708
    %v2710 = vrot.slane %v2696, %v2709
    %v2711 = vcombine.high %v2703, %v2703
    %v2712 = vcombine.low %v2585, %v2645
    %v2713 = vcombine.high %v2585, %v2645
    %v2715 = vunpack.c.l.s4 1966171168
    %v2716 = vunpack.c.0.s8 %v2715
    %v2717 = vlaneseq
    %v2718 = vshrl.u32 %v2717, 7
    %v2719 = vsub.s32 %v2716, %v2718
    %v2720 = vrot.slane %v2712, %v2719
    %v2722 = vunpack.c.l.s4 1966171168
    %v2723 = vunpack.c.0.s8 %v2722
    %v2724 = vlaneseq
    %v2725 = vshrl.u32 %v2724, 7
    %v2726 = vsub.s32 %v2723, %v2725
    %v2727 = vrot.slane %v2713, %v2726
    %v2728 = vcombine.low %v2567, %v2720
    %v2729 = vcombine.high %v2567, %v2720
    %v2730 = vcombine.low %v2574, %v2727
    %v2731 = vcombine.low %v1500, %v1540
    %v2732 = vcombine.low %v1620, %v1704
    %v2734 = vunpack.c.l.s4 1966171168
    %v2735 = vunpack.c.0.s8 %v2734
    %v2736 = vlaneseq
    %v2737 = vshrl.u32 %v2736, 7
    %v2738 = vsub.s32 %v2735, %v2737
    %v2739 = vrot.slane %v2731, %v2738
    %v2741 = vunpack.c.l.s4 1966171168
    %v2742 = vunpack.c.0.s8 %v2741
    %v2743 = vlaneseq
    %v2744 = vshrl.u32 %v2743, 7
    %v2745 = vsub.s32 %v2742, %v2744
    %v2746 = vrot.slane %v2732, %v2745
    %v2747 = vcombine.low %v2652, %v2695
    %v2748 = vcombine.high %v2652, %v2695
    %v2749 = vcombine.low %v2739, %v2746
    %v2750 = vcombine.high %v2739, %v2746
    %v2752 = vunpack.c.l.s4 1966171168
    %v2753 = vunpack.c.0.s8 %v2752
    %v2754 = vlaneseq
    %v2755 = vshrl.u32 %v2754, 7
    %v2756 = vsub.s32 %v2753, %v2755
    %v2757 = vrot.slane %v2747, %v2756
    %v2759 = vunpack.c.l.s4 1966171168
    %v2760 = vunpack.c.0.s8 %v2759
    %v2761 = vlaneseq
    %v2762 = vshrl.u32 %v2761, 7
    %v2763 = vsub.s32 %v2760, %v2762
    %v2764 = vrot.slane %v2748, %v2763
    %v2766 = vunpack.c.l.s4 1966171168
    %v2767 = vunpack.c.0.s8 %v2766
    %v2768 = vlaneseq
    %v2769 = vshrl.u32 %v2768, 7
    %v2770 = vsub.s32 %v2767, %v2769
    %v2771 = vrot.slane %v2749, %v2770
    %v2773 = vunpack.c.l.s4 1966171168
    %v2774 = vunpack.c.0.s8 %v2773
    %v2775 = vlaneseq
    %v2776 = vshrl.u32 %v2775, 7
    %v2777 = vsub.s32 %v2774, %v2776
    %v2778 = vrot.slane %v2750, %v2777
    %v2779 = vcombine.low %v2757, %v2771
    %v2780 = vcombine.high %v2757, %v2771
    %v2781 = vcombine.low %v2764, %v2778
    %v2782 = vcombine.low %v1722, %v1734
    %v2784 = vunpack.c.l.s4 1966171168
    %v2785 = vunpack.c.0.s8 %v2784
    %v2786 = vlaneseq
    %v2787 = vshrl.u32 %v2786, 7
    %v2788 = vsub.s32 %v2785, %v2787
    %v2789 = vrot.slane %v2782, %v2788
    %v2790 = vcombine.high %v2789, %v2789
    %v2792 = vunpack.c.l.s4 1966171168
    %v2793 = vunpack.c.0.s8 %v2792
    %v2794 = vlaneseq
    %v2795 = vshrl.u32 %v2794, 7
    %v2796 = vsub.s32 %v2793, %v2795
    %v2797 = vrot.slane %v2789, %v2796
    %v2799 = vunpack.c.l.s4 1966171168
    %v2800 = vunpack.c.0.s8 %v2799
    %v2801 = vlaneseq
    %v2802 = vshrl.u32 %v2801, 7
    %v2803 = vsub.s32 %v2800, %v2802
    %v2804 = vrot.slane %v2790, %v2803
    %v2805 = vcombine.high %v2797, %v2797
    %v2806 = vcombine.low %v2695, %v2739
    %v2807 = vcombine.high %v2695, %v2739
    %v2809 = vunpack.c.l.s4 1966171168
    %v2810 = vunpack.c.0.s8 %v2809
    %v2811 = vlaneseq
    %v2812 = vshrl.u32 %v2811, 7
    %v2813 = vsub.s32 %v2810, %v2812
    %v2814 = vrot.slane %v2806, %v2813
    %v2816 = vunpack.c.l.s4 1966171168
    %v2817 = vunpack.c.0.s8 %v2816
    %v2818 = vlaneseq
    %v2819 = vshrl.u32 %v2818, 7
    %v2820 = vsub.s32 %v2817, %v2819
    %v2821 = vrot.slane %v2807, %v2820
    %v2822 = vcombine.low %v2677, %v2814
    %v2823 = vcombine.high %v2677, %v2814
    %v2824 = vcombine.low %v2684, %v2821
    %v2825 = vcombine.low %v1501, %v1541
    %v2826 = vcombine.low %v1627, %v1711
    %v2828 = vunpack.c.l.s4 1966171168
    %v2829 = vunpack.c.0.s8 %v2828
    %v2830 = vlaneseq
    %v2831 = vshrl.u32 %v2830, 7
    %v2832 = vsub.s32 %v2829, %v2831
    %v2833 = vrot.slane %v2825, %v2832
    %v2835 = vunpack.c.l.s4 1966171168
    %v2836 = vunpack.c.0.s8 %v2835
    %v2837 = vlaneseq
    %v2838 = vshrl.u32 %v2837, 7
    %v2839 = vsub.s32 %v2836, %v2838
    %v2840 = vrot.slane %v2826, %v2839
    %v2841 = vcombine.low %v2746, %v2789
    %v2842 = vcombine.high %v2746, %v2789
    %v2843 = vcombine.low %v2833, %v2840
    %v2844 = vcombine.high %v2833, %v2840
    %v2846 = vunpack.c.l.s4 1966171168
    %v2847 = vunpack.c.0.s8 %v2846
    %v2848 = vlaneseq
    %v2849 = vshrl.u32 %v2848, 7
    %v2850 = vsub.s32 %v2847, %v2849
    %v2851 = vrot.slane %v2841, %v2850
    %v2853 = vunpack.c.l.s4 1966171168
    %v2854 = vunpack.c.0.s8 %v2853
    %v2855 = vlaneseq
    %v2856 = vshrl.u32 %v2855, 7
    %v2857 = vsub.s32 %v2854, %v2856
    %v2858 = vrot.slane %v2842, %v2857
    %v2860 = vunpack.c.l.s4 1966171168
    %v2861 = vunpack.c.0.s8 %v2860
    %v2862 = vlaneseq
    %v2863 = vshrl.u32 %v2862, 7
    %v2864 = vsub.s32 %v2861, %v2863
    %v2865 = vrot.slane %v2843, %v2864
    %v2867 = vunpack.c.l.s4 1966171168
    %v2868 = vunpack.c.0.s8 %v2867
    %v2869 = vlaneseq
    %v2870 = vshrl.u32 %v2869, 7
    %v2871 = vsub.s32 %v2868, %v2870
    %v2872 = vrot.slane %v2844, %v2871
    %v2873 = vcombine.low %v2851, %v2865
    %v2874 = vcombine.high %v2851, %v2865
    %v2875 = vcombine.low %v2858, %v2872
    %v2876 = vcombine.low %v1723, %v1735
    %v2878 = vunpack.c.l.s4 1966171168
    %v2879 = vunpack.c.0.s8 %v2878
    %v2880 = vlaneseq
    %v2881 = vshrl.u32 %v2880, 7
    %v2882 = vsub.s32 %v2879, %v2881
    %v2883 = vrot.slane %v2876, %v2882
    %v2884 = vcombine.high %v2883, %v2883
    %v2886 = vunpack.c.l.s4 1966171168
    %v2887 = vunpack.c.0.s8 %v2886
    %v2888 = vlaneseq
    %v2889 = vshrl.u32 %v2888, 7
    %v2890 = vsub.s32 %v2887, %v2889
    %v2891 = vrot.slane %v2883, %v2890
    %v2893 = vunpack.c.l.s4 1966171168
    %v2894 = vunpack.c.0.s8 %v2893
    %v2895 = vlaneseq
    %v2896 = vshrl.u32 %v2895, 7
    %v2897 = vsub.s32 %v2894, %v2896
    %v2898 = vrot.slane %v2884, %v2897
    %v2899 = vcombine.high %v2891, %v2891
    %v2900 = vcombine.low %v2789, %v2833
    %v2901 = vcombine.high %v2789, %v2833
    %v2903 = vunpack.c.l.s4 1966171168
    %v2904 = vunpack.c.0.s8 %v2903
    %v2905 = vlaneseq
    %v2906 = vshrl.u32 %v2905, 7
    %v2907 = vsub.s32 %v2904, %v2906
    %v2908 = vrot.slane %v2900, %v2907
    %v2910 = vunpack.c.l.s4 1966171168
    %v2911 = vunpack.c.0.s8 %v2910
    %v2912 = vlaneseq
    %v2913 = vshrl.u32 %v2912, 7
    %v2914 = vsub.s32 %v2911, %v2913
    %v2915 = vrot.slane %v2901, %v2914
    %v2916 = vcombine.low %v2771, %v2908
    %v2917 = vcombine.high %v2771, %v2908
    %v2918 = vcombine.low %v2778, %v2915
    %v2919 = vcombine.low %v1502, %v1542
    %v2920 = vcombine.low %v1749, %v1763
    %v2922 = vunpack.c.l.s4 1966171168
    %v2923 = vunpack.c.0.s8 %v2922
    %v2924 = vlaneseq
    %v2925 = vshrl.u32 %v2924, 7
    %v2926 = vsub.s32 %v2923, %v2925
    %v2927 = vrot.slane %v2919, %v2926
    %v2929 = vunpack.c.l.s4 1966171168
    %v2930 = vunpack.c.0.s8 %v2929
    %v2931 = vlaneseq
    %v2932 = vshrl.u32 %v2931, 7
    %v2933 = vsub.s32 %v2930, %v2932
    %v2934 = vrot.slane %v2920, %v2933
    %v2935 = vcombine.low %v2840, %v2883
    %v2936 = vcombine.high %v2840, %v2883
    %v2937 = vcombine.low %v2927, %v2934
    %v2938 = vcombine.high %v2927, %v2934
    %v2940 = vunpack.c.l.s4 1966171168
    %v2941 = vunpack.c.0.s8 %v2940
    %v2942 = vlaneseq
    %v2943 = vshrl.u32 %v2942, 7
    %v2944 = vsub.s32 %v2941, %v2943
    %v2945 = vrot.slane %v2935, %v2944
    %v2947 = vunpack.c.l.s4 1966171168
    %v2948 = vunpack.c.0.s8 %v2947
    %v2949 = vlaneseq
    %v2950 = vshrl.u32 %v2949, 7
    %v2951 = vsub.s32 %v2948, %v2950
    %v2952 = vrot.slane %v2936, %v2951
    %v2954 = vunpack.c.l.s4 1966171168
    %v2955 = vunpack.c.0.s8 %v2954
    %v2956 = vlaneseq
    %v2957 = vshrl.u32 %v2956, 7
    %v2958 = vsub.s32 %v2955, %v2957
    %v2959 = vrot.slane %v2937, %v2958
    %v2961 = vunpack.c.l.s4 1966171168
    %v2962 = vunpack.c.0.s8 %v2961
    %v2963 = vlaneseq
    %v2964 = vshrl.u32 %v2963, 7
    %v2965 = vsub.s32 %v2962, %v2964
    %v2966 = vrot.slane %v2938, %v2965
    %v2967 = vcombine.low %v2945, %v2959
    %v2968 = vcombine.high %v2945, %v2959
    %v2969 = vcombine.low %v2952, %v2966
    %v2970 = vcombine.low %v1765, %v1767
    %v2972 = vunpack.c.l.s4 1966171168
    %v2973 = vunpack.c.0.s8 %v2972
    %v2974 = vlaneseq
    %v2975 = vshrl.u32 %v2974, 7
    %v2976 = vsub.s32 %v2973, %v2975
    %v2977 = vrot.slane %v2970, %v2976
    %v2978 = vcombine.high %v2977, %v2977
    %v2980 = vunpack.c.l.s4 1966171168
    %v2981 = vunpack.c.0.s8 %v2980
    %v2982 = vlaneseq
    %v2983 = vshrl.u32 %v2982, 7
    %v2984 = vsub.s32 %v2981, %v2983
    %v2985 = vrot.slane %v2977, %v2984
    %v2987 = vunpack.c.l.s4 1966171168
    %v2988 = vunpack.c.0.s8 %v2987
    %v2989 = vlaneseq
    %v2990 = vshrl.u32 %v2989, 7
    %v2991 = vsub.s32 %v2988, %v2990
    %v2992 = vrot.slane %v2978, %v2991
    %v2993 = vcombine.high %v2985, %v2985
    %v2994 = vcombine.low %v2883, %v2927
    %v2995 = vcombine.high %v2883, %v2927
    %v2997 = vunpack.c.l.s4 1966171168
    %v2998 = vunpack.c.0.s8 %v2997
    %v2999 = vlaneseq
    %v3000 = vshrl.u32 %v2999, 7
    %v3001 = vsub.s32 %v2998, %v3000
    %v3002 = vrot.slane %v2994, %v3001
    %v3004 = vunpack.c.l.s4 1966171168
    %v3005 = vunpack.c.0.s8 %v3004
    %v3006 = vlaneseq
    %v3007 = vshrl.u32 %v3006, 7
    %v3008 = vsub.s32 %v3005, %v3007
    %v3009 = vrot.slane %v2995, %v3008
    %v3010 = vcombine.low %v2865, %v3002
    %v3011 = vcombine.high %v2865, %v3002
    %v3012 = vcombine.low %v2872, %v3009
    %v3013 = vcombine.low %v1503, %v1543
    %v3014 = vcombine.low %v1781, %v1795
    %v3016 = vunpack.c.l.s4 1966171168
    %v3017 = vunpack.c.0.s8 %v3016
    %v3018 = vlaneseq
    %v3019 = vshrl.u32 %v3018, 7
    %v3020 = vsub.s32 %v3017, %v3019
    %v3021 = vrot.slane %v3013, %v3020
    %v3023 = vunpack.c.l.s4 1966171168
    %v3024 = vunpack.c.0.s8 %v3023
    %v3025 = vlaneseq
    %v3026 = vshrl.u32 %v3025, 7
    %v3027 = vsub.s32 %v3024, %v3026
    %v3028 = vrot.slane %v3014, %v3027
    %v3029 = vcombine.low %v2934, %v2977
    %v3030 = vcombine.high %v2934, %v2977
    %v3031 = vcombine.low %v3021, %v3028
    %v3032 = vcombine.high %v3021, %v3028
    %v3034 = vunpack.c.l.s4 1966171168
    %v3035 = vunpack.c.0.s8 %v3034
    %v3036 = vlaneseq
    %v3037 = vshrl.u32 %v3036, 7
    %v3038 = vsub.s32 %v3035, %v3037
    %v3039 = vrot.slane %v3029, %v3038
    %v3041 = vunpack.c.l.s4 1966171168
    %v3042 = vunpack.c.0.s8 %v3041
    %v3043 = vlaneseq
    %v3044 = vshrl.u32 %v3043, 7
    %v3045 = vsub.s32 %v3042, %v3044
    %v3046 = vrot.slane %v3030, %v3045
    %v3048 = vunpack.c.l.s4 1966171168
    %v3049 = vunpack.c.0.s8 %v3048
    %v3050 = vlaneseq
    %v3051 = vshrl.u32 %v3050, 7
    %v3052 = vsub.s32 %v3049, %v3051
    %v3053 = vrot.slane %v3031, %v3052
    %v3055 = vunpack.c.l.s4 1966171168
    %v3056 = vunpack.c.0.s8 %v3055
    %v3057 = vlaneseq
    %v3058 = vshrl.u32 %v3057, 7
    %v3059 = vsub.s32 %v3056, %v3058
    %v3060 = vrot.slane %v3032, %v3059
    %v3061 = vcombine.low %v3039, %v3053
    %v3062 = vcombine.high %v3039, %v3053
    %v3063 = vcombine.low %v3046, %v3060
    %v3064 = vcombine.low %v1798, %v1799
    %v3066 = vunpack.c.l.s4 1966171168
    %v3067 = vunpack.c.0.s8 %v3066
    %v3068 = vlaneseq
    %v3069 = vshrl.u32 %v3068, 7
    %v3070 = vsub.s32 %v3067, %v3069
    %v3071 = vrot.slane %v3064, %v3070
    %v3072 = vcombine.high %v3071, %v3071
    %v3074 = vunpack.c.l.s4 1966171168
    %v3075 = vunpack.c.0.s8 %v3074
    %v3076 = vlaneseq
    %v3077 = vshrl.u32 %v3076, 7
    %v3078 = vsub.s32 %v3075, %v3077
    %v3079 = vrot.slane %v3071, %v3078
    %v3081 = vunpack.c.l.s4 1966171168
    %v3082 = vunpack.c.0.s8 %v3081
    %v3083 = vlaneseq
    %v3084 = vshrl.u32 %v3083, 7
    %v3085 = vsub.s32 %v3082, %v3084
    %v3086 = vrot.slane %v3072, %v3085
    %v3087 = vcombine.high %v3079, %v3079
    %v3088 = vld [vmem:[%s3] sm:$0xf]
    %v3089 = vld [vmem:[%s3 + $0x4] sm:$0xf]
    %v3090 = vld [vmem:[%s3 + $0x8] sm:$0xf]
    %v3091 = vld [vmem:[%s3 + $0xc] sm:$0xf]
    %v3092 = vld [vmem:[%s3 + $0x10] sm:$0xf]
    %v3093 = vld [vmem:[%s3 + $0x14] sm:$0xf]
    %v3094 = vld [vmem:[%s3 + $0x18] sm:$0xf]
    %v3095 = vld [vmem:[%s3 + $0x1c] sm:$0xf]
    %v3096 = vld [vmem:[%s3 + $0x20] sm:$0xf]
    %v3097 = vld [vmem:[%s3 + $0x24] sm:$0xf]
    %v3098 = vld [vmem:[%s3 + $0x28] sm:$0xf]
    %v3099 = vld [vmem:[%s3 + $0x2c] sm:$0xf]
    %v3100 = vld [vmem:[%s3 + $0x30] sm:$0xf]
    %v3101 = vld [vmem:[%s3 + $0x34] sm:$0xf]
    %v3102 = vld [vmem:[%s3 + $0x38] sm:$0xf]
    %v3103 = vld [vmem:[%s3 + $0x3c] sm:$0xf]
    %v3104 = vld [vmem:[%s3 + $0x40] sm:$0xf]
    %v3105 = vld [vmem:[%s3 + $0x44] sm:$0xf]
    %v3106 = vld [vmem:[%s3 + $0x48] sm:$0xf]
    %v3107 = vld [vmem:[%s3 + $0x4c] sm:$0xf]
    %v3108 = vld [vmem:[%s3 + $0x50] sm:$0xf]
    %v3109 = vld [vmem:[%s3 + $0x54] sm:$0xf]
    %v3110 = vld [vmem:[%s3 + $0x58] sm:$0xf]
    %v3111 = vld [vmem:[%s3 + $0x5c] sm:$0xf]
    %v3112 = vld [vmem:[%s3 + $0x60] sm:$0xf]
    %v3113 = vld [vmem:[%s3 + $0x64] sm:$0xf]
    %v3114 = vld [vmem:[%s3 + $0x68] sm:$0xf]
    %v3115 = vld [vmem:[%s3 + $0x6c] sm:$0xf]
    %v3116 = vld [vmem:[%s3 + $0x70] sm:$0xf]
    %v3117 = vld [vmem:[%s3 + $0x74] sm:$0xf]
    %v3118 = vld [vmem:[%s3 + $0x78] sm:$0xf]
    %v3119 = vld [vmem:[%s3 + $0x7c] sm:$0xf]
    %v3120 = vld [vmem:[%s3 + $0x80] sm:$0xf]
    %v3121 = vld [vmem:[%s3 + $0x84] sm:$0xf]
    %v3122 = vld [vmem:[%s3 + $0x88] sm:$0xf]
    %v3123 = vld [vmem:[%s3 + $0x8c] sm:$0xf]
    %v3124 = vld [vmem:[%s3 + $0x90] sm:$0xf]
    %v3125 = vld [vmem:[%s3 + $0x94] sm:$0xf]
    %v3126 = vld [vmem:[%s3 + $0x98] sm:$0xf]
    %v3127 = vld [vmem:[%s3 + $0x9c] sm:$0xf]
    %v3128 = vld [vmem:[%s3 + $0xa0] sm:$0xf]
    %v3129 = vld [vmem:[%s3 + $0xa4] sm:$0xf]
    %v3130 = vld [vmem:[%s3 + $0xa8] sm:$0xf]
    %v3131 = vld [vmem:[%s3 + $0xac] sm:$0xf]
    %v3132 = vld [vmem:[%s3 + $0xb0] sm:$0xf]
    %v3133 = vld [vmem:[%s3 + $0xb4] sm:$0xf]
    %v3134 = vld [vmem:[%s3 + $0xb8] sm:$0xf]
    %v3135 = vld [vmem:[%s3 + $0xbc] sm:$0xf]
    %v3136 = vld [vmem:[%s3 + $0xc0] sm:$0xf]
    %v3137 = vld [vmem:[%s3 + $0xc4] sm:$0xf]
    %v3138 = vld [vmem:[%s3 + $0xc8] sm:$0xf]
    %v3139 = vld [vmem:[%s3 + $0xcc] sm:$0xf]
    %v3140 = vld [vmem:[%s3 + $0xd0] sm:$0xf]
    %v3141 = vld [vmem:[%s3 + $0xd4] sm:$0xf]
    %v3142 = vld [vmem:[%s3 + $0xd8] sm:$0xf]
    %v3143 = vld [vmem:[%s3 + $0xdc] sm:$0xf]
    %v3144 = vld [vmem:[%s3 + $0xe0] sm:$0xf]
    %v3145 = vld [vmem:[%s3 + $0xe4] sm:$0xf]
    %v3146 = vld [vmem:[%s3 + $0xe8] sm:$0xf]
    %v3147 = vld [vmem:[%s3 + $0xec] sm:$0xf]
    %v3148 = vld [vmem:[%s3 + $0xf0] sm:$0xf]
    %v3149 = vld [vmem:[%s3 + $0xf4] sm:$0xf]
    %v3150 = vld [vmem:[%s3 + $0xf8] sm:$0xf]
    %v3151 = vld [vmem:[%s3 + $0xfc] sm:$0xf]
    %v3152 = vld [vmem:[%s3 + $0x100] sm:$0xf]
    %v3153 = vld [vmem:[%s3 + $0x104] sm:$0xf]
    %v3154 = vld [vmem:[%s3 + $0x108] sm:$0xf]
    %v3155 = vld [vmem:[%s3 + $0x10c] sm:$0xf]
    %v3156 = vld [vmem:[%s3 + $0x110] sm:$0xf]
    %v3157 = vld [vmem:[%s3 + $0x114] sm:$0xf]
    %v3158 = vld [vmem:[%s3 + $0x118] sm:$0xf]
    %v3159 = vld [vmem:[%s3 + $0x11c] sm:$0xf]
    %v3160 = vld [vmem:[%s3 + $0x120] sm:$0xf]
    %v3161 = vld [vmem:[%s3 + $0x124] sm:$0xf]
    %v3162 = vld [vmem:[%s3 + $0x128] sm:$0xf]
    %v3163 = vld [vmem:[%s3 + $0x12c] sm:$0xf]
    %v3164 = vld [vmem:[%s3 + $0x130] sm:$0xf]
    %v3165 = vld [vmem:[%s3 + $0x134] sm:$0xf]
    %v3166 = vld [vmem:[%s3 + $0x138] sm:$0xf]
    %v3167 = vld [vmem:[%s3 + $0x13c] sm:$0xf]
    %v3168 = vld [vmem:[%s3 + $0x140] sm:$0xf]
    %v3169 = vld [vmem:[%s3 + $0x144] sm:$0xf]
    %v3170 = vld [vmem:[%s3 + $0x148] sm:$0xf]
    %v3171 = vld [vmem:[%s3 + $0x14c] sm:$0xf]
    %v3172 = vld [vmem:[%s3 + $0x150] sm:$0xf]
    %v3173 = vld [vmem:[%s3 + $0x154] sm:$0xf]
    %v3174 = vld [vmem:[%s3 + $0x158] sm:$0xf]
    %v3175 = vld [vmem:[%s3 + $0x15c] sm:$0xf]
    %v3176 = vld [vmem:[%s3 + $0x160] sm:$0xf]
    %v3177 = vld [vmem:[%s3 + $0x164] sm:$0xf]
    %v3178 = vld [vmem:[%s3 + $0x168] sm:$0xf]
    %v3179 = vld [vmem:[%s3 + $0x16c] sm:$0xf]
    %v3180 = vld [vmem:[%s3 + $0x170] sm:$0xf]
    %v3181 = vld [vmem:[%s3 + $0x174] sm:$0xf]
    %v3182 = vld [vmem:[%s3 + $0x178] sm:$0xf]
    %v3183 = vld [vmem:[%s3 + $0x17c] sm:$0xf]
    %v3184 = vld [vmem:[%s3 + $0x180] sm:$0xf]
    %v3185 = vld [vmem:[%s3 + $0x184] sm:$0xf]
    %v3186 = vld [vmem:[%s3 + $0x188] sm:$0xf]
    %v3187 = vld [vmem:[%s3 + $0x18c] sm:$0xf]
    %v3188 = vld [vmem:[%s3 + $0x190] sm:$0xf]
    %v3189 = vld [vmem:[%s3 + $0x194] sm:$0xf]
    %v3190 = vld [vmem:[%s3 + $0x198] sm:$0xf]
    %v3191 = vld [vmem:[%s3 + $0x19c] sm:$0xf]
    %v3192 = vld [vmem:[%s3 + $0x1a0] sm:$0xf]
    %v3193 = vld [vmem:[%s3 + $0x1a4] sm:$0xf]
    %v3194 = vld [vmem:[%s3 + $0x1a8] sm:$0xf]
    %v3195 = vld [vmem:[%s3 + $0x1ac] sm:$0xf]
    %v3196 = vld [vmem:[%s3 + $0x1b0] sm:$0xf]
    %v3197 = vld [vmem:[%s3 + $0x1b4] sm:$0xf]
    %v3198 = vld [vmem:[%s3 + $0x1b8] sm:$0xf]
    %v3199 = vld [vmem:[%s3 + $0x1bc] sm:$0xf]
    %v3200 = vld [vmem:[%s3 + $0x1c0] sm:$0xf]
    %v3201 = vld [vmem:[%s3 + $0x1c4] sm:$0xf]
    %v3202 = vld [vmem:[%s3 + $0x1c8] sm:$0xf]
    %v3203 = vld [vmem:[%s3 + $0x1cc] sm:$0xf]
    %v3204 = vld [vmem:[%s3 + $0x1d0] sm:$0xf]
    %v3205 = vld [vmem:[%s3 + $0x1d4] sm:$0xf]
    %v3206 = vld [vmem:[%s3 + $0x1d8] sm:$0xf]
    %v3207 = vld [vmem:[%s3 + $0x1dc] sm:$0xf]
    %v3208 = vld [vmem:[%s3 + $0x1e0] sm:$0xf]
    %v3209 = vld [vmem:[%s3 + $0x1e4] sm:$0xf]
    %v3210 = vld [vmem:[%s3 + $0x1e8] sm:$0xf]
    %v3211 = vld [vmem:[%s3 + $0x1ec] sm:$0xf]
    %v3212 = vld [vmem:[%s3 + $0x1f0] sm:$0xf]
    %v3213 = vld [vmem:[%s3 + $0x1f4] sm:$0xf]
    %v3214 = vld [vmem:[%s3 + $0x1f8] sm:$0xf]
    %v3215 = vld [vmem:[%s3 + $0x1fc] sm:$0xf]
    %v3216 = vld [vmem:[%s3 + $0x200] sm:$0xf]
    %v3217 = vld [vmem:[%s3 + $0x204] sm:$0xf]
    %v3218 = vld [vmem:[%s3 + $0x208] sm:$0xf]
    %v3219 = vld [vmem:[%s3 + $0x20c] sm:$0xf]
    %v3220 = vld [vmem:[%s3 + $0x210] sm:$0xf]
    %v3221 = vld [vmem:[%s3 + $0x214] sm:$0xf]
    %v3222 = vld [vmem:[%s3 + $0x218] sm:$0xf]
    %v3223 = vld [vmem:[%s3 + $0x21c] sm:$0xf]
    %v3224 = vld [vmem:[%s3 + $0x220] sm:$0xf]
    %v3225 = vld [vmem:[%s3 + $0x224] sm:$0xf]
    %v3226 = vld [vmem:[%s3 + $0x228] sm:$0xf]
    %v3227 = vld [vmem:[%s3 + $0x22c] sm:$0xf]
    %v3228 = vld [vmem:[%s3 + $0x230] sm:$0xf]
    %v3229 = vld [vmem:[%s3 + $0x234] sm:$0xf]
    %v3230 = vld [vmem:[%s3 + $0x238] sm:$0xf]
    %v3231 = vld [vmem:[%s3 + $0x23c] sm:$0xf]
    %v3232 = vld [vmem:[%s3 + $0x240] sm:$0xf]
    %v3233 = vld [vmem:[%s3 + $0x244] sm:$0xf]
    %v3234 = vld [vmem:[%s3 + $0x248] sm:$0xf]
    %v3235 = vld [vmem:[%s3 + $0x24c] sm:$0xf]
    %v3236 = vld [vmem:[%s3 + $0x250] sm:$0xf]
    %v3237 = vld [vmem:[%s3 + $0x254] sm:$0xf]
    %v3238 = vld [vmem:[%s3 + $0x258] sm:$0xf]
    %v3239 = vld [vmem:[%s3 + $0x25c] sm:$0xf]
    %v3240 = vld [vmem:[%s3 + $0x260] sm:$0xf]
    %v3241 = vld [vmem:[%s3 + $0x264] sm:$0xf]
    %v3242 = vld [vmem:[%s3 + $0x268] sm:$0xf]
    %v3243 = vld [vmem:[%s3 + $0x26c] sm:$0xf]
    %v3244 = vld [vmem:[%s3 + $0x270] sm:$0xf]
    %v3245 = vld [vmem:[%s3 + $0x274] sm:$0xf]
    %v3246 = vld [vmem:[%s3 + $0x278] sm:$0xf]
    %v3247 = vld [vmem:[%s3 + $0x27c] sm:$0xf]
    %v3248 = vld [vmem:[%s3 + $0x280] sm:$0xf]
    %v3249 = vld [vmem:[%s3 + $0x284] sm:$0xf]
    %v3250 = vld [vmem:[%s3 + $0x288] sm:$0xf]
    %v3251 = vld [vmem:[%s3 + $0x28c] sm:$0xf]
    %v3252 = vld [vmem:[%s3 + $0x290] sm:$0xf]
    %v3253 = vld [vmem:[%s3 + $0x294] sm:$0xf]
    %v3254 = vld [vmem:[%s3 + $0x298] sm:$0xf]
    %v3255 = vld [vmem:[%s3 + $0x29c] sm:$0xf]
    %v3256 = vld [vmem:[%s3 + $0x2a0] sm:$0xf]
    %v3257 = vld [vmem:[%s3 + $0x2a4] sm:$0xf]
    %v3258 = vld [vmem:[%s3 + $0x2a8] sm:$0xf]
    %v3259 = vld [vmem:[%s3 + $0x2ac] sm:$0xf]
    %v3260 = vld [vmem:[%s3 + $0x2b0] sm:$0xf]
    %v3261 = vld [vmem:[%s3 + $0x2b4] sm:$0xf]
    %v3262 = vld [vmem:[%s3 + $0x2b8] sm:$0xf]
    %v3263 = vld [vmem:[%s3 + $0x2bc] sm:$0xf]
    %v3264 = vld [vmem:[%s3 + $0x2c0] sm:$0xf]
    %v3265 = vld [vmem:[%s3 + $0x2c4] sm:$0xf]
    %v3266 = vld [vmem:[%s3 + $0x2c8] sm:$0xf]
    %v3267 = vld [vmem:[%s3 + $0x2cc] sm:$0xf]
    %v3268 = vld [vmem:[%s3 + $0x2d0] sm:$0xf]
    %v3269 = vld [vmem:[%s3 + $0x2d4] sm:$0xf]
    %v3270 = vld [vmem:[%s3 + $0x2d8] sm:$0xf]
    %v3271 = vld [vmem:[%s3 + $0x2dc] sm:$0xf]
    %v3272 = vld [vmem:[%s3 + $0x2e0] sm:$0xf]
    %v3273 = vld [vmem:[%s3 + $0x2e4] sm:$0xf]
    %v3274 = vld [vmem:[%s3 + $0x2e8] sm:$0xf]
    %v3275 = vld [vmem:[%s3 + $0x2ec] sm:$0xf]
    %v3276 = vld [vmem:[%s3 + $0x2f0] sm:$0xf]
    %v3277 = vld [vmem:[%s3 + $0x2f4] sm:$0xf]
    %v3278 = vld [vmem:[%s3 + $0x2f8] sm:$0xf]
    %v3279 = vld [vmem:[%s3 + $0x2fc] sm:$0xf]
    %v3280 = vld [vmem:[%s3 + $0x300] sm:$0xf]
    %v3281 = vld [vmem:[%s3 + $0x304] sm:$0xf]
    %v3282 = vld [vmem:[%s3 + $0x308] sm:$0xf]
    %v3283 = vld [vmem:[%s3 + $0x30c] sm:$0xf]
    %v3284 = vld [vmem:[%s3 + $0x310] sm:$0xf]
    %v3285 = vld [vmem:[%s3 + $0x314] sm:$0xf]
    %v3286 = vld [vmem:[%s3 + $0x318] sm:$0xf]
    %v3287 = vld [vmem:[%s3 + $0x31c] sm:$0xf]
    %v3288 = vld [vmem:[%s3 + $0x320] sm:$0xf]
    %v3289 = vld [vmem:[%s3 + $0x324] sm:$0xf]
    %v3290 = vld [vmem:[%s3 + $0x328] sm:$0xf]
    %v3291 = vld [vmem:[%s3 + $0x32c] sm:$0xf]
    %v3292 = vld [vmem:[%s3 + $0x330] sm:$0xf]
    %v3293 = vld [vmem:[%s3 + $0x334] sm:$0xf]
    %v3294 = vld [vmem:[%s3 + $0x338] sm:$0xf]
    %v3295 = vld [vmem:[%s3 + $0x33c] sm:$0xf]
    %v3296 = vld [vmem:[%s3 + $0x340] sm:$0xf]
    %v3297 = vld [vmem:[%s3 + $0x344] sm:$0xf]
    %v3298 = vld [vmem:[%s3 + $0x348] sm:$0xf]
    %v3299 = vld [vmem:[%s3 + $0x34c] sm:$0xf]
    %v3300 = vld [vmem:[%s3 + $0x350] sm:$0xf]
    %v3301 = vld [vmem:[%s3 + $0x354] sm:$0xf]
    %v3302 = vld [vmem:[%s3 + $0x358] sm:$0xf]
    %v3303 = vld [vmem:[%s3 + $0x35c] sm:$0xf]
    %v3304 = vld [vmem:[%s3 + $0x360] sm:$0xf]
    %v3305 = vld [vmem:[%s3 + $0x364] sm:$0xf]
    %v3306 = vld [vmem:[%s3 + $0x368] sm:$0xf]
    %v3307 = vld [vmem:[%s3 + $0x36c] sm:$0xf]
    %v3308 = vld [vmem:[%s3 + $0x370] sm:$0xf]
    %v3309 = vld [vmem:[%s3 + $0x374] sm:$0xf]
    %v3310 = vld [vmem:[%s3 + $0x378] sm:$0xf]
    %v3311 = vld [vmem:[%s3 + $0x37c] sm:$0xf]
    %v3312 = vld [vmem:[%s3 + $0x380] sm:$0xf]
    %v3313 = vld [vmem:[%s3 + $0x384] sm:$0xf]
    %v3314 = vld [vmem:[%s3 + $0x388] sm:$0xf]
    %v3315 = vld [vmem:[%s3 + $0x38c] sm:$0xf]
    %v3316 = vld [vmem:[%s3 + $0x390] sm:$0xf]
    %v3317 = vld [vmem:[%s3 + $0x394] sm:$0xf]
    %v3318 = vld [vmem:[%s3 + $0x398] sm:$0xf]
    %v3319 = vld [vmem:[%s3 + $0x39c] sm:$0xf]
    %v3320 = vld [vmem:[%s3 + $0x3a0] sm:$0xf]
    %v3321 = vld [vmem:[%s3 + $0x3a4] sm:$0xf]
    %v3322 = vld [vmem:[%s3 + $0x3a8] sm:$0xf]
    %v3323 = vld [vmem:[%s3 + $0x3ac] sm:$0xf]
    %v3324 = vld [vmem:[%s3 + $0x3b0] sm:$0xf]
    %v3325 = vld [vmem:[%s3 + $0x3b4] sm:$0xf]
    %v3326 = vld [vmem:[%s3 + $0x3b8] sm:$0xf]
    %v3327 = vld [vmem:[%s3 + $0x3bc] sm:$0xf]
    %v3328 = vld [vmem:[%s3 + $0x3c0] sm:$0xf]
    %v3329 = vld [vmem:[%s3 + $0x3c4] sm:$0xf]
    %v3330 = vld [vmem:[%s3 + $0x3c8] sm:$0xf]
    %v3331 = vld [vmem:[%s3 + $0x3cc] sm:$0xf]
    %v3332 = vld [vmem:[%s3 + $0x3d0] sm:$0xf]
    %v3333 = vld [vmem:[%s3 + $0x3d4] sm:$0xf]
    %v3334 = vld [vmem:[%s3 + $0x3d8] sm:$0xf]
    %v3335 = vld [vmem:[%s3 + $0x3dc] sm:$0xf]
    %v3336 = vld [vmem:[%s3 + $0x3e0] sm:$0xf]
    %v3337 = vld [vmem:[%s3 + $0x3e4] sm:$0xf]
    %v3338 = vld [vmem:[%s3 + $0x3e8] sm:$0xf]
    %v3339 = vld [vmem:[%s3 + $0x3ec] sm:$0xf]
    %v3340 = vld [vmem:[%s3 + $0x3f0] sm:$0xf]
    %v3341 = vld [vmem:[%s3 + $0x3f4] sm:$0xf]
    %v3342 = vld [vmem:[%s3 + $0x3f8] sm:$0xf]
    %v3343 = vld [vmem:[%s3 + $0x3fc] sm:$0xf]
    %v3344 = vld [vmem:[%s3 + $0x400] sm:$0xf]
    %v3345 = vld [vmem:[%s3 + $0x404] sm:$0xf]
    %v3346 = vld [vmem:[%s3 + $0x408] sm:$0xf]
    %v3347 = vld [vmem:[%s3 + $0x40c] sm:$0xf]
    %v3348 = vld [vmem:[%s3 + $0x410] sm:$0xf]
    %v3349 = vld [vmem:[%s3 + $0x414] sm:$0xf]
    %v3350 = vld [vmem:[%s3 + $0x418] sm:$0xf]
    %v3351 = vld [vmem:[%s3 + $0x41c] sm:$0xf]
    %v3352 = vld [vmem:[%s3 + $0x420] sm:$0xf]
    %v3353 = vld [vmem:[%s3 + $0x424] sm:$0xf]
    %v3354 = vld [vmem:[%s3 + $0x428] sm:$0xf]
    %v3355 = vld [vmem:[%s3 + $0x42c] sm:$0xf]
    %v3356 = vld [vmem:[%s3 + $0x430] sm:$0xf]
    %v3357 = vld [vmem:[%s3 + $0x434] sm:$0xf]
    %v3358 = vld [vmem:[%s3 + $0x438] sm:$0xf]
    %v3359 = vld [vmem:[%s3 + $0x43c] sm:$0xf]
    %v3360 = vld [vmem:[%s3 + $0x440] sm:$0xf]
    %v3361 = vld [vmem:[%s3 + $0x444] sm:$0xf]
    %v3362 = vld [vmem:[%s3 + $0x448] sm:$0xf]
    %v3363 = vld [vmem:[%s3 + $0x44c] sm:$0xf]
    %v3364 = vld [vmem:[%s3 + $0x450] sm:$0xf]
    %v3365 = vld [vmem:[%s3 + $0x454] sm:$0xf]
    %v3366 = vld [vmem:[%s3 + $0x458] sm:$0xf]
    %v3367 = vld [vmem:[%s3 + $0x45c] sm:$0xf]
    %v3368 = vld [vmem:[%s3 + $0x460] sm:$0xf]
    %v3369 = vld [vmem:[%s3 + $0x464] sm:$0xf]
    %v3370 = vld [vmem:[%s3 + $0x468] sm:$0xf]
    %v3371 = vld [vmem:[%s3 + $0x46c] sm:$0xf]
    %v3372 = vld [vmem:[%s3 + $0x470] sm:$0xf]
    %v3373 = vld [vmem:[%s3 + $0x474] sm:$0xf]
    %v3374 = vld [vmem:[%s3 + $0x478] sm:$0xf]
    %v3375 = vld [vmem:[%s3 + $0x47c] sm:$0xf]
    %v3376 = vld [vmem:[%s4] sm:$0x1]
    %v3378 = vlaneseq
    %v3379 = vshrl.u32 %v3378, 7
    %v3380 = vsub.s32 0, %v3379
    %v3381 = vrot.slane %v3376, %v3380
    %v3383 = vcombine.low %v1864, %v1866
    %v3384 = vcombine.high %v1864, %v1866
    %v3385 = vcombine.low %v1865, %v1990
    %v3386 = vcombine.high %v1865, %v1990
    %v3387 = vcombine.low %v1992, %v1991
    %v3388 = vcombine.high %v1992, %v1991
    %v3389 = vcombine.low %v2084, %v2086
    %v3390 = vcombine.high %v2084, %v2086
    %v3392 = vunpack.c.l.s4 1966171168
    %v3393 = vunpack.c.0.s8 %v3392
    %v3394 = vlaneseq
    %v3395 = vshrl.u32 %v3394, 7
    %v3396 = vsub.s32 %v3393, %v3395
    %v3397 = vrot.slane %v3383, %v3396
    %v3399 = vunpack.c.l.s4 1966171168
    %v3400 = vunpack.c.0.s8 %v3399
    %v3401 = vlaneseq
    %v3402 = vshrl.u32 %v3401, 7
    %v3403 = vsub.s32 %v3400, %v3402
    %v3404 = vrot.slane %v3384, %v3403
    %v3406 = vunpack.c.l.s4 1966171168
    %v3407 = vunpack.c.0.s8 %v3406
    %v3408 = vlaneseq
    %v3409 = vshrl.u32 %v3408, 7
    %v3410 = vsub.s32 %v3407, %v3409
    %v3411 = vrot.slane %v3385, %v3410
    %v3413 = vunpack.c.l.s4 1966171168
    %v3414 = vunpack.c.0.s8 %v3413
    %v3415 = vlaneseq
    %v3416 = vshrl.u32 %v3415, 7
    %v3417 = vsub.s32 %v3414, %v3416
    %v3418 = vrot.slane %v3386, %v3417
    %v3420 = vunpack.c.l.s4 1966171168
    %v3421 = vunpack.c.0.s8 %v3420
    %v3422 = vlaneseq
    %v3423 = vshrl.u32 %v3422, 7
    %v3424 = vsub.s32 %v3421, %v3423
    %v3425 = vrot.slane %v3387, %v3424
    %v3427 = vunpack.c.l.s4 1966171168
    %v3428 = vunpack.c.0.s8 %v3427
    %v3429 = vlaneseq
    %v3430 = vshrl.u32 %v3429, 7
    %v3431 = vsub.s32 %v3428, %v3430
    %v3432 = vrot.slane %v3388, %v3431
    %v3434 = vunpack.c.l.s4 1966171168
    %v3435 = vunpack.c.0.s8 %v3434
    %v3436 = vlaneseq
    %v3437 = vshrl.u32 %v3436, 7
    %v3438 = vsub.s32 %v3435, %v3437
    %v3439 = vrot.slane %v3389, %v3438
    %v3441 = vunpack.c.l.s4 1966171168
    %v3442 = vunpack.c.0.s8 %v3441
    %v3443 = vlaneseq
    %v3444 = vshrl.u32 %v3443, 7
    %v3445 = vsub.s32 %v3442, %v3444
    %v3446 = vrot.slane %v3390, %v3445
    %v3447 = vcombine.low %v3397, %v3411
    %v3448 = vcombine.high %v3397, %v3411
    %v3449 = vcombine.low %v3404, %v3418
    %v3450 = vcombine.high %v3404, %v3418
    %v3451 = vcombine.low %v3425, %v3439
    %v3452 = vcombine.high %v3425, %v3439
    %v3453 = vcombine.low %v3432, %v3446
    %v3454 = vcombine.high %v3432, %v3446
    %v3456 = vunpack.c.l.s4 1966171168
    %v3457 = vunpack.c.0.s8 %v3456
    %v3458 = vlaneseq
    %v3459 = vshrl.u32 %v3458, 7
    %v3460 = vsub.s32 %v3457, %v3459
    %v3461 = vrot.slane %v3447, %v3460
    %v3463 = vunpack.c.l.s4 1966171168
    %v3464 = vunpack.c.0.s8 %v3463
    %v3465 = vlaneseq
    %v3466 = vshrl.u32 %v3465, 7
    %v3467 = vsub.s32 %v3464, %v3466
    %v3468 = vrot.slane %v3449, %v3467
    %v3470 = vunpack.c.l.s4 1966171168
    %v3471 = vunpack.c.0.s8 %v3470
    %v3472 = vlaneseq
    %v3473 = vshrl.u32 %v3472, 7
    %v3474 = vsub.s32 %v3471, %v3473
    %v3475 = vrot.slane %v3448, %v3474
    %v3477 = vunpack.c.l.s4 1966171168
    %v3478 = vunpack.c.0.s8 %v3477
    %v3479 = vlaneseq
    %v3480 = vshrl.u32 %v3479, 7
    %v3481 = vsub.s32 %v3478, %v3480
    %v3482 = vrot.slane %v3450, %v3481
    %v3484 = vunpack.c.l.s4 1966171168
    %v3485 = vunpack.c.0.s8 %v3484
    %v3486 = vlaneseq
    %v3487 = vshrl.u32 %v3486, 7
    %v3488 = vsub.s32 %v3485, %v3487
    %v3489 = vrot.slane %v3451, %v3488
    %v3491 = vunpack.c.l.s4 1966171168
    %v3492 = vunpack.c.0.s8 %v3491
    %v3493 = vlaneseq
    %v3494 = vshrl.u32 %v3493, 7
    %v3495 = vsub.s32 %v3492, %v3494
    %v3496 = vrot.slane %v3453, %v3495
    %v3498 = vunpack.c.l.s4 1966171168
    %v3499 = vunpack.c.0.s8 %v3498
    %v3500 = vlaneseq
    %v3501 = vshrl.u32 %v3500, 7
    %v3502 = vsub.s32 %v3499, %v3501
    %v3503 = vrot.slane %v3452, %v3502
    %v3505 = vunpack.c.l.s4 1966171168
    %v3506 = vunpack.c.0.s8 %v3505
    %v3507 = vlaneseq
    %v3508 = vshrl.u32 %v3507, 7
    %v3509 = vsub.s32 %v3506, %v3508
    %v3510 = vrot.slane %v3454, %v3509
    %v3511 = vcombine.low %v3461, %v3489
    %v3512 = vcombine.high %v3461, %v3489
    %v3513 = vcombine.low %v3468, %v3496
    %v3514 = vcombine.high %v3468, %v3496
    %v3515 = vcombine.low %v3475, %v3503
    %v3516 = vcombine.high %v3475, %v3503
    %v3517 = vcombine.low %v3482, %v3510
    %v3518 = vcombine.high %v3482, %v3510
    %v3519 = vcombine.low %v1931, %v1933
    %v3520 = vcombine.high %v1931, %v1933
    %v3521 = vcombine.low %v1932, %v2041
    %v3522 = vcombine.high %v1932, %v2041
    %v3523 = vcombine.low %v2043, %v2042
    %v3524 = vcombine.high %v2043, %v2042
    %v3525 = vcombine.low %v2135, %v2137
    %v3526 = vcombine.high %v2135, %v2137
    %v3528 = vunpack.c.l.s4 1966171168
    %v3529 = vunpack.c.0.s8 %v3528
    %v3530 = vlaneseq
    %v3531 = vshrl.u32 %v3530, 7
    %v3532 = vsub.s32 %v3529, %v3531
    %v3533 = vrot.slane %v3519, %v3532
    %v3535 = vunpack.c.l.s4 1966171168
    %v3536 = vunpack.c.0.s8 %v3535
    %v3537 = vlaneseq
    %v3538 = vshrl.u32 %v3537, 7
    %v3539 = vsub.s32 %v3536, %v3538
    %v3540 = vrot.slane %v3520, %v3539
    %v3542 = vunpack.c.l.s4 1966171168
    %v3543 = vunpack.c.0.s8 %v3542
    %v3544 = vlaneseq
    %v3545 = vshrl.u32 %v3544, 7
    %v3546 = vsub.s32 %v3543, %v3545
    %v3547 = vrot.slane %v3521, %v3546
    %v3549 = vunpack.c.l.s4 1966171168
    %v3550 = vunpack.c.0.s8 %v3549
    %v3551 = vlaneseq
    %v3552 = vshrl.u32 %v3551, 7
    %v3553 = vsub.s32 %v3550, %v3552
    %v3554 = vrot.slane %v3522, %v3553
    %v3556 = vunpack.c.l.s4 1966171168
    %v3557 = vunpack.c.0.s8 %v3556
    %v3558 = vlaneseq
    %v3559 = vshrl.u32 %v3558, 7
    %v3560 = vsub.s32 %v3557, %v3559
    %v3561 = vrot.slane %v3523, %v3560
    %v3563 = vunpack.c.l.s4 1966171168
    %v3564 = vunpack.c.0.s8 %v3563
    %v3565 = vlaneseq
    %v3566 = vshrl.u32 %v3565, 7
    %v3567 = vsub.s32 %v3564, %v3566
    %v3568 = vrot.slane %v3524, %v3567
    %v3570 = vunpack.c.l.s4 1966171168
    %v3571 = vunpack.c.0.s8 %v3570
    %v3572 = vlaneseq
    %v3573 = vshrl.u32 %v3572, 7
    %v3574 = vsub.s32 %v3571, %v3573
    %v3575 = vrot.slane %v3525, %v3574
    %v3577 = vunpack.c.l.s4 1966171168
    %v3578 = vunpack.c.0.s8 %v3577
    %v3579 = vlaneseq
    %v3580 = vshrl.u32 %v3579, 7
    %v3581 = vsub.s32 %v3578, %v3580
    %v3582 = vrot.slane %v3526, %v3581
    %v3583 = vcombine.low %v3533, %v3547
    %v3584 = vcombine.high %v3533, %v3547
    %v3585 = vcombine.low %v3540, %v3554
    %v3586 = vcombine.high %v3540, %v3554
    %v3587 = vcombine.low %v3561, %v3575
    %v3588 = vcombine.high %v3561, %v3575
    %v3589 = vcombine.low %v3568, %v3582
    %v3590 = vcombine.high %v3568, %v3582
    %v3592 = vunpack.c.l.s4 1966171168
    %v3593 = vunpack.c.0.s8 %v3592
    %v3594 = vlaneseq
    %v3595 = vshrl.u32 %v3594, 7
    %v3596 = vsub.s32 %v3593, %v3595
    %v3597 = vrot.slane %v3583, %v3596
    %v3599 = vunpack.c.l.s4 1966171168
    %v3600 = vunpack.c.0.s8 %v3599
    %v3601 = vlaneseq
    %v3602 = vshrl.u32 %v3601, 7
    %v3603 = vsub.s32 %v3600, %v3602
    %v3604 = vrot.slane %v3585, %v3603
    %v3606 = vunpack.c.l.s4 1966171168
    %v3607 = vunpack.c.0.s8 %v3606
    %v3608 = vlaneseq
    %v3609 = vshrl.u32 %v3608, 7
    %v3610 = vsub.s32 %v3607, %v3609
    %v3611 = vrot.slane %v3584, %v3610
    %v3613 = vunpack.c.l.s4 1966171168
    %v3614 = vunpack.c.0.s8 %v3613
    %v3615 = vlaneseq
    %v3616 = vshrl.u32 %v3615, 7
    %v3617 = vsub.s32 %v3614, %v3616
    %v3618 = vrot.slane %v3586, %v3617
    %v3620 = vunpack.c.l.s4 1966171168
    %v3621 = vunpack.c.0.s8 %v3620
    %v3622 = vlaneseq
    %v3623 = vshrl.u32 %v3622, 7
    %v3624 = vsub.s32 %v3621, %v3623
    %v3625 = vrot.slane %v3587, %v3624
    %v3627 = vunpack.c.l.s4 1966171168
    %v3628 = vunpack.c.0.s8 %v3627
    %v3629 = vlaneseq
    %v3630 = vshrl.u32 %v3629, 7
    %v3631 = vsub.s32 %v3628, %v3630
    %v3632 = vrot.slane %v3589, %v3631
    %v3634 = vunpack.c.l.s4 1966171168
    %v3635 = vunpack.c.0.s8 %v3634
    %v3636 = vlaneseq
    %v3637 = vshrl.u32 %v3636, 7
    %v3638 = vsub.s32 %v3635, %v3637
    %v3639 = vrot.slane %v3588, %v3638
    %v3641 = vunpack.c.l.s4 1966171168
    %v3642 = vunpack.c.0.s8 %v3641
    %v3643 = vlaneseq
    %v3644 = vshrl.u32 %v3643, 7
    %v3645 = vsub.s32 %v3642, %v3644
    %v3646 = vrot.slane %v3590, %v3645
    %v3647 = vcombine.low %v3597, %v3625
    %v3648 = vcombine.high %v3597, %v3625
    %v3649 = vcombine.low %v3604, %v3632
    %v3650 = vcombine.high %v3604, %v3632
    %v3651 = vcombine.low %v3611, %v3639
    %v3652 = vcombine.high %v3611, %v3639
    %v3653 = vcombine.low %v3618, %v3646
    %v3654 = vcombine.high %v3618, %v3646
    %v3655 = vcombine.low %v1949, %v1956
    %v3656 = vcombine.low %v1957, %v2059
    %v3657 = vcombine.low %v2066, %v2067
    %v3658 = vcombine.low %v2153, %v2160
    %v3660 = vunpack.c.l.s4 1966171168
    %v3661 = vunpack.c.0.s8 %v3660
    %v3662 = vlaneseq
    %v3663 = vshrl.u32 %v3662, 7
    %v3664 = vsub.s32 %v3661, %v3663
    %v3665 = vrot.slane %v3655, %v3664
    %v3667 = vunpack.c.l.s4 1966171168
    %v3668 = vunpack.c.0.s8 %v3667
    %v3669 = vlaneseq
    %v3670 = vshrl.u32 %v3669, 7
    %v3671 = vsub.s32 %v3668, %v3670
    %v3672 = vrot.slane %v3656, %v3671
    %v3674 = vunpack.c.l.s4 1966171168
    %v3675 = vunpack.c.0.s8 %v3674
    %v3676 = vlaneseq
    %v3677 = vshrl.u32 %v3676, 7
    %v3678 = vsub.s32 %v3675, %v3677
    %v3679 = vrot.slane %v3657, %v3678
    %v3681 = vunpack.c.l.s4 1966171168
    %v3682 = vunpack.c.0.s8 %v3681
    %v3683 = vlaneseq
    %v3684 = vshrl.u32 %v3683, 7
    %v3685 = vsub.s32 %v3682, %v3684
    %v3686 = vrot.slane %v3658, %v3685
    %v3687 = vcombine.low %v3665, %v3672
    %v3688 = vcombine.high %v3665, %v3672
    %v3689 = vcombine.low %v3679, %v3686
    %v3690 = vcombine.high %v3679, %v3686
    %v3692 = vunpack.c.l.s4 1966171168
    %v3693 = vunpack.c.0.s8 %v3692
    %v3694 = vlaneseq
    %v3695 = vshrl.u32 %v3694, 7
    %v3696 = vsub.s32 %v3693, %v3695
    %v3697 = vrot.slane %v3687, %v3696
    %v3699 = vunpack.c.l.s4 1966171168
    %v3700 = vunpack.c.0.s8 %v3699
    %v3701 = vlaneseq
    %v3702 = vshrl.u32 %v3701, 7
    %v3703 = vsub.s32 %v3700, %v3702
    %v3704 = vrot.slane %v3688, %v3703
    %v3706 = vunpack.c.l.s4 1966171168
    %v3707 = vunpack.c.0.s8 %v3706
    %v3708 = vlaneseq
    %v3709 = vshrl.u32 %v3708, 7
    %v3710 = vsub.s32 %v3707, %v3709
    %v3711 = vrot.slane %v3689, %v3710
    %v3713 = vunpack.c.l.s4 1966171168
    %v3714 = vunpack.c.0.s8 %v3713
    %v3715 = vlaneseq
    %v3716 = vshrl.u32 %v3715, 7
    %v3717 = vsub.s32 %v3714, %v3716
    %v3718 = vrot.slane %v3690, %v3717
    %v3719 = vcombine.low %v3697, %v3711
    %v3720 = vcombine.low %v3704, %v3718
    %v3721 = vcombine.low %v2085, %v2178
    %v3722 = vcombine.high %v2085, %v2178
    %v3723 = vcombine.low %v2180, %v2179
    %v3724 = vcombine.high %v2180, %v2179
    %v3725 = vcombine.low %v2272, %v2274
    %v3726 = vcombine.high %v2272, %v2274
    %v3727 = vcombine.low %v2273, %v2366
    %v3728 = vcombine.high %v2273, %v2366
    %v3730 = vunpack.c.l.s4 1966171168
    %v3731 = vunpack.c.0.s8 %v3730
    %v3732 = vlaneseq
    %v3733 = vshrl.u32 %v3732, 7
    %v3734 = vsub.s32 %v3731, %v3733
    %v3735 = vrot.slane %v3721, %v3734
    %v3737 = vunpack.c.l.s4 1966171168
    %v3738 = vunpack.c.0.s8 %v3737
    %v3739 = vlaneseq
    %v3740 = vshrl.u32 %v3739, 7
    %v3741 = vsub.s32 %v3738, %v3740
    %v3742 = vrot.slane %v3722, %v3741
    %v3744 = vunpack.c.l.s4 1966171168
    %v3745 = vunpack.c.0.s8 %v3744
    %v3746 = vlaneseq
    %v3747 = vshrl.u32 %v3746, 7
    %v3748 = vsub.s32 %v3745, %v3747
    %v3749 = vrot.slane %v3723, %v3748
    %v3751 = vunpack.c.l.s4 1966171168
    %v3752 = vunpack.c.0.s8 %v3751
    %v3753 = vlaneseq
    %v3754 = vshrl.u32 %v3753, 7
    %v3755 = vsub.s32 %v3752, %v3754
    %v3756 = vrot.slane %v3724, %v3755
    %v3758 = vunpack.c.l.s4 1966171168
    %v3759 = vunpack.c.0.s8 %v3758
    %v3760 = vlaneseq
    %v3761 = vshrl.u32 %v3760, 7
    %v3762 = vsub.s32 %v3759, %v3761
    %v3763 = vrot.slane %v3725, %v3762
    %v3765 = vunpack.c.l.s4 1966171168
    %v3766 = vunpack.c.0.s8 %v3765
    %v3767 = vlaneseq
    %v3768 = vshrl.u32 %v3767, 7
    %v3769 = vsub.s32 %v3766, %v3768
    %v3770 = vrot.slane %v3726, %v3769
    %v3772 = vunpack.c.l.s4 1966171168
    %v3773 = vunpack.c.0.s8 %v3772
    %v3774 = vlaneseq
    %v3775 = vshrl.u32 %v3774, 7
    %v3776 = vsub.s32 %v3773, %v3775
    %v3777 = vrot.slane %v3727, %v3776
    %v3779 = vunpack.c.l.s4 1966171168
    %v3780 = vunpack.c.0.s8 %v3779
    %v3781 = vlaneseq
    %v3782 = vshrl.u32 %v3781, 7
    %v3783 = vsub.s32 %v3780, %v3782
    %v3784 = vrot.slane %v3728, %v3783
    %v3785 = vcombine.low %v3735, %v3749
    %v3786 = vcombine.high %v3735, %v3749
    %v3787 = vcombine.low %v3742, %v3756
    %v3788 = vcombine.high %v3742, %v3756
    %v3789 = vcombine.low %v3763, %v3777
    %v3790 = vcombine.high %v3763, %v3777
    %v3791 = vcombine.low %v3770, %v3784
    %v3792 = vcombine.high %v3770, %v3784
    %v3794 = vunpack.c.l.s4 1966171168
    %v3795 = vunpack.c.0.s8 %v3794
    %v3796 = vlaneseq
    %v3797 = vshrl.u32 %v3796, 7
    %v3798 = vsub.s32 %v3795, %v3797
    %v3799 = vrot.slane %v3785, %v3798
    %v3801 = vunpack.c.l.s4 1966171168
    %v3802 = vunpack.c.0.s8 %v3801
    %v3803 = vlaneseq
    %v3804 = vshrl.u32 %v3803, 7
    %v3805 = vsub.s32 %v3802, %v3804
    %v3806 = vrot.slane %v3787, %v3805
    %v3808 = vunpack.c.l.s4 1966171168
    %v3809 = vunpack.c.0.s8 %v3808
    %v3810 = vlaneseq
    %v3811 = vshrl.u32 %v3810, 7
    %v3812 = vsub.s32 %v3809, %v3811
    %v3813 = vrot.slane %v3786, %v3812
    %v3815 = vunpack.c.l.s4 1966171168
    %v3816 = vunpack.c.0.s8 %v3815
    %v3817 = vlaneseq
    %v3818 = vshrl.u32 %v3817, 7
    %v3819 = vsub.s32 %v3816, %v3818
    %v3820 = vrot.slane %v3788, %v3819
    %v3822 = vunpack.c.l.s4 1966171168
    %v3823 = vunpack.c.0.s8 %v3822
    %v3824 = vlaneseq
    %v3825 = vshrl.u32 %v3824, 7
    %v3826 = vsub.s32 %v3823, %v3825
    %v3827 = vrot.slane %v3789, %v3826
    %v3829 = vunpack.c.l.s4 1966171168
    %v3830 = vunpack.c.0.s8 %v3829
    %v3831 = vlaneseq
    %v3832 = vshrl.u32 %v3831, 7
    %v3833 = vsub.s32 %v3830, %v3832
    %v3834 = vrot.slane %v3791, %v3833
    %v3836 = vunpack.c.l.s4 1966171168
    %v3837 = vunpack.c.0.s8 %v3836
    %v3838 = vlaneseq
    %v3839 = vshrl.u32 %v3838, 7
    %v3840 = vsub.s32 %v3837, %v3839
    %v3841 = vrot.slane %v3790, %v3840
    %v3843 = vunpack.c.l.s4 1966171168
    %v3844 = vunpack.c.0.s8 %v3843
    %v3845 = vlaneseq
    %v3846 = vshrl.u32 %v3845, 7
    %v3847 = vsub.s32 %v3844, %v3846
    %v3848 = vrot.slane %v3792, %v3847
    %v3849 = vcombine.low %v3799, %v3827
    %v3850 = vcombine.high %v3799, %v3827
    %v3851 = vcombine.low %v3806, %v3834
    %v3852 = vcombine.high %v3806, %v3834
    %v3853 = vcombine.low %v3813, %v3841
    %v3854 = vcombine.high %v3813, %v3841
    %v3855 = vcombine.low %v3820, %v3848
    %v3856 = vcombine.high %v3820, %v3848
    %v3857 = vcombine.low %v2136, %v2229
    %v3858 = vcombine.high %v2136, %v2229
    %v3859 = vcombine.low %v2231, %v2230
    %v3860 = vcombine.high %v2231, %v2230
    %v3861 = vcombine.low %v2323, %v2325
    %v3862 = vcombine.high %v2323, %v2325
    %v3863 = vcombine.low %v2324, %v2417
    %v3864 = vcombine.high %v2324, %v2417
    %v3866 = vunpack.c.l.s4 1966171168
    %v3867 = vunpack.c.0.s8 %v3866
    %v3868 = vlaneseq
    %v3869 = vshrl.u32 %v3868, 7
    %v3870 = vsub.s32 %v3867, %v3869
    %v3871 = vrot.slane %v3857, %v3870
    %v3873 = vunpack.c.l.s4 1966171168
    %v3874 = vunpack.c.0.s8 %v3873
    %v3875 = vlaneseq
    %v3876 = vshrl.u32 %v3875, 7
    %v3877 = vsub.s32 %v3874, %v3876
    %v3878 = vrot.slane %v3858, %v3877
    %v3880 = vunpack.c.l.s4 1966171168
    %v3881 = vunpack.c.0.s8 %v3880
    %v3882 = vlaneseq
    %v3883 = vshrl.u32 %v3882, 7
    %v3884 = vsub.s32 %v3881, %v3883
    %v3885 = vrot.slane %v3859, %v3884
    %v3887 = vunpack.c.l.s4 1966171168
    %v3888 = vunpack.c.0.s8 %v3887
    %v3889 = vlaneseq
    %v3890 = vshrl.u32 %v3889, 7
    %v3891 = vsub.s32 %v3888, %v3890
    %v3892 = vrot.slane %v3860, %v3891
    %v3894 = vunpack.c.l.s4 1966171168
    %v3895 = vunpack.c.0.s8 %v3894
    %v3896 = vlaneseq
    %v3897 = vshrl.u32 %v3896, 7
    %v3898 = vsub.s32 %v3895, %v3897
    %v3899 = vrot.slane %v3861, %v3898
    %v3901 = vunpack.c.l.s4 1966171168
    %v3902 = vunpack.c.0.s8 %v3901
    %v3903 = vlaneseq
    %v3904 = vshrl.u32 %v3903, 7
    %v3905 = vsub.s32 %v3902, %v3904
    %v3906 = vrot.slane %v3862, %v3905
    %v3908 = vunpack.c.l.s4 1966171168
    %v3909 = vunpack.c.0.s8 %v3908
    %v3910 = vlaneseq
    %v3911 = vshrl.u32 %v3910, 7
    %v3912 = vsub.s32 %v3909, %v3911
    %v3913 = vrot.slane %v3863, %v3912
    %v3915 = vunpack.c.l.s4 1966171168
    %v3916 = vunpack.c.0.s8 %v3915
    %v3917 = vlaneseq
    %v3918 = vshrl.u32 %v3917, 7
    %v3919 = vsub.s32 %v3916, %v3918
    %v3920 = vrot.slane %v3864, %v3919
    %v3921 = vcombine.low %v3871, %v3885
    %v3922 = vcombine.high %v3871, %v3885
    %v3923 = vcombine.low %v3878, %v3892
    %v3924 = vcombine.high %v3878, %v3892
    %v3925 = vcombine.low %v3899, %v3913
    %v3926 = vcombine.high %v3899, %v3913
    %v3927 = vcombine.low %v3906, %v3920
    %v3928 = vcombine.high %v3906, %v3920
    %v3930 = vunpack.c.l.s4 1966171168
    %v3931 = vunpack.c.0.s8 %v3930
    %v3932 = vlaneseq
    %v3933 = vshrl.u32 %v3932, 7
    %v3934 = vsub.s32 %v3931, %v3933
    %v3935 = vrot.slane %v3921, %v3934
    %v3937 = vunpack.c.l.s4 1966171168
    %v3938 = vunpack.c.0.s8 %v3937
    %v3939 = vlaneseq
    %v3940 = vshrl.u32 %v3939, 7
    %v3941 = vsub.s32 %v3938, %v3940
    %v3942 = vrot.slane %v3923, %v3941
    %v3944 = vunpack.c.l.s4 1966171168
    %v3945 = vunpack.c.0.s8 %v3944
    %v3946 = vlaneseq
    %v3947 = vshrl.u32 %v3946, 7
    %v3948 = vsub.s32 %v3945, %v3947
    %v3949 = vrot.slane %v3922, %v3948
    %v3951 = vunpack.c.l.s4 1966171168
    %v3952 = vunpack.c.0.s8 %v3951
    %v3953 = vlaneseq
    %v3954 = vshrl.u32 %v3953, 7
    %v3955 = vsub.s32 %v3952, %v3954
    %v3956 = vrot.slane %v3924, %v3955
    %v3958 = vunpack.c.l.s4 1966171168
    %v3959 = vunpack.c.0.s8 %v3958
    %v3960 = vlaneseq
    %v3961 = vshrl.u32 %v3960, 7
    %v3962 = vsub.s32 %v3959, %v3961
    %v3963 = vrot.slane %v3925, %v3962
    %v3965 = vunpack.c.l.s4 1966171168
    %v3966 = vunpack.c.0.s8 %v3965
    %v3967 = vlaneseq
    %v3968 = vshrl.u32 %v3967, 7
    %v3969 = vsub.s32 %v3966, %v3968
    %v3970 = vrot.slane %v3927, %v3969
    %v3972 = vunpack.c.l.s4 1966171168
    %v3973 = vunpack.c.0.s8 %v3972
    %v3974 = vlaneseq
    %v3975 = vshrl.u32 %v3974, 7
    %v3976 = vsub.s32 %v3973, %v3975
    %v3977 = vrot.slane %v3926, %v3976
    %v3979 = vunpack.c.l.s4 1966171168
    %v3980 = vunpack.c.0.s8 %v3979
    %v3981 = vlaneseq
    %v3982 = vshrl.u32 %v3981, 7
    %v3983 = vsub.s32 %v3980, %v3982
    %v3984 = vrot.slane %v3928, %v3983
    %v3985 = vcombine.low %v3935, %v3963
    %v3986 = vcombine.high %v3935, %v3963
    %v3987 = vcombine.low %v3942, %v3970
    %v3988 = vcombine.high %v3942, %v3970
    %v3989 = vcombine.low %v3949, %v3977
    %v3990 = vcombine.high %v3949, %v3977
    %v3991 = vcombine.low %v3956, %v3984
    %v3992 = vcombine.high %v3956, %v3984
    %v3993 = vcombine.low %v2161, %v2247
    %v3994 = vcombine.low %v2254, %v2255
    %v3995 = vcombine.low %v2341, %v2348
    %v3996 = vcombine.low %v2349, %v2435
    %v3998 = vunpack.c.l.s4 1966171168
    %v3999 = vunpack.c.0.s8 %v3998
    %v4000 = vlaneseq
    %v4001 = vshrl.u32 %v4000, 7
    %v4002 = vsub.s32 %v3999, %v4001
    %v4003 = vrot.slane %v3993, %v4002
    %v4005 = vunpack.c.l.s4 1966171168
    %v4006 = vunpack.c.0.s8 %v4005
    %v4007 = vlaneseq
    %v4008 = vshrl.u32 %v4007, 7
    %v4009 = vsub.s32 %v4006, %v4008
    %v4010 = vrot.slane %v3994, %v4009
    %v4012 = vunpack.c.l.s4 1966171168
    %v4013 = vunpack.c.0.s8 %v4012
    %v4014 = vlaneseq
    %v4015 = vshrl.u32 %v4014, 7
    %v4016 = vsub.s32 %v4013, %v4015
    %v4017 = vrot.slane %v3995, %v4016
    %v4019 = vunpack.c.l.s4 1966171168
    %v4020 = vunpack.c.0.s8 %v4019
    %v4021 = vlaneseq
    %v4022 = vshrl.u32 %v4021, 7
    %v4023 = vsub.s32 %v4020, %v4022
    %v4024 = vrot.slane %v3996, %v4023
    %v4025 = vcombine.low %v4003, %v4010
    %v4026 = vcombine.high %v4003, %v4010
    %v4027 = vcombine.low %v4017, %v4024
    %v4028 = vcombine.high %v4017, %v4024
    %v4030 = vunpack.c.l.s4 1966171168
    %v4031 = vunpack.c.0.s8 %v4030
    %v4032 = vlaneseq
    %v4033 = vshrl.u32 %v4032, 7
    %v4034 = vsub.s32 %v4031, %v4033
    %v4035 = vrot.slane %v4025, %v4034
    %v4037 = vunpack.c.l.s4 1966171168
    %v4038 = vunpack.c.0.s8 %v4037
    %v4039 = vlaneseq
    %v4040 = vshrl.u32 %v4039, 7
    %v4041 = vsub.s32 %v4038, %v4040
    %v4042 = vrot.slane %v4026, %v4041
    %v4044 = vunpack.c.l.s4 1966171168
    %v4045 = vunpack.c.0.s8 %v4044
    %v4046 = vlaneseq
    %v4047 = vshrl.u32 %v4046, 7
    %v4048 = vsub.s32 %v4045, %v4047
    %v4049 = vrot.slane %v4027, %v4048
    %v4051 = vunpack.c.l.s4 1966171168
    %v4052 = vunpack.c.0.s8 %v4051
    %v4053 = vlaneseq
    %v4054 = vshrl.u32 %v4053, 7
    %v4055 = vsub.s32 %v4052, %v4054
    %v4056 = vrot.slane %v4028, %v4055
    %v4057 = vcombine.low %v4035, %v4049
    %v4058 = vcombine.low %v4042, %v4056
    %v4059 = vcombine.low %v2368, %v2367
    %v4060 = vcombine.high %v2368, %v2367
    %v4061 = vcombine.low %v2508, %v2510
    %v4062 = vcombine.high %v2508, %v2510
    %v4063 = vcombine.low %v2509, %v2634
    %v4064 = vcombine.high %v2509, %v2634
    %v4065 = vcombine.low %v2636, %v2635
    %v4066 = vcombine.high %v2636, %v2635
    %v4068 = vunpack.c.l.s4 1966171168
    %v4069 = vunpack.c.0.s8 %v4068
    %v4070 = vlaneseq
    %v4071 = vshrl.u32 %v4070, 7
    %v4072 = vsub.s32 %v4069, %v4071
    %v4073 = vrot.slane %v4059, %v4072
    %v4075 = vunpack.c.l.s4 1966171168
    %v4076 = vunpack.c.0.s8 %v4075
    %v4077 = vlaneseq
    %v4078 = vshrl.u32 %v4077, 7
    %v4079 = vsub.s32 %v4076, %v4078
    %v4080 = vrot.slane %v4060, %v4079
    %v4082 = vunpack.c.l.s4 1966171168
    %v4083 = vunpack.c.0.s8 %v4082
    %v4084 = vlaneseq
    %v4085 = vshrl.u32 %v4084, 7
    %v4086 = vsub.s32 %v4083, %v4085
    %v4087 = vrot.slane %v4061, %v4086
    %v4089 = vunpack.c.l.s4 1966171168
    %v4090 = vunpack.c.0.s8 %v4089
    %v4091 = vlaneseq
    %v4092 = vshrl.u32 %v4091, 7
    %v4093 = vsub.s32 %v4090, %v4092
    %v4094 = vrot.slane %v4062, %v4093
    %v4096 = vunpack.c.l.s4 1966171168
    %v4097 = vunpack.c.0.s8 %v4096
    %v4098 = vlaneseq
    %v4099 = vshrl.u32 %v4098, 7
    %v4100 = vsub.s32 %v4097, %v4099
    %v4101 = vrot.slane %v4063, %v4100
    %v4103 = vunpack.c.l.s4 1966171168
    %v4104 = vunpack.c.0.s8 %v4103
    %v4105 = vlaneseq
    %v4106 = vshrl.u32 %v4105, 7
    %v4107 = vsub.s32 %v4104, %v4106
    %v4108 = vrot.slane %v4064, %v4107
    %v4110 = vunpack.c.l.s4 1966171168
    %v4111 = vunpack.c.0.s8 %v4110
    %v4112 = vlaneseq
    %v4113 = vshrl.u32 %v4112, 7
    %v4114 = vsub.s32 %v4111, %v4113
    %v4115 = vrot.slane %v4065, %v4114
    %v4117 = vunpack.c.l.s4 1966171168
    %v4118 = vunpack.c.0.s8 %v4117
    %v4119 = vlaneseq
    %v4120 = vshrl.u32 %v4119, 7
    %v4121 = vsub.s32 %v4118, %v4120
    %v4122 = vrot.slane %v4066, %v4121
    %v4123 = vcombine.low %v4073, %v4087
    %v4124 = vcombine.high %v4073, %v4087
    %v4125 = vcombine.low %v4080, %v4094
    %v4126 = vcombine.high %v4080, %v4094
    %v4127 = vcombine.low %v4101, %v4115
    %v4128 = vcombine.high %v4101, %v4115
    %v4129 = vcombine.low %v4108, %v4122
    %v4130 = vcombine.high %v4108, %v4122
    %v4132 = vunpack.c.l.s4 1966171168
    %v4133 = vunpack.c.0.s8 %v4132
    %v4134 = vlaneseq
    %v4135 = vshrl.u32 %v4134, 7
    %v4136 = vsub.s32 %v4133, %v4135
    %v4137 = vrot.slane %v4123, %v4136
    %v4139 = vunpack.c.l.s4 1966171168
    %v4140 = vunpack.c.0.s8 %v4139
    %v4141 = vlaneseq
    %v4142 = vshrl.u32 %v4141, 7
    %v4143 = vsub.s32 %v4140, %v4142
    %v4144 = vrot.slane %v4125, %v4143
    %v4146 = vunpack.c.l.s4 1966171168
    %v4147 = vunpack.c.0.s8 %v4146
    %v4148 = vlaneseq
    %v4149 = vshrl.u32 %v4148, 7
    %v4150 = vsub.s32 %v4147, %v4149
    %v4151 = vrot.slane %v4124, %v4150
    %v4153 = vunpack.c.l.s4 1966171168
    %v4154 = vunpack.c.0.s8 %v4153
    %v4155 = vlaneseq
    %v4156 = vshrl.u32 %v4155, 7
    %v4157 = vsub.s32 %v4154, %v4156
    %v4158 = vrot.slane %v4126, %v4157
    %v4160 = vunpack.c.l.s4 1966171168
    %v4161 = vunpack.c.0.s8 %v4160
    %v4162 = vlaneseq
    %v4163 = vshrl.u32 %v4162, 7
    %v4164 = vsub.s32 %v4161, %v4163
    %v4165 = vrot.slane %v4127, %v4164
    %v4167 = vunpack.c.l.s4 1966171168
    %v4168 = vunpack.c.0.s8 %v4167
    %v4169 = vlaneseq
    %v4170 = vshrl.u32 %v4169, 7
    %v4171 = vsub.s32 %v4168, %v4170
    %v4172 = vrot.slane %v4129, %v4171
    %v4174 = vunpack.c.l.s4 1966171168
    %v4175 = vunpack.c.0.s8 %v4174
    %v4176 = vlaneseq
    %v4177 = vshrl.u32 %v4176, 7
    %v4178 = vsub.s32 %v4175, %v4177
    %v4179 = vrot.slane %v4128, %v4178
    %v4181 = vunpack.c.l.s4 1966171168
    %v4182 = vunpack.c.0.s8 %v4181
    %v4183 = vlaneseq
    %v4184 = vshrl.u32 %v4183, 7
    %v4185 = vsub.s32 %v4182, %v4184
    %v4186 = vrot.slane %v4130, %v4185
    %v4187 = vcombine.low %v4137, %v4165
    %v4188 = vcombine.high %v4137, %v4165
    %v4189 = vcombine.low %v4144, %v4172
    %v4190 = vcombine.high %v4144, %v4172
    %v4191 = vcombine.low %v4151, %v4179
    %v4192 = vcombine.high %v4151, %v4179
    %v4193 = vcombine.low %v4158, %v4186
    %v4194 = vcombine.high %v4158, %v4186
    %v4195 = vcombine.low %v2419, %v2418
    %v4196 = vcombine.high %v2419, %v2418
    %v4197 = vcombine.low %v2575, %v2577
    %v4198 = vcombine.high %v2575, %v2577
    %v4199 = vcombine.low %v2576, %v2685
    %v4200 = vcombine.high %v2576, %v2685
    %v4201 = vcombine.low %v2687, %v2686
    %v4202 = vcombine.high %v2687, %v2686
    %v4204 = vunpack.c.l.s4 1966171168
    %v4205 = vunpack.c.0.s8 %v4204
    %v4206 = vlaneseq
    %v4207 = vshrl.u32 %v4206, 7
    %v4208 = vsub.s32 %v4205, %v4207
    %v4209 = vrot.slane %v4195, %v4208
    %v4211 = vunpack.c.l.s4 1966171168
    %v4212 = vunpack.c.0.s8 %v4211
    %v4213 = vlaneseq
    %v4214 = vshrl.u32 %v4213, 7
    %v4215 = vsub.s32 %v4212, %v4214
    %v4216 = vrot.slane %v4196, %v4215
    %v4218 = vunpack.c.l.s4 1966171168
    %v4219 = vunpack.c.0.s8 %v4218
    %v4220 = vlaneseq
    %v4221 = vshrl.u32 %v4220, 7
    %v4222 = vsub.s32 %v4219, %v4221
    %v4223 = vrot.slane %v4197, %v4222
    %v4225 = vunpack.c.l.s4 1966171168
    %v4226 = vunpack.c.0.s8 %v4225
    %v4227 = vlaneseq
    %v4228 = vshrl.u32 %v4227, 7
    %v4229 = vsub.s32 %v4226, %v4228
    %v4230 = vrot.slane %v4198, %v4229
    %v4232 = vunpack.c.l.s4 1966171168
    %v4233 = vunpack.c.0.s8 %v4232
    %v4234 = vlaneseq
    %v4235 = vshrl.u32 %v4234, 7
    %v4236 = vsub.s32 %v4233, %v4235
    %v4237 = vrot.slane %v4199, %v4236
    %v4239 = vunpack.c.l.s4 1966171168
    %v4240 = vunpack.c.0.s8 %v4239
    %v4241 = vlaneseq
    %v4242 = vshrl.u32 %v4241, 7
    %v4243 = vsub.s32 %v4240, %v4242
    %v4244 = vrot.slane %v4200, %v4243
    %v4246 = vunpack.c.l.s4 1966171168
    %v4247 = vunpack.c.0.s8 %v4246
    %v4248 = vlaneseq
    %v4249 = vshrl.u32 %v4248, 7
    %v4250 = vsub.s32 %v4247, %v4249
    %v4251 = vrot.slane %v4201, %v4250
    %v4253 = vunpack.c.l.s4 1966171168
    %v4254 = vunpack.c.0.s8 %v4253
    %v4255 = vlaneseq
    %v4256 = vshrl.u32 %v4255, 7
    %v4257 = vsub.s32 %v4254, %v4256
    %v4258 = vrot.slane %v4202, %v4257
    %v4259 = vcombine.low %v4209, %v4223
    %v4260 = vcombine.high %v4209, %v4223
    %v4261 = vcombine.low %v4216, %v4230
    %v4262 = vcombine.high %v4216, %v4230
    %v4263 = vcombine.low %v4237, %v4251
    %v4264 = vcombine.high %v4237, %v4251
    %v4265 = vcombine.low %v4244, %v4258
    %v4266 = vcombine.high %v4244, %v4258
    %v4268 = vunpack.c.l.s4 1966171168
    %v4269 = vunpack.c.0.s8 %v4268
    %v4270 = vlaneseq
    %v4271 = vshrl.u32 %v4270, 7
    %v4272 = vsub.s32 %v4269, %v4271
    %v4273 = vrot.slane %v4259, %v4272
    %v4275 = vunpack.c.l.s4 1966171168
    %v4276 = vunpack.c.0.s8 %v4275
    %v4277 = vlaneseq
    %v4278 = vshrl.u32 %v4277, 7
    %v4279 = vsub.s32 %v4276, %v4278
    %v4280 = vrot.slane %v4261, %v4279
    %v4282 = vunpack.c.l.s4 1966171168
    %v4283 = vunpack.c.0.s8 %v4282
    %v4284 = vlaneseq
    %v4285 = vshrl.u32 %v4284, 7
    %v4286 = vsub.s32 %v4283, %v4285
    %v4287 = vrot.slane %v4260, %v4286
    %v4289 = vunpack.c.l.s4 1966171168
    %v4290 = vunpack.c.0.s8 %v4289
    %v4291 = vlaneseq
    %v4292 = vshrl.u32 %v4291, 7
    %v4293 = vsub.s32 %v4290, %v4292
    %v4294 = vrot.slane %v4262, %v4293
    %v4296 = vunpack.c.l.s4 1966171168
    %v4297 = vunpack.c.0.s8 %v4296
    %v4298 = vlaneseq
    %v4299 = vshrl.u32 %v4298, 7
    %v4300 = vsub.s32 %v4297, %v4299
    %v4301 = vrot.slane %v4263, %v4300
    %v4303 = vunpack.c.l.s4 1966171168
    %v4304 = vunpack.c.0.s8 %v4303
    %v4305 = vlaneseq
    %v4306 = vshrl.u32 %v4305, 7
    %v4307 = vsub.s32 %v4304, %v4306
    %v4308 = vrot.slane %v4265, %v4307
    %v4310 = vunpack.c.l.s4 1966171168
    %v4311 = vunpack.c.0.s8 %v4310
    %v4312 = vlaneseq
    %v4313 = vshrl.u32 %v4312, 7
    %v4314 = vsub.s32 %v4311, %v4313
    %v4315 = vrot.slane %v4264, %v4314
    %v4317 = vunpack.c.l.s4 1966171168
    %v4318 = vunpack.c.0.s8 %v4317
    %v4319 = vlaneseq
    %v4320 = vshrl.u32 %v4319, 7
    %v4321 = vsub.s32 %v4318, %v4320
    %v4322 = vrot.slane %v4266, %v4321
    %v4323 = vcombine.low %v4273, %v4301
    %v4324 = vcombine.high %v4273, %v4301
    %v4325 = vcombine.low %v4280, %v4308
    %v4326 = vcombine.high %v4280, %v4308
    %v4327 = vcombine.low %v4287, %v4315
    %v4328 = vcombine.high %v4287, %v4315
    %v4329 = vcombine.low %v4294, %v4322
    %v4330 = vcombine.high %v4294, %v4322
    %v4331 = vcombine.low %v2442, %v2443
    %v4332 = vcombine.low %v2593, %v2600
    %v4333 = vcombine.low %v2601, %v2703
    %v4334 = vcombine.low %v2710, %v2711
    %v4336 = vunpack.c.l.s4 1966171168
    %v4337 = vunpack.c.0.s8 %v4336
    %v4338 = vlaneseq
    %v4339 = vshrl.u32 %v4338, 7
    %v4340 = vsub.s32 %v4337, %v4339
    %v4341 = vrot.slane %v4331, %v4340
    %v4343 = vunpack.c.l.s4 1966171168
    %v4344 = vunpack.c.0.s8 %v4343
    %v4345 = vlaneseq
    %v4346 = vshrl.u32 %v4345, 7
    %v4347 = vsub.s32 %v4344, %v4346
    %v4348 = vrot.slane %v4332, %v4347
    %v4350 = vunpack.c.l.s4 1966171168
    %v4351 = vunpack.c.0.s8 %v4350
    %v4352 = vlaneseq
    %v4353 = vshrl.u32 %v4352, 7
    %v4354 = vsub.s32 %v4351, %v4353
    %v4355 = vrot.slane %v4333, %v4354
    %v4357 = vunpack.c.l.s4 1966171168
    %v4358 = vunpack.c.0.s8 %v4357
    %v4359 = vlaneseq
    %v4360 = vshrl.u32 %v4359, 7
    %v4361 = vsub.s32 %v4358, %v4360
    %v4362 = vrot.slane %v4334, %v4361
    %v4363 = vcombine.low %v4341, %v4348
    %v4364 = vcombine.high %v4341, %v4348
    %v4365 = vcombine.low %v4355, %v4362
    %v4366 = vcombine.high %v4355, %v4362
    %v4368 = vunpack.c.l.s4 1966171168
    %v4369 = vunpack.c.0.s8 %v4368
    %v4370 = vlaneseq
    %v4371 = vshrl.u32 %v4370, 7
    %v4372 = vsub.s32 %v4369, %v4371
    %v4373 = vrot.slane %v4363, %v4372
    %v4375 = vunpack.c.l.s4 1966171168
    %v4376 = vunpack.c.0.s8 %v4375
    %v4377 = vlaneseq
    %v4378 = vshrl.u32 %v4377, 7
    %v4379 = vsub.s32 %v4376, %v4378
    %v4380 = vrot.slane %v4364, %v4379
    %v4382 = vunpack.c.l.s4 1966171168
    %v4383 = vunpack.c.0.s8 %v4382
    %v4384 = vlaneseq
    %v4385 = vshrl.u32 %v4384, 7
    %v4386 = vsub.s32 %v4383, %v4385
    %v4387 = vrot.slane %v4365, %v4386
    %v4389 = vunpack.c.l.s4 1966171168
    %v4390 = vunpack.c.0.s8 %v4389
    %v4391 = vlaneseq
    %v4392 = vshrl.u32 %v4391, 7
    %v4393 = vsub.s32 %v4390, %v4392
    %v4394 = vrot.slane %v4366, %v4393
    %v4395 = vcombine.low %v4373, %v4387
    %v4396 = vcombine.low %v4380, %v4394
    %v4397 = vcombine.low %v2728, %v2730
    %v4398 = vcombine.high %v2728, %v2730
    %v4399 = vcombine.low %v2729, %v2822
    %v4400 = vcombine.high %v2729, %v2822
    %v4401 = vcombine.low %v2824, %v2823
    %v4402 = vcombine.high %v2824, %v2823
    %v4403 = vcombine.low %v2916, %v2918
    %v4404 = vcombine.high %v2916, %v2918
    %v4406 = vunpack.c.l.s4 1966171168
    %v4407 = vunpack.c.0.s8 %v4406
    %v4408 = vlaneseq
    %v4409 = vshrl.u32 %v4408, 7
    %v4410 = vsub.s32 %v4407, %v4409
    %v4411 = vrot.slane %v4397, %v4410
    %v4413 = vunpack.c.l.s4 1966171168
    %v4414 = vunpack.c.0.s8 %v4413
    %v4415 = vlaneseq
    %v4416 = vshrl.u32 %v4415, 7
    %v4417 = vsub.s32 %v4414, %v4416
    %v4418 = vrot.slane %v4398, %v4417
    %v4420 = vunpack.c.l.s4 1966171168
    %v4421 = vunpack.c.0.s8 %v4420
    %v4422 = vlaneseq
    %v4423 = vshrl.u32 %v4422, 7
    %v4424 = vsub.s32 %v4421, %v4423
    %v4425 = vrot.slane %v4399, %v4424
    %v4427 = vunpack.c.l.s4 1966171168
    %v4428 = vunpack.c.0.s8 %v4427
    %v4429 = vlaneseq
    %v4430 = vshrl.u32 %v4429, 7
    %v4431 = vsub.s32 %v4428, %v4430
    %v4432 = vrot.slane %v4400, %v4431
    %v4434 = vunpack.c.l.s4 1966171168
    %v4435 = vunpack.c.0.s8 %v4434
    %v4436 = vlaneseq
    %v4437 = vshrl.u32 %v4436, 7
    %v4438 = vsub.s32 %v4435, %v4437
    %v4439 = vrot.slane %v4401, %v4438
    %v4441 = vunpack.c.l.s4 1966171168
    %v4442 = vunpack.c.0.s8 %v4441
    %v4443 = vlaneseq
    %v4444 = vshrl.u32 %v4443, 7
    %v4445 = vsub.s32 %v4442, %v4444
    %v4446 = vrot.slane %v4402, %v4445
    %v4448 = vunpack.c.l.s4 1966171168
    %v4449 = vunpack.c.0.s8 %v4448
    %v4450 = vlaneseq
    %v4451 = vshrl.u32 %v4450, 7
    %v4452 = vsub.s32 %v4449, %v4451
    %v4453 = vrot.slane %v4403, %v4452
    %v4455 = vunpack.c.l.s4 1966171168
    %v4456 = vunpack.c.0.s8 %v4455
    %v4457 = vlaneseq
    %v4458 = vshrl.u32 %v4457, 7
    %v4459 = vsub.s32 %v4456, %v4458
    %v4460 = vrot.slane %v4404, %v4459
    %v4461 = vcombine.low %v4411, %v4425
    %v4462 = vcombine.high %v4411, %v4425
    %v4463 = vcombine.low %v4418, %v4432
    %v4464 = vcombine.high %v4418, %v4432
    %v4465 = vcombine.low %v4439, %v4453
    %v4466 = vcombine.high %v4439, %v4453
    %v4467 = vcombine.low %v4446, %v4460
    %v4468 = vcombine.high %v4446, %v4460
    %v4470 = vunpack.c.l.s4 1966171168
    %v4471 = vunpack.c.0.s8 %v4470
    %v4472 = vlaneseq
    %v4473 = vshrl.u32 %v4472, 7
    %v4474 = vsub.s32 %v4471, %v4473
    %v4475 = vrot.slane %v4461, %v4474
    %v4477 = vunpack.c.l.s4 1966171168
    %v4478 = vunpack.c.0.s8 %v4477
    %v4479 = vlaneseq
    %v4480 = vshrl.u32 %v4479, 7
    %v4481 = vsub.s32 %v4478, %v4480
    %v4482 = vrot.slane %v4463, %v4481
    %v4484 = vunpack.c.l.s4 1966171168
    %v4485 = vunpack.c.0.s8 %v4484
    %v4486 = vlaneseq
    %v4487 = vshrl.u32 %v4486, 7
    %v4488 = vsub.s32 %v4485, %v4487
    %v4489 = vrot.slane %v4462, %v4488
    %v4491 = vunpack.c.l.s4 1966171168
    %v4492 = vunpack.c.0.s8 %v4491
    %v4493 = vlaneseq
    %v4494 = vshrl.u32 %v4493, 7
    %v4495 = vsub.s32 %v4492, %v4494
    %v4496 = vrot.slane %v4464, %v4495
    %v4498 = vunpack.c.l.s4 1966171168
    %v4499 = vunpack.c.0.s8 %v4498
    %v4500 = vlaneseq
    %v4501 = vshrl.u32 %v4500, 7
    %v4502 = vsub.s32 %v4499, %v4501
    %v4503 = vrot.slane %v4465, %v4502
    %v4505 = vunpack.c.l.s4 1966171168
    %v4506 = vunpack.c.0.s8 %v4505
    %v4507 = vlaneseq
    %v4508 = vshrl.u32 %v4507, 7
    %v4509 = vsub.s32 %v4506, %v4508
    %v4510 = vrot.slane %v4467, %v4509
    %v4512 = vunpack.c.l.s4 1966171168
    %v4513 = vunpack.c.0.s8 %v4512
    %v4514 = vlaneseq
    %v4515 = vshrl.u32 %v4514, 7
    %v4516 = vsub.s32 %v4513, %v4515
    %v4517 = vrot.slane %v4466, %v4516
    %v4519 = vunpack.c.l.s4 1966171168
    %v4520 = vunpack.c.0.s8 %v4519
    %v4521 = vlaneseq
    %v4522 = vshrl.u32 %v4521, 7
    %v4523 = vsub.s32 %v4520, %v4522
    %v4524 = vrot.slane %v4468, %v4523
    %v4525 = vcombine.low %v4475, %v4503
    %v4526 = vcombine.high %v4475, %v4503
    %v4527 = vcombine.low %v4482, %v4510
    %v4528 = vcombine.high %v4482, %v4510
    %v4529 = vcombine.low %v4489, %v4517
    %v4530 = vcombine.high %v4489, %v4517
    %v4531 = vcombine.low %v4496, %v4524
    %v4532 = vcombine.high %v4496, %v4524
    %v4533 = vcombine.low %v2779, %v2781
    %v4534 = vcombine.high %v2779, %v2781
    %v4535 = vcombine.low %v2780, %v2873
    %v4536 = vcombine.high %v2780, %v2873
    %v4537 = vcombine.low %v2875, %v2874
    %v4538 = vcombine.high %v2875, %v2874
    %v4539 = vcombine.low %v2967, %v2969
    %v4540 = vcombine.high %v2967, %v2969
    %v4542 = vunpack.c.l.s4 1966171168
    %v4543 = vunpack.c.0.s8 %v4542
    %v4544 = vlaneseq
    %v4545 = vshrl.u32 %v4544, 7
    %v4546 = vsub.s32 %v4543, %v4545
    %v4547 = vrot.slane %v4533, %v4546
    %v4549 = vunpack.c.l.s4 1966171168
    %v4550 = vunpack.c.0.s8 %v4549
    %v4551 = vlaneseq
    %v4552 = vshrl.u32 %v4551, 7
    %v4553 = vsub.s32 %v4550, %v4552
    %v4554 = vrot.slane %v4534, %v4553
    %v4556 = vunpack.c.l.s4 1966171168
    %v4557 = vunpack.c.0.s8 %v4556
    %v4558 = vlaneseq
    %v4559 = vshrl.u32 %v4558, 7
    %v4560 = vsub.s32 %v4557, %v4559
    %v4561 = vrot.slane %v4535, %v4560
    %v4563 = vunpack.c.l.s4 1966171168
    %v4564 = vunpack.c.0.s8 %v4563
    %v4565 = vlaneseq
    %v4566 = vshrl.u32 %v4565, 7
    %v4567 = vsub.s32 %v4564, %v4566
    %v4568 = vrot.slane %v4536, %v4567
    %v4570 = vunpack.c.l.s4 1966171168
    %v4571 = vunpack.c.0.s8 %v4570
    %v4572 = vlaneseq
    %v4573 = vshrl.u32 %v4572, 7
    %v4574 = vsub.s32 %v4571, %v4573
    %v4575 = vrot.slane %v4537, %v4574
    %v4577 = vunpack.c.l.s4 1966171168
    %v4578 = vunpack.c.0.s8 %v4577
    %v4579 = vlaneseq
    %v4580 = vshrl.u32 %v4579, 7
    %v4581 = vsub.s32 %v4578, %v4580
    %v4582 = vrot.slane %v4538, %v4581
    %v4584 = vunpack.c.l.s4 1966171168
    %v4585 = vunpack.c.0.s8 %v4584
    %v4586 = vlaneseq
    %v4587 = vshrl.u32 %v4586, 7
    %v4588 = vsub.s32 %v4585, %v4587
    %v4589 = vrot.slane %v4539, %v4588
    %v4591 = vunpack.c.l.s4 1966171168
    %v4592 = vunpack.c.0.s8 %v4591
    %v4593 = vlaneseq
    %v4594 = vshrl.u32 %v4593, 7
    %v4595 = vsub.s32 %v4592, %v4594
    %v4596 = vrot.slane %v4540, %v4595
    %v4597 = vcombine.low %v4547, %v4561
    %v4598 = vcombine.high %v4547, %v4561
    %v4599 = vcombine.low %v4554, %v4568
    %v4600 = vcombine.high %v4554, %v4568
    %v4601 = vcombine.low %v4575, %v4589
    %v4602 = vcombine.high %v4575, %v4589
    %v4603 = vcombine.low %v4582, %v4596
    %v4604 = vcombine.high %v4582, %v4596
    %v4606 = vunpack.c.l.s4 1966171168
    %v4607 = vunpack.c.0.s8 %v4606
    %v4608 = vlaneseq
    %v4609 = vshrl.u32 %v4608, 7
    %v4610 = vsub.s32 %v4607, %v4609
    %v4611 = vrot.slane %v4597, %v4610
    %v4613 = vunpack.c.l.s4 1966171168
    %v4614 = vunpack.c.0.s8 %v4613
    %v4615 = vlaneseq
    %v4616 = vshrl.u32 %v4615, 7
    %v4617 = vsub.s32 %v4614, %v4616
    %v4618 = vrot.slane %v4599, %v4617
    %v4620 = vunpack.c.l.s4 1966171168
    %v4621 = vunpack.c.0.s8 %v4620
    %v4622 = vlaneseq
    %v4623 = vshrl.u32 %v4622, 7
    %v4624 = vsub.s32 %v4621, %v4623
    %v4625 = vrot.slane %v4598, %v4624
    %v4627 = vunpack.c.l.s4 1966171168
    %v4628 = vunpack.c.0.s8 %v4627
    %v4629 = vlaneseq
    %v4630 = vshrl.u32 %v4629, 7
    %v4631 = vsub.s32 %v4628, %v4630
    %v4632 = vrot.slane %v4600, %v4631
    %v4634 = vunpack.c.l.s4 1966171168
    %v4635 = vunpack.c.0.s8 %v4634
    %v4636 = vlaneseq
    %v4637 = vshrl.u32 %v4636, 7
    %v4638 = vsub.s32 %v4635, %v4637
    %v4639 = vrot.slane %v4601, %v4638
    %v4641 = vunpack.c.l.s4 1966171168
    %v4642 = vunpack.c.0.s8 %v4641
    %v4643 = vlaneseq
    %v4644 = vshrl.u32 %v4643, 7
    %v4645 = vsub.s32 %v4642, %v4644
    %v4646 = vrot.slane %v4603, %v4645
    %v4648 = vunpack.c.l.s4 1966171168
    %v4649 = vunpack.c.0.s8 %v4648
    %v4650 = vlaneseq
    %v4651 = vshrl.u32 %v4650, 7
    %v4652 = vsub.s32 %v4649, %v4651
    %v4653 = vrot.slane %v4602, %v4652
    %v4655 = vunpack.c.l.s4 1966171168
    %v4656 = vunpack.c.0.s8 %v4655
    %v4657 = vlaneseq
    %v4658 = vshrl.u32 %v4657, 7
    %v4659 = vsub.s32 %v4656, %v4658
    %v4660 = vrot.slane %v4604, %v4659
    %v4661 = vcombine.low %v4611, %v4639
    %v4662 = vcombine.high %v4611, %v4639
    %v4663 = vcombine.low %v4618, %v4646
    %v4664 = vcombine.high %v4618, %v4646
    %v4665 = vcombine.low %v4625, %v4653
    %v4666 = vcombine.high %v4625, %v4653
    %v4667 = vcombine.low %v4632, %v4660
    %v4668 = vcombine.high %v4632, %v4660
    %v4669 = vcombine.low %v2797, %v2804
    %v4670 = vcombine.low %v2805, %v2891
    %v4671 = vcombine.low %v2898, %v2899
    %v4672 = vcombine.low %v2985, %v2992
    %v4674 = vunpack.c.l.s4 1966171168
    %v4675 = vunpack.c.0.s8 %v4674
    %v4676 = vlaneseq
    %v4677 = vshrl.u32 %v4676, 7
    %v4678 = vsub.s32 %v4675, %v4677
    %v4679 = vrot.slane %v4669, %v4678
    %v4681 = vunpack.c.l.s4 1966171168
    %v4682 = vunpack.c.0.s8 %v4681
    %v4683 = vlaneseq
    %v4684 = vshrl.u32 %v4683, 7
    %v4685 = vsub.s32 %v4682, %v4684
    %v4686 = vrot.slane %v4670, %v4685
    %v4688 = vunpack.c.l.s4 1966171168
    %v4689 = vunpack.c.0.s8 %v4688
    %v4690 = vlaneseq
    %v4691 = vshrl.u32 %v4690, 7
    %v4692 = vsub.s32 %v4689, %v4691
    %v4693 = vrot.slane %v4671, %v4692
    %v4695 = vunpack.c.l.s4 1966171168
    %v4696 = vunpack.c.0.s8 %v4695
    %v4697 = vlaneseq
    %v4698 = vshrl.u32 %v4697, 7
    %v4699 = vsub.s32 %v4696, %v4698
    %v4700 = vrot.slane %v4672, %v4699
    %v4701 = vcombine.low %v4679, %v4686
    %v4702 = vcombine.high %v4679, %v4686
    %v4703 = vcombine.low %v4693, %v4700
    %v4704 = vcombine.high %v4693, %v4700
    %v4706 = vunpack.c.l.s4 1966171168
    %v4707 = vunpack.c.0.s8 %v4706
    %v4708 = vlaneseq
    %v4709 = vshrl.u32 %v4708, 7
    %v4710 = vsub.s32 %v4707, %v4709
    %v4711 = vrot.slane %v4701, %v4710
    %v4713 = vunpack.c.l.s4 1966171168
    %v4714 = vunpack.c.0.s8 %v4713
    %v4715 = vlaneseq
    %v4716 = vshrl.u32 %v4715, 7
    %v4717 = vsub.s32 %v4714, %v4716
    %v4718 = vrot.slane %v4702, %v4717
    %v4720 = vunpack.c.l.s4 1966171168
    %v4721 = vunpack.c.0.s8 %v4720
    %v4722 = vlaneseq
    %v4723 = vshrl.u32 %v4722, 7
    %v4724 = vsub.s32 %v4721, %v4723
    %v4725 = vrot.slane %v4703, %v4724
    %v4727 = vunpack.c.l.s4 1966171168
    %v4728 = vunpack.c.0.s8 %v4727
    %v4729 = vlaneseq
    %v4730 = vshrl.u32 %v4729, 7
    %v4731 = vsub.s32 %v4728, %v4730
    %v4732 = vrot.slane %v4704, %v4731
    %v4733 = vcombine.low %v4711, %v4725
    %v4734 = vcombine.low %v4718, %v4732
    %v4735 = vcombine.low %v2917, %v3010
    %v4736 = vcombine.high %v2917, %v3010
    %v4737 = vcombine.low %v3012, %v3011
    %v4738 = vcombine.high %v3012, %v3011
    %v4740 = vunpack.c.l.s4 1966171168
    %v4741 = vunpack.c.0.s8 %v4740
    %v4742 = vlaneseq
    %v4743 = vshrl.u32 %v4742, 7
    %v4744 = vsub.s32 %v4741, %v4743
    %v4745 = vrot.slane %v4735, %v4744
    %v4747 = vunpack.c.l.s4 1966171168
    %v4748 = vunpack.c.0.s8 %v4747
    %v4749 = vlaneseq
    %v4750 = vshrl.u32 %v4749, 7
    %v4751 = vsub.s32 %v4748, %v4750
    %v4752 = vrot.slane %v4736, %v4751
    %v4754 = vunpack.c.l.s4 1966171168
    %v4755 = vunpack.c.0.s8 %v4754
    %v4756 = vlaneseq
    %v4757 = vshrl.u32 %v4756, 7
    %v4758 = vsub.s32 %v4755, %v4757
    %v4759 = vrot.slane %v4737, %v4758
    %v4761 = vunpack.c.l.s4 1966171168
    %v4762 = vunpack.c.0.s8 %v4761
    %v4763 = vlaneseq
    %v4764 = vshrl.u32 %v4763, 7
    %v4765 = vsub.s32 %v4762, %v4764
    %v4766 = vrot.slane %v4738, %v4765
    %v4767 = vcombine.low %v4745, %v4759
    %v4768 = vcombine.high %v4745, %v4759
    %v4769 = vcombine.low %v4752, %v4766
    %v4770 = vcombine.high %v4752, %v4766
    %v4772 = vunpack.c.l.s4 1966171168
    %v4773 = vunpack.c.0.s8 %v4772
    %v4774 = vlaneseq
    %v4775 = vshrl.u32 %v4774, 7
    %v4776 = vsub.s32 %v4773, %v4775
    %v4777 = vrot.slane %v4767, %v4776
    %v4779 = vunpack.c.l.s4 1966171168
    %v4780 = vunpack.c.0.s8 %v4779
    %v4781 = vlaneseq
    %v4782 = vshrl.u32 %v4781, 7
    %v4783 = vsub.s32 %v4780, %v4782
    %v4784 = vrot.slane %v4769, %v4783
    %v4786 = vunpack.c.l.s4 1966171168
    %v4787 = vunpack.c.0.s8 %v4786
    %v4788 = vlaneseq
    %v4789 = vshrl.u32 %v4788, 7
    %v4790 = vsub.s32 %v4787, %v4789
    %v4791 = vrot.slane %v4768, %v4790
    %v4793 = vunpack.c.l.s4 1966171168
    %v4794 = vunpack.c.0.s8 %v4793
    %v4795 = vlaneseq
    %v4796 = vshrl.u32 %v4795, 7
    %v4797 = vsub.s32 %v4794, %v4796
    %v4798 = vrot.slane %v4770, %v4797
    %v4799 = vcombine.high %v4777, %v4777
    %v4800 = vcombine.high %v4784, %v4784
    %v4801 = vcombine.high %v4791, %v4791
    %v4802 = vcombine.high %v4798, %v4798
    %v4803 = vcombine.low %v2968, %v3061
    %v4804 = vcombine.high %v2968, %v3061
    %v4805 = vcombine.low %v3063, %v3062
    %v4806 = vcombine.high %v3063, %v3062
    %v4808 = vunpack.c.l.s4 1966171168
    %v4809 = vunpack.c.0.s8 %v4808
    %v4810 = vlaneseq
    %v4811 = vshrl.u32 %v4810, 7
    %v4812 = vsub.s32 %v4809, %v4811
    %v4813 = vrot.slane %v4803, %v4812
    %v4815 = vunpack.c.l.s4 1966171168
    %v4816 = vunpack.c.0.s8 %v4815
    %v4817 = vlaneseq
    %v4818 = vshrl.u32 %v4817, 7
    %v4819 = vsub.s32 %v4816, %v4818
    %v4820 = vrot.slane %v4804, %v4819
    %v4822 = vunpack.c.l.s4 1966171168
    %v4823 = vunpack.c.0.s8 %v4822
    %v4824 = vlaneseq
    %v4825 = vshrl.u32 %v4824, 7
    %v4826 = vsub.s32 %v4823, %v4825
    %v4827 = vrot.slane %v4805, %v4826
    %v4829 = vunpack.c.l.s4 1966171168
    %v4830 = vunpack.c.0.s8 %v4829
    %v4831 = vlaneseq
    %v4832 = vshrl.u32 %v4831, 7
    %v4833 = vsub.s32 %v4830, %v4832
    %v4834 = vrot.slane %v4806, %v4833
    %v4835 = vcombine.low %v4813, %v4827
    %v4836 = vcombine.high %v4813, %v4827
    %v4837 = vcombine.low %v4820, %v4834
    %v4838 = vcombine.high %v4820, %v4834
    %v4840 = vunpack.c.l.s4 1966171168
    %v4841 = vunpack.c.0.s8 %v4840
    %v4842 = vlaneseq
    %v4843 = vshrl.u32 %v4842, 7
    %v4844 = vsub.s32 %v4841, %v4843
    %v4845 = vrot.slane %v4835, %v4844
    %v4847 = vunpack.c.l.s4 1966171168
    %v4848 = vunpack.c.0.s8 %v4847
    %v4849 = vlaneseq
    %v4850 = vshrl.u32 %v4849, 7
    %v4851 = vsub.s32 %v4848, %v4850
    %v4852 = vrot.slane %v4837, %v4851
    %v4854 = vunpack.c.l.s4 1966171168
    %v4855 = vunpack.c.0.s8 %v4854
    %v4856 = vlaneseq
    %v4857 = vshrl.u32 %v4856, 7
    %v4858 = vsub.s32 %v4855, %v4857
    %v4859 = vrot.slane %v4836, %v4858
    %v4861 = vunpack.c.l.s4 1966171168
    %v4862 = vunpack.c.0.s8 %v4861
    %v4863 = vlaneseq
    %v4864 = vshrl.u32 %v4863, 7
    %v4865 = vsub.s32 %v4862, %v4864
    %v4866 = vrot.slane %v4838, %v4865
    %v4867 = vcombine.high %v4845, %v4845
    %v4868 = vcombine.high %v4852, %v4852
    %v4869 = vcombine.high %v4859, %v4859
    %v4870 = vcombine.high %v4866, %v4866
    %v4871 = vcombine.low %v2993, %v3079
    %v4872 = vcombine.low %v3086, %v3087
    %v4874 = vunpack.c.l.s4 1966171168
    %v4875 = vunpack.c.0.s8 %v4874
    %v4876 = vlaneseq
    %v4877 = vshrl.u32 %v4876, 7
    %v4878 = vsub.s32 %v4875, %v4877
    %v4879 = vrot.slane %v4871, %v4878
    %v4881 = vunpack.c.l.s4 1966171168
    %v4882 = vunpack.c.0.s8 %v4881
    %v4883 = vlaneseq
    %v4884 = vshrl.u32 %v4883, 7
    %v4885 = vsub.s32 %v4882, %v4884
    %v4886 = vrot.slane %v4872, %v4885
    %v4887 = vcombine.low %v4879, %v4886
    %v4888 = vcombine.high %v4879, %v4886
    %v4890 = vunpack.c.l.s4 1966171168
    %v4891 = vunpack.c.0.s8 %v4890
    %v4892 = vlaneseq
    %v4893 = vshrl.u32 %v4892, 7
    %v4894 = vsub.s32 %v4891, %v4893
    %v4895 = vrot.slane %v4887, %v4894
    %v4897 = vunpack.c.l.s4 1966171168
    %v4898 = vunpack.c.0.s8 %v4897
    %v4899 = vlaneseq
    %v4900 = vshrl.u32 %v4899, 7
    %v4901 = vsub.s32 %v4898, %v4900
    %v4902 = vrot.slane %v4888, %v4901
    %v5281 = vunpack.c.l.b16 %v3088
    %v5282 = vunpack.c.l.b16 %v3089
    %v5283 = vunpack.c.l.b16 %v3090
    %v5284 = vunpack.c.l.b16 %v3091
    %v5285 = vunpack.c.l.b16 %v3092
    %v5286 = vunpack.c.l.b16 %v3093
    %v5287 = vunpack.c.l.b16 %v3094
    %v5288 = vunpack.c.l.b16 %v3095
    %v5289 = vunpack.c.l.b16 %v3096
    %v5290 = vunpack.c.l.b16 %v3097
    %v5291 = vunpack.c.l.b16 %v3098
    %v5292 = vunpack.c.l.b16 %v3099
    %v5293 = vunpack.c.l.b16 %v3100
    %v5294 = vunpack.c.l.b16 %v3101
    %v5295 = vunpack.c.l.b16 %v3102
    %v5296 = vunpack.c.l.b16 %v3103
    %v5297 = vunpack.c.l.b16 %v3104
    %v5298 = vunpack.c.l.b16 %v3105
    %v5299 = vunpack.c.l.b16 %v3106
    %v5300 = vunpack.c.l.b16 %v3107
    %v5301 = vunpack.c.l.b16 %v3108
    %v5302 = vunpack.c.l.b16 %v3109
    %v5303 = vunpack.c.l.b16 %v3110
    %v5304 = vunpack.c.l.b16 %v3111
    %v5305 = vunpack.c.l.b16 %v3112
    %v5306 = vunpack.c.l.b16 %v3113
    %v5307 = vunpack.c.l.b16 %v3114
    %v5308 = vunpack.c.l.b16 %v3115
    %v5309 = vunpack.c.l.b16 %v3116
    %v5310 = vunpack.c.l.b16 %v3117
    %v5311 = vunpack.c.l.b16 %v3118
    %v5312 = vunpack.c.l.b16 %v3119
    %v5313 = vunpack.c.l.b16 %v3120
    %v5314 = vunpack.c.l.b16 %v3121
    %v5315 = vunpack.c.l.b16 %v3122
    %v5316 = vunpack.c.l.b16 %v3123
    %v5317 = vunpack.c.l.b16 %v3124
    %v5318 = vunpack.c.l.b16 %v3125
    %v5319 = vunpack.c.l.b16 %v3126
    %v5320 = vunpack.c.l.b16 %v3127
    %v5321 = vunpack.c.l.b16 %v3128
    %v5322 = vunpack.c.l.b16 %v3129
    %v5323 = vunpack.c.l.b16 %v3130
    %v5324 = vunpack.c.l.b16 %v3131
    %v5325 = vunpack.c.l.b16 %v3132
    %v5326 = vunpack.c.l.b16 %v3133
    %v5327 = vunpack.c.l.b16 %v3134
    %v5328 = vunpack.c.l.b16 %v3135
    %v5329 = vunpack.c.l.b16 %v3136
    %v5330 = vunpack.c.l.b16 %v3137
    %v5331 = vunpack.c.l.b16 %v3138
    %v5332 = vunpack.c.l.b16 %v3139
    %v5333 = vunpack.c.l.b16 %v3140
    %v5334 = vunpack.c.l.b16 %v3141
    %v5335 = vunpack.c.l.b16 %v3142
    %v5336 = vunpack.c.l.b16 %v3143
    %v5337 = vunpack.c.l.b16 %v3144
    %v5338 = vunpack.c.l.b16 %v3145
    %v5339 = vunpack.c.l.b16 %v3146
    %v5340 = vunpack.c.l.b16 %v3147
    %v5341 = vunpack.c.l.b16 %v3148
    %v5342 = vunpack.c.l.b16 %v3149
    %v5343 = vunpack.c.l.b16 %v3150
    %v5344 = vunpack.c.l.b16 %v3151
    %v5345 = vunpack.c.l.b16 %v3152
    %v5346 = vunpack.c.l.b16 %v3153
    %v5347 = vunpack.c.l.b16 %v3154
    %v5348 = vunpack.c.l.b16 %v3155
    %v5349 = vunpack.c.l.b16 %v3156
    %v5350 = vunpack.c.l.b16 %v3157
    %v5351 = vunpack.c.l.b16 %v3158
    %v5352 = vunpack.c.l.b16 %v3159
    %v5353 = vunpack.c.l.b16 %v3160
    %v5354 = vunpack.c.l.b16 %v3161
    %v5355 = vunpack.c.l.b16 %v3162
    %v5356 = vunpack.c.l.b16 %v3163
    %v5357 = vunpack.c.l.b16 %v3164
    %v5358 = vunpack.c.l.b16 %v3165
    %v5359 = vunpack.c.l.b16 %v3166
    %v5360 = vunpack.c.l.b16 %v3167
    %v5361 = vunpack.c.l.b16 %v3168
    %v5362 = vunpack.c.l.b16 %v3169
    %v5363 = vunpack.c.l.b16 %v3170
    %v5364 = vunpack.c.l.b16 %v3171
    %v5365 = vunpack.c.l.b16 %v3172
    %v5366 = vunpack.c.l.b16 %v3173
    %v5367 = vunpack.c.l.b16 %v3174
    %v5368 = vunpack.c.l.b16 %v3175
    %v5369 = vunpack.c.l.b16 %v3176
    %v5370 = vunpack.c.l.b16 %v3177
    %v5371 = vunpack.c.l.b16 %v3178
    %v5372 = vunpack.c.l.b16 %v3179
    %v5373 = vunpack.c.l.b16 %v3180
    %v5374 = vunpack.c.l.b16 %v3181
    %v5375 = vunpack.c.l.b16 %v3182
    %v5376 = vunpack.c.l.b16 %v3183
    %v5377 = vunpack.c.l.b16 %v3184
    %v5378 = vunpack.c.l.b16 %v3185
    %v5379 = vunpack.c.l.b16 %v3186
    %v5380 = vunpack.c.l.b16 %v3187
    %v5381 = vunpack.c.l.b16 %v3188
    %v5382 = vunpack.c.l.b16 %v3189
    %v5383 = vunpack.c.l.b16 %v3190
    %v5384 = vunpack.c.l.b16 %v3191
    %v5385 = vunpack.c.l.b16 %v3192
    %v5386 = vunpack.c.l.b16 %v3193
    %v5387 = vunpack.c.l.b16 %v3194
    %v5388 = vunpack.c.l.b16 %v3195
    %v5389 = vunpack.c.l.b16 %v3196
    %v5390 = vunpack.c.l.b16 %v3197
    %v5391 = vunpack.c.l.b16 %v3198
    %v5392 = vunpack.c.l.b16 %v3199
    %v5393 = vunpack.c.l.b16 %v3200
    %v5394 = vunpack.c.l.b16 %v3201
    %v5395 = vunpack.c.l.b16 %v3202
    %v5396 = vunpack.c.l.b16 %v3203
    %v5397 = vunpack.c.l.b16 %v3204
    %v5398 = vunpack.c.l.b16 %v3205
    %v5399 = vunpack.c.l.b16 %v3206
    %v5400 = vunpack.c.l.b16 %v3207
    %v5401 = vunpack.c.l.b16 %v3208
    %v5402 = vunpack.c.l.b16 %v3209
    %v5403 = vunpack.c.l.b16 %v3210
    %v5404 = vunpack.c.l.b16 %v3211
    %v5405 = vunpack.c.l.b16 %v3212
    %v5406 = vunpack.c.l.b16 %v3213
    %v5407 = vunpack.c.l.b16 %v3214
    %v5408 = vunpack.c.l.b16 %v3215
    %v5409 = vunpack.c.l.b16 %v3216
    %v5410 = vunpack.c.l.b16 %v3217
    %v5411 = vunpack.c.l.b16 %v3218
    %v5412 = vunpack.c.l.b16 %v3219
    %v5413 = vunpack.c.l.b16 %v3220
    %v5414 = vunpack.c.l.b16 %v3221
    %v5415 = vunpack.c.l.b16 %v3222
    %v5416 = vunpack.c.l.b16 %v3223
    %v5417 = vunpack.c.l.b16 %v3224
    %v5418 = vunpack.c.l.b16 %v3225
    %v5419 = vunpack.c.l.b16 %v3226
    %v5420 = vunpack.c.l.b16 %v3227
    %v5421 = vunpack.c.l.b16 %v3228
    %v5422 = vunpack.c.l.b16 %v3229
    %v5423 = vunpack.c.l.b16 %v3230
    %v5424 = vunpack.c.l.b16 %v3231
    %v5425 = vunpack.c.l.b16 %v3232
    %v5426 = vunpack.c.l.b16 %v3233
    %v5427 = vunpack.c.l.b16 %v3234
    %v5428 = vunpack.c.l.b16 %v3235
    %v5429 = vunpack.c.l.b16 %v3236
    %v5430 = vunpack.c.l.b16 %v3237
    %v5431 = vunpack.c.l.b16 %v3238
    %v5432 = vunpack.c.l.b16 %v3239
    %v5433 = vunpack.c.l.b16 %v3240
    %v5434 = vunpack.c.l.b16 %v3241
    %v5435 = vunpack.c.l.b16 %v3242
    %v5436 = vunpack.c.l.b16 %v3243
    %v5437 = vunpack.c.l.b16 %v3244
    %v5438 = vunpack.c.l.b16 %v3245
    %v5439 = vunpack.c.l.b16 %v3246
    %v5440 = vunpack.c.l.b16 %v3247
    %v5441 = vunpack.c.l.b16 %v3248
    %v5442 = vunpack.c.l.b16 %v3249
    %v5443 = vunpack.c.l.b16 %v3250
    %v5444 = vunpack.c.l.b16 %v3251
    %v5445 = vunpack.c.l.b16 %v3252
    %v5446 = vunpack.c.l.b16 %v3253
    %v5447 = vunpack.c.l.b16 %v3254
    %v5448 = vunpack.c.l.b16 %v3255
    %v5449 = vunpack.c.l.b16 %v3256
    %v5450 = vunpack.c.l.b16 %v3257
    %v5451 = vunpack.c.l.b16 %v3258
    %v5452 = vunpack.c.l.b16 %v3259
    %v5453 = vunpack.c.l.b16 %v3260
    %v5454 = vunpack.c.l.b16 %v3261
    %v5455 = vunpack.c.l.b16 %v3262
    %v5456 = vunpack.c.l.b16 %v3263
    %v5457 = vunpack.c.l.b16 %v3264
    %v5458 = vunpack.c.l.b16 %v3265
    %v5459 = vunpack.c.l.b16 %v3266
    %v5460 = vunpack.c.l.b16 %v3267
    %v5461 = vunpack.c.l.b16 %v3268
    %v5462 = vunpack.c.l.b16 %v3269
    %v5463 = vunpack.c.l.b16 %v3270
    %v5464 = vunpack.c.l.b16 %v3271
    %v5465 = vunpack.c.l.b16 %v3272
    %v5466 = vunpack.c.l.b16 %v3273
    %v5467 = vunpack.c.l.b16 %v3274
    %v5468 = vunpack.c.l.b16 %v3275
    %v5469 = vunpack.c.l.b16 %v3276
    %v5470 = vunpack.c.l.b16 %v3277
    %v5471 = vunpack.c.l.b16 %v3278
    %v5472 = vunpack.c.l.b16 %v3279
    %v5473 = vunpack.c.l.b16 %v3280
    %v5474 = vunpack.c.l.b16 %v3281
    %v5475 = vunpack.c.l.b16 %v3282
    %v5476 = vunpack.c.l.b16 %v3283
    %v5477 = vunpack.c.l.b16 %v3284
    %v5478 = vunpack.c.l.b16 %v3285
    %v5479 = vunpack.c.l.b16 %v3286
    %v5480 = vunpack.c.l.b16 %v3287
    %v5481 = vunpack.c.l.b16 %v3288
    %v5482 = vunpack.c.l.b16 %v3289
    %v5483 = vunpack.c.l.b16 %v3290
    %v5484 = vunpack.c.l.b16 %v3291
    %v5485 = vunpack.c.l.b16 %v3292
    %v5486 = vunpack.c.l.b16 %v3293
    %v5487 = vunpack.c.l.b16 %v3294
    %v5488 = vunpack.c.l.b16 %v3295
    %v5489 = vunpack.c.l.b16 %v3296
    %v5490 = vunpack.c.l.b16 %v3297
    %v5491 = vunpack.c.l.b16 %v3298
    %v5492 = vunpack.c.l.b16 %v3299
    %v5493 = vunpack.c.l.b16 %v3300
    %v5494 = vunpack.c.l.b16 %v3301
    %v5495 = vunpack.c.l.b16 %v3302
    %v5496 = vunpack.c.l.b16 %v3303
    %v5497 = vunpack.c.l.b16 %v3304
    %v5498 = vunpack.c.l.b16 %v3305
    %v5499 = vunpack.c.l.b16 %v3306
    %v5500 = vunpack.c.l.b16 %v3307
    %v5501 = vunpack.c.l.b16 %v3308
    %v5502 = vunpack.c.l.b16 %v3309
    %v5503 = vunpack.c.l.b16 %v3310
    %v5504 = vunpack.c.l.b16 %v3311
    %v5505 = vunpack.c.l.b16 %v3312
    %v5506 = vunpack.c.l.b16 %v3313
    %v5507 = vunpack.c.l.b16 %v3314
    %v5508 = vunpack.c.l.b16 %v3315
    %v5509 = vunpack.c.l.b16 %v3316
    %v5510 = vunpack.c.l.b16 %v3317
    %v5511 = vunpack.c.l.b16 %v3318
    %v5512 = vunpack.c.l.b16 %v3319
    %v5513 = vunpack.c.l.b16 %v3320
    %v5514 = vunpack.c.l.b16 %v3321
    %v5515 = vunpack.c.l.b16 %v3322
    %v5516 = vunpack.c.l.b16 %v3323
    %v5517 = vunpack.c.l.b16 %v3324
    %v5518 = vunpack.c.l.b16 %v3325
    %v5519 = vunpack.c.l.b16 %v3326
    %v5520 = vunpack.c.l.b16 %v3327
    %v5521 = vunpack.c.l.b16 %v3328
    %v5522 = vunpack.c.l.b16 %v3329
    %v5523 = vunpack.c.l.b16 %v3330
    %v5524 = vunpack.c.l.b16 %v3331
    %v5525 = vunpack.c.l.b16 %v3332
    %v5526 = vunpack.c.l.b16 %v3333
    %v5527 = vunpack.c.l.b16 %v3334
    %v5528 = vunpack.c.l.b16 %v3335
    %v5529 = vunpack.c.l.b16 %v3336
    %v5530 = vunpack.c.l.b16 %v3337
    %v5531 = vunpack.c.l.b16 %v3338
    %v5532 = vunpack.c.l.b16 %v3339
    %v5533 = vunpack.c.l.b16 %v3340
    %v5534 = vunpack.c.l.b16 %v3341
    %v5535 = vunpack.c.l.b16 %v3342
    %v5536 = vunpack.c.l.b16 %v3343
    %v5537 = vunpack.c.l.b16 %v3344
    %v5538 = vunpack.c.l.b16 %v3345
    %v5539 = vunpack.c.l.b16 %v3346
    %v5540 = vunpack.c.l.b16 %v3347
    %v5541 = vunpack.c.l.b16 %v3348
    %v5542 = vunpack.c.l.b16 %v3349
    %v5543 = vunpack.c.l.b16 %v3350
    %v5544 = vunpack.c.l.b16 %v3351
    %v5545 = vunpack.c.l.b16 %v3352
    %v5546 = vunpack.c.l.b16 %v3353
    %v5547 = vunpack.c.l.b16 %v3354
    %v5548 = vunpack.c.l.b16 %v3355
    %v5549 = vunpack.c.l.b16 %v3356
    %v5550 = vunpack.c.l.b16 %v3357
    %v5551 = vunpack.c.l.b16 %v3358
    %v5552 = vunpack.c.l.b16 %v3359
    %v5553 = vunpack.c.l.b16 %v3360
    %v5554 = vunpack.c.l.b16 %v3361
    %v5555 = vunpack.c.l.b16 %v3362
    %v5556 = vunpack.c.l.b16 %v3363
    %v5557 = vunpack.c.l.b16 %v3364
    %v5558 = vunpack.c.l.b16 %v3365
    %v5559 = vunpack.c.l.b16 %v3366
    %v5560 = vunpack.c.l.b16 %v3367
    %v5561 = vunpack.c.l.b16 %v3368
    %v5562 = vunpack.c.l.b16 %v3369
    %v5563 = vunpack.c.l.b16 %v3370
    %v5564 = vunpack.c.l.b16 %v3371
    %v5565 = vunpack.c.l.b16 %v3372
    %v5566 = vunpack.c.l.b16 %v3373
    %v5567 = vunpack.c.l.b16 %v3374
    %v5568 = vunpack.c.l.b16 %v3375
    %v5569 = vpack.c.b16 %v5282, %v5281
    %v5570 = vpack.c.b16 %v5284, %v5283
    %v5571 = vpack.c.b16 %v5286, %v5285
    %v5572 = vpack.c.b16 %v5288, %v5287
    %v5573 = vpack.c.b16 %v5290, %v5289
    %v5574 = vpack.c.b16 %v5292, %v5291
    %v5575 = vpack.c.b16 %v5294, %v5293
    %v5576 = vpack.c.b16 %v5296, %v5295
    %v5577 = vpack.c.b16 %v5298, %v5297
    %v5578 = vpack.c.b16 %v5300, %v5299
    %v5579 = vpack.c.b16 %v5302, %v5301
    %v5580 = vpack.c.b16 %v5304, %v5303
    %v5581 = vpack.c.b16 %v5306, %v5305
    %v5582 = vpack.c.b16 %v5308, %v5307
    %v5583 = vpack.c.b16 %v5310, %v5309
    %v5584 = vpack.c.b16 %v5312, %v5311
    %v5585 = vpack.c.b16 %v5314, %v5313
    %v5586 = vpack.c.b16 %v5316, %v5315
    %v5587 = vpack.c.b16 %v5318, %v5317
    %v5588 = vpack.c.b16 %v5320, %v5319
    %v5589 = vpack.c.b16 %v5322, %v5321
    %v5590 = vpack.c.b16 %v5324, %v5323
    %v5591 = vpack.c.b16 %v5326, %v5325
    %v5592 = vpack.c.b16 %v5328, %v5327
    %v5593 = vpack.c.b16 %v5330, %v5329
    %v5594 = vpack.c.b16 %v5332, %v5331
    %v5595 = vpack.c.b16 %v5334, %v5333
    %v5596 = vpack.c.b16 %v5336, %v5335
    %v5597 = vpack.c.b16 %v5338, %v5337
    %v5598 = vpack.c.b16 %v5340, %v5339
    %v5599 = vpack.c.b16 %v5342, %v5341
    %v5600 = vpack.c.b16 %v5344, %v5343
    %v5601 = vpack.c.b16 %v5346, %v5345
    %v5602 = vpack.c.b16 %v5348, %v5347
    %v5603 = vpack.c.b16 %v5350, %v5349
    %v5604 = vpack.c.b16 %v5352, %v5351
    %v5605 = vpack.c.b16 %v5354, %v5353
    %v5606 = vpack.c.b16 %v5356, %v5355
    %v5607 = vpack.c.b16 %v5358, %v5357
    %v5608 = vpack.c.b16 %v5360, %v5359
    %v5609 = vpack.c.b16 %v5362, %v5361
    %v5610 = vpack.c.b16 %v5364, %v5363
    %v5611 = vpack.c.b16 %v5366, %v5365
    %v5612 = vpack.c.b16 %v5368, %v5367
    %v5613 = vpack.c.b16 %v5370, %v5369
    %v5614 = vpack.c.b16 %v5372, %v5371
    %v5615 = vpack.c.b16 %v5374, %v5373
    %v5616 = vpack.c.b16 %v5376, %v5375
    %v5617 = vpack.c.b16 %v5378, %v5377
    %v5618 = vpack.c.b16 %v5380, %v5379
    %v5619 = vpack.c.b16 %v5382, %v5381
    %v5620 = vpack.c.b16 %v5384, %v5383
    %v5621 = vpack.c.b16 %v5386, %v5385
    %v5622 = vpack.c.b16 %v5388, %v5387
    %v5623 = vpack.c.b16 %v5390, %v5389
    %v5624 = vpack.c.b16 %v5392, %v5391
    %v5625 = vpack.c.b16 %v5394, %v5393
    %v5626 = vpack.c.b16 %v5396, %v5395
    %v5627 = vpack.c.b16 %v5398, %v5397
    %v5628 = vpack.c.b16 %v5400, %v5399
    %v5629 = vpack.c.b16 %v5402, %v5401
    %v5630 = vpack.c.b16 %v5404, %v5403
    %v5631 = vpack.c.b16 %v5406, %v5405
    %v5632 = vpack.c.b16 %v5408, %v5407
    %v5633 = vpack.c.b16 %v5410, %v5409
    %v5634 = vpack.c.b16 %v5412, %v5411
    %v5635 = vpack.c.b16 %v5414, %v5413
    %v5636 = vpack.c.b16 %v5416, %v5415
    %v5637 = vpack.c.b16 %v5418, %v5417
    %v5638 = vpack.c.b16 %v5420, %v5419
    %v5639 = vpack.c.b16 %v5422, %v5421
    %v5640 = vpack.c.b16 %v5424, %v5423
    %v5641 = vpack.c.b16 %v5426, %v5425
    %v5642 = vpack.c.b16 %v5428, %v5427
    %v5643 = vpack.c.b16 %v5430, %v5429
    %v5644 = vpack.c.b16 %v5432, %v5431
    %v5645 = vpack.c.b16 %v5434, %v5433
    %v5646 = vpack.c.b16 %v5436, %v5435
    %v5647 = vpack.c.b16 %v5438, %v5437
    %v5648 = vpack.c.b16 %v5440, %v5439
    %v5649 = vpack.c.b16 %v5442, %v5441
    %v5650 = vpack.c.b16 %v5444, %v5443
    %v5651 = vpack.c.b16 %v5446, %v5445
    %v5652 = vpack.c.b16 %v5448, %v5447
    %v5653 = vpack.c.b16 %v5450, %v5449
    %v5654 = vpack.c.b16 %v5452, %v5451
    %v5655 = vpack.c.b16 %v5454, %v5453
    %v5656 = vpack.c.b16 %v5456, %v5455
    %v5657 = vpack.c.b16 %v5458, %v5457
    %v5658 = vpack.c.b16 %v5460, %v5459
    %v5659 = vpack.c.b16 %v5462, %v5461
    %v5660 = vpack.c.b16 %v5464, %v5463
    %v5661 = vpack.c.b16 %v5466, %v5465
    %v5662 = vpack.c.b16 %v5468, %v5467
    %v5663 = vpack.c.b16 %v5470, %v5469
    %v5664 = vpack.c.b16 %v5472, %v5471
    %v5665 = vpack.c.b16 %v5474, %v5473
    %v5666 = vpack.c.b16 %v5476, %v5475
    %v5667 = vpack.c.b16 %v5478, %v5477
    %v5668 = vpack.c.b16 %v5480, %v5479
    %v5669 = vpack.c.b16 %v5482, %v5481
    %v5670 = vpack.c.b16 %v5484, %v5483
    %v5671 = vpack.c.b16 %v5486, %v5485
    %v5672 = vpack.c.b16 %v5488, %v5487
    %v5673 = vpack.c.b16 %v5490, %v5489
    %v5674 = vpack.c.b16 %v5492, %v5491
    %v5675 = vpack.c.b16 %v5494, %v5493
    %v5676 = vpack.c.b16 %v5496, %v5495
    %v5677 = vpack.c.b16 %v5498, %v5497
    %v5678 = vpack.c.b16 %v5500, %v5499
    %v5679 = vpack.c.b16 %v5502, %v5501
    %v5680 = vpack.c.b16 %v5504, %v5503
    %v5681 = vpack.c.b16 %v5506, %v5505
    %v5682 = vpack.c.b16 %v5508, %v5507
    %v5683 = vpack.c.b16 %v5510, %v5509
    %v5684 = vpack.c.b16 %v5512, %v5511
    %v5685 = vpack.c.b16 %v5514, %v5513
    %v5686 = vpack.c.b16 %v5516, %v5515
    %v5687 = vpack.c.b16 %v5518, %v5517
    %v5688 = vpack.c.b16 %v5520, %v5519
    %v5689 = vpack.c.b16 %v5522, %v5521
    %v5690 = vpack.c.b16 %v5524, %v5523
    %v5691 = vpack.c.b16 %v5526, %v5525
    %v5692 = vpack.c.b16 %v5528, %v5527
    %v5693 = vpack.c.b16 %v5530, %v5529
    %v5694 = vpack.c.b16 %v5532, %v5531
    %v5695 = vpack.c.b16 %v5534, %v5533
    %v5696 = vpack.c.b16 %v5536, %v5535
    %v5697 = vpack.c.b16 %v5538, %v5537
    %v5698 = vpack.c.b16 %v5540, %v5539
    %v5699 = vpack.c.b16 %v5542, %v5541
    %v5700 = vpack.c.b16 %v5544, %v5543
    %v5701 = vpack.c.b16 %v5546, %v5545
    %v5702 = vpack.c.b16 %v5548, %v5547
    %v5703 = vpack.c.b16 %v5550, %v5549
    %v5704 = vpack.c.b16 %v5552, %v5551
    %v5705 = vpack.c.b16 %v5554, %v5553
    %v5706 = vpack.c.b16 %v5556, %v5555
    %v5707 = vpack.c.b16 %v5558, %v5557
    %v5708 = vpack.c.b16 %v5560, %v5559
    %v5709 = vpack.c.b16 %v5562, %v5561
    %v5710 = vpack.c.b16 %v5564, %v5563
    %v5711 = vpack.c.b16 %v5566, %v5565
    %v5712 = vpack.c.b16 %v5568, %v5567
    %5857 = vmatprep.subr.bf16.mxu0 0
    %5858 = vmatpush1.bf16.msra.mxu0 %v5569
    %5859 = vmatprep.subr.bf16.mxu0 0
    %5860 = vmatpush1.bf16.msra.mxu0 %v5570
    %5861 = vmatprep.subr.bf16.mxu0 0
    %5862 = vmatpush1.bf16.msra.mxu0 %v5571
    %5863 = vmatprep.subr.bf16.mxu0 0
    %5864 = vmatpush1.bf16.msra.mxu0 %v5572
    %5865 = vmatprep.subr.bf16.mxu0 0
    %5866 = vmatpush1.bf16.msra.mxu0 %v5573
    %5867 = vmatprep.subr.bf16.mxu0 0
    %5868 = vmatpush1.bf16.msra.mxu0 %v5574
    %5869 = vmatprep.subr.bf16.mxu0 0
    %5870 = vmatpush1.bf16.msra.mxu0 %v5575
    %5871 = vmatprep.subr.bf16.mxu0 0
    %5872 = vmatpush1.bf16.msra.mxu0 %v5576
    %5873 = vmatprep.subr.bf16.mxu0 0
    %5874 = vmatpush1.bf16.msra.mxu0 %v5577
    %5875 = vmatprep.subr.bf16.mxu0 0
    %5876 = vmatpush1.bf16.msra.mxu0 %v5578
    %5877 = vmatprep.subr.bf16.mxu0 0
    %5878 = vmatpush1.bf16.msra.mxu0 %v5579
    %5879 = vmatprep.subr.bf16.mxu0 0
    %5880 = vmatpush1.bf16.msra.mxu0 %v5580
    %5881 = vmatprep.subr.bf16.mxu0 0
    %5882 = vmatpush1.bf16.msra.mxu0 %v5581
    %5883 = vmatprep.subr.bf16.mxu0 0
    %5884 = vmatpush1.bf16.msra.mxu0 %v5582
    %5885 = vmatprep.subr.bf16.mxu0 0
    %5886 = vmatpush1.bf16.msra.mxu0 %v5583
    %5887 = vmatprep.subr.bf16.mxu0 0
    %5888 = vmatpush1.bf16.msra.mxu0 %v5584
    %5889 = vmatprep.mubr.bf16.mxu0 %v3515
    %5890 = vmatmul.mubr.bf16.gmra.mrb[0].mxu0 %v3511
    %v5891 = vpop.f32.mrb[0].mxu0
    %v5892 = vadd.f32 %v3381, %v5891
    %v5893 = vpop.f32.mrb[0].mxu0
    %v5894 = vpop.f32.mrb[0].mxu0
    %v5895 = vadd.f32 %v3381, %v5894
    %v5896 = vpop.f32.mrb[0].mxu0
    %5897 = vmatprep.mubr.bf16.mxu0 %v3853
    %5898 = vmatmul.mubr.bf16.gmra.mrb[0].mxu0 %v3849
    %v5899 = vpop.f32.mrb[0].mxu0
    %v5900 = vadd.f32 %v3381, %v5899
    %v5901 = vpop.f32.mrb[0].mxu0
    %v5902 = vpop.f32.mrb[0].mxu0
    %v5903 = vadd.f32 %v3381, %v5902
    %v5904 = vpop.f32.mrb[0].mxu0
    %5905 = vmatprep.mubr.bf16.mxu0 %v4191
    %5906 = vmatmul.mubr.bf16.gmra.mrb[0].mxu0 %v4187
    %v5907 = vpop.f32.mrb[0].mxu0
    %v5908 = vadd.f32 %v3381, %v5907
    %v5909 = vpop.f32.mrb[0].mxu0
    %v5910 = vpop.f32.mrb[0].mxu0
    %v5911 = vadd.f32 %v3381, %v5910
    %v5912 = vpop.f32.mrb[0].mxu0
    %5913 = vmatprep.mubr.bf16.mxu0 %v4529
    %5914 = vmatmul.mubr.bf16.gmra.mrb[0].mxu0 %v4525
    %v5915 = vpop.f32.mrb[0].mxu0
    %v5916 = vadd.f32 %v3381, %v5915
    %v5917 = vpop.f32.mrb[0].mxu0
    %v5918 = vpop.f32.mrb[0].mxu0
    %v5919 = vadd.f32 %v3381, %v5918
    %v5920 = vpop.f32.mrb[0].mxu0
    %5921 = vmatprep.mubr.bf16.mxu0 %v4791
    %5922 = vmatmul.mubr.bf16.gmra.mrb[0].mxu0 %v4777
    %v5923 = vpop.f32.mrb[0].mxu0
    %v5924 = vadd.f32 %v3381, %v5923
    %v5925 = vpop.f32.mrb[0].mxu0
    %v5926 = vpop.f32.mrb[0].mxu0
    %v5927 = vpop.f32.mrb[0].mxu0
    %5928 = vdwg.mxu0
    %5929 = vmatprep.subr.bf16.mxu0 0
    %5930 = vmatpush1.bf16.msra.mxu0 %v5585
    %5931 = vmatprep.subr.bf16.mxu0 0
    %5932 = vmatpush1.bf16.msra.mxu0 %v5586
    %5933 = vmatprep.subr.bf16.mxu0 0
    %5934 = vmatpush1.bf16.msra.mxu0 %v5587
    %5935 = vmatprep.subr.bf16.mxu0 0
    %5936 = vmatpush1.bf16.msra.mxu0 %v5588
    %5937 = vmatprep.subr.bf16.mxu0 0
    %5938 = vmatpush1.bf16.msra.mxu0 %v5589
    %5939 = vmatprep.subr.bf16.mxu0 0
    %5940 = vmatpush1.bf16.msra.mxu0 %v5590
    %5941 = vmatprep.subr.bf16.mxu0 0
    %5942 = vmatpush1.bf16.msra.mxu0 %v5591
    %5943 = vmatprep.subr.bf16.mxu0 0
    %5944 = vmatpush1.bf16.msra.mxu0 %v5592
    %5945 = vmatprep.subr.bf16.mxu0 0
    %5946 = vmatpush1.bf16.msra.mxu0 %v5593
    %5947 = vmatprep.subr.bf16.mxu0 0
    %5948 = vmatpush1.bf16.msra.mxu0 %v5594
    %5949 = vmatprep.subr.bf16.mxu0 0
    %5950 = vmatpush1.bf16.msra.mxu0 %v5595
    %5951 = vmatprep.subr.bf16.mxu0 0
    %5952 = vmatpush1.bf16.msra.mxu0 %v5596
    %5953 = vmatprep.subr.bf16.mxu0 0
    %5954 = vmatpush1.bf16.msra.mxu0 %v5597
    %5955 = vmatprep.subr.bf16.mxu0 0
    %5956 = vmatpush1.bf16.msra.mxu0 %v5598
    %5957 = vmatprep.subr.bf16.mxu0 0
    %5958 = vmatpush1.bf16.msra.mxu0 %v5599
    %5959 = vmatprep.subr.bf16.mxu0 0
    %5960 = vmatpush1.bf16.msra.mxu0 %v5600
    %5961 = vmatprep.mubr.bf16.mxu0 %v3516
    %5962 = vmatmul.mubr.bf16.gmra.mrb[0].mxu0 %v3512
    %v5963 = vpop.f32.mrb[0].mxu0
    %v5964 = vadd.f32 %v5892, %v5963
    %v5965 = vpop.f32.mrb[0].mxu0
    %v5966 = vpop.f32.mrb[0].mxu0
    %v5967 = vadd.f32 %v5895, %v5966
    %v5968 = vpop.f32.mrb[0].mxu0
    %5969 = vmatprep.mubr.bf16.mxu0 %v3854
    %5970 = vmatmul.mubr.bf16.gmra.mrb[0].mxu0 %v3850
    %v5971 = vpop.f32.mrb[0].mxu0
    %v5972 = vadd.f32 %v5900, %v5971
    %v5973 = vpop.f32.mrb[0].mxu0
    %v5974 = vpop.f32.mrb[0].mxu0
    %v5975 = vadd.f32 %v5903, %v5974
    %v5976 = vpop.f32.mrb[0].mxu0
    %5977 = vmatprep.mubr.bf16.mxu0 %v4192
    %5978 = vmatmul.mubr.bf16.gmra.mrb[0].mxu0 %v4188
    %v5979 = vpop.f32.mrb[0].mxu0
    %v5980 = vadd.f32 %v5908, %v5979
    %v5981 = vpop.f32.mrb[0].mxu0
    %v5982 = vpop.f32.mrb[0].mxu0
    %v5983 = vadd.f32 %v5911, %v5982
    %v5984 = vpop.f32.mrb[0].mxu0
    %5985 = vmatprep.mubr.bf16.mxu0 %v4530
    %5986 = vmatmul.mubr.bf16.gmra.mrb[0].mxu0 %v4526
    %v5987 = vpop.f32.mrb[0].mxu0
    %v5988 = vadd.f32 %v5916, %v5987
    %v5989 = vpop.f32.mrb[0].mxu0
    %v5990 = vpop.f32.mrb[0].mxu0
    %v5991 = vadd.f32 %v5919, %v5990
    %v5992 = vpop.f32.mrb[0].mxu0
    %5993 = vmatprep.mubr.bf16.mxu0 %v4801
    %5994 = vmatmul.mubr.bf16.gmra.mrb[0].mxu0 %v4799
    %v5995 = vpop.f32.mrb[0].mxu0
    %v5996 = vadd.f32 %v5924, %v5995
    %v5997 = vpop.f32.mrb[0].mxu0
    %v5998 = vpop.f32.mrb[0].mxu0
    %v5999 = vpop.f32.mrb[0].mxu0
    %6000 = vdwg.mxu0
    %6001 = vmatprep.subr.bf16.mxu0 0
    %6002 = vmatpush1.bf16.msra.mxu0 %v5601
    %6003 = vmatprep.subr.bf16.mxu0 0
    %6004 = vmatpush1.bf16.msra.mxu0 %v5602
    %6005 = vmatprep.subr.bf16.mxu0 0
    %6006 = vmatpush1.bf16.msra.mxu0 %v5603
    %6007 = vmatprep.subr.bf16.mxu0 0
    %6008 = vmatpush1.bf16.msra.mxu0 %v5604
    %6009 = vmatprep.subr.bf16.mxu0 0
    %6010 = vmatpush1.bf16.msra.mxu0 %v5605
    %6011 = vmatprep.subr.bf16.mxu0 0
    %6012 = vmatpush1.bf16.msra.mxu0 %v5606
    %6013 = vmatprep.subr.bf16.mxu0 0
    %6014 = vmatpush1.bf16.msra.mxu0 %v5607
    %6015 = vmatprep.subr.bf16.mxu0 0
    %6016 = vmatpush1.bf16.msra.mxu0 %v5608
    %6017 = vmatprep.subr.bf16.mxu0 0
    %6018 = vmatpush1.bf16.msra.mxu0 %v5609
    %6019 = vmatprep.subr.bf16.mxu0 0
    %6020 = vmatpush1.bf16.msra.mxu0 %v5610
    %6021 = vmatprep.subr.bf16.mxu0 0
    %6022 = vmatpush1.bf16.msra.mxu0 %v5611
    %6023 = vmatprep.subr.bf16.mxu0 0
    %6024 = vmatpush1.bf16.msra.mxu0 %v5612
    %6025 = vmatprep.subr.bf16.mxu0 0
    %6026 = vmatpush1.bf16.msra.mxu0 %v5613
    %6027 = vmatprep.subr.bf16.mxu0 0
    %6028 = vmatpush1.bf16.msra.mxu0 %v5614
    %6029 = vmatprep.subr.bf16.mxu0 0
    %6030 = vmatpush1.bf16.msra.mxu0 %v5615
    %6031 = vmatprep.subr.bf16.mxu0 0
    %6032 = vmatpush1.bf16.msra.mxu0 %v5616
    %6033 = vmatprep.mubr.bf16.mxu0 %v3517
    %6034 = vmatmul.mubr.bf16.gmra.mrb[0].mxu0 %v3513
    %v6035 = vpop.f32.mrb[0].mxu0
    %v6036 = vadd.f32 %v5964, %v6035
    %v6037 = vpop.f32.mrb[0].mxu0
    %v6038 = vpop.f32.mrb[0].mxu0
    %v6039 = vadd.f32 %v5967, %v6038
    %v6040 = vpop.f32.mrb[0].mxu0
    %6041 = vmatprep.mubr.bf16.mxu0 %v3855
    %6042 = vmatmul.mubr.bf16.gmra.mrb[0].mxu0 %v3851
    %v6043 = vpop.f32.mrb[0].mxu0
    %v6044 = vadd.f32 %v5972, %v6043
    %v6045 = vpop.f32.mrb[0].mxu0
    %v6046 = vpop.f32.mrb[0].mxu0
    %v6047 = vadd.f32 %v5975, %v6046
    %v6048 = vpop.f32.mrb[0].mxu0
    %6049 = vmatprep.mubr.bf16.mxu0 %v4193
    %6050 = vmatmul.mubr.bf16.gmra.mrb[0].mxu0 %v4189
    %v6051 = vpop.f32.mrb[0].mxu0
    %v6052 = vadd.f32 %v5980, %v6051
    %v6053 = vpop.f32.mrb[0].mxu0
    %v6054 = vpop.f32.mrb[0].mxu0
    %v6055 = vadd.f32 %v5983, %v6054
    %v6056 = vpop.f32.mrb[0].mxu0
    %6057 = vmatprep.mubr.bf16.mxu0 %v4531
    %6058 = vmatmul.mubr.bf16.gmra.mrb[0].mxu0 %v4527
    %v6059 = vpop.f32.mrb[0].mxu0
    %v6060 = vadd.f32 %v5988, %v6059
    %v6061 = vpop.f32.mrb[0].mxu0
    %v6062 = vpop.f32.mrb[0].mxu0
    %v6063 = vadd.f32 %v5991, %v6062
    %v6064 = vpop.f32.mrb[0].mxu0
    %6065 = vmatprep.mubr.bf16.mxu0 %v4798
    %6066 = vmatmul.mubr.bf16.gmra.mrb[0].mxu0 %v4784
    %v6067 = vpop.f32.mrb[0].mxu0
    %v6068 = vadd.f32 %v5996, %v6067
    %v6069 = vpop.f32.mrb[0].mxu0
    %v6070 = vpop.f32.mrb[0].mxu0
    %v6071 = vpop.f32.mrb[0].mxu0
    %6072 = vdwg.mxu0
    %6073 = vmatprep.subr.bf16.mxu0 0
    %6074 = vmatpush1.bf16.msra.mxu0 %v5617
    %6075 = vmatprep.subr.bf16.mxu0 0
    %6076 = vmatpush1.bf16.msra.mxu0 %v5618
    %6077 = vmatprep.subr.bf16.mxu0 0
    %6078 = vmatpush1.bf16.msra.mxu0 %v5619
    %6079 = vmatprep.subr.bf16.mxu0 0
    %6080 = vmatpush1.bf16.msra.mxu0 %v5620
    %6081 = vmatprep.subr.bf16.mxu0 0
    %6082 = vmatpush1.bf16.msra.mxu0 %v5621
    %6083 = vmatprep.subr.bf16.mxu0 0
    %6084 = vmatpush1.bf16.msra.mxu0 %v5622
    %6085 = vmatprep.subr.bf16.mxu0 0
    %6086 = vmatpush1.bf16.msra.mxu0 %v5623
    %6087 = vmatprep.subr.bf16.mxu0 0
    %6088 = vmatpush1.bf16.msra.mxu0 %v5624
    %6089 = vmatprep.subr.bf16.mxu0 0
    %6090 = vmatpush1.bf16.msra.mxu0 %v5625
    %6091 = vmatprep.subr.bf16.mxu0 0
    %6092 = vmatpush1.bf16.msra.mxu0 %v5626
    %6093 = vmatprep.subr.bf16.mxu0 0
    %6094 = vmatpush1.bf16.msra.mxu0 %v5627
    %6095 = vmatprep.subr.bf16.mxu0 0
    %6096 = vmatpush1.bf16.msra.mxu0 %v5628
    %6097 = vmatprep.subr.bf16.mxu0 0
    %6098 = vmatpush1.bf16.msra.mxu0 %v5629
    %6099 = vmatprep.subr.bf16.mxu0 0
    %6100 = vmatpush1.bf16.msra.mxu0 %v5630
    %6101 = vmatprep.subr.bf16.mxu0 0
    %6102 = vmatpush1.bf16.msra.mxu0 %v5631
    %6103 = vmatprep.subr.bf16.mxu0 0
    %6104 = vmatpush1.bf16.msra.mxu0 %v5632
    %6105 = vmatprep.mubr.bf16.mxu0 %v3518
    %6106 = vmatmul.mubr.bf16.gmra.mrb[0].mxu0 %v3514
    %v6107 = vpop.f32.mrb[0].mxu0
    %v6108 = vadd.f32 %v6036, %v6107
    %v6109 = vpop.f32.mrb[0].mxu0
    %v6110 = vpop.f32.mrb[0].mxu0
    %v6111 = vadd.f32 %v6039, %v6110
    %v6112 = vpop.f32.mrb[0].mxu0
    %6113 = vmatprep.mubr.bf16.mxu0 %v3856
    %6114 = vmatmul.mubr.bf16.gmra.mrb[0].mxu0 %v3852
    %v6115 = vpop.f32.mrb[0].mxu0
    %v6116 = vadd.f32 %v6044, %v6115
    %v6117 = vpop.f32.mrb[0].mxu0
    %v6118 = vpop.f32.mrb[0].mxu0
    %v6119 = vadd.f32 %v6047, %v6118
    %v6120 = vpop.f32.mrb[0].mxu0
    %6121 = vmatprep.mubr.bf16.mxu0 %v4194
    %6122 = vmatmul.mubr.bf16.gmra.mrb[0].mxu0 %v4190
    %v6123 = vpop.f32.mrb[0].mxu0
    %v6124 = vadd.f32 %v6052, %v6123
    %v6125 = vpop.f32.mrb[0].mxu0
    %v6126 = vpop.f32.mrb[0].mxu0
    %v6127 = vadd.f32 %v6055, %v6126
    %v6128 = vpop.f32.mrb[0].mxu0
    %6129 = vmatprep.mubr.bf16.mxu0 %v4532
    %6130 = vmatmul.mubr.bf16.gmra.mrb[0].mxu0 %v4528
    %v6131 = vpop.f32.mrb[0].mxu0
    %v6132 = vadd.f32 %v6060, %v6131
    %v6133 = vpop.f32.mrb[0].mxu0
    %v6134 = vpop.f32.mrb[0].mxu0
    %v6135 = vadd.f32 %v6063, %v6134
    %v6136 = vpop.f32.mrb[0].mxu0
    %6137 = vmatprep.mubr.bf16.mxu0 %v4802
    %6138 = vmatmul.mubr.bf16.gmra.mrb[0].mxu0 %v4800
    %v6139 = vpop.f32.mrb[0].mxu0
    %v6140 = vadd.f32 %v6068, %v6139
    %v6141 = vpop.f32.mrb[0].mxu0
    %v6142 = vpop.f32.mrb[0].mxu0
    %v6143 = vpop.f32.mrb[0].mxu0
    %6144 = vdwg.mxu0
    %6145 = vmatprep.subr.bf16.mxu0 0
    %6146 = vmatpush1.bf16.msra.mxu0 %v5633
    %6147 = vmatprep.subr.bf16.mxu0 0
    %6148 = vmatpush1.bf16.msra.mxu0 %v5634
    %6149 = vmatprep.subr.bf16.mxu0 0
    %6150 = vmatpush1.bf16.msra.mxu0 %v5635
    %6151 = vmatprep.subr.bf16.mxu0 0
    %6152 = vmatpush1.bf16.msra.mxu0 %v5636
    %6153 = vmatprep.subr.bf16.mxu0 0
    %6154 = vmatpush1.bf16.msra.mxu0 %v5637
    %6155 = vmatprep.subr.bf16.mxu0 0
    %6156 = vmatpush1.bf16.msra.mxu0 %v5638
    %6157 = vmatprep.subr.bf16.mxu0 0
    %6158 = vmatpush1.bf16.msra.mxu0 %v5639
    %6159 = vmatprep.subr.bf16.mxu0 0
    %6160 = vmatpush1.bf16.msra.mxu0 %v5640
    %6161 = vmatprep.subr.bf16.mxu0 0
    %6162 = vmatpush1.bf16.msra.mxu0 %v5641
    %6163 = vmatprep.subr.bf16.mxu0 0
    %6164 = vmatpush1.bf16.msra.mxu0 %v5642
    %6165 = vmatprep.subr.bf16.mxu0 0
    %6166 = vmatpush1.bf16.msra.mxu0 %v5643
    %6167 = vmatprep.subr.bf16.mxu0 0
    %6168 = vmatpush1.bf16.msra.mxu0 %v5644
    %6169 = vmatprep.subr.bf16.mxu0 0
    %6170 = vmatpush1.bf16.msra.mxu0 %v5645
    %6171 = vmatprep.subr.bf16.mxu0 0
    %6172 = vmatpush1.bf16.msra.mxu0 %v5646
    %6173 = vmatprep.subr.bf16.mxu0 0
    %6174 = vmatpush1.bf16.msra.mxu0 %v5647
    %6175 = vmatprep.subr.bf16.mxu0 0
    %6176 = vmatpush1.bf16.msra.mxu0 %v5648
    %6177 = vmatprep.mubr.bf16.mxu0 %v3651
    %6178 = vmatmul.mubr.bf16.gmra.mrb[0].mxu0 %v3647
    %v6179 = vpop.f32.mrb[0].mxu0
    %v6180 = vadd.f32 %v6108, %v6179
    %v6181 = vpop.f32.mrb[0].mxu0
    %v6182 = vpop.f32.mrb[0].mxu0
    %v6183 = vadd.f32 %v6111, %v6182
    %v6184 = vpop.f32.mrb[0].mxu0
    %6185 = vmatprep.mubr.bf16.mxu0 %v3989
    %6186 = vmatmul.mubr.bf16.gmra.mrb[0].mxu0 %v3985
    %v6187 = vpop.f32.mrb[0].mxu0
    %v6188 = vadd.f32 %v6116, %v6187
    %v6189 = vpop.f32.mrb[0].mxu0
    %v6190 = vpop.f32.mrb[0].mxu0
    %v6191 = vadd.f32 %v6119, %v6190
    %v6192 = vpop.f32.mrb[0].mxu0
    %6193 = vmatprep.mubr.bf16.mxu0 %v4327
    %6194 = vmatmul.mubr.bf16.gmra.mrb[0].mxu0 %v4323
    %v6195 = vpop.f32.mrb[0].mxu0
    %v6196 = vadd.f32 %v6124, %v6195
    %v6197 = vpop.f32.mrb[0].mxu0
    %v6198 = vpop.f32.mrb[0].mxu0
    %v6199 = vadd.f32 %v6127, %v6198
    %v6200 = vpop.f32.mrb[0].mxu0
    %6201 = vmatprep.mubr.bf16.mxu0 %v4665
    %6202 = vmatmul.mubr.bf16.gmra.mrb[0].mxu0 %v4661
    %v6203 = vpop.f32.mrb[0].mxu0
    %v6204 = vadd.f32 %v6132, %v6203
    %v6205 = vpop.f32.mrb[0].mxu0
    %v6206 = vpop.f32.mrb[0].mxu0
    %v6207 = vadd.f32 %v6135, %v6206
    %v6208 = vpop.f32.mrb[0].mxu0
    %6209 = vmatprep.mubr.bf16.mxu0 %v4859
    %6210 = vmatmul.mubr.bf16.gmra.mrb[0].mxu0 %v4845
    %v6211 = vpop.f32.mrb[0].mxu0
    %v6212 = vadd.f32 %v6140, %v6211
    %v6213 = vpop.f32.mrb[0].mxu0
    %v6214 = vpop.f32.mrb[0].mxu0
    %v6215 = vpop.f32.mrb[0].mxu0
    %6216 = vdwg.mxu0
    %6217 = vmatprep.subr.bf16.mxu0 0
    %6218 = vmatpush1.bf16.msra.mxu0 %v5649
    %6219 = vmatprep.subr.bf16.mxu0 0
    %6220 = vmatpush1.bf16.msra.mxu0 %v5650
    %6221 = vmatprep.subr.bf16.mxu0 0
    %6222 = vmatpush1.bf16.msra.mxu0 %v5651
    %6223 = vmatprep.subr.bf16.mxu0 0
    %6224 = vmatpush1.bf16.msra.mxu0 %v5652
    %6225 = vmatprep.subr.bf16.mxu0 0
    %6226 = vmatpush1.bf16.msra.mxu0 %v5653
    %6227 = vmatprep.subr.bf16.mxu0 0
    %6228 = vmatpush1.bf16.msra.mxu0 %v5654
    %6229 = vmatprep.subr.bf16.mxu0 0
    %6230 = vmatpush1.bf16.msra.mxu0 %v5655
    %6231 = vmatprep.subr.bf16.mxu0 0
    %6232 = vmatpush1.bf16.msra.mxu0 %v5656
    %6233 = vmatprep.subr.bf16.mxu0 0
    %6234 = vmatpush1.bf16.msra.mxu0 %v5657
    %6235 = vmatprep.subr.bf16.mxu0 0
    %6236 = vmatpush1.bf16.msra.mxu0 %v5658
    %6237 = vmatprep.subr.bf16.mxu0 0
    %6238 = vmatpush1.bf16.msra.mxu0 %v5659
    %6239 = vmatprep.subr.bf16.mxu0 0
    %6240 = vmatpush1.bf16.msra.mxu0 %v5660
    %6241 = vmatprep.subr.bf16.mxu0 0
    %6242 = vmatpush1.bf16.msra.mxu0 %v5661
    %6243 = vmatprep.subr.bf16.mxu0 0
    %6244 = vmatpush1.bf16.msra.mxu0 %v5662
    %6245 = vmatprep.subr.bf16.mxu0 0
    %6246 = vmatpush1.bf16.msra.mxu0 %v5663
    %6247 = vmatprep.subr.bf16.mxu0 0
    %6248 = vmatpush1.bf16.msra.mxu0 %v5664
    %6249 = vmatprep.mubr.bf16.mxu0 %v3652
    %6250 = vmatmul.mubr.bf16.gmra.mrb[0].mxu0 %v3648
    %v6251 = vpop.f32.mrb[0].mxu0
    %v6252 = vadd.f32 %v6180, %v6251
    %v6253 = vpop.f32.mrb[0].mxu0
    %v6254 = vpop.f32.mrb[0].mxu0
    %v6255 = vadd.f32 %v6183, %v6254
    %v6256 = vpop.f32.mrb[0].mxu0
    %6257 = vmatprep.mubr.bf16.mxu0 %v3990
    %6258 = vmatmul.mubr.bf16.gmra.mrb[0].mxu0 %v3986
    %v6259 = vpop.f32.mrb[0].mxu0
    %v6260 = vadd.f32 %v6188, %v6259
    %v6261 = vpop.f32.mrb[0].mxu0
    %v6262 = vpop.f32.mrb[0].mxu0
    %v6263 = vadd.f32 %v6191, %v6262
    %v6264 = vpop.f32.mrb[0].mxu0
    %6265 = vmatprep.mubr.bf16.mxu0 %v4328
    %6266 = vmatmul.mubr.bf16.gmra.mrb[0].mxu0 %v4324
    %v6267 = vpop.f32.mrb[0].mxu0
    %v6268 = vadd.f32 %v6196, %v6267
    %v6269 = vpop.f32.mrb[0].mxu0
    %v6270 = vpop.f32.mrb[0].mxu0
    %v6271 = vadd.f32 %v6199, %v6270
    %v6272 = vpop.f32.mrb[0].mxu0
    %6273 = vmatprep.mubr.bf16.mxu0 %v4666
    %6274 = vmatmul.mubr.bf16.gmra.mrb[0].mxu0 %v4662
    %v6275 = vpop.f32.mrb[0].mxu0
    %v6276 = vadd.f32 %v6204, %v6275
    %v6277 = vpop.f32.mrb[0].mxu0
    %v6278 = vpop.f32.mrb[0].mxu0
    %v6279 = vadd.f32 %v6207, %v6278
    %v6280 = vpop.f32.mrb[0].mxu0
    %6281 = vmatprep.mubr.bf16.mxu0 %v4869
    %6282 = vmatmul.mubr.bf16.gmra.mrb[0].mxu0 %v4867
    %v6283 = vpop.f32.mrb[0].mxu0
    %v6284 = vadd.f32 %v6212, %v6283
    %v6285 = vpop.f32.mrb[0].mxu0
    %v6286 = vpop.f32.mrb[0].mxu0
    %v6287 = vpop.f32.mrb[0].mxu0
    %6288 = vdwg.mxu0
    %6289 = vmatprep.subr.bf16.mxu0 0
    %6290 = vmatpush1.bf16.msra.mxu0 %v5665
    %6291 = vmatprep.subr.bf16.mxu0 0
    %6292 = vmatpush1.bf16.msra.mxu0 %v5666
    %6293 = vmatprep.subr.bf16.mxu0 0
    %6294 = vmatpush1.bf16.msra.mxu0 %v5667
    %6295 = vmatprep.subr.bf16.mxu0 0
    %6296 = vmatpush1.bf16.msra.mxu0 %v5668
    %6297 = vmatprep.subr.bf16.mxu0 0
    %6298 = vmatpush1.bf16.msra.mxu0 %v5669
    %6299 = vmatprep.subr.bf16.mxu0 0
    %6300 = vmatpush1.bf16.msra.mxu0 %v5670
    %6301 = vmatprep.subr.bf16.mxu0 0
    %6302 = vmatpush1.bf16.msra.mxu0 %v5671
    %6303 = vmatprep.subr.bf16.mxu0 0
    %6304 = vmatpush1.bf16.msra.mxu0 %v5672
    %6305 = vmatprep.subr.bf16.mxu0 0
    %6306 = vmatpush1.bf16.msra.mxu0 %v5673
    %6307 = vmatprep.subr.bf16.mxu0 0
    %6308 = vmatpush1.bf16.msra.mxu0 %v5674
    %6309 = vmatprep.subr.bf16.mxu0 0
    %6310 = vmatpush1.bf16.msra.mxu0 %v5675
    %6311 = vmatprep.subr.bf16.mxu0 0
    %6312 = vmatpush1.bf16.msra.mxu0 %v5676
    %6313 = vmatprep.subr.bf16.mxu0 0
    %6314 = vmatpush1.bf16.msra.mxu0 %v5677
    %6315 = vmatprep.subr.bf16.mxu0 0
    %6316 = vmatpush1.bf16.msra.mxu0 %v5678
    %6317 = vmatprep.subr.bf16.mxu0 0
    %6318 = vmatpush1.bf16.msra.mxu0 %v5679
    %6319 = vmatprep.subr.bf16.mxu0 0
    %6320 = vmatpush1.bf16.msra.mxu0 %v5680
    %6321 = vmatprep.mubr.bf16.mxu0 %v3653
    %6322 = vmatmul.mubr.bf16.gmra.mrb[0].mxu0 %v3649
    %v6323 = vpop.f32.mrb[0].mxu0
    %v6324 = vadd.f32 %v6252, %v6323
    %v6325 = vpop.f32.mrb[0].mxu0
    %v6326 = vpop.f32.mrb[0].mxu0
    %v6327 = vadd.f32 %v6255, %v6326
    %v6328 = vpop.f32.mrb[0].mxu0
    %6329 = vmatprep.mubr.bf16.mxu0 %v3991
    %6330 = vmatmul.mubr.bf16.gmra.mrb[0].mxu0 %v3987
    %v6331 = vpop.f32.mrb[0].mxu0
    %v6332 = vadd.f32 %v6260, %v6331
    %v6333 = vpop.f32.mrb[0].mxu0
    %v6334 = vpop.f32.mrb[0].mxu0
    %v6335 = vadd.f32 %v6263, %v6334
    %v6336 = vpop.f32.mrb[0].mxu0
    %6337 = vmatprep.mubr.bf16.mxu0 %v4329
    %6338 = vmatmul.mubr.bf16.gmra.mrb[0].mxu0 %v4325
    %v6339 = vpop.f32.mrb[0].mxu0
    %v6340 = vadd.f32 %v6268, %v6339
    %v6341 = vpop.f32.mrb[0].mxu0
    %v6342 = vpop.f32.mrb[0].mxu0
    %v6343 = vadd.f32 %v6271, %v6342
    %v6344 = vpop.f32.mrb[0].mxu0
    %6345 = vmatprep.mubr.bf16.mxu0 %v4667
    %6346 = vmatmul.mubr.bf16.gmra.mrb[0].mxu0 %v4663
    %v6347 = vpop.f32.mrb[0].mxu0
    %v6348 = vadd.f32 %v6276, %v6347
    %v6349 = vpop.f32.mrb[0].mxu0
    %v6350 = vpop.f32.mrb[0].mxu0
    %v6351 = vadd.f32 %v6279, %v6350
    %v6352 = vpop.f32.mrb[0].mxu0
    %6353 = vmatprep.mubr.bf16.mxu0 %v4866
    %6354 = vmatmul.mubr.bf16.gmra.mrb[0].mxu0 %v4852
    %v6355 = vpop.f32.mrb[0].mxu0
    %v6356 = vadd.f32 %v6284, %v6355
    %v6357 = vpop.f32.mrb[0].mxu0
    %v6358 = vpop.f32.mrb[0].mxu0
    %v6359 = vpop.f32.mrb[0].mxu0
    %6360 = vdwg.mxu0
    %6361 = vmatprep.subr.bf16.mxu0 0
    %6362 = vmatpush1.bf16.msra.mxu0 %v5681
    %6363 = vmatprep.subr.bf16.mxu0 0
    %6364 = vmatpush1.bf16.msra.mxu0 %v5682
    %6365 = vmatprep.subr.bf16.mxu0 0
    %6366 = vmatpush1.bf16.msra.mxu0 %v5683
    %6367 = vmatprep.subr.bf16.mxu0 0
    %6368 = vmatpush1.bf16.msra.mxu0 %v5684
    %6369 = vmatprep.subr.bf16.mxu0 0
    %6370 = vmatpush1.bf16.msra.mxu0 %v5685
    %6371 = vmatprep.subr.bf16.mxu0 0
    %6372 = vmatpush1.bf16.msra.mxu0 %v5686
    %6373 = vmatprep.subr.bf16.mxu0 0
    %6374 = vmatpush1.bf16.msra.mxu0 %v5687
    %6375 = vmatprep.subr.bf16.mxu0 0
    %6376 = vmatpush1.bf16.msra.mxu0 %v5688
    %6377 = vmatprep.subr.bf16.mxu0 0
    %6378 = vmatpush1.bf16.msra.mxu0 %v5689
    %6379 = vmatprep.subr.bf16.mxu0 0
    %6380 = vmatpush1.bf16.msra.mxu0 %v5690
    %6381 = vmatprep.subr.bf16.mxu0 0
    %6382 = vmatpush1.bf16.msra.mxu0 %v5691
    %6383 = vmatprep.subr.bf16.mxu0 0
    %6384 = vmatpush1.bf16.msra.mxu0 %v5692
    %6385 = vmatprep.subr.bf16.mxu0 0
    %6386 = vmatpush1.bf16.msra.mxu0 %v5693
    %6387 = vmatprep.subr.bf16.mxu0 0
    %6388 = vmatpush1.bf16.msra.mxu0 %v5694
    %6389 = vmatprep.subr.bf16.mxu0 0
    %6390 = vmatpush1.bf16.msra.mxu0 %v5695
    %6391 = vmatprep.subr.bf16.mxu0 0
    %6392 = vmatpush1.bf16.msra.mxu0 %v5696
    %6393 = vmatprep.mubr.bf16.mxu0 %v3654
    %6394 = vmatmul.mubr.bf16.gmra.mrb[0].mxu0 %v3650
    %v6395 = vpop.f32.mrb[0].mxu0
    %v6396 = vadd.f32 %v6324, %v6395
    %v6397 = vpop.f32.mrb[0].mxu0
    %v6398 = vpop.f32.mrb[0].mxu0
    %v6399 = vadd.f32 %v6327, %v6398
    %v6400 = vpop.f32.mrb[0].mxu0
    %6401 = vmatprep.mubr.bf16.mxu0 %v3992
    %6402 = vmatmul.mubr.bf16.gmra.mrb[0].mxu0 %v3988
    %v6403 = vpop.f32.mrb[0].mxu0
    %v6404 = vadd.f32 %v6332, %v6403
    %v6405 = vpop.f32.mrb[0].mxu0
    %v6406 = vpop.f32.mrb[0].mxu0
    %v6407 = vadd.f32 %v6335, %v6406
    %v6408 = vpop.f32.mrb[0].mxu0
    %6409 = vmatprep.mubr.bf16.mxu0 %v4330
    %6410 = vmatmul.mubr.bf16.gmra.mrb[0].mxu0 %v4326
    %v6411 = vpop.f32.mrb[0].mxu0
    %v6412 = vadd.f32 %v6340, %v6411
    %v6413 = vpop.f32.mrb[0].mxu0
    %v6414 = vpop.f32.mrb[0].mxu0
    %v6415 = vadd.f32 %v6343, %v6414
    %v6416 = vpop.f32.mrb[0].mxu0
    %6417 = vmatprep.mubr.bf16.mxu0 %v4668
    %6418 = vmatmul.mubr.bf16.gmra.mrb[0].mxu0 %v4664
    %v6419 = vpop.f32.mrb[0].mxu0
    %v6420 = vadd.f32 %v6348, %v6419
    %v6421 = vpop.f32.mrb[0].mxu0
    %v6422 = vpop.f32.mrb[0].mxu0
    %v6423 = vadd.f32 %v6351, %v6422
    %v6424 = vpop.f32.mrb[0].mxu0
    %6425 = vmatprep.mubr.bf16.mxu0 %v4870
    %6426 = vmatmul.mubr.bf16.gmra.mrb[0].mxu0 %v4868
    %v6427 = vpop.f32.mrb[0].mxu0
    %v6428 = vadd.f32 %v6356, %v6427
    %v6429 = vpop.f32.mrb[0].mxu0
    %v6430 = vpop.f32.mrb[0].mxu0
    %v6431 = vpop.f32.mrb[0].mxu0
    %6432 = vdwg.mxu0
    %6433 = vmatprep.subr.bf16.mxu0 0
    %6434 = vmatpush1.bf16.msra.mxu0 %v5697
    %6435 = vmatprep.subr.bf16.mxu0 0
    %6436 = vmatpush1.bf16.msra.mxu0 %v5698
    %6437 = vmatprep.subr.bf16.mxu0 0
    %6438 = vmatpush1.bf16.msra.mxu0 %v5699
    %6439 = vmatprep.subr.bf16.mxu0 0
    %6440 = vmatpush1.bf16.msra.mxu0 %v5700
    %6441 = vmatprep.subr.bf16.mxu0 0
    %6442 = vmatpush1.bf16.msra.mxu0 %v5701
    %6443 = vmatprep.subr.bf16.mxu0 0
    %6444 = vmatpush1.bf16.msra.mxu0 %v5702
    %6445 = vmatprep.subr.bf16.mxu0 0
    %6446 = vmatpush1.bf16.msra.mxu0 %v5703
    %6447 = vmatprep.subr.bf16.mxu0 0
    %6448 = vmatpush1.bf16.msra.mxu0 %v5704
    %6449 = vmatprep.subr.bf16.mxu0 0
    %6450 = vmatpush1.bf16.msra.mxu0 %v5705
    %6451 = vmatprep.subr.bf16.mxu0 0
    %6452 = vmatpush1.bf16.msra.mxu0 %v5706
    %6453 = vmatprep.subr.bf16.mxu0 0
    %6454 = vmatpush1.bf16.msra.mxu0 %v5707
    %6455 = vmatprep.subr.bf16.mxu0 0
    %6456 = vmatpush1.bf16.msra.mxu0 %v5708
    %6457 = vmatprep.subr.bf16.mxu0 0
    %6458 = vmatpush1.bf16.msra.mxu0 %v5709
    %6459 = vmatprep.subr.bf16.mxu0 0
    %6460 = vmatpush1.bf16.msra.mxu0 %v5710
    %6461 = vmatprep.subr.bf16.mxu0 0
    %6462 = vmatpush1.bf16.msra.mxu0 %v5711
    %6463 = vmatprep.subr.bf16.mxu0 0
    %6464 = vmatpush1.bf16.msra.mxu0 %v5712
    %6465 = vmatprep.mubr.bf16.mxu0 %v3720
    %6466 = vmatmul.mubr.bf16.gmra.mrb[0].mxu0 %v3719
    %v6467 = vpop.f32.mrb[0].mxu0
    %v6468 = vadd.f32 %v6396, %v6467
    %v6469 = vpop.f32.mrb[0].mxu0
    %v6470 = vpop.f32.mrb[0].mxu0
    %v6471 = vadd.f32 %v6399, %v6470
    %v6472 = vpop.f32.mrb[0].mxu0
    %6473 = vmatprep.mubr.bf16.mxu0 %v4058
    %6474 = vmatmul.mubr.bf16.gmra.mrb[0].mxu0 %v4057
    %v6475 = vpop.f32.mrb[0].mxu0
    %v6476 = vadd.f32 %v6404, %v6475
    %v6477 = vpop.f32.mrb[0].mxu0
    %v6478 = vpop.f32.mrb[0].mxu0
    %v6479 = vadd.f32 %v6407, %v6478
    %v6480 = vpop.f32.mrb[0].mxu0
    %6481 = vmatprep.mubr.bf16.mxu0 %v4396
    %6482 = vmatmul.mubr.bf16.gmra.mrb[0].mxu0 %v4395
    %v6483 = vpop.f32.mrb[0].mxu0
    %v6484 = vadd.f32 %v6412, %v6483
    %v6485 = vpop.f32.mrb[0].mxu0
    %v6486 = vpop.f32.mrb[0].mxu0
    %v6487 = vadd.f32 %v6415, %v6486
    %v6488 = vpop.f32.mrb[0].mxu0
    %6489 = vmatprep.mubr.bf16.mxu0 %v4734
    %6490 = vmatmul.mubr.bf16.gmra.mrb[0].mxu0 %v4733
    %v6491 = vpop.f32.mrb[0].mxu0
    %v6492 = vadd.f32 %v6420, %v6491
    %v6493 = vpop.f32.mrb[0].mxu0
    %v6494 = vpop.f32.mrb[0].mxu0
    %v6495 = vadd.f32 %v6423, %v6494
    %v6496 = vpop.f32.mrb[0].mxu0
    %6497 = vmatprep.mubr.bf16.mxu0 %v4902
    %6498 = vmatmul.mubr.bf16.gmra.mrb[0].mxu0 %v4895
    %v6499 = vpop.f32.mrb[0].mxu0
    %v6500 = vadd.f32 %v6428, %v6499
    %v6501 = vpop.f32.mrb[0].mxu0
    %v6502 = vpop.f32.mrb[0].mxu0
    %v6503 = vpop.f32.mrb[0].mxu0
    %6504 = vdwg.mxu0
    %v6505 = vmax.f32 %v6468, 0.0
    %v6506 = vmax.f32 %v6471, 0.0
    %v6507 = vmax.f32 %v6476, 0.0
    %v6508 = vmax.f32 %v6479, 0.0
    %v6509 = vmax.f32 %v6484, 0.0
    %v6510 = vmax.f32 %v6487, 0.0
    %v6511 = vmax.f32 %v6492, 0.0
    %v6512 = vmax.f32 %v6495, 0.0
    %v6513 = vmax.f32 %v6500, 0.0
    %v6514 = vpack.c.bf16 %v6506, %v6505
    %v6515 = vpack.c.bf16 %v6508, %v6507
    %v6516 = vpack.c.bf16 %v6510, %v6509
    %v6517 = vpack.c.bf16 %v6512, %v6511
    %v6518 = vpack.c.bf16 %v6513, %v6513
    %v6524 = vcombine.high %v6514, %v6514
    %v6526 = vunpack.c.l.s4 1966171168
    %v6527 = vunpack.c.0.s8 %v6526
    %v6528 = vlaneseq
    %v6529 = vshrl.u32 %v6528, 7
    %v6530 = vsub.s32 %v6527, %v6529
    %v6531 = vrot.slane %v6514, %v6530
    %v6533 = vunpack.c.l.s4 1966171168
    %v6534 = vunpack.c.0.s8 %v6533
    %v6535 = vlaneseq
    %v6536 = vshrl.u32 %v6535, 7
    %v6537 = vsub.s32 %v6534, %v6536
    %v6538 = vrot.slane %v6524, %v6537
    %v6539 = vcombine.high %v6531, %v6531
    %v6540 = vcombine.high %v6538, %v6538
    %v6542 = vunpack.c.l.s4 1966171168
    %v6543 = vunpack.c.0.s8 %v6542
    %v6544 = vlaneseq
    %v6545 = vshrl.u32 %v6544, 7
    %v6546 = vsub.s32 %v6543, %v6545
    %v6547 = vrot.slane %v6531, %v6546
    %v6549 = vunpack.c.l.s4 1966171168
    %v6550 = vunpack.c.0.s8 %v6549
    %v6551 = vlaneseq
    %v6552 = vshrl.u32 %v6551, 7
    %v6553 = vsub.s32 %v6550, %v6552
    %v6554 = vrot.slane %v6538, %v6553
    %v6556 = vunpack.c.l.s4 1966171168
    %v6557 = vunpack.c.0.s8 %v6556
    %v6558 = vlaneseq
    %v6559 = vshrl.u32 %v6558, 7
    %v6560 = vsub.s32 %v6557, %v6559
    %v6561 = vrot.slane %v6539, %v6560
    %v6563 = vunpack.c.l.s4 1966171168
    %v6564 = vunpack.c.0.s8 %v6563
    %v6565 = vlaneseq
    %v6566 = vshrl.u32 %v6565, 7
    %v6567 = vsub.s32 %v6564, %v6566
    %v6568 = vrot.slane %v6540, %v6567
    %v6569 = vcombine.high %v6547, %v6547
    %v6570 = vcombine.high %v6554, %v6554
    %v6571 = vcombine.high %v6561, %v6561
    %v6572 = vcombine.high %v6568, %v6568
    %v6573 = vcombine.high %v6515, %v6515
    %v6575 = vunpack.c.l.s4 1966171168
    %v6576 = vunpack.c.0.s8 %v6575
    %v6577 = vlaneseq
    %v6578 = vshrl.u32 %v6577, 7
    %v6579 = vsub.s32 %v6576, %v6578
    %v6580 = vrot.slane %v6515, %v6579
    %v6582 = vunpack.c.l.s4 1966171168
    %v6583 = vunpack.c.0.s8 %v6582
    %v6584 = vlaneseq
    %v6585 = vshrl.u32 %v6584, 7
    %v6586 = vsub.s32 %v6583, %v6585
    %v6587 = vrot.slane %v6573, %v6586
    %v6588 = vcombine.high %v6580, %v6580
    %v6589 = vcombine.high %v6587, %v6587
    %v6591 = vunpack.c.l.s4 1966171168
    %v6592 = vunpack.c.0.s8 %v6591
    %v6593 = vlaneseq
    %v6594 = vshrl.u32 %v6593, 7
    %v6595 = vsub.s32 %v6592, %v6594
    %v6596 = vrot.slane %v6580, %v6595
    %v6598 = vunpack.c.l.s4 1966171168
    %v6599 = vunpack.c.0.s8 %v6598
    %v6600 = vlaneseq
    %v6601 = vshrl.u32 %v6600, 7
    %v6602 = vsub.s32 %v6599, %v6601
    %v6603 = vrot.slane %v6587, %v6602
    %v6605 = vunpack.c.l.s4 1966171168
    %v6606 = vunpack.c.0.s8 %v6605
    %v6607 = vlaneseq
    %v6608 = vshrl.u32 %v6607, 7
    %v6609 = vsub.s32 %v6606, %v6608
    %v6610 = vrot.slane %v6588, %v6609
    %v6612 = vunpack.c.l.s4 1966171168
    %v6613 = vunpack.c.0.s8 %v6612
    %v6614 = vlaneseq
    %v6615 = vshrl.u32 %v6614, 7
    %v6616 = vsub.s32 %v6613, %v6615
    %v6617 = vrot.slane %v6589, %v6616
    %v6618 = vcombine.high %v6596, %v6596
    %v6619 = vcombine.high %v6603, %v6603
    %v6620 = vcombine.high %v6610, %v6610
    %v6621 = vcombine.high %v6617, %v6617
    %v6622 = vcombine.high %v6516, %v6516
    %v6624 = vunpack.c.l.s4 1966171168
    %v6625 = vunpack.c.0.s8 %v6624
    %v6626 = vlaneseq
    %v6627 = vshrl.u32 %v6626, 7
    %v6628 = vsub.s32 %v6625, %v6627
    %v6629 = vrot.slane %v6516, %v6628
    %v6631 = vunpack.c.l.s4 1966171168
    %v6632 = vunpack.c.0.s8 %v6631
    %v6633 = vlaneseq
    %v6634 = vshrl.u32 %v6633, 7
    %v6635 = vsub.s32 %v6632, %v6634
    %v6636 = vrot.slane %v6622, %v6635
    %v6637 = vcombine.high %v6629, %v6629
    %v6638 = vcombine.high %v6636, %v6636
    %v6640 = vunpack.c.l.s4 1966171168
    %v6641 = vunpack.c.0.s8 %v6640
    %v6642 = vlaneseq
    %v6643 = vshrl.u32 %v6642, 7
    %v6644 = vsub.s32 %v6641, %v6643
    %v6645 = vrot.slane %v6629, %v6644
    %v6647 = vunpack.c.l.s4 1966171168
    %v6648 = vunpack.c.0.s8 %v6647
    %v6649 = vlaneseq
    %v6650 = vshrl.u32 %v6649, 7
    %v6651 = vsub.s32 %v6648, %v6650
    %v6652 = vrot.slane %v6636, %v6651
    %v6654 = vunpack.c.l.s4 1966171168
    %v6655 = vunpack.c.0.s8 %v6654
    %v6656 = vlaneseq
    %v6657 = vshrl.u32 %v6656, 7
    %v6658 = vsub.s32 %v6655, %v6657
    %v6659 = vrot.slane %v6637, %v6658
    %v6661 = vunpack.c.l.s4 1966171168
    %v6662 = vunpack.c.0.s8 %v6661
    %v6663 = vlaneseq
    %v6664 = vshrl.u32 %v6663, 7
    %v6665 = vsub.s32 %v6662, %v6664
    %v6666 = vrot.slane %v6638, %v6665
    %v6667 = vcombine.high %v6645, %v6645
    %v6668 = vcombine.high %v6652, %v6652
    %v6669 = vcombine.high %v6659, %v6659
    %v6670 = vcombine.high %v6666, %v6666
    %v6671 = vcombine.high %v6517, %v6517
    %v6673 = vunpack.c.l.s4 1966171168
    %v6674 = vunpack.c.0.s8 %v6673
    %v6675 = vlaneseq
    %v6676 = vshrl.u32 %v6675, 7
    %v6677 = vsub.s32 %v6674, %v6676
    %v6678 = vrot.slane %v6517, %v6677
    %v6680 = vunpack.c.l.s4 1966171168
    %v6681 = vunpack.c.0.s8 %v6680
    %v6682 = vlaneseq
    %v6683 = vshrl.u32 %v6682, 7
    %v6684 = vsub.s32 %v6681, %v6683
    %v6685 = vrot.slane %v6671, %v6684
    %v6686 = vcombine.high %v6678, %v6678
    %v6687 = vcombine.high %v6685, %v6685
    %v6689 = vunpack.c.l.s4 1966171168
    %v6690 = vunpack.c.0.s8 %v6689
    %v6691 = vlaneseq
    %v6692 = vshrl.u32 %v6691, 7
    %v6693 = vsub.s32 %v6690, %v6692
    %v6694 = vrot.slane %v6678, %v6693
    %v6696 = vunpack.c.l.s4 1966171168
    %v6697 = vunpack.c.0.s8 %v6696
    %v6698 = vlaneseq
    %v6699 = vshrl.u32 %v6698, 7
    %v6700 = vsub.s32 %v6697, %v6699
    %v6701 = vrot.slane %v6685, %v6700
    %v6703 = vunpack.c.l.s4 1966171168
    %v6704 = vunpack.c.0.s8 %v6703
    %v6705 = vlaneseq
    %v6706 = vshrl.u32 %v6705, 7
    %v6707 = vsub.s32 %v6704, %v6706
    %v6708 = vrot.slane %v6686, %v6707
    %v6710 = vunpack.c.l.s4 1966171168
    %v6711 = vunpack.c.0.s8 %v6710
    %v6712 = vlaneseq
    %v6713 = vshrl.u32 %v6712, 7
    %v6714 = vsub.s32 %v6711, %v6713
    %v6715 = vrot.slane %v6687, %v6714
    %v6716 = vcombine.high %v6694, %v6694
    %v6717 = vcombine.high %v6701, %v6701
    %v6718 = vcombine.high %v6708, %v6708
    %v6719 = vcombine.high %v6715, %v6715
    %v6721 = vunpack.c.l.s4 1966171168
    %v6722 = vunpack.c.0.s8 %v6721
    %v6723 = vlaneseq
    %v6724 = vshrl.u32 %v6723, 7
    %v6725 = vsub.s32 %v6722, %v6724
    %v6726 = vrot.slane %v6518, %v6725
    %v6727 = vcombine.high %v6726, %v6726
    %v6729 = vunpack.c.l.s4 1966171168
    %v6730 = vunpack.c.0.s8 %v6729
    %v6731 = vlaneseq
    %v6732 = vshrl.u32 %v6731, 7
    %v6733 = vsub.s32 %v6730, %v6732
    %v6734 = vrot.slane %v6726, %v6733
    %v6736 = vunpack.c.l.s4 1966171168
    %v6737 = vunpack.c.0.s8 %v6736
    %v6738 = vlaneseq
    %v6739 = vshrl.u32 %v6738, 7
    %v6740 = vsub.s32 %v6737, %v6739
    %v6741 = vrot.slane %v6727, %v6740
    %v6742 = vcombine.high %v6734, %v6734
    %v6743 = vcombine.high %v6741, %v6741
    %v6744 = vcombine.low %v6547, %v6561
    %v6746 = vunpack.c.l.s4 1966171168
    %v6747 = vunpack.c.0.s8 %v6746
    %v6748 = vlaneseq
    %v6749 = vshrl.u32 %v6748, 7
    %v6750 = vsub.s32 %v6747, %v6749
    %v6751 = vrot.slane %v6744, %v6750
    %v6753 = vunpack.c.l.s4 1966171168
    %v6754 = vunpack.c.0.s8 %v6753
    %v6755 = vlaneseq
    %v6756 = vshrl.u32 %v6755, 7
    %v6757 = vsub.s32 %v6754, %v6756
    %v6758 = vrot.slane %v6751, %v6757
    %v6759 = vcombine.low %v6571, %v6554
    %v6761 = vunpack.c.l.s4 1966171168
    %v6762 = vunpack.c.0.s8 %v6761
    %v6763 = vlaneseq
    %v6764 = vshrl.u32 %v6763, 7
    %v6765 = vsub.s32 %v6762, %v6764
    %v6766 = vrot.slane %v6759, %v6765
    %v6768 = vunpack.c.l.s4 1966171168
    %v6769 = vunpack.c.0.s8 %v6768
    %v6770 = vlaneseq
    %v6771 = vshrl.u32 %v6770, 7
    %v6772 = vsub.s32 %v6769, %v6771
    %v6773 = vrot.slane %v6766, %v6772
    %v6774 = vcombine.low %v6667, %v6669
    %v6776 = vunpack.c.l.s4 1966171168
    %v6777 = vunpack.c.0.s8 %v6776
    %v6778 = vlaneseq
    %v6779 = vshrl.u32 %v6778, 7
    %v6780 = vsub.s32 %v6777, %v6779
    %v6781 = vrot.slane %v6774, %v6780
    %v6783 = vunpack.c.l.s4 1966171168
    %v6784 = vunpack.c.0.s8 %v6783
    %v6785 = vlaneseq
    %v6786 = vshrl.u32 %v6785, 7
    %v6787 = vsub.s32 %v6784, %v6786
    %v6788 = vrot.slane %v6781, %v6787
    %v6789 = vcombine.low %v6666, %v6668
    %v6791 = vunpack.c.l.s4 1966171168
    %v6792 = vunpack.c.0.s8 %v6791
    %v6793 = vlaneseq
    %v6794 = vshrl.u32 %v6793, 7
    %v6795 = vsub.s32 %v6792, %v6794
    %v6796 = vrot.slane %v6789, %v6795
    %v6798 = vunpack.c.l.s4 1966171168
    %v6799 = vunpack.c.0.s8 %v6798
    %v6800 = vlaneseq
    %v6801 = vshrl.u32 %v6800, 7
    %v6802 = vsub.s32 %v6799, %v6801
    %v6803 = vrot.slane %v6796, %v6802
    %v6805 = vshrl.u32 %v6758, 16
    %v6807 = vshll.u32 %v6758, 16
    %v6809 = vrot.slane %v6807, 1
    %v6810 = vor.u32 %v6805, %v6809
    %v6812 = vshrl.u32 %v6773, 16
    %v6814 = vshll.u32 %v6773, 16
    %v6816 = vrot.slane %v6814, 1
    %v6817 = vor.u32 %v6812, %v6816
    %v6819 = vshrl.u32 %v6788, 16
    %v6821 = vshll.u32 %v6788, 16
    %v6823 = vrot.slane %v6821, 1
    %v6824 = vor.u32 %v6819, %v6823
    %v6826 = vshrl.u32 %v6803, 16
    %v6828 = vshll.u32 %v6803, 16
    %v6830 = vrot.slane %v6828, 1
    %v6831 = vor.u32 %v6826, %v6830
    %v6832 = vcombine.low %v6561, %v6569
    %v6834 = vunpack.c.l.s4 1966171168
    %v6835 = vunpack.c.0.s8 %v6834
    %v6836 = vlaneseq
    %v6837 = vshrl.u32 %v6836, 7
    %v6838 = vsub.s32 %v6835, %v6837
    %v6839 = vrot.slane %v6832, %v6838
    %v6841 = vunpack.c.l.s4 1966171168
    %v6842 = vunpack.c.0.s8 %v6841
    %v6843 = vlaneseq
    %v6844 = vshrl.u32 %v6843, 7
    %v6845 = vsub.s32 %v6842, %v6844
    %v6846 = vrot.slane %v6839, %v6845
    %v6847 = vcombine.low %v6554, %v6568
    %v6849 = vunpack.c.l.s4 1966171168
    %v6850 = vunpack.c.0.s8 %v6849
    %v6851 = vlaneseq
    %v6852 = vshrl.u32 %v6851, 7
    %v6853 = vsub.s32 %v6850, %v6852
    %v6854 = vrot.slane %v6847, %v6853
    %v6856 = vunpack.c.l.s4 1966171168
    %v6857 = vunpack.c.0.s8 %v6856
    %v6858 = vlaneseq
    %v6859 = vshrl.u32 %v6858, 7
    %v6860 = vsub.s32 %v6857, %v6859
    %v6861 = vrot.slane %v6854, %v6860
    %v6862 = vcombine.low %v6669, %v6652
    %v6864 = vunpack.c.l.s4 1966171168
    %v6865 = vunpack.c.0.s8 %v6864
    %v6866 = vlaneseq
    %v6867 = vshrl.u32 %v6866, 7
    %v6868 = vsub.s32 %v6865, %v6867
    %v6869 = vrot.slane %v6862, %v6868
    %v6871 = vunpack.c.l.s4 1966171168
    %v6872 = vunpack.c.0.s8 %v6871
    %v6873 = vlaneseq
    %v6874 = vshrl.u32 %v6873, 7
    %v6875 = vsub.s32 %v6872, %v6874
    %v6876 = vrot.slane %v6869, %v6875
    %v6877 = vcombine.low %v6668, %v6670
    %v6879 = vunpack.c.l.s4 1966171168
    %v6880 = vunpack.c.0.s8 %v6879
    %v6881 = vlaneseq
    %v6882 = vshrl.u32 %v6881, 7
    %v6883 = vsub.s32 %v6880, %v6882
    %v6884 = vrot.slane %v6877, %v6883
    %v6886 = vunpack.c.l.s4 1966171168
    %v6887 = vunpack.c.0.s8 %v6886
    %v6888 = vlaneseq
    %v6889 = vshrl.u32 %v6888, 7
    %v6890 = vsub.s32 %v6887, %v6889
    %v6891 = vrot.slane %v6884, %v6890
    %v6893 = vshrl.u32 %v6846, 16
    %v6895 = vshll.u32 %v6846, 16
    %v6897 = vrot.slane %v6895, 1
    %v6898 = vor.u32 %v6893, %v6897
    %v6900 = vshrl.u32 %v6861, 16
    %v6902 = vshll.u32 %v6861, 16
    %v6904 = vrot.slane %v6902, 1
    %v6905 = vor.u32 %v6900, %v6904
    %v6907 = vshrl.u32 %v6876, 16
    %v6909 = vshll.u32 %v6876, 16
    %v6911 = vrot.slane %v6909, 1
    %v6912 = vor.u32 %v6907, %v6911
    %v6914 = vshrl.u32 %v6891, 16
    %v6916 = vshll.u32 %v6891, 16
    %v6918 = vrot.slane %v6916, 1
    %v6919 = vor.u32 %v6914, %v6918
    %v6920 = vcombine.low %v6570, %v6572
    %v6922 = vunpack.c.l.s4 1966171168
    %v6923 = vunpack.c.0.s8 %v6922
    %v6924 = vlaneseq
    %v6925 = vshrl.u32 %v6924, 7
    %v6926 = vsub.s32 %v6923, %v6925
    %v6927 = vrot.slane %v6920, %v6926
    %v6929 = vunpack.c.l.s4 1966171168
    %v6930 = vunpack.c.0.s8 %v6929
    %v6931 = vlaneseq
    %v6932 = vshrl.u32 %v6931, 7
    %v6933 = vsub.s32 %v6930, %v6932
    %v6934 = vrot.slane %v6927, %v6933
    %v6935 = vcombine.low %v6694, %v6708
    %v6937 = vunpack.c.l.s4 1966171168
    %v6938 = vunpack.c.0.s8 %v6937
    %v6939 = vlaneseq
    %v6940 = vshrl.u32 %v6939, 7
    %v6941 = vsub.s32 %v6938, %v6940
    %v6942 = vrot.slane %v6935, %v6941
    %v6944 = vunpack.c.l.s4 1966171168
    %v6945 = vunpack.c.0.s8 %v6944
    %v6946 = vlaneseq
    %v6947 = vshrl.u32 %v6946, 7
    %v6948 = vsub.s32 %v6945, %v6947
    %v6949 = vrot.slane %v6942, %v6948
    %v6951 = vshrl.u32 %v6934, 16
    %v6953 = vshll.u32 %v6934, 16
    %v6955 = vrot.slane %v6953, 1
    %v6956 = vor.u32 %v6951, %v6955
    %v6958 = vshrl.u32 %v6949, 16
    %v6960 = vshll.u32 %v6949, 16
    %v6962 = vrot.slane %v6960, 1
    %v6963 = vor.u32 %v6958, %v6962
    %v6964 = vcombine.low %v6572, %v6596
    %v6966 = vunpack.c.l.s4 1966171168
    %v6967 = vunpack.c.0.s8 %v6966
    %v6968 = vlaneseq
    %v6969 = vshrl.u32 %v6968, 7
    %v6970 = vsub.s32 %v6967, %v6969
    %v6971 = vrot.slane %v6964, %v6970
    %v6973 = vunpack.c.l.s4 1966171168
    %v6974 = vunpack.c.0.s8 %v6973
    %v6975 = vlaneseq
    %v6976 = vshrl.u32 %v6975, 7
    %v6977 = vsub.s32 %v6974, %v6976
    %v6978 = vrot.slane %v6971, %v6977
    %v6979 = vcombine.low %v6708, %v6716
    %v6981 = vunpack.c.l.s4 1966171168
    %v6982 = vunpack.c.0.s8 %v6981
    %v6983 = vlaneseq
    %v6984 = vshrl.u32 %v6983, 7
    %v6985 = vsub.s32 %v6982, %v6984
    %v6986 = vrot.slane %v6979, %v6985
    %v6988 = vunpack.c.l.s4 1966171168
    %v6989 = vunpack.c.0.s8 %v6988
    %v6990 = vlaneseq
    %v6991 = vshrl.u32 %v6990, 7
    %v6992 = vsub.s32 %v6989, %v6991
    %v6993 = vrot.slane %v6986, %v6992
    %v6995 = vshrl.u32 %v6978, 16
    %v6997 = vshll.u32 %v6978, 16
    %v6999 = vrot.slane %v6997, 1
    %v7000 = vor.u32 %v6995, %v6999
    %v7002 = vshrl.u32 %v6993, 16
    %v7004 = vshll.u32 %v6993, 16
    %v7006 = vrot.slane %v7004, 1
    %v7007 = vor.u32 %v7002, %v7006
    %v7008 = vcombine.low %v6610, %v6618
    %v7010 = vunpack.c.l.s4 1966171168
    %v7011 = vunpack.c.0.s8 %v7010
    %v7012 = vlaneseq
    %v7013 = vshrl.u32 %v7012, 7
    %v7014 = vsub.s32 %v7011, %v7013
    %v7015 = vrot.slane %v7008, %v7014
    %v7017 = vunpack.c.l.s4 1966171168
    %v7018 = vunpack.c.0.s8 %v7017
    %v7019 = vlaneseq
    %v7020 = vshrl.u32 %v7019, 7
    %v7021 = vsub.s32 %v7018, %v7020
    %v7022 = vrot.slane %v7015, %v7021
    %v7023 = vcombine.low %v6718, %v6701
    %v7025 = vunpack.c.l.s4 1966171168
    %v7026 = vunpack.c.0.s8 %v7025
    %v7027 = vlaneseq
    %v7028 = vshrl.u32 %v7027, 7
    %v7029 = vsub.s32 %v7026, %v7028
    %v7030 = vrot.slane %v7023, %v7029
    %v7032 = vunpack.c.l.s4 1966171168
    %v7033 = vunpack.c.0.s8 %v7032
    %v7034 = vlaneseq
    %v7035 = vshrl.u32 %v7034, 7
    %v7036 = vsub.s32 %v7033, %v7035
    %v7037 = vrot.slane %v7030, %v7036
    %v7039 = vshrl.u32 %v7022, 16
    %v7041 = vshll.u32 %v7022, 16
    %v7043 = vrot.slane %v7041, 1
    %v7044 = vor.u32 %v7039, %v7043
    %v7046 = vshrl.u32 %v7037, 16
    %v7048 = vshll.u32 %v7037, 16
    %v7050 = vrot.slane %v7048, 1
    %v7051 = vor.u32 %v7046, %v7050
    %v7052 = vcombine.low %v6618, %v6620
    %v7054 = vunpack.c.l.s4 1966171168
    %v7055 = vunpack.c.0.s8 %v7054
    %v7056 = vlaneseq
    %v7057 = vshrl.u32 %v7056, 7
    %v7058 = vsub.s32 %v7055, %v7057
    %v7059 = vrot.slane %v7052, %v7058
    %v7061 = vunpack.c.l.s4 1966171168
    %v7062 = vunpack.c.0.s8 %v7061
    %v7063 = vlaneseq
    %v7064 = vshrl.u32 %v7063, 7
    %v7065 = vsub.s32 %v7062, %v7064
    %v7066 = vrot.slane %v7059, %v7065
    %v7067 = vcombine.low %v6701, %v6715
    %v7069 = vunpack.c.l.s4 1966171168
    %v7070 = vunpack.c.0.s8 %v7069
    %v7071 = vlaneseq
    %v7072 = vshrl.u32 %v7071, 7
    %v7073 = vsub.s32 %v7070, %v7072
    %v7074 = vrot.slane %v7067, %v7073
    %v7076 = vunpack.c.l.s4 1966171168
    %v7077 = vunpack.c.0.s8 %v7076
    %v7078 = vlaneseq
    %v7079 = vshrl.u32 %v7078, 7
    %v7080 = vsub.s32 %v7077, %v7079
    %v7081 = vrot.slane %v7074, %v7080
    %v7083 = vshrl.u32 %v7066, 16
    %v7085 = vshll.u32 %v7066, 16
    %v7087 = vrot.slane %v7085, 1
    %v7088 = vor.u32 %v7083, %v7087
    %v7090 = vshrl.u32 %v7081, 16
    %v7092 = vshll.u32 %v7081, 16
    %v7094 = vrot.slane %v7092, 1
    %v7095 = vor.u32 %v7090, %v7094
    %v7096 = vcombine.low %v6603, %v6617
    %v7098 = vunpack.c.l.s4 1966171168
    %v7099 = vunpack.c.0.s8 %v7098
    %v7100 = vlaneseq
    %v7101 = vshrl.u32 %v7100, 7
    %v7102 = vsub.s32 %v7099, %v7101
    %v7103 = vrot.slane %v7096, %v7102
    %v7105 = vunpack.c.l.s4 1966171168
    %v7106 = vunpack.c.0.s8 %v7105
    %v7107 = vlaneseq
    %v7108 = vshrl.u32 %v7107, 7
    %v7109 = vsub.s32 %v7106, %v7108
    %v7110 = vrot.slane %v7103, %v7109
    %v7111 = vcombine.low %v6717, %v6719
    %v7113 = vunpack.c.l.s4 1966171168
    %v7114 = vunpack.c.0.s8 %v7113
    %v7115 = vlaneseq
    %v7116 = vshrl.u32 %v7115, 7
    %v7117 = vsub.s32 %v7114, %v7116
    %v7118 = vrot.slane %v7111, %v7117
    %v7120 = vunpack.c.l.s4 1966171168
    %v7121 = vunpack.c.0.s8 %v7120
    %v7122 = vlaneseq
    %v7123 = vshrl.u32 %v7122, 7
    %v7124 = vsub.s32 %v7121, %v7123
    %v7125 = vrot.slane %v7118, %v7124
    %v7127 = vunpack.c.l.s4 1966171168
    %v7128 = vunpack.c.0.s8 %v7127
    %v7129 = vlaneseq
    %v7130 = vshrl.u32 %v7129, 7
    %v7131 = vsub.s32 %v7128, %v7130
    %v7132 = vrot.slane %v6618, %v7131
    %v7134 = vunpack.c.l.s4 1966171168
    %v7135 = vunpack.c.0.s8 %v7134
    %v7136 = vlaneseq
    %v7137 = vshrl.u32 %v7136, 7
    %v7138 = vsub.s32 %v7135, %v7137
    %v7139 = vrot.slane %v7132, %v7138
    %v7141 = vunpack.c.l.s4 1966171168
    %v7142 = vunpack.c.0.s8 %v7141
    %v7143 = vlaneseq
    %v7144 = vshrl.u32 %v7143, 7
    %v7145 = vsub.s32 %v7142, %v7144
    %v7146 = vrot.slane %v6617, %v7145
    %v7148 = vunpack.c.l.s4 1966171168
    %v7149 = vunpack.c.0.s8 %v7148
    %v7150 = vlaneseq
    %v7151 = vshrl.u32 %v7150, 7
    %v7152 = vsub.s32 %v7149, %v7151
    %v7153 = vrot.slane %v7146, %v7152
    %v7155 = vunpack.c.l.s4 1966171168
    %v7156 = vunpack.c.0.s8 %v7155
    %v7157 = vlaneseq
    %v7158 = vshrl.u32 %v7157, 7
    %v7159 = vsub.s32 %v7156, %v7158
    %v7160 = vrot.slane %v6701, %v7159
    %v7162 = vunpack.c.l.s4 1966171168
    %v7163 = vunpack.c.0.s8 %v7162
    %v7164 = vlaneseq
    %v7165 = vshrl.u32 %v7164, 7
    %v7166 = vsub.s32 %v7163, %v7165
    %v7167 = vrot.slane %v7160, %v7166
    %v7169 = vunpack.c.l.s4 1966171168
    %v7170 = vunpack.c.0.s8 %v7169
    %v7171 = vlaneseq
    %v7172 = vshrl.u32 %v7171, 7
    %v7173 = vsub.s32 %v7170, %v7172
    %v7174 = vrot.slane %v6719, %v7173
    %v7176 = vunpack.c.l.s4 1966171168
    %v7177 = vunpack.c.0.s8 %v7176
    %v7178 = vlaneseq
    %v7179 = vshrl.u32 %v7178, 7
    %v7180 = vsub.s32 %v7177, %v7179
    %v7181 = vrot.slane %v7174, %v7180
    %v7183 = vshrl.u32 %v7139, 16
    %v7185 = vrot.slane %v7183, 7
    %v7186 = vshll.u32 %v7139, 16
    %v7188 = vor.u32 %v7185, %v7186
    %v7190 = vshrl.u32 %v7153, 16
    %v7192 = vrot.slane %v7190, 7
    %v7193 = vshll.u32 %v7153, 16
    %v7195 = vor.u32 %v7192, %v7193
    %v7197 = vshrl.u32 %v7167, 16
    %v7199 = vrot.slane %v7197, 7
    %v7200 = vshll.u32 %v7167, 16
    %v7202 = vor.u32 %v7199, %v7200
    %v7204 = vshrl.u32 %v7181, 16
    %v7206 = vrot.slane %v7204, 7
    %v7207 = vshll.u32 %v7181, 16
    %v7209 = vor.u32 %v7206, %v7207
    %v7210 = vcombine.low %v6617, %v6619
    %v7212 = vunpack.c.l.s4 1966171168
    %v7213 = vunpack.c.0.s8 %v7212
    %v7214 = vlaneseq
    %v7215 = vshrl.u32 %v7214, 7
    %v7216 = vsub.s32 %v7213, %v7215
    %v7217 = vrot.slane %v7210, %v7216
    %v7219 = vunpack.c.l.s4 1966171168
    %v7220 = vunpack.c.0.s8 %v7219
    %v7221 = vlaneseq
    %v7222 = vshrl.u32 %v7221, 7
    %v7223 = vsub.s32 %v7220, %v7222
    %v7224 = vrot.slane %v7217, %v7223
    %v7225 = vcombine.low %v6719, %v6734
    %v7227 = vunpack.c.l.s4 1966171168
    %v7228 = vunpack.c.0.s8 %v7227
    %v7229 = vlaneseq
    %v7230 = vshrl.u32 %v7229, 7
    %v7231 = vsub.s32 %v7228, %v7230
    %v7232 = vrot.slane %v7225, %v7231
    %v7234 = vunpack.c.l.s4 1966171168
    %v7235 = vunpack.c.0.s8 %v7234
    %v7236 = vlaneseq
    %v7237 = vshrl.u32 %v7236, 7
    %v7238 = vsub.s32 %v7235, %v7237
    %v7239 = vrot.slane %v7232, %v7238
    %v7241 = vunpack.c.l.s4 1966171168
    %v7242 = vunpack.c.0.s8 %v7241
    %v7243 = vlaneseq
    %v7244 = vshrl.u32 %v7243, 7
    %v7245 = vsub.s32 %v7242, %v7244
    %v7246 = vrot.slane %v6620, %v7245
    %v7248 = vunpack.c.l.s4 1966171168
    %v7249 = vunpack.c.0.s8 %v7248
    %v7250 = vlaneseq
    %v7251 = vshrl.u32 %v7250, 7
    %v7252 = vsub.s32 %v7249, %v7251
    %v7253 = vrot.slane %v7246, %v7252
    %v7255 = vunpack.c.l.s4 1966171168
    %v7256 = vunpack.c.0.s8 %v7255
    %v7257 = vlaneseq
    %v7258 = vshrl.u32 %v7257, 7
    %v7259 = vsub.s32 %v7256, %v7258
    %v7260 = vrot.slane %v6619, %v7259
    %v7262 = vunpack.c.l.s4 1966171168
    %v7263 = vunpack.c.0.s8 %v7262
    %v7264 = vlaneseq
    %v7265 = vshrl.u32 %v7264, 7
    %v7266 = vsub.s32 %v7263, %v7265
    %v7267 = vrot.slane %v7260, %v7266
    %v7269 = vunpack.c.l.s4 1966171168
    %v7270 = vunpack.c.0.s8 %v7269
    %v7271 = vlaneseq
    %v7272 = vshrl.u32 %v7271, 7
    %v7273 = vsub.s32 %v7270, %v7272
    %v7274 = vrot.slane %v6715, %v7273
    %v7276 = vunpack.c.l.s4 1966171168
    %v7277 = vunpack.c.0.s8 %v7276
    %v7278 = vlaneseq
    %v7279 = vshrl.u32 %v7278, 7
    %v7280 = vsub.s32 %v7277, %v7279
    %v7281 = vrot.slane %v7274, %v7280
    %v7283 = vunpack.c.l.s4 1966171168
    %v7284 = vunpack.c.0.s8 %v7283
    %v7285 = vlaneseq
    %v7286 = vshrl.u32 %v7285, 7
    %v7287 = vsub.s32 %v7284, %v7286
    %v7288 = vrot.slane %v6734, %v7287
    %v7290 = vunpack.c.l.s4 1966171168
    %v7291 = vunpack.c.0.s8 %v7290
    %v7292 = vlaneseq
    %v7293 = vshrl.u32 %v7292, 7
    %v7294 = vsub.s32 %v7291, %v7293
    %v7295 = vrot.slane %v7288, %v7294
    %v7297 = vshrl.u32 %v7253, 16
    %v7299 = vrot.slane %v7297, 7
    %v7300 = vshll.u32 %v7253, 16
    %v7302 = vor.u32 %v7299, %v7300
    %v7304 = vshrl.u32 %v7267, 16
    %v7306 = vrot.slane %v7304, 7
    %v7307 = vshll.u32 %v7267, 16
    %v7309 = vor.u32 %v7306, %v7307
    %v7311 = vshrl.u32 %v7281, 16
    %v7313 = vrot.slane %v7311, 7
    %v7314 = vshll.u32 %v7281, 16
    %v7316 = vor.u32 %v7313, %v7314
    %v7318 = vshrl.u32 %v7295, 16
    %v7320 = vrot.slane %v7318, 7
    %v7321 = vshll.u32 %v7295, 16
    %v7323 = vor.u32 %v7320, %v7321
    %v7325 = vunpack.c.l.s4 1966171168
    %v7326 = vunpack.c.0.s8 %v7325
    %v7327 = vlaneseq
    %v7328 = vshrl.u32 %v7327, 7
    %v7329 = vsub.s32 %v7326, %v7328
    %v7330 = vrot.slane %v6603, %v7329
    %v7332 = vunpack.c.l.s4 1966171168
    %v7333 = vunpack.c.0.s8 %v7332
    %v7334 = vlaneseq
    %v7335 = vshrl.u32 %v7334, 7
    %v7336 = vsub.s32 %v7333, %v7335
    %v7337 = vrot.slane %v7330, %v7336
    %v7339 = vunpack.c.l.s4 1966171168
    %v7340 = vunpack.c.0.s8 %v7339
    %v7341 = vlaneseq
    %v7342 = vshrl.u32 %v7341, 7
    %v7343 = vsub.s32 %v7340, %v7342
    %v7344 = vrot.slane %v6621, %v7343
    %v7346 = vunpack.c.l.s4 1966171168
    %v7347 = vunpack.c.0.s8 %v7346
    %v7348 = vlaneseq
    %v7349 = vshrl.u32 %v7348, 7
    %v7350 = vsub.s32 %v7347, %v7349
    %v7351 = vrot.slane %v7344, %v7350
    %v7353 = vunpack.c.l.s4 1966171168
    %v7354 = vunpack.c.0.s8 %v7353
    %v7355 = vlaneseq
    %v7356 = vshrl.u32 %v7355, 7
    %v7357 = vsub.s32 %v7354, %v7356
    %v7358 = vrot.slane %v6717, %v7357
    %v7360 = vunpack.c.l.s4 1966171168
    %v7361 = vunpack.c.0.s8 %v7360
    %v7362 = vlaneseq
    %v7363 = vshrl.u32 %v7362, 7
    %v7364 = vsub.s32 %v7361, %v7363
    %v7365 = vrot.slane %v7358, %v7364
    %v7367 = vunpack.c.l.s4 1966171168
    %v7368 = vunpack.c.0.s8 %v7367
    %v7369 = vlaneseq
    %v7370 = vshrl.u32 %v7369, 7
    %v7371 = vsub.s32 %v7368, %v7370
    %v7372 = vrot.slane %v6741, %v7371
    %v7374 = vunpack.c.l.s4 1966171168
    %v7375 = vunpack.c.0.s8 %v7374
    %v7376 = vlaneseq
    %v7377 = vshrl.u32 %v7376, 7
    %v7378 = vsub.s32 %v7375, %v7377
    %v7379 = vrot.slane %v7372, %v7378
    %v7381 = vshrl.u32 %v7337, 16
    %v7383 = vrot.slane %v7381, 7
    %v7384 = vshll.u32 %v7337, 16
    %v7386 = vor.u32 %v7383, %v7384
    %v7388 = vshrl.u32 %v7351, 16
    %v7390 = vrot.slane %v7388, 7
    %v7391 = vshll.u32 %v7351, 16
    %v7393 = vor.u32 %v7390, %v7391
    %v7395 = vshrl.u32 %v7365, 16
    %v7397 = vrot.slane %v7395, 7
    %v7398 = vshll.u32 %v7365, 16
    %v7400 = vor.u32 %v7397, %v7398
    %v7402 = vshrl.u32 %v7379, 16
    %v7404 = vrot.slane %v7402, 7
    %v7405 = vshll.u32 %v7379, 16
    %v7407 = vor.u32 %v7404, %v7405
    %v7408 = vcombine.low %v6621, %v6645
    %v7410 = vunpack.c.l.s4 1966171168
    %v7411 = vunpack.c.0.s8 %v7410
    %v7412 = vlaneseq
    %v7413 = vshrl.u32 %v7412, 7
    %v7414 = vsub.s32 %v7411, %v7413
    %v7415 = vrot.slane %v7408, %v7414
    %v7417 = vunpack.c.l.s4 1966171168
    %v7418 = vunpack.c.0.s8 %v7417
    %v7419 = vlaneseq
    %v7420 = vshrl.u32 %v7419, 7
    %v7421 = vsub.s32 %v7418, %v7420
    %v7422 = vrot.slane %v7415, %v7421
    %v7423 = vcombine.low %v6741, %v6742
    %v7425 = vunpack.c.l.s4 1966171168
    %v7426 = vunpack.c.0.s8 %v7425
    %v7427 = vlaneseq
    %v7428 = vshrl.u32 %v7427, 7
    %v7429 = vsub.s32 %v7426, %v7428
    %v7430 = vrot.slane %v7423, %v7429
    %v7432 = vunpack.c.l.s4 1966171168
    %v7433 = vunpack.c.0.s8 %v7432
    %v7434 = vlaneseq
    %v7435 = vshrl.u32 %v7434, 7
    %v7436 = vsub.s32 %v7433, %v7435
    %v7437 = vrot.slane %v7430, %v7436
    %v7439 = vunpack.c.l.s4 1966171168
    %v7440 = vunpack.c.0.s8 %v7439
    %v7441 = vlaneseq
    %v7442 = vshrl.u32 %v7441, 7
    %v7443 = vsub.s32 %v7440, %v7442
    %v7444 = vrot.slane %v6645, %v7443
    %v7446 = vunpack.c.l.s4 1966171168
    %v7447 = vunpack.c.0.s8 %v7446
    %v7448 = vlaneseq
    %v7449 = vshrl.u32 %v7448, 7
    %v7450 = vsub.s32 %v7447, %v7449
    %v7451 = vrot.slane %v7444, %v7450
    %v7453 = vunpack.c.l.s4 1966171168
    %v7454 = vunpack.c.0.s8 %v7453
    %v7455 = vlaneseq
    %v7456 = vshrl.u32 %v7455, 7
    %v7457 = vsub.s32 %v7454, %v7456
    %v7458 = vrot.slane %v6742, %v7457
    %v7460 = vunpack.c.l.s4 1966171168
    %v7461 = vunpack.c.0.s8 %v7460
    %v7462 = vlaneseq
    %v7463 = vshrl.u32 %v7462, 7
    %v7464 = vsub.s32 %v7461, %v7463
    %v7465 = vrot.slane %v7458, %v7464
    %v7467 = vshrl.u32 %v7451, 16
    %v7469 = vrot.slane %v7467, 7
    %v7470 = vshll.u32 %v7451, 16
    %v7472 = vor.u32 %v7469, %v7470
    %v7474 = vshrl.u32 %v7465, 16
    %v7476 = vrot.slane %v7474, 7
    %v7477 = vshll.u32 %v7465, 16
    %v7479 = vor.u32 %v7476, %v7477
    %v7480 = vcombine.low %v6645, %v6659
    %v7482 = vunpack.c.l.s4 1966171168
    %v7483 = vunpack.c.0.s8 %v7482
    %v7484 = vlaneseq
    %v7485 = vshrl.u32 %v7484, 7
    %v7486 = vsub.s32 %v7483, %v7485
    %v7487 = vrot.slane %v7480, %v7486
    %v7489 = vunpack.c.l.s4 1966171168
    %v7490 = vunpack.c.0.s8 %v7489
    %v7491 = vlaneseq
    %v7492 = vshrl.u32 %v7491, 7
    %v7493 = vsub.s32 %v7490, %v7492
    %v7494 = vrot.slane %v7487, %v7493
    %v7495 = vcombine.low %v6742, %v6743
    %v7497 = vunpack.c.l.s4 1966171168
    %v7498 = vunpack.c.0.s8 %v7497
    %v7499 = vlaneseq
    %v7500 = vshrl.u32 %v7499, 7
    %v7501 = vsub.s32 %v7498, %v7500
    %v7502 = vrot.slane %v7495, %v7501
    %v7504 = vunpack.c.l.s4 1966171168
    %v7505 = vunpack.c.0.s8 %v7504
    %v7506 = vlaneseq
    %v7507 = vshrl.u32 %v7506, 7
    %v7508 = vsub.s32 %v7505, %v7507
    %v7509 = vrot.slane %v7502, %v7508
    %v7511 = vunpack.c.l.s4 1966171168
    %v7512 = vunpack.c.0.s8 %v7511
    %v7513 = vlaneseq
    %v7514 = vshrl.u32 %v7513, 7
    %v7515 = vsub.s32 %v7512, %v7514
    %v7516 = vrot.slane %v6659, %v7515
    %v7518 = vunpack.c.l.s4 1966171168
    %v7519 = vunpack.c.0.s8 %v7518
    %v7520 = vlaneseq
    %v7521 = vshrl.u32 %v7520, 7
    %v7522 = vsub.s32 %v7519, %v7521
    %v7523 = vrot.slane %v7516, %v7522
    %v7525 = vunpack.c.l.s4 1966171168
    %v7526 = vunpack.c.0.s8 %v7525
    %v7527 = vlaneseq
    %v7528 = vshrl.u32 %v7527, 7
    %v7529 = vsub.s32 %v7526, %v7528
    %v7530 = vrot.slane %v6743, %v7529
    %v7532 = vunpack.c.l.s4 1966171168
    %v7533 = vunpack.c.0.s8 %v7532
    %v7534 = vlaneseq
    %v7535 = vshrl.u32 %v7534, 7
    %v7536 = vsub.s32 %v7533, %v7535
    %v7537 = vrot.slane %v7530, %v7536
    %v7539 = vshrl.u32 %v7523, 16
    %v7541 = vrot.slane %v7539, 7
    %v7542 = vshll.u32 %v7523, 16
    %v7544 = vor.u32 %v7541, %v7542
    %v7546 = vshrl.u32 %v7537, 16
    %v7548 = vrot.slane %v7546, 7
    %v7549 = vshll.u32 %v7537, 16
    %v7551 = vor.u32 %v7548, %v7549
    %v7553 = vshrl.u32 %v7188, 16
    %v7555 = vshll.u32 %v7188, 16
    %v7557 = vrot.slane %v7555, 1
    %v7558 = vor.u32 %v7553, %v7557
    %v7560 = vshrl.u32 %v7302, 16
    %v7562 = vshll.u32 %v7302, 16
    %v7564 = vrot.slane %v7562, 1
    %v7565 = vor.u32 %v7560, %v7564
    %v7567 = vshrl.u32 %v7386, 16
    %v7569 = vshll.u32 %v7386, 16
    %v7571 = vrot.slane %v7569, 1
    %v7572 = vor.u32 %v7567, %v7571
    %v7574 = vshrl.u32 %v7110, 16
    %v7576 = vshll.u32 %v7110, 16
    %v7578 = vrot.slane %v7576, 1
    %v7579 = vor.u32 %v7574, %v7578
    %v7581 = vshrl.u32 %v7195, 16
    %v7583 = vshll.u32 %v7195, 16
    %v7585 = vrot.slane %v7583, 1
    %v7586 = vor.u32 %v7581, %v7585
    %v7588 = vshrl.u32 %v7224, 16
    %v7590 = vshll.u32 %v7224, 16
    %v7592 = vrot.slane %v7590, 1
    %v7593 = vor.u32 %v7588, %v7592
    %v7595 = vshrl.u32 %v7309, 16
    %v7597 = vshll.u32 %v7309, 16
    %v7599 = vrot.slane %v7597, 1
    %v7600 = vor.u32 %v7595, %v7599
    %v7602 = vshrl.u32 %v7393, 16
    %v7604 = vshll.u32 %v7393, 16
    %v7606 = vrot.slane %v7604, 1
    %v7607 = vor.u32 %v7602, %v7606
    %v7609 = vshrl.u32 %v7422, 16
    %v7611 = vshll.u32 %v7422, 16
    %v7613 = vrot.slane %v7611, 1
    %v7614 = vor.u32 %v7609, %v7613
    %v7616 = vshrl.u32 %v7472, 16
    %v7618 = vshll.u32 %v7472, 16
    %v7620 = vrot.slane %v7618, 1
    %v7621 = vor.u32 %v7616, %v7620
    %v7623 = vshrl.u32 %v7494, 16
    %v7625 = vshll.u32 %v7494, 16
    %v7627 = vrot.slane %v7625, 1
    %v7628 = vor.u32 %v7623, %v7627
    %v7630 = vshrl.u32 %v7544, 16
    %v7632 = vshll.u32 %v7544, 16
    %v7634 = vrot.slane %v7632, 1
    %v7635 = vor.u32 %v7630, %v7634
    %v7637 = vshrl.u32 %v7202, 16
    %v7639 = vshll.u32 %v7202, 16
    %v7641 = vrot.slane %v7639, 1
    %v7642 = vor.u32 %v7637, %v7641
    %v7644 = vshrl.u32 %v7316, 16
    %v7646 = vshll.u32 %v7316, 16
    %v7648 = vrot.slane %v7646, 1
    %v7649 = vor.u32 %v7644, %v7648
    %v7651 = vshrl.u32 %v7400, 16
    %v7653 = vshll.u32 %v7400, 16
    %v7655 = vrot.slane %v7653, 1
    %v7656 = vor.u32 %v7651, %v7655
    %v7658 = vshrl.u32 %v7125, 16
    %v7660 = vshll.u32 %v7125, 16
    %v7662 = vrot.slane %v7660, 1
    %v7663 = vor.u32 %v7658, %v7662
    %v7665 = vshrl.u32 %v7209, 16
    %v7667 = vshll.u32 %v7209, 16
    %v7669 = vrot.slane %v7667, 1
    %v7670 = vor.u32 %v7665, %v7669
    %v7672 = vshrl.u32 %v7239, 16
    %v7674 = vshll.u32 %v7239, 16
    %v7676 = vrot.slane %v7674, 1
    %v7677 = vor.u32 %v7672, %v7676
    %v7679 = vshrl.u32 %v7323, 16
    %v7681 = vshll.u32 %v7323, 16
    %v7683 = vrot.slane %v7681, 1
    %v7684 = vor.u32 %v7679, %v7683
    %v7686 = vshrl.u32 %v7407, 16
    %v7688 = vshll.u32 %v7407, 16
    %v7690 = vrot.slane %v7688, 1
    %v7691 = vor.u32 %v7686, %v7690
    %v7693 = vshrl.u32 %v7437, 16
    %v7695 = vshll.u32 %v7437, 16
    %v7697 = vrot.slane %v7695, 1
    %v7698 = vor.u32 %v7693, %v7697
    %v7700 = vshrl.u32 %v7479, 16
    %v7702 = vshll.u32 %v7479, 16
    %v7704 = vrot.slane %v7702, 1
    %v7705 = vor.u32 %v7700, %v7704
    %v7707 = vshrl.u32 %v7509, 16
    %v7709 = vshll.u32 %v7509, 16
    %v7711 = vrot.slane %v7709, 1
    %v7712 = vor.u32 %v7707, %v7711
    %v7714 = vshrl.u32 %v7551, 16
    %v7716 = vshll.u32 %v7551, 16
    %v7718 = vrot.slane %v7716, 1
    %v7719 = vor.u32 %v7714, %v7718
    %v7720 = vcombine.low %v6547, %v6810
    %v7721 = vcombine.low %v6561, %v6898
    %v7722 = vcombine.low %v6569, %v6571
    %v7723 = vcombine.low %v6817, %v6554
    %v7725 = vunpack.c.l.s4 1966171168
    %v7726 = vunpack.c.0.s8 %v7725
    %v7727 = vlaneseq
    %v7728 = vshrl.u32 %v7727, 7
    %v7729 = vsub.s32 %v7726, %v7728
    %v7730 = vrot.slane %v7720, %v7729
    %v7732 = vunpack.c.l.s4 1966171168
    %v7733 = vunpack.c.0.s8 %v7732
    %v7734 = vlaneseq
    %v7735 = vshrl.u32 %v7734, 7
    %v7736 = vsub.s32 %v7733, %v7735
    %v7737 = vrot.slane %v7721, %v7736
    %v7739 = vunpack.c.l.s4 1966171168
    %v7740 = vunpack.c.0.s8 %v7739
    %v7741 = vlaneseq
    %v7742 = vshrl.u32 %v7741, 7
    %v7743 = vsub.s32 %v7740, %v7742
    %v7744 = vrot.slane %v7722, %v7743
    %v7746 = vunpack.c.l.s4 1966171168
    %v7747 = vunpack.c.0.s8 %v7746
    %v7748 = vlaneseq
    %v7749 = vshrl.u32 %v7748, 7
    %v7750 = vsub.s32 %v7747, %v7749
    %v7751 = vrot.slane %v7723, %v7750
    %v7752 = vcombine.low %v7730, %v7737
    %v7753 = vcombine.low %v7744, %v7751
    %v7755 = vunpack.c.l.s4 1966171168
    %v7756 = vunpack.c.0.s8 %v7755
    %v7757 = vlaneseq
    %v7758 = vshrl.u32 %v7757, 7
    %v7759 = vsub.s32 %v7756, %v7758
    %v7760 = vrot.slane %v7752, %v7759
    %v7762 = vunpack.c.l.s4 1966171168
    %v7763 = vunpack.c.0.s8 %v7762
    %v7764 = vlaneseq
    %v7765 = vshrl.u32 %v7764, 7
    %v7766 = vsub.s32 %v7763, %v7765
    %v7767 = vrot.slane %v7753, %v7766
    %v7768 = vcombine.low %v7760, %v7767
    %v7769 = vcombine.low %v6905, %v6568
    %v7770 = vcombine.low %v6570, %v6956
    %v7771 = vcombine.low %v6572, %v7000
    %v7772 = vcombine.low %v6596, %v6610
    %v7774 = vunpack.c.l.s4 1966171168
    %v7775 = vunpack.c.0.s8 %v7774
    %v7776 = vlaneseq
    %v7777 = vshrl.u32 %v7776, 7
    %v7778 = vsub.s32 %v7775, %v7777
    %v7779 = vrot.slane %v7769, %v7778
    %v7781 = vunpack.c.l.s4 1966171168
    %v7782 = vunpack.c.0.s8 %v7781
    %v7783 = vlaneseq
    %v7784 = vshrl.u32 %v7783, 7
    %v7785 = vsub.s32 %v7782, %v7784
    %v7786 = vrot.slane %v7770, %v7785
    %v7788 = vunpack.c.l.s4 1966171168
    %v7789 = vunpack.c.0.s8 %v7788
    %v7790 = vlaneseq
    %v7791 = vshrl.u32 %v7790, 7
    %v7792 = vsub.s32 %v7789, %v7791
    %v7793 = vrot.slane %v7771, %v7792
    %v7795 = vunpack.c.l.s4 1966171168
    %v7796 = vunpack.c.0.s8 %v7795
    %v7797 = vlaneseq
    %v7798 = vshrl.u32 %v7797, 7
    %v7799 = vsub.s32 %v7796, %v7798
    %v7800 = vrot.slane %v7772, %v7799
    %v7801 = vcombine.low %v7779, %v7786
    %v7802 = vcombine.low %v7793, %v7800
    %v7804 = vunpack.c.l.s4 1966171168
    %v7805 = vunpack.c.0.s8 %v7804
    %v7806 = vlaneseq
    %v7807 = vshrl.u32 %v7806, 7
    %v7808 = vsub.s32 %v7805, %v7807
    %v7809 = vrot.slane %v7801, %v7808
    %v7811 = vunpack.c.l.s4 1966171168
    %v7812 = vunpack.c.0.s8 %v7811
    %v7813 = vlaneseq
    %v7814 = vshrl.u32 %v7813, 7
    %v7815 = vsub.s32 %v7812, %v7814
    %v7816 = vrot.slane %v7802, %v7815
    %v7817 = vcombine.low %v7809, %v7816
    %v7818 = vcombine.low %v7044, %v7558
    %v7819 = vcombine.low %v7088, %v7565
    %v7820 = vcombine.low %v7572, %v7579
    %v7821 = vcombine.low %v7586, %v7593
    %v7823 = vunpack.c.l.s4 1966171168
    %v7824 = vunpack.c.0.s8 %v7823
    %v7825 = vlaneseq
    %v7826 = vshrl.u32 %v7825, 7
    %v7827 = vsub.s32 %v7824, %v7826
    %v7828 = vrot.slane %v7818, %v7827
    %v7830 = vunpack.c.l.s4 1966171168
    %v7831 = vunpack.c.0.s8 %v7830
    %v7832 = vlaneseq
    %v7833 = vshrl.u32 %v7832, 7
    %v7834 = vsub.s32 %v7831, %v7833
    %v7835 = vrot.slane %v7819, %v7834
    %v7837 = vunpack.c.l.s4 1966171168
    %v7838 = vunpack.c.0.s8 %v7837
    %v7839 = vlaneseq
    %v7840 = vshrl.u32 %v7839, 7
    %v7841 = vsub.s32 %v7838, %v7840
    %v7842 = vrot.slane %v7820, %v7841
    %v7844 = vunpack.c.l.s4 1966171168
    %v7845 = vunpack.c.0.s8 %v7844
    %v7846 = vlaneseq
    %v7847 = vshrl.u32 %v7846, 7
    %v7848 = vsub.s32 %v7845, %v7847
    %v7849 = vrot.slane %v7821, %v7848
    %v7850 = vcombine.low %v7828, %v7835
    %v7851 = vcombine.low %v7842, %v7849
    %v7853 = vunpack.c.l.s4 1966171168
    %v7854 = vunpack.c.0.s8 %v7853
    %v7855 = vlaneseq
    %v7856 = vshrl.u32 %v7855, 7
    %v7857 = vsub.s32 %v7854, %v7856
    %v7858 = vrot.slane %v7850, %v7857
    %v7860 = vunpack.c.l.s4 1966171168
    %v7861 = vunpack.c.0.s8 %v7860
    %v7862 = vlaneseq
    %v7863 = vshrl.u32 %v7862, 7
    %v7864 = vsub.s32 %v7861, %v7863
    %v7865 = vrot.slane %v7851, %v7864
    %v7866 = vcombine.low %v7858, %v7865
    %v7868 = vunpack.c.l.s4 1966171168
    %v7869 = vunpack.c.0.s8 %v7868
    %v7870 = vlaneseq
    %v7871 = vshrl.u32 %v7870, 7
    %v7872 = vsub.s32 %v7869, %v7871
    %v7873 = vrot.slane %v7600, %v7872
    %v7875 = vunpack.c.l.s4 1966171168
    %v7876 = vunpack.c.0.s8 %v7875
    %v7877 = vlaneseq
    %v7878 = vshrl.u32 %v7877, 7
    %v7879 = vsub.s32 %v7876, %v7878
    %v7880 = vrot.slane %v7873, %v7879
    %v7881 = vcombine.low %v6571, %v6817
    %v7882 = vcombine.low %v6554, %v6905
    %v7883 = vcombine.low %v6568, %v6570
    %v7884 = vcombine.low %v6956, %v6572
    %v7886 = vunpack.c.l.s4 1966171168
    %v7887 = vunpack.c.0.s8 %v7886
    %v7888 = vlaneseq
    %v7889 = vshrl.u32 %v7888, 7
    %v7890 = vsub.s32 %v7887, %v7889
    %v7891 = vrot.slane %v7881, %v7890
    %v7893 = vunpack.c.l.s4 1966171168
    %v7894 = vunpack.c.0.s8 %v7893
    %v7895 = vlaneseq
    %v7896 = vshrl.u32 %v7895, 7
    %v7897 = vsub.s32 %v7894, %v7896
    %v7898 = vrot.slane %v7882, %v7897
    %v7900 = vunpack.c.l.s4 1966171168
    %v7901 = vunpack.c.0.s8 %v7900
    %v7902 = vlaneseq
    %v7903 = vshrl.u32 %v7902, 7
    %v7904 = vsub.s32 %v7901, %v7903
    %v7905 = vrot.slane %v7883, %v7904
    %v7907 = vunpack.c.l.s4 1966171168
    %v7908 = vunpack.c.0.s8 %v7907
    %v7909 = vlaneseq
    %v7910 = vshrl.u32 %v7909, 7
    %v7911 = vsub.s32 %v7908, %v7910
    %v7912 = vrot.slane %v7884, %v7911
    %v7913 = vcombine.low %v7891, %v7898
    %v7914 = vcombine.low %v7905, %v7912
    %v7916 = vunpack.c.l.s4 1966171168
    %v7917 = vunpack.c.0.s8 %v7916
    %v7918 = vlaneseq
    %v7919 = vshrl.u32 %v7918, 7
    %v7920 = vsub.s32 %v7917, %v7919
    %v7921 = vrot.slane %v7913, %v7920
    %v7923 = vunpack.c.l.s4 1966171168
    %v7924 = vunpack.c.0.s8 %v7923
    %v7925 = vlaneseq
    %v7926 = vshrl.u32 %v7925, 7
    %v7927 = vsub.s32 %v7924, %v7926
    %v7928 = vrot.slane %v7914, %v7927
    %v7929 = vcombine.low %v7921, %v7928
    %v7930 = vcombine.low %v7000, %v6596
    %v7931 = vcombine.low %v6610, %v7044
    %v7932 = vcombine.low %v6618, %v7088
    %v7933 = vcombine.low %v6620, %v6603
    %v7935 = vunpack.c.l.s4 1966171168
    %v7936 = vunpack.c.0.s8 %v7935
    %v7937 = vlaneseq
    %v7938 = vshrl.u32 %v7937, 7
    %v7939 = vsub.s32 %v7936, %v7938
    %v7940 = vrot.slane %v7930, %v7939
    %v7942 = vunpack.c.l.s4 1966171168
    %v7943 = vunpack.c.0.s8 %v7942
    %v7944 = vlaneseq
    %v7945 = vshrl.u32 %v7944, 7
    %v7946 = vsub.s32 %v7943, %v7945
    %v7947 = vrot.slane %v7931, %v7946
    %v7949 = vunpack.c.l.s4 1966171168
    %v7950 = vunpack.c.0.s8 %v7949
    %v7951 = vlaneseq
    %v7952 = vshrl.u32 %v7951, 7
    %v7953 = vsub.s32 %v7950, %v7952
    %v7954 = vrot.slane %v7932, %v7953
    %v7956 = vunpack.c.l.s4 1966171168
    %v7957 = vunpack.c.0.s8 %v7956
    %v7958 = vlaneseq
    %v7959 = vshrl.u32 %v7958, 7
    %v7960 = vsub.s32 %v7957, %v7959
    %v7961 = vrot.slane %v7933, %v7960
    %v7962 = vcombine.low %v7940, %v7947
    %v7963 = vcombine.low %v7954, %v7961
    %v7965 = vunpack.c.l.s4 1966171168
    %v7966 = vunpack.c.0.s8 %v7965
    %v7967 = vlaneseq
    %v7968 = vshrl.u32 %v7967, 7
    %v7969 = vsub.s32 %v7966, %v7968
    %v7970 = vrot.slane %v7962, %v7969
    %v7972 = vunpack.c.l.s4 1966171168
    %v7973 = vunpack.c.0.s8 %v7972
    %v7974 = vlaneseq
    %v7975 = vshrl.u32 %v7974, 7
    %v7976 = vsub.s32 %v7973, %v7975
    %v7977 = vrot.slane %v7963, %v7976
    %v7978 = vcombine.low %v7970, %v7977
    %v7979 = vcombine.low %v7579, %v7586
    %v7980 = vcombine.low %v7593, %v7600
    %v7981 = vcombine.low %v7607, %v7614
    %v7982 = vcombine.low %v7621, %v7628
    %v7984 = vunpack.c.l.s4 1966171168
    %v7985 = vunpack.c.0.s8 %v7984
    %v7986 = vlaneseq
    %v7987 = vshrl.u32 %v7986, 7
    %v7988 = vsub.s32 %v7985, %v7987
    %v7989 = vrot.slane %v7979, %v7988
    %v7991 = vunpack.c.l.s4 1966171168
    %v7992 = vunpack.c.0.s8 %v7991
    %v7993 = vlaneseq
    %v7994 = vshrl.u32 %v7993, 7
    %v7995 = vsub.s32 %v7992, %v7994
    %v7996 = vrot.slane %v7980, %v7995
    %v7998 = vunpack.c.l.s4 1966171168
    %v7999 = vunpack.c.0.s8 %v7998
    %v8000 = vlaneseq
    %v8001 = vshrl.u32 %v8000, 7
    %v8002 = vsub.s32 %v7999, %v8001
    %v8003 = vrot.slane %v7981, %v8002
    %v8005 = vunpack.c.l.s4 1966171168
    %v8006 = vunpack.c.0.s8 %v8005
    %v8007 = vlaneseq
    %v8008 = vshrl.u32 %v8007, 7
    %v8009 = vsub.s32 %v8006, %v8008
    %v8010 = vrot.slane %v7982, %v8009
    %v8011 = vcombine.low %v7989, %v7996
    %v8012 = vcombine.low %v8003, %v8010
    %v8014 = vunpack.c.l.s4 1966171168
    %v8015 = vunpack.c.0.s8 %v8014
    %v8016 = vlaneseq
    %v8017 = vshrl.u32 %v8016, 7
    %v8018 = vsub.s32 %v8015, %v8017
    %v8019 = vrot.slane %v8011, %v8018
    %v8021 = vunpack.c.l.s4 1966171168
    %v8022 = vunpack.c.0.s8 %v8021
    %v8023 = vlaneseq
    %v8024 = vshrl.u32 %v8023, 7
    %v8025 = vsub.s32 %v8022, %v8024
    %v8026 = vrot.slane %v8012, %v8025
    %v8027 = vcombine.low %v8019, %v8026
    %v8029 = vunpack.c.l.s4 1966171168
    %v8030 = vunpack.c.0.s8 %v8029
    %v8031 = vlaneseq
    %v8032 = vshrl.u32 %v8031, 7
    %v8033 = vsub.s32 %v8030, %v8032
    %v8034 = vrot.slane %v7635, %v8033
    %v8036 = vunpack.c.l.s4 1966171168
    %v8037 = vunpack.c.0.s8 %v8036
    %v8038 = vlaneseq
    %v8039 = vshrl.u32 %v8038, 7
    %v8040 = vsub.s32 %v8037, %v8039
    %v8041 = vrot.slane %v8034, %v8040
    %v8042 = vcombine.low %v6667, %v6824
    %v8043 = vcombine.low %v6669, %v6912
    %v8044 = vcombine.low %v6652, %v6666
    %v8045 = vcombine.low %v6831, %v6668
    %v8047 = vunpack.c.l.s4 1966171168
    %v8048 = vunpack.c.0.s8 %v8047
    %v8049 = vlaneseq
    %v8050 = vshrl.u32 %v8049, 7
    %v8051 = vsub.s32 %v8048, %v8050
    %v8052 = vrot.slane %v8042, %v8051
    %v8054 = vunpack.c.l.s4 1966171168
    %v8055 = vunpack.c.0.s8 %v8054
    %v8056 = vlaneseq
    %v8057 = vshrl.u32 %v8056, 7
    %v8058 = vsub.s32 %v8055, %v8057
    %v8059 = vrot.slane %v8043, %v8058
    %v8061 = vunpack.c.l.s4 1966171168
    %v8062 = vunpack.c.0.s8 %v8061
    %v8063 = vlaneseq
    %v8064 = vshrl.u32 %v8063, 7
    %v8065 = vsub.s32 %v8062, %v8064
    %v8066 = vrot.slane %v8044, %v8065
    %v8068 = vunpack.c.l.s4 1966171168
    %v8069 = vunpack.c.0.s8 %v8068
    %v8070 = vlaneseq
    %v8071 = vshrl.u32 %v8070, 7
    %v8072 = vsub.s32 %v8069, %v8071
    %v8073 = vrot.slane %v8045, %v8072
    %v8074 = vcombine.low %v8052, %v8059
    %v8075 = vcombine.low %v8066, %v8073
    %v8077 = vunpack.c.l.s4 1966171168
    %v8078 = vunpack.c.0.s8 %v8077
    %v8079 = vlaneseq
    %v8080 = vshrl.u32 %v8079, 7
    %v8081 = vsub.s32 %v8078, %v8080
    %v8082 = vrot.slane %v8074, %v8081
    %v8084 = vunpack.c.l.s4 1966171168
    %v8085 = vunpack.c.0.s8 %v8084
    %v8086 = vlaneseq
    %v8087 = vshrl.u32 %v8086, 7
    %v8088 = vsub.s32 %v8085, %v8087
    %v8089 = vrot.slane %v8075, %v8088
    %v8090 = vcombine.low %v8082, %v8089
    %v8091 = vcombine.low %v6919, %v6670
    %v8092 = vcombine.low %v6694, %v6963
    %v8093 = vcombine.low %v6708, %v7007
    %v8094 = vcombine.low %v6716, %v6718
    %v8096 = vunpack.c.l.s4 1966171168
    %v8097 = vunpack.c.0.s8 %v8096
    %v8098 = vlaneseq
    %v8099 = vshrl.u32 %v8098, 7
    %v8100 = vsub.s32 %v8097, %v8099
    %v8101 = vrot.slane %v8091, %v8100
    %v8103 = vunpack.c.l.s4 1966171168
    %v8104 = vunpack.c.0.s8 %v8103
    %v8105 = vlaneseq
    %v8106 = vshrl.u32 %v8105, 7
    %v8107 = vsub.s32 %v8104, %v8106
    %v8108 = vrot.slane %v8092, %v8107
    %v8110 = vunpack.c.l.s4 1966171168
    %v8111 = vunpack.c.0.s8 %v8110
    %v8112 = vlaneseq
    %v8113 = vshrl.u32 %v8112, 7
    %v8114 = vsub.s32 %v8111, %v8113
    %v8115 = vrot.slane %v8093, %v8114
    %v8117 = vunpack.c.l.s4 1966171168
    %v8118 = vunpack.c.0.s8 %v8117
    %v8119 = vlaneseq
    %v8120 = vshrl.u32 %v8119, 7
    %v8121 = vsub.s32 %v8118, %v8120
    %v8122 = vrot.slane %v8094, %v8121
    %v8123 = vcombine.low %v8101, %v8108
    %v8124 = vcombine.low %v8115, %v8122
    %v8126 = vunpack.c.l.s4 1966171168
    %v8127 = vunpack.c.0.s8 %v8126
    %v8128 = vlaneseq
    %v8129 = vshrl.u32 %v8128, 7
    %v8130 = vsub.s32 %v8127, %v8129
    %v8131 = vrot.slane %v8123, %v8130
    %v8133 = vunpack.c.l.s4 1966171168
    %v8134 = vunpack.c.0.s8 %v8133
    %v8135 = vlaneseq
    %v8136 = vshrl.u32 %v8135, 7
    %v8137 = vsub.s32 %v8134, %v8136
    %v8138 = vrot.slane %v8124, %v8137
    %v8139 = vcombine.low %v8131, %v8138
    %v8140 = vcombine.low %v7051, %v7642
    %v8141 = vcombine.low %v7095, %v7649
    %v8142 = vcombine.low %v7656, %v7663
    %v8143 = vcombine.low %v7670, %v7677
    %v8145 = vunpack.c.l.s4 1966171168
    %v8146 = vunpack.c.0.s8 %v8145
    %v8147 = vlaneseq
    %v8148 = vshrl.u32 %v8147, 7
    %v8149 = vsub.s32 %v8146, %v8148
    %v8150 = vrot.slane %v8140, %v8149
    %v8152 = vunpack.c.l.s4 1966171168
    %v8153 = vunpack.c.0.s8 %v8152
    %v8154 = vlaneseq
    %v8155 = vshrl.u32 %v8154, 7
    %v8156 = vsub.s32 %v8153, %v8155
    %v8157 = vrot.slane %v8141, %v8156
    %v8159 = vunpack.c.l.s4 1966171168
    %v8160 = vunpack.c.0.s8 %v8159
    %v8161 = vlaneseq
    %v8162 = vshrl.u32 %v8161, 7
    %v8163 = vsub.s32 %v8160, %v8162
    %v8164 = vrot.slane %v8142, %v8163
    %v8166 = vunpack.c.l.s4 1966171168
    %v8167 = vunpack.c.0.s8 %v8166
    %v8168 = vlaneseq
    %v8169 = vshrl.u32 %v8168, 7
    %v8170 = vsub.s32 %v8167, %v8169
    %v8171 = vrot.slane %v8143, %v8170
    %v8172 = vcombine.low %v8150, %v8157
    %v8173 = vcombine.low %v8164, %v8171
    %v8175 = vunpack.c.l.s4 1966171168
    %v8176 = vunpack.c.0.s8 %v8175
    %v8177 = vlaneseq
    %v8178 = vshrl.u32 %v8177, 7
    %v8179 = vsub.s32 %v8176, %v8178
    %v8180 = vrot.slane %v8172, %v8179
    %v8182 = vunpack.c.l.s4 1966171168
    %v8183 = vunpack.c.0.s8 %v8182
    %v8184 = vlaneseq
    %v8185 = vshrl.u32 %v8184, 7
    %v8186 = vsub.s32 %v8183, %v8185
    %v8187 = vrot.slane %v8173, %v8186
    %v8188 = vcombine.low %v8180, %v8187
    %v8190 = vunpack.c.l.s4 1966171168
    %v8191 = vunpack.c.0.s8 %v8190
    %v8192 = vlaneseq
    %v8193 = vshrl.u32 %v8192, 7
    %v8194 = vsub.s32 %v8191, %v8193
    %v8195 = vrot.slane %v7684, %v8194
    %v8197 = vunpack.c.l.s4 1966171168
    %v8198 = vunpack.c.0.s8 %v8197
    %v8199 = vlaneseq
    %v8200 = vshrl.u32 %v8199, 7
    %v8201 = vsub.s32 %v8198, %v8200
    %v8202 = vrot.slane %v8195, %v8201
    %v8203 = vcombine.low %v6666, %v6831
    %v8204 = vcombine.low %v6668, %v6919
    %v8205 = vcombine.low %v6670, %v6694
    %v8206 = vcombine.low %v6963, %v6708
    %v8208 = vunpack.c.l.s4 1966171168
    %v8209 = vunpack.c.0.s8 %v8208
    %v8210 = vlaneseq
    %v8211 = vshrl.u32 %v8210, 7
    %v8212 = vsub.s32 %v8209, %v8211
    %v8213 = vrot.slane %v8203, %v8212
    %v8215 = vunpack.c.l.s4 1966171168
    %v8216 = vunpack.c.0.s8 %v8215
    %v8217 = vlaneseq
    %v8218 = vshrl.u32 %v8217, 7
    %v8219 = vsub.s32 %v8216, %v8218
    %v8220 = vrot.slane %v8204, %v8219
    %v8222 = vunpack.c.l.s4 1966171168
    %v8223 = vunpack.c.0.s8 %v8222
    %v8224 = vlaneseq
    %v8225 = vshrl.u32 %v8224, 7
    %v8226 = vsub.s32 %v8223, %v8225
    %v8227 = vrot.slane %v8205, %v8226
    %v8229 = vunpack.c.l.s4 1966171168
    %v8230 = vunpack.c.0.s8 %v8229
    %v8231 = vlaneseq
    %v8232 = vshrl.u32 %v8231, 7
    %v8233 = vsub.s32 %v8230, %v8232
    %v8234 = vrot.slane %v8206, %v8233
    %v8235 = vcombine.low %v8213, %v8220
    %v8236 = vcombine.low %v8227, %v8234
    %v8238 = vunpack.c.l.s4 1966171168
    %v8239 = vunpack.c.0.s8 %v8238
    %v8240 = vlaneseq
    %v8241 = vshrl.u32 %v8240, 7
    %v8242 = vsub.s32 %v8239, %v8241
    %v8243 = vrot.slane %v8235, %v8242
    %v8245 = vunpack.c.l.s4 1966171168
    %v8246 = vunpack.c.0.s8 %v8245
    %v8247 = vlaneseq
    %v8248 = vshrl.u32 %v8247, 7
    %v8249 = vsub.s32 %v8246, %v8248
    %v8250 = vrot.slane %v8236, %v8249
    %v8251 = vcombine.low %v8243, %v8250
    %v8252 = vcombine.low %v7007, %v6716
    %v8253 = vcombine.low %v6718, %v7051
    %v8254 = vcombine.low %v6701, %v7095
    %v8255 = vcombine.low %v6715, %v6717
    %v8257 = vunpack.c.l.s4 1966171168
    %v8258 = vunpack.c.0.s8 %v8257
    %v8259 = vlaneseq
    %v8260 = vshrl.u32 %v8259, 7
    %v8261 = vsub.s32 %v8258, %v8260
    %v8262 = vrot.slane %v8252, %v8261
    %v8264 = vunpack.c.l.s4 1966171168
    %v8265 = vunpack.c.0.s8 %v8264
    %v8266 = vlaneseq
    %v8267 = vshrl.u32 %v8266, 7
    %v8268 = vsub.s32 %v8265, %v8267
    %v8269 = vrot.slane %v8253, %v8268
    %v8271 = vunpack.c.l.s4 1966171168
    %v8272 = vunpack.c.0.s8 %v8271
    %v8273 = vlaneseq
    %v8274 = vshrl.u32 %v8273, 7
    %v8275 = vsub.s32 %v8272, %v8274
    %v8276 = vrot.slane %v8254, %v8275
    %v8278 = vunpack.c.l.s4 1966171168
    %v8279 = vunpack.c.0.s8 %v8278
    %v8280 = vlaneseq
    %v8281 = vshrl.u32 %v8280, 7
    %v8282 = vsub.s32 %v8279, %v8281
    %v8283 = vrot.slane %v8255, %v8282
    %v8284 = vcombine.low %v8262, %v8269
    %v8285 = vcombine.low %v8276, %v8283
    %v8287 = vunpack.c.l.s4 1966171168
    %v8288 = vunpack.c.0.s8 %v8287
    %v8289 = vlaneseq
    %v8290 = vshrl.u32 %v8289, 7
    %v8291 = vsub.s32 %v8288, %v8290
    %v8292 = vrot.slane %v8284, %v8291
    %v8294 = vunpack.c.l.s4 1966171168
    %v8295 = vunpack.c.0.s8 %v8294
    %v8296 = vlaneseq
    %v8297 = vshrl.u32 %v8296, 7
    %v8298 = vsub.s32 %v8295, %v8297
    %v8299 = vrot.slane %v8285, %v8298
    %v8300 = vcombine.low %v8292, %v8299
    %v8301 = vcombine.low %v7663, %v7670
    %v8302 = vcombine.low %v7677, %v7684
    %v8303 = vcombine.low %v7691, %v7698
    %v8304 = vcombine.low %v7705, %v7712
    %v8306 = vunpack.c.l.s4 1966171168
    %v8307 = vunpack.c.0.s8 %v8306
    %v8308 = vlaneseq
    %v8309 = vshrl.u32 %v8308, 7
    %v8310 = vsub.s32 %v8307, %v8309
    %v8311 = vrot.slane %v8301, %v8310
    %v8313 = vunpack.c.l.s4 1966171168
    %v8314 = vunpack.c.0.s8 %v8313
    %v8315 = vlaneseq
    %v8316 = vshrl.u32 %v8315, 7
    %v8317 = vsub.s32 %v8314, %v8316
    %v8318 = vrot.slane %v8302, %v8317
    %v8320 = vunpack.c.l.s4 1966171168
    %v8321 = vunpack.c.0.s8 %v8320
    %v8322 = vlaneseq
    %v8323 = vshrl.u32 %v8322, 7
    %v8324 = vsub.s32 %v8321, %v8323
    %v8325 = vrot.slane %v8303, %v8324
    %v8327 = vunpack.c.l.s4 1966171168
    %v8328 = vunpack.c.0.s8 %v8327
    %v8329 = vlaneseq
    %v8330 = vshrl.u32 %v8329, 7
    %v8331 = vsub.s32 %v8328, %v8330
    %v8332 = vrot.slane %v8304, %v8331
    %v8333 = vcombine.low %v8311, %v8318
    %v8334 = vcombine.low %v8325, %v8332
    %v8336 = vunpack.c.l.s4 1966171168
    %v8337 = vunpack.c.0.s8 %v8336
    %v8338 = vlaneseq
    %v8339 = vshrl.u32 %v8338, 7
    %v8340 = vsub.s32 %v8337, %v8339
    %v8341 = vrot.slane %v8333, %v8340
    %v8343 = vunpack.c.l.s4 1966171168
    %v8344 = vunpack.c.0.s8 %v8343
    %v8345 = vlaneseq
    %v8346 = vshrl.u32 %v8345, 7
    %v8347 = vsub.s32 %v8344, %v8346
    %v8348 = vrot.slane %v8334, %v8347
    %v8349 = vcombine.low %v8341, %v8348
    %v8351 = vunpack.c.l.s4 1966171168
    %v8352 = vunpack.c.0.s8 %v8351
    %v8353 = vlaneseq
    %v8354 = vshrl.u32 %v8353, 7
    %v8355 = vsub.s32 %v8352, %v8354
    %v8356 = vrot.slane %v7719, %v8355
    %v8358 = vunpack.c.l.s4 1966171168
    %v8359 = vunpack.c.0.s8 %v8358
    %v8360 = vlaneseq
    %v8361 = vshrl.u32 %v8360, 7
    %v8362 = vsub.s32 %v8359, %v8361
    %v8363 = vrot.slane %v8356, %v8362
    %s8364 = smul.u32 4, 400
    %s8365 = smul.u32 %s8364, 1
    %s8366 = sshll.u32 %s8365, 4
    %8367 = dma.done [#allocation4], %s8366
    %v8368 = vld [vmem:[#allocation2] sm:$0xff]
    %v8369 = vld [vmem:[#allocation2 + $0x8] sm:$0xff]
    %v8370 = vld [vmem:[#allocation2 + $0x10] sm:$0xff]
    %v8371 = vld [vmem:[#allocation2 + $0x18] sm:$0xff]
    %v8372 = vld [vmem:[#allocation2 + $0x20] sm:$0xff]
    %v8373 = vld [vmem:[#allocation2 + $0x28] sm:$0xff]
    %v8374 = vld [vmem:[#allocation2 + $0x30] sm:$0xff]
    %v8375 = vld [vmem:[#allocation2 + $0x38] sm:$0xff]
    %v8376 = vld [vmem:[#allocation2 + $0x40] sm:$0xff]
    %v8377 = vld [vmem:[#allocation2 + $0x48] sm:$0xff]
    %v8378 = vld [vmem:[#allocation2 + $0x50] sm:$0xff]
    %v8379 = vld [vmem:[#allocation2 + $0x58] sm:$0xff]
    %v8380 = vld [vmem:[#allocation2 + $0x60] sm:$0xff]
    %v8381 = vld [vmem:[#allocation2 + $0x68] sm:$0xff]
    %v8382 = vld [vmem:[#allocation2 + $0x70] sm:$0xff]
    %v8383 = vld [vmem:[#allocation2 + $0x78] sm:$0xff]
    %v8384 = vld [vmem:[#allocation2 + $0x80] sm:$0xff]
    %v8385 = vld [vmem:[#allocation2 + $0x88] sm:$0xff]
    %v8386 = vld [vmem:[#allocation2 + $0x90] sm:$0xff]
    %v8387 = vld [vmem:[#allocation2 + $0x98] sm:$0xff]
    %v8388 = vld [vmem:[#allocation2 + $0xa0] sm:$0xff]
    %v8389 = vld [vmem:[#allocation2 + $0xa8] sm:$0xff]
    %v8390 = vld [vmem:[#allocation2 + $0xb0] sm:$0xff]
    %v8391 = vld [vmem:[#allocation2 + $0xb8] sm:$0xff]
    %v8392 = vld [vmem:[#allocation2 + $0xc0] sm:$0xff]
    %v8393 = vld [vmem:[#allocation2 + $0xc8] sm:$0xff]
    %v8394 = vld [vmem:[#allocation2 + $0xd0] sm:$0xff]
    %v8395 = vld [vmem:[#allocation2 + $0xd8] sm:$0xff]
    %v8396 = vld [vmem:[#allocation2 + $0xe0] sm:$0xff]
    %v8397 = vld [vmem:[#allocation2 + $0xe8] sm:$0xff]
    %v8398 = vld [vmem:[#allocation2 + $0xf0] sm:$0xff]
    %v8399 = vld [vmem:[#allocation2 + $0xf8] sm:$0xff]
    %v8400 = vld [vmem:[#allocation2 + $0x100] sm:$0xff]
    %v8401 = vld [vmem:[#allocation2 + $0x108] sm:$0xff]
    %v8402 = vld [vmem:[#allocation2 + $0x110] sm:$0xff]
    %v8403 = vld [vmem:[#allocation2 + $0x118] sm:$0xff]
    %v8404 = vld [vmem:[#allocation2 + $0x120] sm:$0xff]
    %v8405 = vld [vmem:[#allocation2 + $0x128] sm:$0xff]
    %v8406 = vld [vmem:[#allocation2 + $0x130] sm:$0xff]
    %v8407 = vld [vmem:[#allocation2 + $0x138] sm:$0xff]
    %v8408 = vld [vmem:[#allocation2 + $0x140] sm:$0xff]
    %v8409 = vld [vmem:[#allocation2 + $0x148] sm:$0xff]
    %v8410 = vld [vmem:[#allocation2 + $0x150] sm:$0xff]
    %v8411 = vld [vmem:[#allocation2 + $0x158] sm:$0xff]
    %v8412 = vld [vmem:[#allocation2 + $0x160] sm:$0xff]
    %v8413 = vld [vmem:[#allocation2 + $0x168] sm:$0xff]
    %v8414 = vld [vmem:[#allocation2 + $0x170] sm:$0xff]
    %v8415 = vld [vmem:[#allocation2 + $0x178] sm:$0xff]
    %v8416 = vld [vmem:[#allocation2 + $0x180] sm:$0xff]
    %v8417 = vld [vmem:[#allocation2 + $0x188] sm:$0xff]
    %v8418 = vld [vmem:[#allocation2 + $0x190] sm:$0xff]
    %v8419 = vld [vmem:[#allocation2 + $0x198] sm:$0xff]
    %v8420 = vld [vmem:[#allocation2 + $0x1a0] sm:$0xff]
    %v8421 = vld [vmem:[#allocation2 + $0x1a8] sm:$0xff]
    %v8422 = vld [vmem:[#allocation2 + $0x1b0] sm:$0xff]
    %v8423 = vld [vmem:[#allocation2 + $0x1b8] sm:$0xff]
    %v8424 = vld [vmem:[#allocation2 + $0x1c0] sm:$0xff]
    %v8425 = vld [vmem:[#allocation2 + $0x1c8] sm:$0xff]
    %v8426 = vld [vmem:[#allocation2 + $0x1d0] sm:$0xff]
    %v8427 = vld [vmem:[#allocation2 + $0x1d8] sm:$0xff]
    %v8428 = vld [vmem:[#allocation2 + $0x1e0] sm:$0xff]
    %v8429 = vld [vmem:[#allocation2 + $0x1e8] sm:$0xff]
    %v8430 = vld [vmem:[#allocation2 + $0x1f0] sm:$0xff]
    %v8431 = vld [vmem:[#allocation2 + $0x1f8] sm:$0xff]
    %v8432 = vld [vmem:[#allocation2 + $0x200] sm:$0xff]
    %v8433 = vld [vmem:[#allocation2 + $0x208] sm:$0xff]
    %v8434 = vld [vmem:[#allocation2 + $0x210] sm:$0xff]
    %v8435 = vld [vmem:[#allocation2 + $0x218] sm:$0xff]
    %v8436 = vld [vmem:[#allocation2 + $0x220] sm:$0xff]
    %v8437 = vld [vmem:[#allocation2 + $0x228] sm:$0xff]
    %v8438 = vld [vmem:[#allocation2 + $0x230] sm:$0xff]
    %v8439 = vld [vmem:[#allocation2 + $0x238] sm:$0xff]
    %v8440 = vld [vmem:[#allocation2 + $0x240] sm:$0xff]
    %v8441 = vld [vmem:[#allocation2 + $0x248] sm:$0xff]
    %v8442 = vld [vmem:[#allocation2 + $0x250] sm:$0xff]
    %v8443 = vld [vmem:[#allocation2 + $0x258] sm:$0xff]
    %v8444 = vld [vmem:[#allocation2 + $0x260] sm:$0xff]
    %v8445 = vld [vmem:[#allocation2 + $0x268] sm:$0xff]
    %v8446 = vld [vmem:[#allocation2 + $0x270] sm:$0xff]
    %v8447 = vld [vmem:[#allocation2 + $0x278] sm:$0xff]
    %v8448 = vld [vmem:[#allocation2 + $0x280] sm:$0xff]
    %v8449 = vld [vmem:[#allocation2 + $0x288] sm:$0xff]
    %v8450 = vld [vmem:[#allocation2 + $0x290] sm:$0xff]
    %v8451 = vld [vmem:[#allocation2 + $0x298] sm:$0xff]
    %v8452 = vld [vmem:[#allocation2 + $0x2a0] sm:$0xff]
    %v8453 = vld [vmem:[#allocation2 + $0x2a8] sm:$0xff]
    %v8454 = vld [vmem:[#allocation2 + $0x2b0] sm:$0xff]
    %v8455 = vld [vmem:[#allocation2 + $0x2b8] sm:$0xff]
    %v8456 = vld [vmem:[#allocation2 + $0x2c0] sm:$0xff]
    %v8457 = vld [vmem:[#allocation2 + $0x2c8] sm:$0xff]
    %v8458 = vld [vmem:[#allocation2 + $0x2d0] sm:$0xff]
    %v8459 = vld [vmem:[#allocation2 + $0x2d8] sm:$0xff]
    %v8460 = vld [vmem:[#allocation2 + $0x2e0] sm:$0xff]
    %v8461 = vld [vmem:[#allocation2 + $0x2e8] sm:$0xff]
    %v8462 = vld [vmem:[#allocation2 + $0x2f0] sm:$0xff]
    %v8463 = vld [vmem:[#allocation2 + $0x2f8] sm:$0xff]
    %v8464 = vld [vmem:[#allocation2 + $0x300] sm:$0xff]
    %v8465 = vld [vmem:[#allocation2 + $0x308] sm:$0xff]
    %v8466 = vld [vmem:[#allocation2 + $0x310] sm:$0xff]
    %v8467 = vld [vmem:[#allocation2 + $0x318] sm:$0xff]
    %v8468 = vld [vmem:[#allocation2 + $0x320] sm:$0xff]
    %v8469 = vld [vmem:[#allocation2 + $0x328] sm:$0xff]
    %v8470 = vld [vmem:[#allocation2 + $0x330] sm:$0xff]
    %v8471 = vld [vmem:[#allocation2 + $0x338] sm:$0xff]
    %v8472 = vld [vmem:[#allocation2 + $0x340] sm:$0xff]
    %v8473 = vld [vmem:[#allocation2 + $0x348] sm:$0xff]
    %v8474 = vld [vmem:[#allocation2 + $0x350] sm:$0xff]
    %v8475 = vld [vmem:[#allocation2 + $0x358] sm:$0xff]
    %v8476 = vld [vmem:[#allocation2 + $0x360] sm:$0xff]
    %v8477 = vld [vmem:[#allocation2 + $0x368] sm:$0xff]
    %v8478 = vld [vmem:[#allocation2 + $0x370] sm:$0xff]
    %v8479 = vld [vmem:[#allocation2 + $0x378] sm:$0xff]
    %v8480 = vld [vmem:[#allocation2 + $0x380] sm:$0xff]
    %v8481 = vld [vmem:[#allocation2 + $0x388] sm:$0xff]
    %v8482 = vld [vmem:[#allocation2 + $0x390] sm:$0xff]
    %v8483 = vld [vmem:[#allocation2 + $0x398] sm:$0xff]
    %v8484 = vld [vmem:[#allocation2 + $0x3a0] sm:$0xff]
    %v8485 = vld [vmem:[#allocation2 + $0x3a8] sm:$0xff]
    %v8486 = vld [vmem:[#allocation2 + $0x3b0] sm:$0xff]
    %v8487 = vld [vmem:[#allocation2 + $0x3b8] sm:$0xff]
    %v8488 = vld [vmem:[#allocation2 + $0x3c0] sm:$0xff]
    %v8489 = vld [vmem:[#allocation2 + $0x3c8] sm:$0xff]
    %v8490 = vld [vmem:[#allocation2 + $0x3d0] sm:$0xff]
    %v8491 = vld [vmem:[#allocation2 + $0x3d8] sm:$0xff]
    %v8492 = vld [vmem:[#allocation2 + $0x3e0] sm:$0xff]
    %v8493 = vld [vmem:[#allocation2 + $0x3e8] sm:$0xff]
    %v8494 = vld [vmem:[#allocation2 + $0x3f0] sm:$0xff]
    %v8495 = vld [vmem:[#allocation2 + $0x3f8] sm:$0xff]
    %v8496 = vld [vmem:[#allocation2 + $0x400] sm:$0xff]
    %v8497 = vld [vmem:[#allocation2 + $0x408] sm:$0xff]
    %v8498 = vld [vmem:[#allocation2 + $0x410] sm:$0xff]
    %v8499 = vld [vmem:[#allocation2 + $0x418] sm:$0xff]
    %v8500 = vld [vmem:[#allocation2 + $0x420] sm:$0xff]
    %v8501 = vld [vmem:[#allocation2 + $0x428] sm:$0xff]
    %v8502 = vld [vmem:[#allocation2 + $0x430] sm:$0xff]
    %v8503 = vld [vmem:[#allocation2 + $0x438] sm:$0xff]
    %v8504 = vld [vmem:[#allocation2 + $0x440] sm:$0xff]
    %v8505 = vld [vmem:[#allocation2 + $0x448] sm:$0xff]
    %v8506 = vld [vmem:[#allocation2 + $0x450] sm:$0xff]
    %v8507 = vld [vmem:[#allocation2 + $0x458] sm:$0xff]
    %v8508 = vld [vmem:[#allocation2 + $0x460] sm:$0xff]
    %v8509 = vld [vmem:[#allocation2 + $0x468] sm:$0xff]
    %v8510 = vld [vmem:[#allocation2 + $0x470] sm:$0xff]
    %v8511 = vld [vmem:[#allocation2 + $0x478] sm:$0xff]
    %v8512 = vld [vmem:[#allocation2 + $0x480] sm:$0xff]
    %v8513 = vld [vmem:[#allocation2 + $0x488] sm:$0xff]
    %v8514 = vld [vmem:[#allocation2 + $0x490] sm:$0xff]
    %v8515 = vld [vmem:[#allocation2 + $0x498] sm:$0xff]
    %v8516 = vld [vmem:[#allocation2 + $0x4a0] sm:$0xff]
    %v8517 = vld [vmem:[#allocation2 + $0x4a8] sm:$0xff]
    %v8518 = vld [vmem:[#allocation2 + $0x4b0] sm:$0xff]
    %v8519 = vld [vmem:[#allocation2 + $0x4b8] sm:$0xff]
    %v8520 = vld [vmem:[#allocation2 + $0x4c0] sm:$0xff]
    %v8521 = vld [vmem:[#allocation2 + $0x4c8] sm:$0xff]
    %v8522 = vld [vmem:[#allocation2 + $0x4d0] sm:$0xff]
    %v8523 = vld [vmem:[#allocation2 + $0x4d8] sm:$0xff]
    %v8524 = vld [vmem:[#allocation2 + $0x4e0] sm:$0xff]
    %v8525 = vld [vmem:[#allocation2 + $0x4e8] sm:$0xff]
    %v8526 = vld [vmem:[#allocation2 + $0x4f0] sm:$0xff]
    %v8527 = vld [vmem:[#allocation2 + $0x4f8] sm:$0xff]
    %v8528 = vld [vmem:[#allocation2 + $0x500] sm:$0xff]
    %v8529 = vld [vmem:[#allocation2 + $0x508] sm:$0xff]
    %v8530 = vld [vmem:[#allocation2 + $0x510] sm:$0xff]
    %v8531 = vld [vmem:[#allocation2 + $0x518] sm:$0xff]
    %v8532 = vld [vmem:[#allocation2 + $0x520] sm:$0xff]
    %v8533 = vld [vmem:[#allocation2 + $0x528] sm:$0xff]
    %v8534 = vld [vmem:[#allocation2 + $0x530] sm:$0xff]
    %v8535 = vld [vmem:[#allocation2 + $0x538] sm:$0xff]
    %v8536 = vld [vmem:[#allocation2 + $0x540] sm:$0xff]
    %v8537 = vld [vmem:[#allocation2 + $0x548] sm:$0xff]
    %v8538 = vld [vmem:[#allocation2 + $0x550] sm:$0xff]
    %v8539 = vld [vmem:[#allocation2 + $0x558] sm:$0xff]
    %v8540 = vld [vmem:[#allocation2 + $0x560] sm:$0xff]
    %v8541 = vld [vmem:[#allocation2 + $0x568] sm:$0xff]
    %v8542 = vld [vmem:[#allocation2 + $0x570] sm:$0xff]
    %v8543 = vld [vmem:[#allocation2 + $0x578] sm:$0xff]
    %v8544 = vld [vmem:[#allocation2 + $0x580] sm:$0xff]
    %v8545 = vld [vmem:[#allocation2 + $0x588] sm:$0xff]
    %v8546 = vld [vmem:[#allocation2 + $0x590] sm:$0xff]
    %v8547 = vld [vmem:[#allocation2 + $0x598] sm:$0xff]
    %v8548 = vld [vmem:[#allocation2 + $0x5a0] sm:$0xff]
    %v8549 = vld [vmem:[#allocation2 + $0x5a8] sm:$0xff]
    %v8550 = vld [vmem:[#allocation2 + $0x5b0] sm:$0xff]
    %v8551 = vld [vmem:[#allocation2 + $0x5b8] sm:$0xff]
    %v8552 = vld [vmem:[#allocation2 + $0x5c0] sm:$0xff]
    %v8553 = vld [vmem:[#allocation2 + $0x5c8] sm:$0xff]
    %v8554 = vld [vmem:[#allocation2 + $0x5d0] sm:$0xff]
    %v8555 = vld [vmem:[#allocation2 + $0x5d8] sm:$0xff]
    %v8556 = vld [vmem:[#allocation2 + $0x5e0] sm:$0xff]
    %v8557 = vld [vmem:[#allocation2 + $0x5e8] sm:$0xff]
    %v8558 = vld [vmem:[#allocation2 + $0x5f0] sm:$0xff]
    %v8559 = vld [vmem:[#allocation2 + $0x5f8] sm:$0xff]
    %v8560 = vld [vmem:[#allocation2 + $0x600] sm:$0xff]
    %v8561 = vld [vmem:[#allocation2 + $0x608] sm:$0xff]
    %v8562 = vld [vmem:[#allocation2 + $0x610] sm:$0xff]
    %v8563 = vld [vmem:[#allocation2 + $0x618] sm:$0xff]
    %v8564 = vld [vmem:[#allocation2 + $0x620] sm:$0xff]
    %v8565 = vld [vmem:[#allocation2 + $0x628] sm:$0xff]
    %v8566 = vld [vmem:[#allocation2 + $0x630] sm:$0xff]
    %v8567 = vld [vmem:[#allocation2 + $0x638] sm:$0xff]
    %v8568 = vld [vmem:[%s6] sm:$0x1]
    %v8570 = vlaneseq
    %v8571 = vshrl.u32 %v8570, 7
    %v8572 = vsub.s32 0, %v8571
    %v8573 = vrot.slane %v8568, %v8572
    %v8575 = vcombine.low %v7768, %v7929
    %v8576 = vcombine.high %v7768, %v7929
    %v8577 = vcombine.low %v8090, %v8251
    %v8578 = vcombine.high %v8090, %v8251
    %v8580 = vunpack.c.l.s4 1966171168
    %v8581 = vunpack.c.0.s8 %v8580
    %v8582 = vlaneseq
    %v8583 = vshrl.u32 %v8582, 7
    %v8584 = vsub.s32 %v8581, %v8583
    %v8585 = vrot.slane %v8575, %v8584
    %v8587 = vunpack.c.l.s4 1966171168
    %v8588 = vunpack.c.0.s8 %v8587
    %v8589 = vlaneseq
    %v8590 = vshrl.u32 %v8589, 7
    %v8591 = vsub.s32 %v8588, %v8590
    %v8592 = vrot.slane %v8576, %v8591
    %v8594 = vunpack.c.l.s4 1966171168
    %v8595 = vunpack.c.0.s8 %v8594
    %v8596 = vlaneseq
    %v8597 = vshrl.u32 %v8596, 7
    %v8598 = vsub.s32 %v8595, %v8597
    %v8599 = vrot.slane %v8577, %v8598
    %v8601 = vunpack.c.l.s4 1966171168
    %v8602 = vunpack.c.0.s8 %v8601
    %v8603 = vlaneseq
    %v8604 = vshrl.u32 %v8603, 7
    %v8605 = vsub.s32 %v8602, %v8604
    %v8606 = vrot.slane %v8578, %v8605
    %v8607 = vcombine.low %v8585, %v8599
    %v8608 = vcombine.high %v8585, %v8599
    %v8609 = vcombine.low %v8592, %v8606
    %v8610 = vcombine.high %v8592, %v8606
    %v8612 = vunpack.c.l.s4 1966171168
    %v8613 = vunpack.c.0.s8 %v8612
    %v8614 = vlaneseq
    %v8615 = vshrl.u32 %v8614, 7
    %v8616 = vsub.s32 %v8613, %v8615
    %v8617 = vrot.slane %v8607, %v8616
    %v8619 = vunpack.c.l.s4 1966171168
    %v8620 = vunpack.c.0.s8 %v8619
    %v8621 = vlaneseq
    %v8622 = vshrl.u32 %v8621, 7
    %v8623 = vsub.s32 %v8620, %v8622
    %v8624 = vrot.slane %v8609, %v8623
    %v8626 = vunpack.c.l.s4 1966171168
    %v8627 = vunpack.c.0.s8 %v8626
    %v8628 = vlaneseq
    %v8629 = vshrl.u32 %v8628, 7
    %v8630 = vsub.s32 %v8627, %v8629
    %v8631 = vrot.slane %v8608, %v8630
    %v8633 = vunpack.c.l.s4 1966171168
    %v8634 = vunpack.c.0.s8 %v8633
    %v8635 = vlaneseq
    %v8636 = vshrl.u32 %v8635, 7
    %v8637 = vsub.s32 %v8634, %v8636
    %v8638 = vrot.slane %v8610, %v8637
    %v8639 = vcombine.high %v8617, %v8617
    %v8640 = vcombine.high %v8624, %v8624
    %v8641 = vcombine.high %v8631, %v8631
    %v8642 = vcombine.high %v8638, %v8638
    %v8643 = vcombine.low %v7817, %v7978
    %v8644 = vcombine.high %v7817, %v7978
    %v8645 = vcombine.low %v8139, %v8300
    %v8646 = vcombine.high %v8139, %v8300
    %v8648 = vunpack.c.l.s4 1966171168
    %v8649 = vunpack.c.0.s8 %v8648
    %v8650 = vlaneseq
    %v8651 = vshrl.u32 %v8650, 7
    %v8652 = vsub.s32 %v8649, %v8651
    %v8653 = vrot.slane %v8643, %v8652
    %v8655 = vunpack.c.l.s4 1966171168
    %v8656 = vunpack.c.0.s8 %v8655
    %v8657 = vlaneseq
    %v8658 = vshrl.u32 %v8657, 7
    %v8659 = vsub.s32 %v8656, %v8658
    %v8660 = vrot.slane %v8644, %v8659
    %v8662 = vunpack.c.l.s4 1966171168
    %v8663 = vunpack.c.0.s8 %v8662
    %v8664 = vlaneseq
    %v8665 = vshrl.u32 %v8664, 7
    %v8666 = vsub.s32 %v8663, %v8665
    %v8667 = vrot.slane %v8645, %v8666
    %v8669 = vunpack.c.l.s4 1966171168
    %v8670 = vunpack.c.0.s8 %v8669
    %v8671 = vlaneseq
    %v8672 = vshrl.u32 %v8671, 7
    %v8673 = vsub.s32 %v8670, %v8672
    %v8674 = vrot.slane %v8646, %v8673
    %v8675 = vcombine.low %v8653, %v8667
    %v8676 = vcombine.high %v8653, %v8667
    %v8677 = vcombine.low %v8660, %v8674
    %v8678 = vcombine.high %v8660, %v8674
    %v8680 = vunpack.c.l.s4 1966171168
    %v8681 = vunpack.c.0.s8 %v8680
    %v8682 = vlaneseq
    %v8683 = vshrl.u32 %v8682, 7
    %v8684 = vsub.s32 %v8681, %v8683
    %v8685 = vrot.slane %v8675, %v8684
    %v8687 = vunpack.c.l.s4 1966171168
    %v8688 = vunpack.c.0.s8 %v8687
    %v8689 = vlaneseq
    %v8690 = vshrl.u32 %v8689, 7
    %v8691 = vsub.s32 %v8688, %v8690
    %v8692 = vrot.slane %v8677, %v8691
    %v8694 = vunpack.c.l.s4 1966171168
    %v8695 = vunpack.c.0.s8 %v8694
    %v8696 = vlaneseq
    %v8697 = vshrl.u32 %v8696, 7
    %v8698 = vsub.s32 %v8695, %v8697
    %v8699 = vrot.slane %v8676, %v8698
    %v8701 = vunpack.c.l.s4 1966171168
    %v8702 = vunpack.c.0.s8 %v8701
    %v8703 = vlaneseq
    %v8704 = vshrl.u32 %v8703, 7
    %v8705 = vsub.s32 %v8702, %v8704
    %v8706 = vrot.slane %v8678, %v8705
    %v8707 = vcombine.high %v8685, %v8685
    %v8708 = vcombine.high %v8692, %v8692
    %v8709 = vcombine.high %v8699, %v8699
    %v8710 = vcombine.high %v8706, %v8706
    %v8711 = vcombine.low %v7866, %v8027
    %v8712 = vcombine.high %v7866, %v8027
    %v8713 = vcombine.low %v8188, %v8349
    %v8714 = vcombine.high %v8188, %v8349
    %v8716 = vunpack.c.l.s4 1966171168
    %v8717 = vunpack.c.0.s8 %v8716
    %v8718 = vlaneseq
    %v8719 = vshrl.u32 %v8718, 7
    %v8720 = vsub.s32 %v8717, %v8719
    %v8721 = vrot.slane %v8711, %v8720
    %v8723 = vunpack.c.l.s4 1966171168
    %v8724 = vunpack.c.0.s8 %v8723
    %v8725 = vlaneseq
    %v8726 = vshrl.u32 %v8725, 7
    %v8727 = vsub.s32 %v8724, %v8726
    %v8728 = vrot.slane %v8712, %v8727
    %v8730 = vunpack.c.l.s4 1966171168
    %v8731 = vunpack.c.0.s8 %v8730
    %v8732 = vlaneseq
    %v8733 = vshrl.u32 %v8732, 7
    %v8734 = vsub.s32 %v8731, %v8733
    %v8735 = vrot.slane %v8713, %v8734
    %v8737 = vunpack.c.l.s4 1966171168
    %v8738 = vunpack.c.0.s8 %v8737
    %v8739 = vlaneseq
    %v8740 = vshrl.u32 %v8739, 7
    %v8741 = vsub.s32 %v8738, %v8740
    %v8742 = vrot.slane %v8714, %v8741
    %v8743 = vcombine.low %v8721, %v8735
    %v8744 = vcombine.high %v8721, %v8735
    %v8745 = vcombine.low %v8728, %v8742
    %v8746 = vcombine.high %v8728, %v8742
    %v8748 = vunpack.c.l.s4 1966171168
    %v8749 = vunpack.c.0.s8 %v8748
    %v8750 = vlaneseq
    %v8751 = vshrl.u32 %v8750, 7
    %v8752 = vsub.s32 %v8749, %v8751
    %v8753 = vrot.slane %v8743, %v8752
    %v8755 = vunpack.c.l.s4 1966171168
    %v8756 = vunpack.c.0.s8 %v8755
    %v8757 = vlaneseq
    %v8758 = vshrl.u32 %v8757, 7
    %v8759 = vsub.s32 %v8756, %v8758
    %v8760 = vrot.slane %v8745, %v8759
    %v8762 = vunpack.c.l.s4 1966171168
    %v8763 = vunpack.c.0.s8 %v8762
    %v8764 = vlaneseq
    %v8765 = vshrl.u32 %v8764, 7
    %v8766 = vsub.s32 %v8763, %v8765
    %v8767 = vrot.slane %v8744, %v8766
    %v8769 = vunpack.c.l.s4 1966171168
    %v8770 = vunpack.c.0.s8 %v8769
    %v8771 = vlaneseq
    %v8772 = vshrl.u32 %v8771, 7
    %v8773 = vsub.s32 %v8770, %v8772
    %v8774 = vrot.slane %v8746, %v8773
    %v8775 = vcombine.high %v8753, %v8753
    %v8776 = vcombine.high %v8760, %v8760
    %v8777 = vcombine.high %v8767, %v8767
    %v8778 = vcombine.high %v8774, %v8774
    %v8779 = vcombine.low %v7880, %v8041
    %v8780 = vcombine.low %v8202, %v8363
    %v8782 = vunpack.c.l.s4 1966171168
    %v8783 = vunpack.c.0.s8 %v8782
    %v8784 = vlaneseq
    %v8785 = vshrl.u32 %v8784, 7
    %v8786 = vsub.s32 %v8783, %v8785
    %v8787 = vrot.slane %v8779, %v8786
    %v8789 = vunpack.c.l.s4 1966171168
    %v8790 = vunpack.c.0.s8 %v8789
    %v8791 = vlaneseq
    %v8792 = vshrl.u32 %v8791, 7
    %v8793 = vsub.s32 %v8790, %v8792
    %v8794 = vrot.slane %v8780, %v8793
    %v8795 = vcombine.low %v8787, %v8794
    %v8797 = vunpack.c.l.s4 1966171168
    %v8798 = vunpack.c.0.s8 %v8797
    %v8799 = vlaneseq
    %v8800 = vshrl.u32 %v8799, 7
    %v8801 = vsub.s32 %v8798, %v8800
    %v8802 = vrot.slane %v8795, %v8801
    %8828 = vmatprep.subr.bf16.mxu0 0
    %8829 = vmatpush1.bf16.msra.mxu0 %v8368
    %8830 = vmatprep.subr.bf16.mxu0 0
    %8831 = vmatpush1.bf16.msra.mxu0 %v8369
    %8832 = vmatprep.subr.bf16.mxu0 0
    %8833 = vmatpush1.bf16.msra.mxu0 %v8370
    %8834 = vmatprep.subr.bf16.mxu0 0
    %8835 = vmatpush1.bf16.msra.mxu0 %v8371
    %8836 = vmatprep.subr.bf16.mxu0 0
    %8837 = vmatpush1.bf16.msra.mxu0 %v8372
    %8838 = vmatprep.subr.bf16.mxu0 0
    %8839 = vmatpush1.bf16.msra.mxu0 %v8373
    %8840 = vmatprep.subr.bf16.mxu0 0
    %8841 = vmatpush1.bf16.msra.mxu0 %v8374
    %8842 = vmatprep.subr.bf16.mxu0 0
    %8843 = vmatpush1.bf16.msra.mxu0 %v8375
    %8844 = vmatprep.subr.bf16.mxu0 0
    %8845 = vmatpush1.bf16.msra.mxu0 %v8376
    %8846 = vmatprep.subr.bf16.mxu0 0
    %8847 = vmatpush1.bf16.msra.mxu0 %v8377
    %8848 = vmatprep.subr.bf16.mxu0 0
    %8849 = vmatpush1.bf16.msra.mxu0 %v8378
    %8850 = vmatprep.subr.bf16.mxu0 0
    %8851 = vmatpush1.bf16.msra.mxu0 %v8379
    %8852 = vmatprep.subr.bf16.mxu0 0
    %8853 = vmatpush1.bf16.msra.mxu0 %v8380
    %8854 = vmatprep.subr.bf16.mxu0 0
    %8855 = vmatpush1.bf16.msra.mxu0 %v8381
    %8856 = vmatprep.subr.bf16.mxu0 0
    %8857 = vmatpush1.bf16.msra.mxu0 %v8382
    %8858 = vmatprep.subr.bf16.mxu0 0
    %8859 = vmatpush1.bf16.msra.mxu0 %v8383
    %8860 = vmatprep.mubr.bf16.mxu0 %v8631
    %8861 = vmatmul.mubr.bf16.gmra.mrb[0].mxu0 %v8617
    %v8862 = vpop.f32.mrb[0].mxu0
    %v8863 = vadd.f32 %v8573, %v8862
    %v8864 = vpop.f32.mrb[0].mxu0
    %v8865 = vpop.f32.mrb[0].mxu0
    %v8866 = vpop.f32.mrb[0].mxu0
    %8867 = vdwg.mxu0
    %8868 = vmatprep.subr.bf16.mxu0 0
    %8869 = vmatpush1.bf16.msra.mxu0 %v8384
    %8870 = vmatprep.subr.bf16.mxu0 0
    %8871 = vmatpush1.bf16.msra.mxu0 %v8385
    %8872 = vmatprep.subr.bf16.mxu0 0
    %8873 = vmatpush1.bf16.msra.mxu0 %v8386
    %8874 = vmatprep.subr.bf16.mxu0 0
    %8875 = vmatpush1.bf16.msra.mxu0 %v8387
    %8876 = vmatprep.subr.bf16.mxu0 0
    %8877 = vmatpush1.bf16.msra.mxu0 %v8388
    %8878 = vmatprep.subr.bf16.mxu0 0
    %8879 = vmatpush1.bf16.msra.mxu0 %v8389
    %8880 = vmatprep.subr.bf16.mxu0 0
    %8881 = vmatpush1.bf16.msra.mxu0 %v8390
    %8882 = vmatprep.subr.bf16.mxu0 0
    %8883 = vmatpush1.bf16.msra.mxu0 %v8391
    %8884 = vmatprep.subr.bf16.mxu0 0
    %8885 = vmatpush1.bf16.msra.mxu0 %v8392
    %8886 = vmatprep.subr.bf16.mxu0 0
    %8887 = vmatpush1.bf16.msra.mxu0 %v8393
    %8888 = vmatprep.subr.bf16.mxu0 0
    %8889 = vmatpush1.bf16.msra.mxu0 %v8394
    %8890 = vmatprep.subr.bf16.mxu0 0
    %8891 = vmatpush1.bf16.msra.mxu0 %v8395
    %8892 = vmatprep.subr.bf16.mxu0 0
    %8893 = vmatpush1.bf16.msra.mxu0 %v8396
    %8894 = vmatprep.subr.bf16.mxu0 0
    %8895 = vmatpush1.bf16.msra.mxu0 %v8397
    %8896 = vmatprep.subr.bf16.mxu0 0
    %8897 = vmatpush1.bf16.msra.mxu0 %v8398
    %8898 = vmatprep.subr.bf16.mxu0 0
    %8899 = vmatpush1.bf16.msra.mxu0 %v8399
    %8900 = vmatprep.mubr.bf16.mxu0 %v8641
    %8901 = vmatmul.mubr.bf16.gmra.mrb[0].mxu0 %v8639
    %v8902 = vpop.f32.mrb[0].mxu0
    %v8903 = vadd.f32 %v8863, %v8902
    %v8904 = vpop.f32.mrb[0].mxu0
    %v8905 = vpop.f32.mrb[0].mxu0
    %v8906 = vpop.f32.mrb[0].mxu0
    %8907 = vdwg.mxu0
    %8908 = vmatprep.subr.bf16.mxu0 0
    %8909 = vmatpush1.bf16.msra.mxu0 %v8400
    %8910 = vmatprep.subr.bf16.mxu0 0
    %8911 = vmatpush1.bf16.msra.mxu0 %v8401
    %8912 = vmatprep.subr.bf16.mxu0 0
    %8913 = vmatpush1.bf16.msra.mxu0 %v8402
    %8914 = vmatprep.subr.bf16.mxu0 0
    %8915 = vmatpush1.bf16.msra.mxu0 %v8403
    %8916 = vmatprep.subr.bf16.mxu0 0
    %8917 = vmatpush1.bf16.msra.mxu0 %v8404
    %8918 = vmatprep.subr.bf16.mxu0 0
    %8919 = vmatpush1.bf16.msra.mxu0 %v8405
    %8920 = vmatprep.subr.bf16.mxu0 0
    %8921 = vmatpush1.bf16.msra.mxu0 %v8406
    %8922 = vmatprep.subr.bf16.mxu0 0
    %8923 = vmatpush1.bf16.msra.mxu0 %v8407
    %8924 = vmatprep.subr.bf16.mxu0 0
    %8925 = vmatpush1.bf16.msra.mxu0 %v8408
    %8926 = vmatprep.subr.bf16.mxu0 0
    %8927 = vmatpush1.bf16.msra.mxu0 %v8409
    %8928 = vmatprep.subr.bf16.mxu0 0
    %8929 = vmatpush1.bf16.msra.mxu0 %v8410
    %8930 = vmatprep.subr.bf16.mxu0 0
    %8931 = vmatpush1.bf16.msra.mxu0 %v8411
    %8932 = vmatprep.subr.bf16.mxu0 0
    %8933 = vmatpush1.bf16.msra.mxu0 %v8412
    %8934 = vmatprep.subr.bf16.mxu0 0
    %8935 = vmatpush1.bf16.msra.mxu0 %v8413
    %8936 = vmatprep.subr.bf16.mxu0 0
    %8937 = vmatpush1.bf16.msra.mxu0 %v8414
    %8938 = vmatprep.subr.bf16.mxu0 0
    %8939 = vmatpush1.bf16.msra.mxu0 %v8415
    %8940 = vmatprep.mubr.bf16.mxu0 %v8638
    %8941 = vmatmul.mubr.bf16.gmra.mrb[0].mxu0 %v8624
    %v8942 = vpop.f32.mrb[0].mxu0
    %v8943 = vadd.f32 %v8903, %v8942
    %v8944 = vpop.f32.mrb[0].mxu0
    %v8945 = vpop.f32.mrb[0].mxu0
    %v8946 = vpop.f32.mrb[0].mxu0
    %8947 = vdwg.mxu0
    %8948 = vmatprep.subr.bf16.mxu0 0
    %8949 = vmatpush1.bf16.msra.mxu0 %v8416
    %8950 = vmatprep.subr.bf16.mxu0 0
    %8951 = vmatpush1.bf16.msra.mxu0 %v8417
    %8952 = vmatprep.subr.bf16.mxu0 0
    %8953 = vmatpush1.bf16.msra.mxu0 %v8418
    %8954 = vmatprep.subr.bf16.mxu0 0
    %8955 = vmatpush1.bf16.msra.mxu0 %v8419
    %8956 = vmatprep.subr.bf16.mxu0 0
    %8957 = vmatpush1.bf16.msra.mxu0 %v8420
    %8958 = vmatprep.subr.bf16.mxu0 0
    %8959 = vmatpush1.bf16.msra.mxu0 %v8421
    %8960 = vmatprep.subr.bf16.mxu0 0
    %8961 = vmatpush1.bf16.msra.mxu0 %v8422
    %8962 = vmatprep.subr.bf16.mxu0 0
    %8963 = vmatpush1.bf16.msra.mxu0 %v8423
    %8964 = vmatprep.subr.bf16.mxu0 0
    %8965 = vmatpush1.bf16.msra.mxu0 %v8424
    %8966 = vmatprep.subr.bf16.mxu0 0
    %8967 = vmatpush1.bf16.msra.mxu0 %v8425
    %8968 = vmatprep.subr.bf16.mxu0 0
    %8969 = vmatpush1.bf16.msra.mxu0 %v8426
    %8970 = vmatprep.subr.bf16.mxu0 0
    %8971 = vmatpush1.bf16.msra.mxu0 %v8427
    %8972 = vmatprep.subr.bf16.mxu0 0
    %8973 = vmatpush1.bf16.msra.mxu0 %v8428
    %8974 = vmatprep.subr.bf16.mxu0 0
    %8975 = vmatpush1.bf16.msra.mxu0 %v8429
    %8976 = vmatprep.subr.bf16.mxu0 0
    %8977 = vmatpush1.bf16.msra.mxu0 %v8430
    %8978 = vmatprep.subr.bf16.mxu0 0
    %8979 = vmatpush1.bf16.msra.mxu0 %v8431
    %8980 = vmatprep.mubr.bf16.mxu0 %v8642
    %8981 = vmatmul.mubr.bf16.gmra.mrb[0].mxu0 %v8640
    %v8982 = vpop.f32.mrb[0].mxu0
    %v8983 = vadd.f32 %v8943, %v8982
    %v8984 = vpop.f32.mrb[0].mxu0
    %v8985 = vpop.f32.mrb[0].mxu0
    %v8986 = vpop.f32.mrb[0].mxu0
    %8987 = vdwg.mxu0
    %8988 = vmatprep.subr.bf16.mxu0 0
    %8989 = vmatpush1.bf16.msra.mxu0 %v8432
    %8990 = vmatprep.subr.bf16.mxu0 0
    %8991 = vmatpush1.bf16.msra.mxu0 %v8433
    %8992 = vmatprep.subr.bf16.mxu0 0
    %8993 = vmatpush1.bf16.msra.mxu0 %v8434
    %8994 = vmatprep.subr.bf16.mxu0 0
    %8995 = vmatpush1.bf16.msra.mxu0 %v8435
    %8996 = vmatprep.subr.bf16.mxu0 0
    %8997 = vmatpush1.bf16.msra.mxu0 %v8436
    %8998 = vmatprep.subr.bf16.mxu0 0
    %8999 = vmatpush1.bf16.msra.mxu0 %v8437
    %9000 = vmatprep.subr.bf16.mxu0 0
    %9001 = vmatpush1.bf16.msra.mxu0 %v8438
    %9002 = vmatprep.subr.bf16.mxu0 0
    %9003 = vmatpush1.bf16.msra.mxu0 %v8439
    %9004 = vmatprep.subr.bf16.mxu0 0
    %9005 = vmatpush1.bf16.msra.mxu0 %v8440
    %9006 = vmatprep.subr.bf16.mxu0 0
    %9007 = vmatpush1.bf16.msra.mxu0 %v8441
    %9008 = vmatprep.subr.bf16.mxu0 0
    %9009 = vmatpush1.bf16.msra.mxu0 %v8442
    %9010 = vmatprep.subr.bf16.mxu0 0
    %9011 = vmatpush1.bf16.msra.mxu0 %v8443
    %9012 = vmatprep.subr.bf16.mxu0 0
    %9013 = vmatpush1.bf16.msra.mxu0 %v8444
    %9014 = vmatprep.subr.bf16.mxu0 0
    %9015 = vmatpush1.bf16.msra.mxu0 %v8445
    %9016 = vmatprep.subr.bf16.mxu0 0
    %9017 = vmatpush1.bf16.msra.mxu0 %v8446
    %9018 = vmatprep.subr.bf16.mxu0 0
    %9019 = vmatpush1.bf16.msra.mxu0 %v8447
    %9020 = vmatprep.mubr.bf16.mxu0 %v8699
    %9021 = vmatmul.mubr.bf16.gmra.mrb[0].mxu0 %v8685
    %v9022 = vpop.f32.mrb[0].mxu0
    %v9023 = vadd.f32 %v8983, %v9022
    %v9024 = vpop.f32.mrb[0].mxu0
    %v9025 = vpop.f32.mrb[0].mxu0
    %v9026 = vpop.f32.mrb[0].mxu0
    %9027 = vdwg.mxu0
    %9028 = vmatprep.subr.bf16.mxu0 0
    %9029 = vmatpush1.bf16.msra.mxu0 %v8448
    %9030 = vmatprep.subr.bf16.mxu0 0
    %9031 = vmatpush1.bf16.msra.mxu0 %v8449
    %9032 = vmatprep.subr.bf16.mxu0 0
    %9033 = vmatpush1.bf16.msra.mxu0 %v8450
    %9034 = vmatprep.subr.bf16.mxu0 0
    %9035 = vmatpush1.bf16.msra.mxu0 %v8451
    %9036 = vmatprep.subr.bf16.mxu0 0
    %9037 = vmatpush1.bf16.msra.mxu0 %v8452
    %9038 = vmatprep.subr.bf16.mxu0 0
    %9039 = vmatpush1.bf16.msra.mxu0 %v8453
    %9040 = vmatprep.subr.bf16.mxu0 0
    %9041 = vmatpush1.bf16.msra.mxu0 %v8454
    %9042 = vmatprep.subr.bf16.mxu0 0
    %9043 = vmatpush1.bf16.msra.mxu0 %v8455
    %9044 = vmatprep.subr.bf16.mxu0 0
    %9045 = vmatpush1.bf16.msra.mxu0 %v8456
    %9046 = vmatprep.subr.bf16.mxu0 0
    %9047 = vmatpush1.bf16.msra.mxu0 %v8457
    %9048 = vmatprep.subr.bf16.mxu0 0
    %9049 = vmatpush1.bf16.msra.mxu0 %v8458
    %9050 = vmatprep.subr.bf16.mxu0 0
    %9051 = vmatpush1.bf16.msra.mxu0 %v8459
    %9052 = vmatprep.subr.bf16.mxu0 0
    %9053 = vmatpush1.bf16.msra.mxu0 %v8460
    %9054 = vmatprep.subr.bf16.mxu0 0
    %9055 = vmatpush1.bf16.msra.mxu0 %v8461
    %9056 = vmatprep.subr.bf16.mxu0 0
    %9057 = vmatpush1.bf16.msra.mxu0 %v8462
    %9058 = vmatprep.subr.bf16.mxu0 0
    %9059 = vmatpush1.bf16.msra.mxu0 %v8463
    %9060 = vmatprep.mubr.bf16.mxu0 %v8709
    %9061 = vmatmul.mubr.bf16.gmra.mrb[0].mxu0 %v8707
    %v9062 = vpop.f32.mrb[0].mxu0
    %v9063 = vadd.f32 %v9023, %v9062
    %v9064 = vpop.f32.mrb[0].mxu0
    %v9065 = vpop.f32.mrb[0].mxu0
    %v9066 = vpop.f32.mrb[0].mxu0
    %9067 = vdwg.mxu0
    %9068 = vmatprep.subr.bf16.mxu0 0
    %9069 = vmatpush1.bf16.msra.mxu0 %v8464
    %9070 = vmatprep.subr.bf16.mxu0 0
    %9071 = vmatpush1.bf16.msra.mxu0 %v8465
    %9072 = vmatprep.subr.bf16.mxu0 0
    %9073 = vmatpush1.bf16.msra.mxu0 %v8466
    %9074 = vmatprep.subr.bf16.mxu0 0
    %9075 = vmatpush1.bf16.msra.mxu0 %v8467
    %9076 = vmatprep.subr.bf16.mxu0 0
    %9077 = vmatpush1.bf16.msra.mxu0 %v8468
    %9078 = vmatprep.subr.bf16.mxu0 0
    %9079 = vmatpush1.bf16.msra.mxu0 %v8469
    %9080 = vmatprep.subr.bf16.mxu0 0
    %9081 = vmatpush1.bf16.msra.mxu0 %v8470
    %9082 = vmatprep.subr.bf16.mxu0 0
    %9083 = vmatpush1.bf16.msra.mxu0 %v8471
    %9084 = vmatprep.subr.bf16.mxu0 0
    %9085 = vmatpush1.bf16.msra.mxu0 %v8472
    %9086 = vmatprep.subr.bf16.mxu0 0
    %9087 = vmatpush1.bf16.msra.mxu0 %v8473
    %9088 = vmatprep.subr.bf16.mxu0 0
    %9089 = vmatpush1.bf16.msra.mxu0 %v8474
    %9090 = vmatprep.subr.bf16.mxu0 0
    %9091 = vmatpush1.bf16.msra.mxu0 %v8475
    %9092 = vmatprep.subr.bf16.mxu0 0
    %9093 = vmatpush1.bf16.msra.mxu0 %v8476
    %9094 = vmatprep.subr.bf16.mxu0 0
    %9095 = vmatpush1.bf16.msra.mxu0 %v8477
    %9096 = vmatprep.subr.bf16.mxu0 0
    %9097 = vmatpush1.bf16.msra.mxu0 %v8478
    %9098 = vmatprep.subr.bf16.mxu0 0
    %9099 = vmatpush1.bf16.msra.mxu0 %v8479
    %9100 = vmatprep.mubr.bf16.mxu0 %v8706
    %9101 = vmatmul.mubr.bf16.gmra.mrb[0].mxu0 %v8692
    %v9102 = vpop.f32.mrb[0].mxu0
    %v9103 = vadd.f32 %v9063, %v9102
    %v9104 = vpop.f32.mrb[0].mxu0
    %v9105 = vpop.f32.mrb[0].mxu0
    %v9106 = vpop.f32.mrb[0].mxu0
    %9107 = vdwg.mxu0
    %9108 = vmatprep.subr.bf16.mxu0 0
    %9109 = vmatpush1.bf16.msra.mxu0 %v8480
    %9110 = vmatprep.subr.bf16.mxu0 0
    %9111 = vmatpush1.bf16.msra.mxu0 %v8481
    %9112 = vmatprep.subr.bf16.mxu0 0
    %9113 = vmatpush1.bf16.msra.mxu0 %v8482
    %9114 = vmatprep.subr.bf16.mxu0 0
    %9115 = vmatpush1.bf16.msra.mxu0 %v8483
    %9116 = vmatprep.subr.bf16.mxu0 0
    %9117 = vmatpush1.bf16.msra.mxu0 %v8484
    %9118 = vmatprep.subr.bf16.mxu0 0
    %9119 = vmatpush1.bf16.msra.mxu0 %v8485
    %9120 = vmatprep.subr.bf16.mxu0 0
    %9121 = vmatpush1.bf16.msra.mxu0 %v8486
    %9122 = vmatprep.subr.bf16.mxu0 0
    %9123 = vmatpush1.bf16.msra.mxu0 %v8487
    %9124 = vmatprep.subr.bf16.mxu0 0
    %9125 = vmatpush1.bf16.msra.mxu0 %v8488
    %9126 = vmatprep.subr.bf16.mxu0 0
    %9127 = vmatpush1.bf16.msra.mxu0 %v8489
    %9128 = vmatprep.subr.bf16.mxu0 0
    %9129 = vmatpush1.bf16.msra.mxu0 %v8490
    %9130 = vmatprep.subr.bf16.mxu0 0
    %9131 = vmatpush1.bf16.msra.mxu0 %v8491
    %9132 = vmatprep.subr.bf16.mxu0 0
    %9133 = vmatpush1.bf16.msra.mxu0 %v8492
    %9134 = vmatprep.subr.bf16.mxu0 0
    %9135 = vmatpush1.bf16.msra.mxu0 %v8493
    %9136 = vmatprep.subr.bf16.mxu0 0
    %9137 = vmatpush1.bf16.msra.mxu0 %v8494
    %9138 = vmatprep.subr.bf16.mxu0 0
    %9139 = vmatpush1.bf16.msra.mxu0 %v8495
    %9140 = vmatprep.mubr.bf16.mxu0 %v8710
    %9141 = vmatmul.mubr.bf16.gmra.mrb[0].mxu0 %v8708
    %v9142 = vpop.f32.mrb[0].mxu0
    %v9143 = vadd.f32 %v9103, %v9142
    %v9144 = vpop.f32.mrb[0].mxu0
    %v9145 = vpop.f32.mrb[0].mxu0
    %v9146 = vpop.f32.mrb[0].mxu0
    %9147 = vdwg.mxu0
    %9148 = vmatprep.subr.bf16.mxu0 0
    %9149 = vmatpush1.bf16.msra.mxu0 %v8496
    %9150 = vmatprep.subr.bf16.mxu0 0
    %9151 = vmatpush1.bf16.msra.mxu0 %v8497
    %9152 = vmatprep.subr.bf16.mxu0 0
    %9153 = vmatpush1.bf16.msra.mxu0 %v8498
    %9154 = vmatprep.subr.bf16.mxu0 0
    %9155 = vmatpush1.bf16.msra.mxu0 %v8499
    %9156 = vmatprep.subr.bf16.mxu0 0
    %9157 = vmatpush1.bf16.msra.mxu0 %v8500
    %9158 = vmatprep.subr.bf16.mxu0 0
    %9159 = vmatpush1.bf16.msra.mxu0 %v8501
    %9160 = vmatprep.subr.bf16.mxu0 0
    %9161 = vmatpush1.bf16.msra.mxu0 %v8502
    %9162 = vmatprep.subr.bf16.mxu0 0
    %9163 = vmatpush1.bf16.msra.mxu0 %v8503
    %9164 = vmatprep.subr.bf16.mxu0 0
    %9165 = vmatpush1.bf16.msra.mxu0 %v8504
    %9166 = vmatprep.subr.bf16.mxu0 0
    %9167 = vmatpush1.bf16.msra.mxu0 %v8505
    %9168 = vmatprep.subr.bf16.mxu0 0
    %9169 = vmatpush1.bf16.msra.mxu0 %v8506
    %9170 = vmatprep.subr.bf16.mxu0 0
    %9171 = vmatpush1.bf16.msra.mxu0 %v8507
    %9172 = vmatprep.subr.bf16.mxu0 0
    %9173 = vmatpush1.bf16.msra.mxu0 %v8508
    %9174 = vmatprep.subr.bf16.mxu0 0
    %9175 = vmatpush1.bf16.msra.mxu0 %v8509
    %9176 = vmatprep.subr.bf16.mxu0 0
    %9177 = vmatpush1.bf16.msra.mxu0 %v8510
    %9178 = vmatprep.subr.bf16.mxu0 0
    %9179 = vmatpush1.bf16.msra.mxu0 %v8511
    %9180 = vmatprep.mubr.bf16.mxu0 %v8767
    %9181 = vmatmul.mubr.bf16.gmra.mrb[0].mxu0 %v8753
    %v9182 = vpop.f32.mrb[0].mxu0
    %v9183 = vadd.f32 %v9143, %v9182
    %v9184 = vpop.f32.mrb[0].mxu0
    %v9185 = vpop.f32.mrb[0].mxu0
    %v9186 = vpop.f32.mrb[0].mxu0
    %9187 = vdwg.mxu0
    %9188 = vmatprep.subr.bf16.mxu0 0
    %9189 = vmatpush1.bf16.msra.mxu0 %v8512
    %9190 = vmatprep.subr.bf16.mxu0 0
    %9191 = vmatpush1.bf16.msra.mxu0 %v8513
    %9192 = vmatprep.subr.bf16.mxu0 0
    %9193 = vmatpush1.bf16.msra.mxu0 %v8514
    %9194 = vmatprep.subr.bf16.mxu0 0
    %9195 = vmatpush1.bf16.msra.mxu0 %v8515
    %9196 = vmatprep.subr.bf16.mxu0 0
    %9197 = vmatpush1.bf16.msra.mxu0 %v8516
    %9198 = vmatprep.subr.bf16.mxu0 0
    %9199 = vmatpush1.bf16.msra.mxu0 %v8517
    %9200 = vmatprep.subr.bf16.mxu0 0
    %9201 = vmatpush1.bf16.msra.mxu0 %v8518
    %9202 = vmatprep.subr.bf16.mxu0 0
    %9203 = vmatpush1.bf16.msra.mxu0 %v8519
    %9204 = vmatprep.subr.bf16.mxu0 0
    %9205 = vmatpush1.bf16.msra.mxu0 %v8520
    %9206 = vmatprep.subr.bf16.mxu0 0
    %9207 = vmatpush1.bf16.msra.mxu0 %v8521
    %9208 = vmatprep.subr.bf16.mxu0 0
    %9209 = vmatpush1.bf16.msra.mxu0 %v8522
    %9210 = vmatprep.subr.bf16.mxu0 0
    %9211 = vmatpush1.bf16.msra.mxu0 %v8523
    %9212 = vmatprep.subr.bf16.mxu0 0
    %9213 = vmatpush1.bf16.msra.mxu0 %v8524
    %9214 = vmatprep.subr.bf16.mxu0 0
    %9215 = vmatpush1.bf16.msra.mxu0 %v8525
    %9216 = vmatprep.subr.bf16.mxu0 0
    %9217 = vmatpush1.bf16.msra.mxu0 %v8526
    %9218 = vmatprep.subr.bf16.mxu0 0
    %9219 = vmatpush1.bf16.msra.mxu0 %v8527
    %9220 = vmatprep.mubr.bf16.mxu0 %v8777
    %9221 = vmatmul.mubr.bf16.gmra.mrb[0].mxu0 %v8775
    %v9222 = vpop.f32.mrb[0].mxu0
    %v9223 = vadd.f32 %v9183, %v9222
    %v9224 = vpop.f32.mrb[0].mxu0
    %v9225 = vpop.f32.mrb[0].mxu0
    %v9226 = vpop.f32.mrb[0].mxu0
    %9227 = vdwg.mxu0
    %9228 = vmatprep.subr.bf16.mxu0 0
    %9229 = vmatpush1.bf16.msra.mxu0 %v8528
    %9230 = vmatprep.subr.bf16.mxu0 0
    %9231 = vmatpush1.bf16.msra.mxu0 %v8529
    %9232 = vmatprep.subr.bf16.mxu0 0
    %9233 = vmatpush1.bf16.msra.mxu0 %v8530
    %9234 = vmatprep.subr.bf16.mxu0 0
    %9235 = vmatpush1.bf16.msra.mxu0 %v8531
    %9236 = vmatprep.subr.bf16.mxu0 0
    %9237 = vmatpush1.bf16.msra.mxu0 %v8532
    %9238 = vmatprep.subr.bf16.mxu0 0
    %9239 = vmatpush1.bf16.msra.mxu0 %v8533
    %9240 = vmatprep.subr.bf16.mxu0 0
    %9241 = vmatpush1.bf16.msra.mxu0 %v8534
    %9242 = vmatprep.subr.bf16.mxu0 0
    %9243 = vmatpush1.bf16.msra.mxu0 %v8535
    %9244 = vmatprep.subr.bf16.mxu0 0
    %9245 = vmatpush1.bf16.msra.mxu0 %v8536
    %9246 = vmatprep.subr.bf16.mxu0 0
    %9247 = vmatpush1.bf16.msra.mxu0 %v8537
    %9248 = vmatprep.subr.bf16.mxu0 0
    %9249 = vmatpush1.bf16.msra.mxu0 %v8538
    %9250 = vmatprep.subr.bf16.mxu0 0
    %9251 = vmatpush1.bf16.msra.mxu0 %v8539
    %9252 = vmatprep.subr.bf16.mxu0 0
    %9253 = vmatpush1.bf16.msra.mxu0 %v8540
    %9254 = vmatprep.subr.bf16.mxu0 0
    %9255 = vmatpush1.bf16.msra.mxu0 %v8541
    %9256 = vmatprep.subr.bf16.mxu0 0
    %9257 = vmatpush1.bf16.msra.mxu0 %v8542
    %9258 = vmatprep.subr.bf16.mxu0 0
    %9259 = vmatpush1.bf16.msra.mxu0 %v8543
    %9260 = vmatprep.mubr.bf16.mxu0 %v8774
    %9261 = vmatmul.mubr.bf16.gmra.mrb[0].mxu0 %v8760
    %v9262 = vpop.f32.mrb[0].mxu0
    %v9263 = vadd.f32 %v9223, %v9262
    %v9264 = vpop.f32.mrb[0].mxu0
    %v9265 = vpop.f32.mrb[0].mxu0
    %v9266 = vpop.f32.mrb[0].mxu0
    %9267 = vdwg.mxu0
    %9268 = vmatprep.subr.bf16.mxu0 0
    %9269 = vmatpush1.bf16.msra.mxu0 %v8544
    %9270 = vmatprep.subr.bf16.mxu0 0
    %9271 = vmatpush1.bf16.msra.mxu0 %v8545
    %9272 = vmatprep.subr.bf16.mxu0 0
    %9273 = vmatpush1.bf16.msra.mxu0 %v8546
    %9274 = vmatprep.subr.bf16.mxu0 0
    %9275 = vmatpush1.bf16.msra.mxu0 %v8547
    %9276 = vmatprep.subr.bf16.mxu0 0
    %9277 = vmatpush1.bf16.msra.mxu0 %v8548
    %9278 = vmatprep.subr.bf16.mxu0 0
    %9279 = vmatpush1.bf16.msra.mxu0 %v8549
    %9280 = vmatprep.subr.bf16.mxu0 0
    %9281 = vmatpush1.bf16.msra.mxu0 %v8550
    %9282 = vmatprep.subr.bf16.mxu0 0
    %9283 = vmatpush1.bf16.msra.mxu0 %v8551
    %9284 = vmatprep.subr.bf16.mxu0 0
    %9285 = vmatpush1.bf16.msra.mxu0 %v8552
    %9286 = vmatprep.subr.bf16.mxu0 0
    %9287 = vmatpush1.bf16.msra.mxu0 %v8553
    %9288 = vmatprep.subr.bf16.mxu0 0
    %9289 = vmatpush1.bf16.msra.mxu0 %v8554
    %9290 = vmatprep.subr.bf16.mxu0 0
    %9291 = vmatpush1.bf16.msra.mxu0 %v8555
    %9292 = vmatprep.subr.bf16.mxu0 0
    %9293 = vmatpush1.bf16.msra.mxu0 %v8556
    %9294 = vmatprep.subr.bf16.mxu0 0
    %9295 = vmatpush1.bf16.msra.mxu0 %v8557
    %9296 = vmatprep.subr.bf16.mxu0 0
    %9297 = vmatpush1.bf16.msra.mxu0 %v8558
    %9298 = vmatprep.subr.bf16.mxu0 0
    %9299 = vmatpush1.bf16.msra.mxu0 %v8559
    %9300 = vmatprep.mubr.bf16.mxu0 %v8778
    %9301 = vmatmul.mubr.bf16.gmra.mrb[0].mxu0 %v8776
    %v9302 = vpop.f32.mrb[0].mxu0
    %v9303 = vadd.f32 %v9263, %v9302
    %v9304 = vpop.f32.mrb[0].mxu0
    %v9305 = vpop.f32.mrb[0].mxu0
    %v9306 = vpop.f32.mrb[0].mxu0
    %9307 = vdwg.mxu0
    %9308 = vmatprep.subr.bf16.mxu0 0
    %9309 = vmatpush1.bf16.msra.mxu0 %v8560
    %9310 = vmatprep.subr.bf16.mxu0 0
    %9311 = vmatpush1.bf16.msra.mxu0 %v8561
    %9312 = vmatprep.subr.bf16.mxu0 0
    %9313 = vmatpush1.bf16.msra.mxu0 %v8562
    %9314 = vmatprep.subr.bf16.mxu0 0
    %9315 = vmatpush1.bf16.msra.mxu0 %v8563
    %9316 = vmatprep.subr.bf16.mxu0 0
    %9317 = vmatpush1.bf16.msra.mxu0 %v8564
    %9318 = vmatprep.subr.bf16.mxu0 0
    %9319 = vmatpush1.bf16.msra.mxu0 %v8565
    %9320 = vmatprep.subr.bf16.mxu0 0
    %9321 = vmatpush1.bf16.msra.mxu0 %v8566
    %9322 = vmatprep.subr.bf16.mxu0 0
    %9323 = vmatpush1.bf16.msra.mxu0 %v8567
    %9324 = vmatprep.subr.bf16.mxu0 0
    %9325 = vmatpush1.bf16.msra.mxu0 0
    %9326 = vmatprep.subr.bf16.mxu0 0
    %9327 = vmatpush1.bf16.msra.mxu0 0
    %9328 = vmatprep.subr.bf16.mxu0 0
    %9329 = vmatpush1.bf16.msra.mxu0 0
    %9330 = vmatprep.subr.bf16.mxu0 0
    %9331 = vmatpush1.bf16.msra.mxu0 0
    %9332 = vmatprep.subr.bf16.mxu0 0
    %9333 = vmatpush1.bf16.msra.mxu0 0
    %9334 = vmatprep.subr.bf16.mxu0 0
    %9335 = vmatpush1.bf16.msra.mxu0 0
    %9336 = vmatprep.subr.bf16.mxu0 0
    %9337 = vmatpush1.bf16.msra.mxu0 0
    %9338 = vmatprep.subr.bf16.mxu0 0
    %9339 = vmatpush1.bf16.msra.mxu0 0
    %9340 = vmatprep.mubr.bf16.mxu0 0
    %9341 = vmatmul.mubr.bf16.gmra.mrb[0].mxu0 %v8802
    %v9342 = vpop.f32.mrb[0].mxu0
    %v9343 = vadd.f32 %v9303, %v9342
    %v9344 = vpop.f32.mrb[0].mxu0
    %v9345 = vpop.f32.mrb[0].mxu0
    %v9346 = vpop.f32.mrb[0].mxu0
    %9347 = vdwg.mxu0
    %v9348 = vmax.f32 %v9343, 0.0
    %v9349 = vpack.c.bf16 %v9348, %v9348
    %v9352 = vunpack.c.l.s4 1983009808
    %v9353 = vunpack.c.0.s8 %v9352
    %v9354 = vlaneseq
    %v9355 = vshrl.u32 %v9354, 7
    %v9356 = vsub.s32 %v9353, %v9355
    %v9357 = vrot.slane %v9349, %v9356
    %v9358 = vcombine.high %v9357, %v9357
    %v9360 = vunpack.c.l.s4 1983009808
    %v9361 = vunpack.c.0.s8 %v9360
    %v9362 = vlaneseq
    %v9363 = vshrl.u32 %v9362, 7
    %v9364 = vsub.s32 %v9361, %v9363
    %v9365 = vrot.slane %v9357, %v9364
    %v9367 = vunpack.c.l.s4 1983009808
    %v9368 = vunpack.c.0.s8 %v9367
    %v9369 = vlaneseq
    %v9370 = vshrl.u32 %v9369, 7
    %v9371 = vsub.s32 %v9368, %v9370
    %v9372 = vrot.slane %v9358, %v9371
    %v9373 = vunpack.c.l.b16 %v9365
    %v9374 = vunpack.c.l.b16 %v9372
    %v9375 = vrot.slane %v9374, 7
    %vm9376 = vcmask 1041409
    %v9377 = vsel %vm9376, %v9375, %v9373
    %v9378 = vpack.c.b16 %v9377, %v9377
    %v9380 = vrot.slane %v9373, 1
    %v9381 = vsel %vm9376, %v9374, %v9380
    %v9382 = vpack.c.b16 %v9381, %v9381
    %v9384 = vrot.slane %v9373, 2
    %v9385 = vrot.slane %v9374, 1
    %v9386 = vsel %vm9376, %v9385, %v9384
    %v9387 = vpack.c.b16 %v9386, %v9386
    %v9389 = vrot.slane %v9373, 3
    %v9390 = vrot.slane %v9374, 2
    %v9391 = vsel %vm9376, %v9390, %v9389
    %v9392 = vpack.c.b16 %v9391, %v9391
    %s9394 = smul.u32 4, 64
    %s9395 = smul.u32 %s9394, 1
    %s9396 = sshll.u32 %s9395, 4
    %9397 = dma.done %s470, %s9396
    %v9398 = vld [vmem:[#allocation3] sm:$0xff]
    %v9399 = vld [vmem:[#allocation3 + $0x8] sm:$0xff]
    %v9400 = vld [vmem:[#allocation3 + $0x10] sm:$0xff]
    %v9401 = vld [vmem:[#allocation3 + $0x18] sm:$0xff]
    %v9402 = vld [vmem:[#allocation3 + $0x20] sm:$0xff]
    %v9403 = vld [vmem:[#allocation3 + $0x28] sm:$0xff]
    %v9404 = vld [vmem:[#allocation3 + $0x30] sm:$0xff]
    %v9405 = vld [vmem:[#allocation3 + $0x38] sm:$0xff]
    %v9406 = vld [vmem:[#allocation3 + $0x40] sm:$0xff]
    %v9407 = vld [vmem:[#allocation3 + $0x48] sm:$0xff]
    %v9408 = vld [vmem:[#allocation3 + $0x50] sm:$0xff]
    %v9409 = vld [vmem:[#allocation3 + $0x58] sm:$0xff]
    %v9410 = vld [vmem:[#allocation3 + $0x60] sm:$0xff]
    %v9411 = vld [vmem:[#allocation3 + $0x68] sm:$0xff]
    %v9412 = vld [vmem:[#allocation3 + $0x70] sm:$0xff]
    %v9413 = vld [vmem:[#allocation3 + $0x78] sm:$0xff]
    %v9414 = vld [vmem:[#allocation3 + $0x80] sm:$0xff]
    %v9415 = vld [vmem:[#allocation3 + $0x88] sm:$0xff]
    %v9416 = vld [vmem:[#allocation3 + $0x90] sm:$0xff]
    %v9417 = vld [vmem:[#allocation3 + $0x98] sm:$0xff]
    %v9418 = vld [vmem:[#allocation3 + $0xa0] sm:$0xff]
    %v9419 = vld [vmem:[#allocation3 + $0xa8] sm:$0xff]
    %v9420 = vld [vmem:[#allocation3 + $0xb0] sm:$0xff]
    %v9421 = vld [vmem:[#allocation3 + $0xb8] sm:$0xff]
    %v9422 = vld [vmem:[#allocation3 + $0xc0] sm:$0xff]
    %v9423 = vld [vmem:[#allocation3 + $0xc8] sm:$0xff]
    %v9424 = vld [vmem:[#allocation3 + $0xd0] sm:$0xff]
    %v9425 = vld [vmem:[#allocation3 + $0xd8] sm:$0xff]
    %v9426 = vld [vmem:[#allocation3 + $0xe0] sm:$0xff]
    %v9427 = vld [vmem:[#allocation3 + $0xe8] sm:$0xff]
    %v9428 = vld [vmem:[#allocation3 + $0xf0] sm:$0xff]
    %v9429 = vld [vmem:[#allocation3 + $0xf8] sm:$0xff]
    %v9430 = vld [vmem:[%s8] sm:$0x1]
    %v9432 = vlaneseq
    %v9433 = vshrl.u32 %v9432, 7
    %v9434 = vsub.s32 0, %v9433
    %v9435 = vrot.slane %v9430, %v9434
    %9437 = vmatprep.subr.bf16.mxu0 0
    %9438 = vmatpush1.bf16.msra.mxu0 %v9398
    %9439 = vmatprep.subr.bf16.mxu0 0
    %9440 = vmatpush1.bf16.msra.mxu0 %v9399
    %9441 = vmatprep.subr.bf16.mxu0 0
    %9442 = vmatpush1.bf16.msra.mxu0 %v9400
    %9443 = vmatprep.subr.bf16.mxu0 0
    %9444 = vmatpush1.bf16.msra.mxu0 %v9401
    %9445 = vmatprep.subr.bf16.mxu0 0
    %9446 = vmatpush1.bf16.msra.mxu0 %v9402
    %9447 = vmatprep.subr.bf16.mxu0 0
    %9448 = vmatpush1.bf16.msra.mxu0 %v9403
    %9449 = vmatprep.subr.bf16.mxu0 0
    %9450 = vmatpush1.bf16.msra.mxu0 %v9404
    %9451 = vmatprep.subr.bf16.mxu0 0
    %9452 = vmatpush1.bf16.msra.mxu0 %v9405
    %9453 = vmatprep.subr.bf16.mxu0 0
    %9454 = vmatpush1.bf16.msra.mxu0 %v9406
    %9455 = vmatprep.subr.bf16.mxu0 0
    %9456 = vmatpush1.bf16.msra.mxu0 %v9407
    %9457 = vmatprep.subr.bf16.mxu0 0
    %9458 = vmatpush1.bf16.msra.mxu0 %v9408
    %9459 = vmatprep.subr.bf16.mxu0 0
    %9460 = vmatpush1.bf16.msra.mxu0 %v9409
    %9461 = vmatprep.subr.bf16.mxu0 0
    %9462 = vmatpush1.bf16.msra.mxu0 %v9410
    %9463 = vmatprep.subr.bf16.mxu0 0
    %9464 = vmatpush1.bf16.msra.mxu0 %v9411
    %9465 = vmatprep.subr.bf16.mxu0 0
    %9466 = vmatpush1.bf16.msra.mxu0 %v9412
    %9467 = vmatprep.subr.bf16.mxu0 0
    %9468 = vmatpush1.bf16.msra.mxu0 %v9413
    %9469 = vmatprep.mubr.bf16.mxu0 %v9382
    %9470 = vmatmul.mubr.bf16.gmra.mrb[0].mxu0 %v9378
    %v9471 = vpop.f32.mrb[0].mxu0
    %v9472 = vadd.f32 %v9435, %v9471
    %v9473 = vpop.f32.mrb[0].mxu0
    %v9474 = vpop.f32.mrb[0].mxu0
    %v9475 = vpop.f32.mrb[0].mxu0
    %9476 = vdwg.mxu0
    %9477 = vmatprep.subr.bf16.mxu0 0
    %9478 = vmatpush1.bf16.msra.mxu0 %v9414
    %9479 = vmatprep.subr.bf16.mxu0 0
    %9480 = vmatpush1.bf16.msra.mxu0 %v9415
    %9481 = vmatprep.subr.bf16.mxu0 0
    %9482 = vmatpush1.bf16.msra.mxu0 %v9416
    %9483 = vmatprep.subr.bf16.mxu0 0
    %9484 = vmatpush1.bf16.msra.mxu0 %v9417
    %9485 = vmatprep.subr.bf16.mxu0 0
    %9486 = vmatpush1.bf16.msra.mxu0 %v9418
    %9487 = vmatprep.subr.bf16.mxu0 0
    %9488 = vmatpush1.bf16.msra.mxu0 %v9419
    %9489 = vmatprep.subr.bf16.mxu0 0
    %9490 = vmatpush1.bf16.msra.mxu0 %v9420
    %9491 = vmatprep.subr.bf16.mxu0 0
    %9492 = vmatpush1.bf16.msra.mxu0 %v9421
    %9493 = vmatprep.subr.bf16.mxu0 0
    %9494 = vmatpush1.bf16.msra.mxu0 %v9422
    %9495 = vmatprep.subr.bf16.mxu0 0
    %9496 = vmatpush1.bf16.msra.mxu0 %v9423
    %9497 = vmatprep.subr.bf16.mxu0 0
    %9498 = vmatpush1.bf16.msra.mxu0 %v9424
    %9499 = vmatprep.subr.bf16.mxu0 0
    %9500 = vmatpush1.bf16.msra.mxu0 %v9425
    %9501 = vmatprep.subr.bf16.mxu0 0
    %9502 = vmatpush1.bf16.msra.mxu0 %v9426
    %9503 = vmatprep.subr.bf16.mxu0 0
    %9504 = vmatpush1.bf16.msra.mxu0 %v9427
    %9505 = vmatprep.subr.bf16.mxu0 0
    %9506 = vmatpush1.bf16.msra.mxu0 %v9428
    %9507 = vmatprep.subr.bf16.mxu0 0
    %9508 = vmatpush1.bf16.msra.mxu0 %v9429
    %9509 = vmatprep.mubr.bf16.mxu0 %v9392
    %9510 = vmatmul.mubr.bf16.gmra.mrb[0].mxu0 %v9387
    %v9511 = vpop.f32.mrb[0].mxu0
    %v9512 = vadd.f32 %v9472, %v9511
    %v9513 = vpop.f32.mrb[0].mxu0
    %v9514 = vpop.f32.mrb[0].mxu0
    %v9515 = vpop.f32.mrb[0].mxu0
    %9516 = vdwg.mxu0
    %v9517 = vmax.f32 %v9512, 0.0
    %v9518 = vlaneseq
    %v9519 = vand.u32 %v9518, 127
    %vm9520 = vcmp.lt.s32.totalorder %v9519, 18
    %v9521 = vsel %vm9520, %v9517, -1e+30
    %vm9522 = vcmask 1041408
    %v9523 = vsel %vm9522, %v9521, -inf
    %9524 = vmax.xlane.f32.xlu0 %v9523
    %v9525 = vpop.xlane.xlu0 %9524
    %v9526 = vsub.f32 %v9521, %v9525
    %v9527 = vmul.f32 %v9526, 1.442695
    %v9528 = vpow.pop %v9527
    %v9529 = vsel %vm9522, %v9528, 0.0
    %9530 = vadd.xlane.f32.xlu0 %v9529
    %v9531 = vpop.xlane.xlu0 %9530
    %v9532 = vrcp.pop %v9531
    %v9533 = vmul.f32 %v9528, %v9532
    %9534 = vst [vmem:[#allocation5] sm:$0x3] %v9533
    // Predicated region
    $region98: #{net_forward.1} parent=1 // pred_check
      _
    $region99: #{net_forward.1} parent=1 // pred_check_branch
      %9536 = sbr.rel (0) target = $region101
    $region100: #{net_forward.1} parent=1 // pred_region
      %s9538 = ssub.s32 32, 32
      %9539 = vsyncadd [#allocation6], %s9538
      %s9541 = sshll.u32 [#allocation5], 4
      %s9542 = int_to_ptr.vmem [resolvable:$true] %s9541
      %9544 = dma.vmem_to_hbm [thread:$0]  %s9542, 32, %s9, [#allocation6]
    $region101: #{net_forward.1} parent=1 // pred_fallthru
      _
    // Predicated region
    $region102: #{net_forward.1} parent=1 // pred_check
      _
    $region103: #{net_forward.1} parent=1 // pred_check_branch
      %9546 = sbr.rel (0) target = $region105
    $region104: #{net_forward.1} parent=1 // pred_region
      %9547 = dma.done [#allocation6], 32
    $region105: #{net_forward.1} parent=1 // pred_fallthru
      _
    %9548 = vsyncpa [#allocation6], 1
  %9549 = vsyncmov [#allocation4]
  %s9550 = vpop.sfrf %9549
  %p9551 = scmp.eq.s32.totalorder %s9550, 0
  %p9552 = pneg %p9551
  %9554 = shalt.err (%p9552)
  %s9555 = scalar_lea.sflag [#allocation4], 1
  %9556 = vsyncmov %s9555
  %s9557 = vpop.sfrf %9556
  %p9558 = scmp.eq.s32.totalorder %s9557, 0
  %p9559 = pneg %p9558
  %9561 = shalt.err (%p9559)

</llo_original>
